<compile_context>
chip_gen: v7x
topology: tpu7x:2x2x1
jax: 0.10.0
libtpu: 0.0.40
codegen_flags: <defaults>
</compile_context>

<pallas_src>
import jax
import jax.numpy as jnp
from jax import lax
from jax.experimental import pallas as pl
from jax.experimental.pallas import tpu as pltpu


# ----------------------------------------------------------------------------
# Pallas kernels
# ----------------------------------------------------------------------------
def _conv_pool_kernel(p00_ref, p01_ref, p10_ref, p11_ref,
                      w_ref, b_ref, s_ref, t_ref, o_ref):
    """Fused conv(+bias) -> ReLU -> BN(eval) -> 2x2 max-pool for one image.

    p??_ref : (K, M)  bf16  im2col patches, one per 2x2 pool-window quadrant
    w_ref   : (Co, K) bf16  conv weights
    b/s/t   : (Co, 1) f32   conv bias / folded-BN scale / folded-BN shift
    o_ref   : (Co, M) f32   pooled output (M = pooled H*W, lane-dense)
    """
    w = w_ref[...]
    b = b_ref[...]
    s = s_ref[...]
    t = t_ref[...]

    def branch(p_ref):
        z = jnp.dot(w, p_ref[...], preferred_element_type=jnp.float32)
        a = jnp.maximum(z + b, 0.0)          # conv bias + ReLU (f32)
        return a * s + t                     # BatchNorm, eval stats (f32)

    o_ref[...] = jnp.maximum(
        jnp.maximum(branch(p00_ref), branch(p01_ref)),
        jnp.maximum(branch(p10_ref), branch(p11_ref)))


def _mlp_kernel(x_ref, w1_ref, b1_ref, w2_ref, b2_ref, o_ref):
    h = jnp.dot(x_ref[...], w1_ref[...], preferred_element_type=jnp.float32)
    h = h + b1_ref[...]
    y = jnp.dot(h, w2_ref[...], preferred_element_type=jnp.float32)
    o_ref[...] = y + b2_ref[...]


# ----------------------------------------------------------------------------
# Wrappers / glue
# ----------------------------------------------------------------------------
def _quadrant_patches(x_nchw, k, pad):
    """Four im2col matrices (N, Cin*k*k, (H//2)*(W//2)), one per pool quadrant.

    Row order ci*k*k + kh*k + kw matches torch conv_w.reshape(Co, Cin*k*k).
    """
    N, C, H, W = x_nchw.shape
    HP, WP = H // 2, W // 2
    xp = jnp.pad(x_nchw.astype(jnp.bfloat16),
                 ((0, 0), (0, 0), (pad, pad), (pad, pad)))
    quads = []
    for qh in (0, 1):
        for qw in (0, 1):
            slabs = [xp[:, :,
                        qh + kh: qh + kh + 2 * HP - 1: 2,
                        qw + kw: qw + kw + 2 * WP - 1: 2]
                     for kh in range(k) for kw in range(k)]
            p = jnp.stack(slabs, axis=2)             # (N, C, k*k, HP, WP)
            quads.append(p.reshape(N, C * k * k, HP * WP))
    return quads


def conv_relu_bn_pool(x_nchw, conv_w, conv_b, gamma, beta, mean, var,
                      *, k=5, pad=2, eps=1e-5):
    """Fused conv2d(k, pad, stride=1) -> relu -> bn(eval) -> maxpool2x2 (NCHW)."""
    N, Cin, H, W = x_nchw.shape
    Cout = conv_w.shape[0]
    HP, WP = H // 2, W // 2
    Kd, M = Cin * k * k, HP * WP

    p00, p01, p10, p11 = _quadrant_patches(x_nchw, k, pad)
    w = conv_w.reshape(Cout, Kd).astype(jnp.bfloat16)
    s = (gamma / jnp.sqrt(var + eps)).astype(jnp.float32)
    t = (beta - mean * s).astype(jnp.float32)
    b = conv_b.astype(jnp.float32)

    patch_spec = pl.BlockSpec((None, Kd, M), lambda n: (n, 0, 0))
    chan_spec = pl.BlockSpec((Cout, 1), lambda n: (0, 0))
    out = pl.pallas_call(
        _conv_pool_kernel,
        out_shape=jax.ShapeDtypeStruct((N, Cout, M), jnp.float32),
        grid_spec=pltpu.PrefetchScalarGridSpec(
            num_scalar_prefetch=0,
            grid=(N,),                                 # one image per step
            in_specs=[patch_spec, patch_spec, patch_spec, patch_spec,
                      pl.BlockSpec((Cout, Kd), lambda n: (0, 0)),
                      chan_spec, chan_spec, chan_spec],
            out_specs=pl.BlockSpec((None, Cout, M), lambda n: (n, 0, 0)),
        ),
        compiler_params=pltpu.CompilerParams(
            dimension_semantics=("parallel",)),        # 2-TC sharding on v7x
    )(p00, p01, p10, p11, w,
      b.reshape(Cout, 1), s.reshape(Cout, 1), t.reshape(Cout, 1))
    return out.reshape(N, Cout, HP, WP)                # NCHW, contiguous


def mlp(x, fc1_w, fc1_b, fc2_w, fc2_b):
    """x: (N, F) f32; fc weights in torch (out, in) layout. Returns (N, out2)."""
    N = x.shape[0]
    out_dim = fc2_w.shape[0]
    return pl.pallas_call(
        _mlp_kernel,
        out_shape=jax.ShapeDtypeStruct((N, out_dim), jnp.float32),
    )(x.astype(jnp.bfloat16),
      fc1_w.T.astype(jnp.bfloat16),
      fc1_b.reshape(1, -1).astype(jnp.float32),
      fc2_w.T.astype(jnp.float32),
      fc2_b.reshape(1, -1).astype(jnp.float32))


@jax.jit
def cnn_forward(x_nchw, p):
    y1 = conv_relu_bn_pool(x_nchw, p["conv1_w"], p["conv1_b"],
                           p["bn1_gamma"], p["bn1_beta"],
                           p["bn1_mean"], p["bn1_var"])      # (N, 8, 40, 40)
    y2 = conv_relu_bn_pool(y1, p["conv2_w"], p["conv2_b"],
                           p["bn2_gamma"], p["bn2_beta"],
                           p["bn2_mean"], p["bn2_var"])      # (N, 16, 20, 20)
    flat = y2.reshape(y2.shape[0], -1)   # NCHW flatten == torch x.view(N, -1)
    return mlp(flat, p["fc1_w"], p["fc1_b"], p["fc2_w"], p["fc2_b"])


# ----------------------------------------------------------------------------
# Pure-JAX reference (for sanity check)
# ----------------------------------------------------------------------------
def cnn_reference(x, p):
    EPS = 1e-5

    def conv(x, w, b):
        y = lax.conv_general_dilated(
            x, w, (1, 1), ((2, 2), (2, 2)),
            dimension_numbers=("NCHW", "OIHW", "NCHW"))
        return y + b[None, :, None, None]

    def bn(x, g, bt, m, v):
        return (g[None, :, None, None] * (x - m[None, :, None, None])
                / jnp.sqrt(v[None, :, None, None] + EPS)
                + bt[None, :, None, None])

    def pool(x):
        return lax.reduce_window(x, -jnp.inf, lax.max,
                                 (1, 1, 2, 2), (1, 1, 2, 2), "VALID")

    a = pool(bn(jnp.maximum(conv(x, p["conv1_w"], p["conv1_b"]), 0.0),
                p["bn1_gamma"], p["bn1_beta"], p["bn1_mean"], p["bn1_var"]))
    a = pool(bn(jnp.maximum(conv(a, p["conv2_w"], p["conv2_b"]), 0.0),
                p["bn2_gamma"], p["bn2_beta"], p["bn2_mean"], p["bn2_var"]))
    flat = a.reshape(a.shape[0], -1)
    h = flat @ p["fc1_w"].T + p["fc1_b"]
    return h @ p["fc2_w"].T + p["fc2_b"]


# ----------------------------------------------------------------------------
# Main
# ----------------------------------------------------------------------------
if __name__ == "__main__":
    key = jax.random.PRNGKey(0)
    ks = jax.random.split(key, 8)

    in_1, out_1, out_2, output, k = 1, 8, 16, 1, 5
    params = {
        "conv1_w": 0.05 * jax.random.normal(ks[0], (out_1, in_1, k, k), jnp.float32),
        "conv1_b": 0.05 * jax.random.normal(ks[1], (out_1,), jnp.float32),
        "bn1_gamma": jnp.ones((out_1,), jnp.float32),
        "bn1_beta": jnp.zeros((out_1,), jnp.float32),
        "bn1_mean": jnp.zeros((out_1,), jnp.float32),
        "bn1_var": jnp.ones((out_1,), jnp.float32),
        "conv2_w": 0.05 * jax.random.normal(ks[2], (out_2, out_1, k, k), jnp.float32),
        "conv2_b": 0.05 * jax.random.normal(ks[3], (out_2,), jnp.float32),
        "bn2_gamma": jnp.ones((out_2,), jnp.float32),
        "bn2_beta": jnp.zeros((out_2,), jnp.float32),
        "bn2_mean": jnp.zeros((out_2,), jnp.float32),
        "bn2_var": jnp.ones((out_2,), jnp.float32),
        "fc1_w": 0.01 * jax.random.normal(ks[4], (128, out_2 * 20 * 20), jnp.float32),
        "fc1_b": 0.01 * jax.random.normal(ks[5], (128,), jnp.float32),
        "fc2_w": 0.05 * jax.random.normal(ks[6], (output, 128), jnp.float32),
        "fc2_b": 0.05 * jax.random.normal(ks[7], (output,), jnp.float32),
    }

    # fc1 expects out_2 * 20 * 20 features => spatial 80x80 input (80/2/2 = 20).
    x = jax.random.normal(jax.random.PRNGKey(1), (2, 1, 80, 80), jnp.float32)

    y = jax.block_until_ready(cnn_forward(x, params))
    y_ref = jax.block_until_ready(cnn_reference(x, params))

    assert y.shape == (2, 1), y.shape
    # Tolerance widened slightly vs the pure-f32 version: matmul inputs are
    # bf16 (f32 accumulation), which introduces ~0.1% relative error.
    assert jnp.allclose(y, y_ref, rtol=1e-2, atol=2e-3), (y, y_ref)
    print("KERNEL_OK")
</pallas_src>

<mosaic_0001>
module attributes {stable_mosaic.version = 11 : i64} {
  func.func @_conv_pool_kernel(%arg0: i32, %arg1: memref<1x25x1600xbf16, #tpu.memory_space<vmem>>, %arg2: memref<1x25x1600xbf16, #tpu.memory_space<vmem>>, %arg3: memref<1x25x1600xbf16, #tpu.memory_space<vmem>>, %arg4: memref<1x25x1600xbf16, #tpu.memory_space<vmem>>, %arg5: memref<8x25xbf16, #tpu.memory_space<vmem>>, %arg6: memref<8x1xf32, #tpu.memory_space<vmem>>, %arg7: memref<8x1xf32, #tpu.memory_space<vmem>>, %arg8: memref<8x1xf32, #tpu.memory_space<vmem>>, %arg9: memref<1x8x1600xf32, #tpu.memory_space<vmem>>) attributes {dimension_semantics = [#tpu.dimension_semantics<parallel>], iteration_bounds = array<i64: 2>, scalar_prefetch = 0 : i64, scratch_operands = 0 : i64, tpu.core_type = #tpu.core_type<tc>, window_params = [{transform_indices = @transform_0, window_bounds = array<i64: 1, 25, 1600>}, {transform_indices = @transform_1, window_bounds = array<i64: 1, 25, 1600>}, {transform_indices = @transform_2, window_bounds = array<i64: 1, 25, 1600>}, {transform_indices = @transform_3, window_bounds = array<i64: 1, 25, 1600>}, {pipeline_mode = #tpu.pipeline_mode<synchronous>, transform_indices = @transform_4, window_bounds = array<i64: 8, 25>}, {pipeline_mode = #tpu.pipeline_mode<synchronous>, transform_indices = @transform_5, window_bounds = array<i64: 8, 1>}, {pipeline_mode = #tpu.pipeline_mode<synchronous>, transform_indices = @transform_6, window_bounds = array<i64: 8, 1>}, {pipeline_mode = #tpu.pipeline_mode<synchronous>, transform_indices = @transform_7, window_bounds = array<i64: 8, 1>}, {transform_indices = @transform_8, window_bounds = array<i64: 1, 8, 1600>}]} {
    %c0 = arith.constant 0 : index
    %c0_0 = arith.constant 0 : index
    %0 = vector.load %arg5[%c0, %c0_0] : memref<8x25xbf16, #tpu.memory_space<vmem>>, vector<8x25xbf16>
    %c0_1 = arith.constant 0 : index
    %c0_2 = arith.constant 0 : index
    %1 = vector.load %arg6[%c0_1, %c0_2] : memref<8x1xf32, #tpu.memory_space<vmem>>, vector<8x1xf32>
    %c0_3 = arith.constant 0 : index
    %c0_4 = arith.constant 0 : index
    %2 = vector.load %arg7[%c0_3, %c0_4] : memref<8x1xf32, #tpu.memory_space<vmem>>, vector<8x1xf32>
    %c0_5 = arith.constant 0 : index
    %c0_6 = arith.constant 0 : index
    %3 = vector.load %arg8[%c0_5, %c0_6] : memref<8x1xf32, #tpu.memory_space<vmem>>, vector<8x1xf32>
    %c0_7 = arith.constant 0 : index
    %c0_8 = arith.constant 0 : index
    %c0_9 = arith.constant 0 : index
    %4 = vector.load %arg1[%c0_7, %c0_8, %c0_9] : memref<1x25x1600xbf16, #tpu.memory_space<vmem>>, vector<1x25x1600xbf16>
    %5 = vector.shape_cast %4 : vector<1x25x1600xbf16> to vector<25x1600xbf16>
    %cst = arith.constant dense<0.000000e+00> : vector<8x1600xf32>
    %6 = tpu.matmul %0, %5, %cst {dimension_numbers = #tpu.dot_dimension_numbers<[1], [0], [0], [1], [0, 0, 1, 1], [], []>} : vector<8x25xbf16>, vector<25x1600xbf16>, vector<8x1600xf32> -> vector<8x1600xf32>
    %7 = vector.broadcast %1 : vector<8x1xf32> to vector<8x1600xf32>
    %8 = arith.addf %6, %7 : vector<8x1600xf32>
    %cst_10 = arith.constant 0.000000e+00 : f32
    %9 = vector.broadcast %cst_10 : f32 to vector<8x1600xf32>
    %10 = arith.maximumf %8, %9 : vector<8x1600xf32>
    %11 = vector.broadcast %2 : vector<8x1xf32> to vector<8x1600xf32>
    %12 = arith.mulf %10, %11 : vector<8x1600xf32>
    %13 = vector.broadcast %3 : vector<8x1xf32> to vector<8x1600xf32>
    %14 = arith.addf %12, %13 : vector<8x1600xf32>
    %c0_11 = arith.constant 0 : index
    %c0_12 = arith.constant 0 : index
    %c0_13 = arith.constant 0 : index
    %15 = vector.load %arg2[%c0_11, %c0_12, %c0_13] : memref<1x25x1600xbf16, #tpu.memory_space<vmem>>, vector<1x25x1600xbf16>
    %16 = vector.shape_cast %15 : vector<1x25x1600xbf16> to vector<25x1600xbf16>
    %cst_14 = arith.constant dense<0.000000e+00> : vector<8x1600xf32>
    %17 = tpu.matmul %0, %16, %cst_14 {dimension_numbers = #tpu.dot_dimension_numbers<[1], [0], [0], [1], [0, 0, 1, 1], [], []>} : vector<8x25xbf16>, vector<25x1600xbf16>, vector<8x1600xf32> -> vector<8x1600xf32>
    %18 = vector.broadcast %1 : vector<8x1xf32> to vector<8x1600xf32>
    %19 = arith.addf %17, %18 : vector<8x1600xf32>
    %cst_15 = arith.constant 0.000000e+00 : f32
    %20 = vector.broadcast %cst_15 : f32 to vector<8x1600xf32>
    %21 = arith.maximumf %19, %20 : vector<8x1600xf32>
    %22 = vector.broadcast %2 : vector<8x1xf32> to vector<8x1600xf32>
    %23 = arith.mulf %21, %22 : vector<8x1600xf32>
    %24 = vector.broadcast %3 : vector<8x1xf32> to vector<8x1600xf32>
    %25 = arith.addf %23, %24 : vector<8x1600xf32>
    %26 = arith.maximumf %14, %25 : vector<8x1600xf32>
    %c0_16 = arith.constant 0 : index
    %c0_17 = arith.constant 0 : index
    %c0_18 = arith.constant 0 : index
    %27 = vector.load %arg3[%c0_16, %c0_17, %c0_18] : memref<1x25x1600xbf16, #tpu.memory_space<vmem>>, vector<1x25x1600xbf16>
    %28 = vector.shape_cast %27 : vector<1x25x1600xbf16> to vector<25x1600xbf16>
    %cst_19 = arith.constant dense<0.000000e+00> : vector<8x1600xf32>
    %29 = tpu.matmul %0, %28, %cst_19 {dimension_numbers = #tpu.dot_dimension_numbers<[1], [0], [0], [1], [0, 0, 1, 1], [], []>} : vector<8x25xbf16>, vector<25x1600xbf16>, vector<8x1600xf32> -> vector<8x1600xf32>
    %30 = vector.broadcast %1 : vector<8x1xf32> to vector<8x1600xf32>
    %31 = arith.addf %29, %30 : vector<8x1600xf32>
    %cst_20 = arith.constant 0.000000e+00 : f32
    %32 = vector.broadcast %cst_20 : f32 to vector<8x1600xf32>
    %33 = arith.maximumf %31, %32 : vector<8x1600xf32>
    %34 = vector.broadcast %2 : vector<8x1xf32> to vector<8x1600xf32>
    %35 = arith.mulf %33, %34 : vector<8x1600xf32>
    %36 = vector.broadcast %3 : vector<8x1xf32> to vector<8x1600xf32>
    %37 = arith.addf %35, %36 : vector<8x1600xf32>
    %c0_21 = arith.constant 0 : index
    %c0_22 = arith.constant 0 : index
    %c0_23 = arith.constant 0 : index
    %38 = vector.load %arg4[%c0_21, %c0_22, %c0_23] : memref<1x25x1600xbf16, #tpu.memory_space<vmem>>, vector<1x25x1600xbf16>
    %39 = vector.shape_cast %38 : vector<1x25x1600xbf16> to vector<25x1600xbf16>
    %cst_24 = arith.constant dense<0.000000e+00> : vector<8x1600xf32>
    %40 = tpu.matmul %0, %39, %cst_24 {dimension_numbers = #tpu.dot_dimension_numbers<[1], [0], [0], [1], [0, 0, 1, 1], [], []>} : vector<8x25xbf16>, vector<25x1600xbf16>, vector<8x1600xf32> -> vector<8x1600xf32>
    %41 = vector.broadcast %1 : vector<8x1xf32> to vector<8x1600xf32>
    %42 = arith.addf %40, %41 : vector<8x1600xf32>
    %cst_25 = arith.constant 0.000000e+00 : f32
    %43 = vector.broadcast %cst_25 : f32 to vector<8x1600xf32>
    %44 = arith.maximumf %42, %43 : vector<8x1600xf32>
    %45 = vector.broadcast %2 : vector<8x1xf32> to vector<8x1600xf32>
    %46 = arith.mulf %44, %45 : vector<8x1600xf32>
    %47 = vector.broadcast %3 : vector<8x1xf32> to vector<8x1600xf32>
    %48 = arith.addf %46, %47 : vector<8x1600xf32>
    %49 = arith.maximumf %37, %48 : vector<8x1600xf32>
    %50 = arith.maximumf %26, %49 : vector<8x1600xf32>
    %c0_26 = arith.constant 0 : index
    %c0_27 = arith.constant 0 : index
    %c0_28 = arith.constant 0 : index
    %51 = vector.load %arg9[%c0_26, %c0_27, %c0_28] : memref<1x8x1600xf32, #tpu.memory_space<vmem>>, vector<1x8x1600xf32>
    %52 = vector.shape_cast %51 : vector<1x8x1600xf32> to vector<8x1600xf32>
    %53 = vector.shape_cast %50 : vector<8x1600xf32> to vector<1x8x1600xf32>
    tpu.vector_store %arg9[%c0_26, %c0_27, %c0_28], %53 {strides = array<i32>} : memref<1x8x1600xf32, #tpu.memory_space<vmem>>, vector<1x8x1600xf32>,
    return
  }
  func.func @transform_0(%arg0: i32) -> (i32, i32, i32) {
    %c0_i32 = arith.constant 0 : i32
    %c0_i32_0 = arith.constant 0 : i32
    %c0_i32_1 = arith.constant 0 : i32
    return %arg0, %c0_i32, %c0_i32_0 : i32, i32, i32
  }
  func.func @transform_1(%arg0: i32) -> (i32, i32, i32) {
    %c0_i32 = arith.constant 0 : i32
    %c0_i32_0 = arith.constant 0 : i32
    %c0_i32_1 = arith.constant 0 : i32
    return %arg0, %c0_i32, %c0_i32_0 : i32, i32, i32
  }
  func.func @transform_2(%arg0: i32) -> (i32, i32, i32) {
    %c0_i32 = arith.constant 0 : i32
    %c0_i32_0 = arith.constant 0 : i32
    %c0_i32_1 = arith.constant 0 : i32
    return %arg0, %c0_i32, %c0_i32_0 : i32, i32, i32
  }
  func.func @transform_3(%arg0: i32) -> (i32, i32, i32) {
    %c0_i32 = arith.constant 0 : i32
    %c0_i32_0 = arith.constant 0 : i32
    %c0_i32_1 = arith.constant 0 : i32
    return %arg0, %c0_i32, %c0_i32_0 : i32, i32, i32
  }
  func.func @transform_4(%arg0: i32) -> (i32, i32) {
    %c0_i32 = arith.constant 0 : i32
    %c0_i32_0 = arith.constant 0 : i32
    %c0_i32_1 = arith.constant 0 : i32
    return %c0_i32, %c0_i32_0 : i32, i32
  }
  func.func @transform_5(%arg0: i32) -> (i32, i32) {
    %c0_i32 = arith.constant 0 : i32
    %c0_i32_0 = arith.constant 0 : i32
    %c0_i32_1 = arith.constant 0 : i32
    return %c0_i32, %c0_i32_0 : i32, i32
  }
  func.func @transform_6(%arg0: i32) -> (i32, i32) {
    %c0_i32 = arith.constant 0 : i32
    %c0_i32_0 = arith.constant 0 : i32
    %c0_i32_1 = arith.constant 0 : i32
    return %c0_i32, %c0_i32_0 : i32, i32
  }
  func.func @transform_7(%arg0: i32) -> (i32, i32) {
    %c0_i32 = arith.constant 0 : i32
    %c0_i32_0 = arith.constant 0 : i32
    %c0_i32_1 = arith.constant 0 : i32
    return %c0_i32, %c0_i32_0 : i32, i32
  }
  func.func @transform_8(%arg0: i32) -> (i32, i32, i32) {
    %c0_i32 = arith.constant 0 : i32
    %c0_i32_0 = arith.constant 0 : i32
    %c0_i32_1 = arith.constant 0 : i32
    return %arg0, %c0_i32, %c0_i32_0 : i32, i32, i32
  }
}

module attributes {stable_mosaic.version = 11 : i64} {
  func.func @_conv_pool_kernel(%arg0: i32, %arg1: memref<1x200x400xbf16, #tpu.memory_space<vmem>>, %arg2: memref<1x200x400xbf16, #tpu.memory_space<vmem>>, %arg3: memref<1x200x400xbf16, #tpu.memory_space<vmem>>, %arg4: memref<1x200x400xbf16, #tpu.memory_space<vmem>>, %arg5: memref<16x200xbf16, #tpu.memory_space<vmem>>, %arg6: memref<16x1xf32, #tpu.memory_space<vmem>>, %arg7: memref<16x1xf32, #tpu.memory_space<vmem>>, %arg8: memref<16x1xf32, #tpu.memory_space<vmem>>, %arg9: memref<1x16x400xf32, #tpu.memory_space<vmem>>) attributes {dimension_semantics = [#tpu.dimension_semantics<parallel>], iteration_bounds = array<i64: 2>, scalar_prefetch = 0 : i64, scratch_operands = 0 : i64, tpu.core_type = #tpu.core_type<tc>, window_params = [{transform_indices = @transform_0, window_bounds = array<i64: 1, 200, 400>}, {transform_indices = @transform_1, window_bounds = array<i64: 1, 200, 400>}, {transform_indices = @transform_2, window_bounds = array<i64: 1, 200, 400>}, {transform_indices = @transform_3, window_bounds = array<i64: 1, 200, 400>}, {pipeline_mode = #tpu.pipeline_mode<synchronous>, transform_indices = @transform_4, window_bounds = array<i64: 16, 200>}, {pipeline_mode = #tpu.pipeline_mode<synchronous>, transform_indices = @transform_5, window_bounds = array<i64: 16, 1>}, {pipeline_mode = #tpu.pipeline_mode<synchronous>, transform_indices = @transform_6, window_bounds = array<i64: 16, 1>}, {pipeline_mode = #tpu.pipeline_mode<synchronous>, transform_indices = @transform_7, window_bounds = array<i64: 16, 1>}, {transform_indices = @transform_8, window_bounds = array<i64: 1, 16, 400>}]} {
    %c0 = arith.constant 0 : index
    %c0_0 = arith.constant 0 : index
    %0 = vector.load %arg5[%c0, %c0_0] : memref<16x200xbf16, #tpu.memory_space<vmem>>, vector<16x200xbf16>
    %c0_1 = arith.constant 0 : index
    %c0_2 = arith.constant 0 : index
    %1 = vector.load %arg6[%c0_1, %c0_2] : memref<16x1xf32, #tpu.memory_space<vmem>>, vector<16x1xf32>
    %c0_3 = arith.constant 0 : index
    %c0_4 = arith.constant 0 : index
    %2 = vector.load %arg7[%c0_3, %c0_4] : memref<16x1xf32, #tpu.memory_space<vmem>>, vector<16x1xf32>
    %c0_5 = arith.constant 0 : index
    %c0_6 = arith.constant 0 : index
    %3 = vector.load %arg8[%c0_5, %c0_6] : memref<16x1xf32, #tpu.memory_space<vmem>>, vector<16x1xf32>
    %c0_7 = arith.constant 0 : index
    %c0_8 = arith.constant 0 : index
    %c0_9 = arith.constant 0 : index
    %4 = vector.load %arg1[%c0_7, %c0_8, %c0_9] : memref<1x200x400xbf16, #tpu.memory_space<vmem>>, vector<1x200x400xbf16>
    %5 = vector.shape_cast %4 : vector<1x200x400xbf16> to vector<200x400xbf16>
    %cst = arith.constant dense<0.000000e+00> : vector<16x400xf32>
    %6 = tpu.matmul %0, %5, %cst {dimension_numbers = #tpu.dot_dimension_numbers<[1], [0], [0], [1], [0, 0, 1, 1], [], []>} : vector<16x200xbf16>, vector<200x400xbf16>, vector<16x400xf32> -> vector<16x400xf32>
    %7 = vector.broadcast %1 : vector<16x1xf32> to vector<16x400xf32>
    %8 = arith.addf %6, %7 : vector<16x400xf32>
    %cst_10 = arith.constant 0.000000e+00 : f32
    %9 = vector.broadcast %cst_10 : f32 to vector<16x400xf32>
    %10 = arith.maximumf %8, %9 : vector<16x400xf32>
    %11 = vector.broadcast %2 : vector<16x1xf32> to vector<16x400xf32>
    %12 = arith.mulf %10, %11 : vector<16x400xf32>
    %13 = vector.broadcast %3 : vector<16x1xf32> to vector<16x400xf32>
    %14 = arith.addf %12, %13 : vector<16x400xf32>
    %c0_11 = arith.constant 0 : index
    %c0_12 = arith.constant 0 : index
    %c0_13 = arith.constant 0 : index
    %15 = vector.load %arg2[%c0_11, %c0_12, %c0_13] : memref<1x200x400xbf16, #tpu.memory_space<vmem>>, vector<1x200x400xbf16>
    %16 = vector.shape_cast %15 : vector<1x200x400xbf16> to vector<200x400xbf16>
    %cst_14 = arith.constant dense<0.000000e+00> : vector<16x400xf32>
    %17 = tpu.matmul %0, %16, %cst_14 {dimension_numbers = #tpu.dot_dimension_numbers<[1], [0], [0], [1], [0, 0, 1, 1], [], []>} : vector<16x200xbf16>, vector<200x400xbf16>, vector<16x400xf32> -> vector<16x400xf32>
    %18 = vector.broadcast %1 : vector<16x1xf32> to vector<16x400xf32>
    %19 = arith.addf %17, %18 : vector<16x400xf32>
    %cst_15 = arith.constant 0.000000e+00 : f32
    %20 = vector.broadcast %cst_15 : f32 to vector<16x400xf32>
    %21 = arith.maximumf %19, %20 : vector<16x400xf32>
    %22 = vector.broadcast %2 : vector<16x1xf32> to vector<16x400xf32>
    %23 = arith.mulf %21, %22 : vector<16x400xf32>
    %24 = vector.broadcast %3 : vector<16x1xf32> to vector<16x400xf32>
    %25 = arith.addf %23, %24 : vector<16x400xf32>
    %26 = arith.maximumf %14, %25 : vector<16x400xf32>
    %c0_16 = arith.constant 0 : index
    %c0_17 = arith.constant 0 : index
    %c0_18 = arith.constant 0 : index
    %27 = vector.load %arg3[%c0_16, %c0_17, %c0_18] : memref<1x200x400xbf16, #tpu.memory_space<vmem>>, vector<1x200x400xbf16>
    %28 = vector.shape_cast %27 : vector<1x200x400xbf16> to vector<200x400xbf16>
    %cst_19 = arith.constant dense<0.000000e+00> : vector<16x400xf32>
    %29 = tpu.matmul %0, %28, %cst_19 {dimension_numbers = #tpu.dot_dimension_numbers<[1], [0], [0], [1], [0, 0, 1, 1], [], []>} : vector<16x200xbf16>, vector<200x400xbf16>, vector<16x400xf32> -> vector<16x400xf32>
    %30 = vector.broadcast %1 : vector<16x1xf32> to vector<16x400xf32>
    %31 = arith.addf %29, %30 : vector<16x400xf32>
    %cst_20 = arith.constant 0.000000e+00 : f32
    %32 = vector.broadcast %cst_20 : f32 to vector<16x400xf32>
    %33 = arith.maximumf %31, %32 : vector<16x400xf32>
    %34 = vector.broadcast %2 : vector<16x1xf32> to vector<16x400xf32>
    %35 = arith.mulf %33, %34 : vector<16x400xf32>
    %36 = vector.broadcast %3 : vector<16x1xf32> to vector<16x400xf32>
    %37 = arith.addf %35, %36 : vector<16x400xf32>
    %c0_21 = arith.constant 0 : index
    %c0_22 = arith.constant 0 : index
    %c0_23 = arith.constant 0 : index
    %38 = vector.load %arg4[%c0_21, %c0_22, %c0_23] : memref<1x200x400xbf16, #tpu.memory_space<vmem>>, vector<1x200x400xbf16>
    %39 = vector.shape_cast %38 : vector<1x200x400xbf16> to vector<200x400xbf16>
    %cst_24 = arith.constant dense<0.000000e+00> : vector<16x400xf32>
    %40 = tpu.matmul %0, %39, %cst_24 {dimension_numbers = #tpu.dot_dimension_numbers<[1], [0], [0], [1], [0, 0, 1, 1], [], []>} : vector<16x200xbf16>, vector<200x400xbf16>, vector<16x400xf32> -> vector<16x400xf32>
    %41 = vector.broadcast %1 : vector<16x1xf32> to vector<16x400xf32>
    %42 = arith.addf %40, %41 : vector<16x400xf32>
    %cst_25 = arith.constant 0.000000e+00 : f32
    %43 = vector.broadcast %cst_25 : f32 to vector<16x400xf32>
    %44 = arith.maximumf %42, %43 : vector<16x400xf32>
    %45 = vector.broadcast %2 : vector<16x1xf32> to vector<16x400xf32>
    %46 = arith.mulf %44, %45 : vector<16x400xf32>
    %47 = vector.broadcast %3 : vector<16x1xf32> to vector<16x400xf32>
    %48 = arith.addf %46, %47 : vector<16x400xf32>
    %49 = arith.maximumf %37, %48 : vector<16x400xf32>
    %50 = arith.maximumf %26, %49 : vector<16x400xf32>
    %c0_26 = arith.constant 0 : index
    %c0_27 = arith.constant 0 : index
    %c0_28 = arith.constant 0 : index
    %51 = vector.load %arg9[%c0_26, %c0_27, %c0_28] : memref<1x16x400xf32, #tpu.memory_space<vmem>>, vector<1x16x400xf32>
    %52 = vector.shape_cast %51 : vector<1x16x400xf32> to vector<16x400xf32>
    %53 = vector.shape_cast %50 : vector<16x400xf32> to vector<1x16x400xf32>
    tpu.vector_store %arg9[%c0_26, %c0_27, %c0_28], %53 {strides = array<i32>} : memref<1x16x400xf32, #tpu.memory_space<vmem>>, vector<1x16x400xf32>,
    return
  }
  func.func @transform_0(%arg0: i32) -> (i32, i32, i32) {
    %c0_i32 = arith.constant 0 : i32
    %c0_i32_0 = arith.constant 0 : i32
    %c0_i32_1 = arith.constant 0 : i32
    return %arg0, %c0_i32, %c0_i32_0 : i32, i32, i32
  }
  func.func @transform_1(%arg0: i32) -> (i32, i32, i32) {
    %c0_i32 = arith.constant 0 : i32
    %c0_i32_0 = arith.constant 0 : i32
    %c0_i32_1 = arith.constant 0 : i32
    return %arg0, %c0_i32, %c0_i32_0 : i32, i32, i32
  }
  func.func @transform_2(%arg0: i32) -> (i32, i32, i32) {
    %c0_i32 = arith.constant 0 : i32
    %c0_i32_0 = arith.constant 0 : i32
    %c0_i32_1 = arith.constant 0 : i32
    return %arg0, %c0_i32, %c0_i32_0 : i32, i32, i32
  }
  func.func @transform_3(%arg0: i32) -> (i32, i32, i32) {
    %c0_i32 = arith.constant 0 : i32
    %c0_i32_0 = arith.constant 0 : i32
    %c0_i32_1 = arith.constant 0 : i32
    return %arg0, %c0_i32, %c0_i32_0 : i32, i32, i32
  }
  func.func @transform_4(%arg0: i32) -> (i32, i32) {
    %c0_i32 = arith.constant 0 : i32
    %c0_i32_0 = arith.constant 0 : i32
    %c0_i32_1 = arith.constant 0 : i32
    return %c0_i32, %c0_i32_0 : i32, i32
  }
  func.func @transform_5(%arg0: i32) -> (i32, i32) {
    %c0_i32 = arith.constant 0 : i32
    %c0_i32_0 = arith.constant 0 : i32
    %c0_i32_1 = arith.constant 0 : i32
    return %c0_i32, %c0_i32_0 : i32, i32
  }
  func.func @transform_6(%arg0: i32) -> (i32, i32) {
    %c0_i32 = arith.constant 0 : i32
    %c0_i32_0 = arith.constant 0 : i32
    %c0_i32_1 = arith.constant 0 : i32
    return %c0_i32, %c0_i32_0 : i32, i32
  }
  func.func @transform_7(%arg0: i32) -> (i32, i32) {
    %c0_i32 = arith.constant 0 : i32
    %c0_i32_0 = arith.constant 0 : i32
    %c0_i32_1 = arith.constant 0 : i32
    return %c0_i32, %c0_i32_0 : i32, i32
  }
  func.func @transform_8(%arg0: i32) -> (i32, i32, i32) {
    %c0_i32 = arith.constant 0 : i32
    %c0_i32_0 = arith.constant 0 : i32
    %c0_i32_1 = arith.constant 0 : i32
    return %arg0, %c0_i32, %c0_i32_0 : i32, i32, i32
  }
}

module attributes {stable_mosaic.version = 11 : i64} {
  func.func @_mlp_kernel(%arg0: memref<2x6400xbf16, #tpu.memory_space<vmem>>, %arg1: memref<6400x128xbf16, #tpu.memory_space<vmem>>, %arg2: memref<1x128xf32, #tpu.memory_space<vmem>>, %arg3: memref<128x1xf32, #tpu.memory_space<vmem>>, %arg4: memref<1x1xf32, #tpu.memory_space<vmem>>, %arg5: memref<2x1xf32, #tpu.memory_space<vmem>>) attributes {dimension_semantics = [], scalar_prefetch = 0 : i64, scratch_operands = 0 : i64, tpu.core_type = #tpu.core_type<tc>} {
    %c0 = arith.constant 0 : index
    %c0_0 = arith.constant 0 : index
    %0 = vector.load %arg0[%c0, %c0_0] : memref<2x6400xbf16, #tpu.memory_space<vmem>>, vector<2x6400xbf16>
    %c0_1 = arith.constant 0 : index
    %c0_2 = arith.constant 0 : index
    %1 = vector.load %arg1[%c0_1, %c0_2] : memref<6400x128xbf16, #tpu.memory_space<vmem>>, vector<6400x128xbf16>
    %cst = arith.constant dense<0.000000e+00> : vector<2x128xf32>
    %2 = tpu.matmul %0, %1, %cst {dimension_numbers = #tpu.dot_dimension_numbers<[1], [0], [0], [1], [0, 0, 1, 1], [], []>} : vector<2x6400xbf16>, vector<6400x128xbf16>, vector<2x128xf32> -> vector<2x128xf32>
    %c0_3 = arith.constant 0 : index
    %c0_4 = arith.constant 0 : index
    %3 = vector.load %arg2[%c0_3, %c0_4] : memref<1x128xf32, #tpu.memory_space<vmem>>, vector<1x128xf32>
    %4 = vector.broadcast %3 : vector<1x128xf32> to vector<2x128xf32>
    %5 = arith.addf %2, %4 : vector<2x128xf32>
    %c0_5 = arith.constant 0 : index
    %c0_6 = arith.constant 0 : index
    %6 = vector.load %arg3[%c0_5, %c0_6] : memref<128x1xf32, #tpu.memory_space<vmem>>, vector<128x1xf32>
    %cst_7 = arith.constant dense<0.000000e+00> : vector<2x1xf32>
    %7 = tpu.matmul %5, %6, %cst_7 {dimension_numbers = #tpu.dot_dimension_numbers<[1], [0], [0], [1], [0, 0, 1, 1], [], []>} : vector<2x128xf32>, vector<128x1xf32>, vector<2x1xf32> -> vector<2x1xf32>
    %c0_8 = arith.constant 0 : index
    %c0_9 = arith.constant 0 : index
    %8 = vector.load %arg4[%c0_8, %c0_9] : memref<1x1xf32, #tpu.memory_space<vmem>>, vector<1x1xf32>
    %9 = vector.broadcast %8 : vector<1x1xf32> to vector<2x1xf32>
    %10 = arith.addf %7, %9 : vector<2x1xf32>
    %c0_10 = arith.constant 0 : index
    %c0_11 = arith.constant 0 : index
    %11 = vector.load %arg5[%c0_10, %c0_11] : memref<2x1xf32, #tpu.memory_space<vmem>>, vector<2x1xf32>
    tpu.vector_store %arg5[%c0_10, %c0_11], %10 {strides = array<i32>} : memref<2x1xf32, #tpu.memory_space<vmem>>, vector<2x1xf32>,
    return
  }
}

</mosaic_0001>

<llo_original>
// kernel: cnn_forward.3
$region0: #{cnn_forward.3}
  #allocation0 [shape = 'u32[]', space=smem, size = 0x4, offset = 0x4, fixed_abs, tag = 'smem constant byte address 0x4 - core index']
  #allocation1 [shape = 'u32[144,128]{1,0:T(1,128)}', space=vmem, size = 0x12000, scoped, tag = 'internal scratch']
  %s0 = inlined_call_operand.vmem [shape: bf16[2,25,1600], index: 0, kind: input, shape index: {}]
  %s1 = inlined_call_operand.vmem [shape: bf16[2,25,1600], index: 1, kind: input, shape index: {}]
  %s2 = inlined_call_operand.vmem [shape: bf16[2,25,1600], index: 2, kind: input, shape index: {}]
  %s3 = inlined_call_operand.vmem [shape: bf16[2,25,1600], index: 3, kind: input, shape index: {}]
  %s4 = inlined_call_operand.vmem [shape: bf16[8,25], index: 4, kind: input, shape index: {}]
  %s5 = inlined_call_operand.vmem [shape: f32[8,1], index: 5, kind: input, shape index: {}]
  %s6 = inlined_call_operand.vmem [shape: f32[8,1], index: 6, kind: input, shape index: {}]
  %s7 = inlined_call_operand.vmem [shape: f32[8,1], index: 7, kind: input, shape index: {}]
  %s8 = inlined_call_operand.vmem [shape: f32[2,8,1600], index: 8, kind: output, shape index: {}]
  %s9 = sld [smem:[#allocation0]]
  $region65: #{cnn_forward.3} parent=0
    _
  %s11 = ssub.s32 1, %s9
  %s12 = scalar_select 0, %s11, %s9
  loop: start=0, step=1, limit=4
  $region2: #{cnn_forward.3} parent=0 // loop_pre_header
    _
  $region3: #{cnn_forward.3} parent=0 // loop_header
    %s14 = sphi 0, %s18
    %p15 = scmp.ge.s32.totalorder %s14, 4
    %s24 = sphi 0, %s26
    %s27 = sphi 0, %s24
    %s28 = sphi 0, %s27
    %s44 = sphi 0, %s28
    %s50 = sphi 0, %s52
    %s53 = sphi 0, %s50
    %s54 = sphi 0, %s53
    %s70 = sphi 0, %s54
    %s76 = sphi 0, %s78
    %s79 = sphi 0, %s76
    %s80 = sphi 0, %s79
    %s96 = sphi 0, %s80
    %s102 = sphi 0, %s104
    %s105 = sphi 0, %s102
    %s106 = sphi 0, %s105
    %s122 = sphi 0, %s106
    %s126 = sphi 0, %s126
    %s128 = sphi 0, %s126
    %s129 = sphi 0, %s128
    %s143 = sphi 0, %s129
    %s147 = sphi 0, %s147
    %s149 = sphi 0, %s147
    %s150 = sphi 0, %s149
    %s164 = sphi 0, %s150
    %s168 = sphi 0, %s168
    %s170 = sphi 0, %s168
    %s171 = sphi 0, %s170
    %s185 = sphi 0, %s171
    %s189 = sphi 0, %s189
    %s191 = sphi 0, %s189
    %s192 = sphi 0, %s191
    %s206 = sphi 0, %s192
    %s212 = sphi 0, %s214
    %s215 = sphi 0, %s212
    %s216 = sphi 0, %s215
    %s232 = sphi 0, %s216
  $region4: #{cnn_forward.3} parent=0 // loop_header_branch
    %17 = sbr.rel (%p15) target = $region8
  $region5: #{cnn_forward.3} parent=0 // loop_body
    %s19 = ssub.s32 %s14, 1
    %s20 = ssub.s32 %s14, 2
    %s21 = sadd.s32 %s14, 1
    %s22 = ssub.s32 %s14, %s21
    %p23 = scmp.eq.s32.totalorder %s22, 0
    %s25 = sadd.s32 %s24, 1
    %s26 = scalar_select %p23, %s24, %s25
    %p29 = pneg %p23
    %p30 = scmp.eq.s32.totalorder %s14, 1
    %p31 = por %p29, %p30
    %p32 = scmp.ne.s32.totalorder %s24, %s27
    %p33 = scmp.eq.s32.totalorder %s14, 0
    %p34 = por %p32, %p33
    %p35 = scmp.ne.s32.totalorder %s24, %s27
    %p36 = scmp.eq.s32.totalorder %s19, 1
    %p37 = por %p35, %p36
    %p38 = scmp.ne.s32.totalorder %s27, %s28
    %p39 = scmp.eq.s32.totalorder %s19, 0
    %p40 = por %p38, %p39
    %p41 = scmp.ne.s32.totalorder %s27, %s28
    %p42 = scmp.eq.s32.totalorder %s20, 1
    %p43 = por %p41, %p42
    %p45 = scmp.ne.s32.totalorder %s28, %s44
    %p46 = scmp.eq.s32.totalorder %s20, 0
    %p47 = por %p45, %p46
    %s48 = ssub.s32 %s14, %s21
    %p49 = scmp.eq.s32.totalorder %s48, 0
    %s51 = sadd.s32 %s50, 1
    %s52 = scalar_select %p49, %s50, %s51
    %p55 = pneg %p49
    %p56 = scmp.eq.s32.totalorder %s14, 1
    %p57 = por %p55, %p56
    %p58 = scmp.ne.s32.totalorder %s50, %s53
    %p59 = scmp.eq.s32.totalorder %s14, 0
    %p60 = por %p58, %p59
    %p61 = scmp.ne.s32.totalorder %s50, %s53
    %p62 = scmp.eq.s32.totalorder %s19, 1
    %p63 = por %p61, %p62
    %p64 = scmp.ne.s32.totalorder %s53, %s54
    %p65 = scmp.eq.s32.totalorder %s19, 0
    %p66 = por %p64, %p65
    %p67 = scmp.ne.s32.totalorder %s53, %s54
    %p68 = scmp.eq.s32.totalorder %s20, 1
    %p69 = por %p67, %p68
    %p71 = scmp.ne.s32.totalorder %s54, %s70
    %p72 = scmp.eq.s32.totalorder %s20, 0
    %p73 = por %p71, %p72
    %s74 = ssub.s32 %s14, %s21
    %p75 = scmp.eq.s32.totalorder %s74, 0
    %s77 = sadd.s32 %s76, 1
    %s78 = scalar_select %p75, %s76, %s77
    %p81 = pneg %p75
    %p82 = scmp.eq.s32.totalorder %s14, 1
    %p83 = por %p81, %p82
    %p84 = scmp.ne.s32.totalorder %s76, %s79
    %p85 = scmp.eq.s32.totalorder %s14, 0
    %p86 = por %p84, %p85
    %p87 = scmp.ne.s32.totalorder %s76, %s79
    %p88 = scmp.eq.s32.totalorder %s19, 1
    %p89 = por %p87, %p88
    %p90 = scmp.ne.s32.totalorder %s79, %s80
    %p91 = scmp.eq.s32.totalorder %s19, 0
    %p92 = por %p90, %p91
    %p93 = scmp.ne.s32.totalorder %s79, %s80
    %p94 = scmp.eq.s32.totalorder %s20, 1
    %p95 = por %p93, %p94
    %p97 = scmp.ne.s32.totalorder %s80, %s96
    %p98 = scmp.eq.s32.totalorder %s20, 0
    %p99 = por %p97, %p98
    %s100 = ssub.s32 %s14, %s21
    %p101 = scmp.eq.s32.totalorder %s100, 0
    %s103 = sadd.s32 %s102, 1
    %s104 = scalar_select %p101, %s102, %s103
    %p107 = pneg %p101
    %p108 = scmp.eq.s32.totalorder %s14, 1
    %p109 = por %p107, %p108
    %p110 = scmp.ne.s32.totalorder %s102, %s105
    %p111 = scmp.eq.s32.totalorder %s14, 0
    %p112 = por %p110, %p111
    %p113 = scmp.ne.s32.totalorder %s102, %s105
    %p114 = scmp.eq.s32.totalorder %s19, 1
    %p115 = por %p113, %p114
    %p116 = scmp.ne.s32.totalorder %s105, %s106
    %p117 = scmp.eq.s32.totalorder %s19, 0
    %p118 = por %p116, %p117
    %p119 = scmp.ne.s32.totalorder %s105, %s106
    %p120 = scmp.eq.s32.totalorder %s20, 1
    %p121 = por %p119, %p120
    %p123 = scmp.ne.s32.totalorder %s106, %s122
    %p124 = scmp.eq.s32.totalorder %s20, 0
    %p125 = por %p123, %p124
    %s127 = sadd.s32 %s126, 1
    %p130 = scmp.eq.s32.totalorder %s14, 1
    %p131 = scmp.ne.s32.totalorder %s126, %s128
    %p132 = scmp.eq.s32.totalorder %s14, 0
    %p133 = por %p131, %p132
    %p134 = scmp.ne.s32.totalorder %s126, %s128
    %p135 = scmp.eq.s32.totalorder %s19, 1
    %p136 = por %p134, %p135
    %p137 = scmp.ne.s32.totalorder %s128, %s129
    %p138 = scmp.eq.s32.totalorder %s19, 0
    %p139 = por %p137, %p138
    %p140 = scmp.ne.s32.totalorder %s128, %s129
    %p141 = scmp.eq.s32.totalorder %s20, 1
    %p142 = por %p140, %p141
    %p144 = scmp.ne.s32.totalorder %s129, %s143
    %p145 = scmp.eq.s32.totalorder %s20, 0
    %p146 = por %p144, %p145
    %s148 = sadd.s32 %s147, 1
    %p151 = scmp.eq.s32.totalorder %s14, 1
    %p152 = scmp.ne.s32.totalorder %s147, %s149
    %p153 = scmp.eq.s32.totalorder %s14, 0
    %p154 = por %p152, %p153
    %p155 = scmp.ne.s32.totalorder %s147, %s149
    %p156 = scmp.eq.s32.totalorder %s19, 1
    %p157 = por %p155, %p156
    %p158 = scmp.ne.s32.totalorder %s149, %s150
    %p159 = scmp.eq.s32.totalorder %s19, 0
    %p160 = por %p158, %p159
    %p161 = scmp.ne.s32.totalorder %s149, %s150
    %p162 = scmp.eq.s32.totalorder %s20, 1
    %p163 = por %p161, %p162
    %p165 = scmp.ne.s32.totalorder %s150, %s164
    %p166 = scmp.eq.s32.totalorder %s20, 0
    %p167 = por %p165, %p166
    %s169 = sadd.s32 %s168, 1
    %p172 = scmp.eq.s32.totalorder %s14, 1
    %p173 = scmp.ne.s32.totalorder %s168, %s170
    %p174 = scmp.eq.s32.totalorder %s14, 0
    %p175 = por %p173, %p174
    %p176 = scmp.ne.s32.totalorder %s168, %s170
    %p177 = scmp.eq.s32.totalorder %s19, 1
    %p178 = por %p176, %p177
    %p179 = scmp.ne.s32.totalorder %s170, %s171
    %p180 = scmp.eq.s32.totalorder %s19, 0
    %p181 = por %p179, %p180
    %p182 = scmp.ne.s32.totalorder %s170, %s171
    %p183 = scmp.eq.s32.totalorder %s20, 1
    %p184 = por %p182, %p183
    %p186 = scmp.ne.s32.totalorder %s171, %s185
    %p187 = scmp.eq.s32.totalorder %s20, 0
    %p188 = por %p186, %p187
    %s190 = sadd.s32 %s189, 1
    %p193 = scmp.eq.s32.totalorder %s14, 1
    %p194 = scmp.ne.s32.totalorder %s189, %s191
    %p195 = scmp.eq.s32.totalorder %s14, 0
    %p196 = por %p194, %p195
    %p197 = scmp.ne.s32.totalorder %s189, %s191
    %p198 = scmp.eq.s32.totalorder %s19, 1
    %p199 = por %p197, %p198
    %p200 = scmp.ne.s32.totalorder %s191, %s192
    %p201 = scmp.eq.s32.totalorder %s19, 0
    %p202 = por %p200, %p201
    %p203 = scmp.ne.s32.totalorder %s191, %s192
    %p204 = scmp.eq.s32.totalorder %s20, 1
    %p205 = por %p203, %p204
    %p207 = scmp.ne.s32.totalorder %s192, %s206
    %p208 = scmp.eq.s32.totalorder %s20, 0
    %p209 = por %p207, %p208
    %s210 = ssub.s32 %s14, %s21
    %p211 = scmp.eq.s32.totalorder %s210, 0
    %s213 = sadd.s32 %s212, 1
    %s214 = scalar_select %p211, %s212, %s213
    %p217 = pneg %p211
    %p218 = scmp.eq.s32.totalorder %s14, 1
    %p219 = por %p217, %p218
    %p220 = scmp.ne.s32.totalorder %s212, %s215
    %p221 = scmp.eq.s32.totalorder %s14, 0
    %p222 = por %p220, %p221
    %p223 = scmp.ne.s32.totalorder %s212, %s215
    %p224 = scmp.eq.s32.totalorder %s19, 1
    %p225 = por %p223, %p224
    %p226 = scmp.ne.s32.totalorder %s215, %s216
    %p227 = scmp.eq.s32.totalorder %s19, 0
    %p228 = por %p226, %p227
    %p229 = scmp.ne.s32.totalorder %s215, %s216
    %p230 = scmp.eq.s32.totalorder %s20, 1
    %p231 = por %p229, %p230
    %p233 = scmp.ne.s32.totalorder %s216, %s232
    %p234 = scmp.eq.s32.totalorder %s20, 0
    %p235 = por %p233, %p234
    %p236 = scmp.le.s32.totalorder 1, %s14
    %p237 = scmp.lt.s32.totalorder %s14, 3
    %p238 = pnand %p236, %p237
    %p239 = pneg %p238
    // Predicated region
    $region9: #{cnn_forward.3} parent=5 // pred_check
      _
    $region10: #{cnn_forward.3} parent=5 // pred_check_branch
      %241 = sbr.rel (%p238) target = $region12
    $region11: #{cnn_forward.3} parent=5 // pred_region
      %s242 = ssub.s32 %s14, 1
      // Predicated region
      $region13: #{cnn_forward.3} parent=11 // pred_check
        %p243 = pneg %p139
      $region14: #{cnn_forward.3} parent=11 // pred_check_branch
        %245 = sbr.rel (%p243) target = $region16
      $region15: #{cnn_forward.3} parent=11 // pred_region
        _
      $region16: #{cnn_forward.3} parent=11 // pred_fallthru
        _
      // Predicated region
      $region17: #{cnn_forward.3} parent=11 // pred_check
        %p246 = pneg %p160
      $region18: #{cnn_forward.3} parent=11 // pred_check_branch
        %248 = sbr.rel (%p246) target = $region20
      $region19: #{cnn_forward.3} parent=11 // pred_region
        _
      $region20: #{cnn_forward.3} parent=11 // pred_fallthru
        _
      // Predicated region
      $region21: #{cnn_forward.3} parent=11 // pred_check
        %p249 = pneg %p181
      $region22: #{cnn_forward.3} parent=11 // pred_check_branch
        %251 = sbr.rel (%p249) target = $region24
      $region23: #{cnn_forward.3} parent=11 // pred_region
        _
      $region24: #{cnn_forward.3} parent=11 // pred_fallthru
        _
      // Predicated region
      $region25: #{cnn_forward.3} parent=11 // pred_check
        %p252 = pneg %p202
      $region26: #{cnn_forward.3} parent=11 // pred_check_branch
        %254 = sbr.rel (%p252) target = $region28
      $region27: #{cnn_forward.3} parent=11 // pred_region
        _
      $region28: #{cnn_forward.3} parent=11 // pred_fallthru
        _
    $region12: #{cnn_forward.3} parent=5 // pred_fallthru
      _
    %p255 = scmp.lt.s32.totalorder %s14, 2
    // Predicated region
    $region29: #{cnn_forward.3} parent=5 // pred_check
      %p256 = pneg %p255
    $region30: #{cnn_forward.3} parent=5 // pred_check_branch
      %258 = sbr.rel (%p256) target = $region32
    $region31: #{cnn_forward.3} parent=5 // pred_region
      // Predicated region
      $region33: #{cnn_forward.3} parent=31 // pred_check
        %p259 = pneg %p34
      $region34: #{cnn_forward.3} parent=31 // pred_check_branch
        %261 = sbr.rel (%p259) target = $region36
      $region35: #{cnn_forward.3} parent=31 // pred_region
        %p262 = scmp.lt.s32.totalorder %s14, 1
        %s263 = scalar_select %p262, %s14, 1
        %s264 = smul.addr %s263, 52
        %s265 = smul.addr %s264, 4
        %s266 = scalar_lea.vmem %s0, %s265
      $region36: #{cnn_forward.3} parent=31 // pred_fallthru
        _
      // Predicated region
      $region37: #{cnn_forward.3} parent=31 // pred_check
        %p267 = pneg %p60
      $region38: #{cnn_forward.3} parent=31 // pred_check_branch
        %269 = sbr.rel (%p267) target = $region40
      $region39: #{cnn_forward.3} parent=31 // pred_region
        %p270 = scmp.lt.s32.totalorder %s14, 1
        %s271 = scalar_select %p270, %s14, 1
        %s272 = smul.addr %s271, 52
        %s273 = smul.addr %s272, 4
        %s274 = scalar_lea.vmem %s1, %s273
      $region40: #{cnn_forward.3} parent=31 // pred_fallthru
        _
      // Predicated region
      $region41: #{cnn_forward.3} parent=31 // pred_check
        %p275 = pneg %p86
      $region42: #{cnn_forward.3} parent=31 // pred_check_branch
        %277 = sbr.rel (%p275) target = $region44
      $region43: #{cnn_forward.3} parent=31 // pred_region
        %p278 = scmp.lt.s32.totalorder %s14, 1
        %s279 = scalar_select %p278, %s14, 1
        %s280 = smul.addr %s279, 52
        %s281 = smul.addr %s280, 4
        %s282 = scalar_lea.vmem %s2, %s281
      $region44: #{cnn_forward.3} parent=31 // pred_fallthru
        _
      // Predicated region
      $region45: #{cnn_forward.3} parent=31 // pred_check
        %p283 = pneg %p112
      $region46: #{cnn_forward.3} parent=31 // pred_check_branch
        %285 = sbr.rel (%p283) target = $region48
      $region47: #{cnn_forward.3} parent=31 // pred_region
        %p286 = scmp.lt.s32.totalorder %s14, 1
        %s287 = scalar_select %p286, %s14, 1
        %s288 = smul.addr %s287, 52
        %s289 = smul.addr %s288, 4
        %s290 = scalar_lea.vmem %s3, %s289
      $region48: #{cnn_forward.3} parent=31 // pred_fallthru
        _
    $region32: #{cnn_forward.3} parent=5 // pred_fallthru
      _
    %p291 = scmp.le.s32.totalorder 1, %s14
    %p292 = scmp.lt.s32.totalorder %s14, 3
    %p293 = pnand %p291, %p292
    %p294 = pneg %p293
    // Predicated region
    $region49: #{cnn_forward.3} parent=5 // pred_check
      _
    $region50: #{cnn_forward.3} parent=5 // pred_check_branch
      %296 = sbr.rel (%p293) target = $region52
    $region51: #{cnn_forward.3} parent=5 // pred_region
      %s297 = ssub.s32 %s14, 1
      %p298 = scmp.lt.s32.totalorder %s19, 1
      %s299 = scalar_select %p298, %s19, 1
      %s300 = smul.addr %s299, 52
      %s301 = smul.addr %s300, 4
      %s302 = scalar_lea.vmem %s0, %s301
      %p303 = pneg %p40
      %p304 = pneg %p37
      %p305 = scmp.lt.s32.totalorder %s19, 1
      %s306 = scalar_select %p305, %s19, 1
      %s307 = smul.addr %s306, 52
      %s308 = smul.addr %s307, 4
      %s309 = scalar_lea.vmem %s1, %s308
      %p310 = pneg %p66
      %p311 = pneg %p63
      %p312 = scmp.lt.s32.totalorder %s19, 1
      %s313 = scalar_select %p312, %s19, 1
      %s314 = smul.addr %s313, 52
      %s315 = smul.addr %s314, 4
      %s316 = scalar_lea.vmem %s2, %s315
      %p317 = pneg %p92
      %p318 = pneg %p89
      %p319 = scmp.lt.s32.totalorder %s19, 1
      %s320 = scalar_select %p319, %s19, 1
      %s321 = smul.addr %s320, 52
      %s322 = smul.addr %s321, 4
      %s323 = scalar_lea.vmem %s3, %s322
      %p324 = pneg %p118
      %p325 = pneg %p115
      %p326 = pneg %p139
      %p327 = pneg %p136
      %p328 = pneg %p160
      %p329 = pneg %p157
      %p330 = pneg %p181
      %p331 = pneg %p178
      %p332 = pneg %p202
      %p333 = pneg %p199
      %p334 = pneg %p228
      %p335 = pneg %p225
      %p336 = scmp.lt.s32.totalorder %s19, 1
      %s337 = scalar_select %p336, %s19, 1
      %s338 = smul.addr %s337, 13
      %s339 = smul.addr %s338, 8
      %s340 = scalar_lea.vmem %s8, %s339
      %p341 = scmp.lt.s32.totalorder %s19, 1
      %s342 = scalar_select %p341, %s19, 1
      %s343 = smul.addr %s342, 52
      %s344 = smul.addr %s343, 4
      %s345 = scalar_lea.vmem %s0, %s344
      %p346 = scmp.lt.s32.totalorder %s19, 1
      %s347 = scalar_select %p346, %s19, 1
      %s348 = smul.addr %s347, 52
      %s349 = smul.addr %s348, 4
      %s350 = scalar_lea.vmem %s1, %s349
      %p351 = scmp.lt.s32.totalorder %s19, 1
      %s352 = scalar_select %p351, %s19, 1
      %s353 = smul.addr %s352, 52
      %s354 = smul.addr %s353, 4
      %s355 = scalar_lea.vmem %s2, %s354
      %p356 = scmp.lt.s32.totalorder %s19, 1
      %s357 = scalar_select %p356, %s19, 1
      %s358 = smul.addr %s357, 52
      %s359 = smul.addr %s358, 4
      %s360 = scalar_lea.vmem %s3, %s359
      %p361 = scmp.lt.s32.totalorder %s19, 1
      %s362 = scalar_select %p361, %s19, 1
      %s363 = smul.addr %s362, 13
      %s364 = smul.addr %s363, 8
      %s365 = scalar_lea.vmem %s8, %s364
      %v367 = vld [vmem:[%s4] sm:$0xf]
      %v368 = vld [vmem:[%s5] sm:$0xff]
      %v369 = vld [vmem:[%s6] sm:$0xff]
      %v370 = vld [vmem:[%s7] sm:$0xff]
      %v371 = vld [vmem:[%s345] sm:$0xff]
      %v372 = vld [vmem:[%s345 + $0x8] sm:$0xff]
      %v373 = vld [vmem:[%s345 + $0x10] sm:$0xff]
      %v374 = vld [vmem:[%s345 + $0x18] sm:$0xff]
      %v375 = vld [vmem:[%s345 + $0x20] sm:$0xff]
      %v376 = vld [vmem:[%s345 + $0x28] sm:$0xff]
      %v377 = vld [vmem:[%s345 + $0x30] sm:$0xf]
      %v378 = vld [vmem:[%s345 + $0x34] sm:$0xff]
      %v379 = vld [vmem:[%s345 + $0x3c] sm:$0xff]
      %v380 = vld [vmem:[%s345 + $0x44] sm:$0xff]
      %v381 = vld [vmem:[%s345 + $0x4c] sm:$0xff]
      %v382 = vld [vmem:[%s345 + $0x54] sm:$0xff]
      %v383 = vld [vmem:[%s345 + $0x5c] sm:$0xff]
      %v384 = vld [vmem:[%s345 + $0x64] sm:$0xf]
      %v385 = vld [vmem:[%s345 + $0x68] sm:$0xff]
      %v386 = vld [vmem:[%s345 + $0x70] sm:$0xff]
      %v387 = vld [vmem:[%s345 + $0x78] sm:$0xff]
      %v388 = vld [vmem:[%s345 + $0x80] sm:$0xff]
      %v389 = vld [vmem:[%s345 + $0x88] sm:$0xff]
      %v390 = vld [vmem:[%s345 + $0x90] sm:$0xff]
      %v391 = vld [vmem:[%s345 + $0x98] sm:$0xf]
      %v392 = vld [vmem:[%s345 + $0x9c] sm:$0x11]
      %v393 = vld [vmem:[%s345 + $0xa4] sm:$0x11]
      %v394 = vld [vmem:[%s345 + $0xac] sm:$0x11]
      %v395 = vld [vmem:[%s345 + $0xb4] sm:$0x11]
      %v396 = vld [vmem:[%s345 + $0xbc] sm:$0x11]
      %v397 = vld [vmem:[%s345 + $0xc4] sm:$0x11]
      %v398 = vld [vmem:[%s345 + $0xcc] sm:$0x1]
      %400 = vset.pattern.permute.xlu0 0
      %401 = vperm.xlu0 %400, %v368
      %v402 = vpop.permute.xlu0 %401
      %v432 = vunpack.c.l.b16 %v371
      %v433 = vunpack.c.h.b16 %v371
      %v434 = vunpack.c.l.b16 %v372
      %v435 = vunpack.c.h.b16 %v372
      %v436 = vunpack.c.l.b16 %v373
      %v437 = vunpack.c.h.b16 %v373
      %v438 = vunpack.c.l.b16 %v374
      %v439 = vunpack.c.h.b16 %v374
      %v440 = vunpack.c.l.b16 %v375
      %v441 = vunpack.c.h.b16 %v375
      %v442 = vunpack.c.l.b16 %v376
      %v443 = vunpack.c.h.b16 %v376
      %v444 = vunpack.c.l.b16 %v377
      %v445 = vunpack.c.l.b16 %v378
      %v446 = vunpack.c.h.b16 %v378
      %v447 = vunpack.c.l.b16 %v379
      %v448 = vunpack.c.h.b16 %v379
      %v449 = vunpack.c.l.b16 %v380
      %v450 = vunpack.c.h.b16 %v380
      %v451 = vunpack.c.l.b16 %v381
      %v452 = vunpack.c.h.b16 %v381
      %v453 = vunpack.c.l.b16 %v382
      %v454 = vunpack.c.h.b16 %v382
      %v455 = vunpack.c.l.b16 %v383
      %v456 = vunpack.c.h.b16 %v383
      %v457 = vunpack.c.l.b16 %v384
      %v458 = vunpack.c.l.b16 %v385
      %v459 = vunpack.c.h.b16 %v385
      %v460 = vunpack.c.l.b16 %v386
      %v461 = vunpack.c.h.b16 %v386
      %v462 = vunpack.c.l.b16 %v387
      %v463 = vunpack.c.h.b16 %v387
      %v464 = vunpack.c.l.b16 %v388
      %v465 = vunpack.c.h.b16 %v388
      %v466 = vunpack.c.l.b16 %v389
      %v467 = vunpack.c.h.b16 %v389
      %v468 = vunpack.c.l.b16 %v390
      %v469 = vunpack.c.h.b16 %v390
      %v470 = vunpack.c.l.b16 %v391
      %v471 = vunpack.c.l.b16 %v392
      %v472 = vunpack.c.h.b16 %v392
      %v473 = vunpack.c.l.b16 %v393
      %v474 = vunpack.c.h.b16 %v393
      %v475 = vunpack.c.l.b16 %v394
      %v476 = vunpack.c.h.b16 %v394
      %v477 = vunpack.c.l.b16 %v395
      %v478 = vunpack.c.h.b16 %v395
      %v479 = vunpack.c.l.b16 %v396
      %v480 = vunpack.c.h.b16 %v396
      %v481 = vunpack.c.l.b16 %v397
      %v482 = vunpack.c.h.b16 %v397
      %v483 = vunpack.c.l.b16 %v398
      %v484 = vpack.c.b16 %v445, %v432
      %v485 = vpack.c.b16 %v446, %v433
      %v486 = vpack.c.b16 %v447, %v434
      %v487 = vpack.c.b16 %v448, %v435
      %v488 = vpack.c.b16 %v449, %v436
      %v489 = vpack.c.b16 %v450, %v437
      %v490 = vpack.c.b16 %v451, %v438
      %v491 = vpack.c.b16 %v452, %v439
      %v492 = vpack.c.b16 %v453, %v440
      %v493 = vpack.c.b16 %v454, %v441
      %v494 = vpack.c.b16 %v455, %v442
      %v495 = vpack.c.b16 %v456, %v443
      %v496 = vpack.c.b16 %v457, %v444
      %v497 = vpack.c.b16 %v471, %v458
      %v498 = vpack.c.b16 %v472, %v459
      %v499 = vpack.c.b16 %v473, %v460
      %v500 = vpack.c.b16 %v474, %v461
      %v501 = vpack.c.b16 %v475, %v462
      %v502 = vpack.c.b16 %v476, %v463
      %v503 = vpack.c.b16 %v477, %v464
      %v504 = vpack.c.b16 %v478, %v465
      %v505 = vpack.c.b16 %v479, %v466
      %v506 = vpack.c.b16 %v480, %v467
      %v507 = vpack.c.b16 %v481, %v468
      %v508 = vpack.c.b16 %v482, %v469
      %v509 = vpack.c.b16 %v483, %v470
      %vm523 = vcmask 203776
      %v525 = vsel %vm523, %v367, 0
      %vm527 = vcmask 1043456
      %vm528 = vcmask 1044480
      %v529 = vsel %vm527, 4294967295, 65535
      %v530 = vsel %vm528, %v529, 0
      %v532 = vand.u32 %v497, %v530
      %v535 = vand.u32 %v498, %v530
      %v538 = vand.u32 %v499, %v530
      %v541 = vand.u32 %v500, %v530
      %v544 = vand.u32 %v501, %v530
      %v547 = vand.u32 %v502, %v530
      %v550 = vand.u32 %v503, %v530
      %v553 = vand.u32 %v504, %v530
      %v556 = vand.u32 %v505, %v530
      %v559 = vand.u32 %v506, %v530
      %v562 = vand.u32 %v507, %v530
      %v565 = vand.u32 %v508, %v530
      %v568 = vand.u32 %v509, %v530
      %570 = vmatprep.subr.bf16.mxu0 %v485
      %571 = vmatpush1.bf16.msra.mxu0 %v484
      %572 = vmatprep.subr.bf16.mxu0 %v535
      %573 = vmatpush1.bf16.msra.mxu0 %v532
      %574 = vmatprep.subr.bf16.mxu0 0
      %575 = vmatpush1.bf16.msra.mxu0 0
      %576 = vmatprep.subr.bf16.mxu0 0
      %577 = vmatpush1.bf16.msra.mxu0 0
      %578 = vmatprep.subr.bf16.mxu0 0
      %579 = vmatpush1.bf16.msra.mxu0 0
      %580 = vmatprep.subr.bf16.mxu0 0
      %581 = vmatpush1.bf16.msra.mxu0 0
      %582 = vmatprep.subr.bf16.mxu0 0
      %583 = vmatpush1.bf16.msra.mxu0 0
      %584 = vmatprep.subr.bf16.mxu0 0
      %585 = vmatpush1.bf16.msra.mxu0 0
      %586 = vmatprep.subr.bf16.mxu0 0
      %587 = vmatpush1.bf16.msra.mxu0 0
      %588 = vmatprep.subr.bf16.mxu0 0
      %589 = vmatpush1.bf16.msra.mxu0 0
      %590 = vmatprep.subr.bf16.mxu0 0
      %591 = vmatpush1.bf16.msra.mxu0 0
      %592 = vmatprep.subr.bf16.mxu0 0
      %593 = vmatpush1.bf16.msra.mxu0 0
      %594 = vmatprep.subr.bf16.mxu0 0
      %595 = vmatpush1.bf16.msra.mxu0 0
      %596 = vmatprep.subr.bf16.mxu0 0
      %597 = vmatpush1.bf16.msra.mxu0 0
      %598 = vmatprep.subr.bf16.mxu0 0
      %599 = vmatpush1.bf16.msra.mxu0 0
      %600 = vmatprep.subr.bf16.mxu0 0
      %601 = vmatpush1.bf16.msra.mxu0 0
      %602 = vmatprep.mubr.bf16.mxu0 0
      %603 = vmatmul.mubr.bf16.gmra.mrb[0].mxu0 %v525
      %v604 = vpop.f32.mrb[0].mxu0
      %v605 = vadd.f32 %v402, %v604
      %v606 = vpop.f32.mrb[0].mxu0
      %v607 = vadd.f32 %v402, %v606
      %v608 = vpop.f32.mrb[0].mxu0
      %v609 = vpop.f32.mrb[0].mxu0
      %610 = vdwg.mxu0
      %611 = vmatprep.subr.bf16.mxu0 %v487
      %612 = vmatpush1.bf16.msra.mxu0 %v486
      %613 = vmatprep.subr.bf16.mxu0 %v541
      %614 = vmatpush1.bf16.msra.mxu0 %v538
      %615 = vmatprep.subr.bf16.mxu0 0
      %616 = vmatpush1.bf16.msra.mxu0 0
      %617 = vmatprep.subr.bf16.mxu0 0
      %618 = vmatpush1.bf16.msra.mxu0 0
      %619 = vmatprep.subr.bf16.mxu0 0
      %620 = vmatpush1.bf16.msra.mxu0 0
      %621 = vmatprep.subr.bf16.mxu0 0
      %622 = vmatpush1.bf16.msra.mxu0 0
      %623 = vmatprep.subr.bf16.mxu0 0
      %624 = vmatpush1.bf16.msra.mxu0 0
      %625 = vmatprep.subr.bf16.mxu0 0
      %626 = vmatpush1.bf16.msra.mxu0 0
      %627 = vmatprep.subr.bf16.mxu0 0
      %628 = vmatpush1.bf16.msra.mxu0 0
      %629 = vmatprep.subr.bf16.mxu0 0
      %630 = vmatpush1.bf16.msra.mxu0 0
      %631 = vmatprep.subr.bf16.mxu0 0
      %632 = vmatpush1.bf16.msra.mxu0 0
      %633 = vmatprep.subr.bf16.mxu0 0
      %634 = vmatpush1.bf16.msra.mxu0 0
      %635 = vmatprep.subr.bf16.mxu0 0
      %636 = vmatpush1.bf16.msra.mxu0 0
      %637 = vmatprep.subr.bf16.mxu0 0
      %638 = vmatpush1.bf16.msra.mxu0 0
      %639 = vmatprep.subr.bf16.mxu0 0
      %640 = vmatpush1.bf16.msra.mxu0 0
      %641 = vmatprep.subr.bf16.mxu0 0
      %642 = vmatpush1.bf16.msra.mxu0 0
      %643 = vmatprep.mubr.bf16.mxu0 0
      %644 = vmatmul.mubr.bf16.gmra.mrb[0].mxu0 %v525
      %v645 = vpop.f32.mrb[0].mxu0
      %v646 = vadd.f32 %v402, %v645
      %v647 = vpop.f32.mrb[0].mxu0
      %v648 = vadd.f32 %v402, %v647
      %v649 = vpop.f32.mrb[0].mxu0
      %v650 = vpop.f32.mrb[0].mxu0
      %651 = vdwg.mxu0
      %652 = vmatprep.subr.bf16.mxu0 %v489
      %653 = vmatpush1.bf16.msra.mxu0 %v488
      %654 = vmatprep.subr.bf16.mxu0 %v547
      %655 = vmatpush1.bf16.msra.mxu0 %v544
      %656 = vmatprep.subr.bf16.mxu0 0
      %657 = vmatpush1.bf16.msra.mxu0 0
      %658 = vmatprep.subr.bf16.mxu0 0
      %659 = vmatpush1.bf16.msra.mxu0 0
      %660 = vmatprep.subr.bf16.mxu0 0
      %661 = vmatpush1.bf16.msra.mxu0 0
      %662 = vmatprep.subr.bf16.mxu0 0
      %663 = vmatpush1.bf16.msra.mxu0 0
      %664 = vmatprep.subr.bf16.mxu0 0
      %665 = vmatpush1.bf16.msra.mxu0 0
      %666 = vmatprep.subr.bf16.mxu0 0
      %667 = vmatpush1.bf16.msra.mxu0 0
      %668 = vmatprep.subr.bf16.mxu0 0
      %669 = vmatpush1.bf16.msra.mxu0 0
      %670 = vmatprep.subr.bf16.mxu0 0
      %671 = vmatpush1.bf16.msra.mxu0 0
      %672 = vmatprep.subr.bf16.mxu0 0
      %673 = vmatpush1.bf16.msra.mxu0 0
      %674 = vmatprep.subr.bf16.mxu0 0
      %675 = vmatpush1.bf16.msra.mxu0 0
      %676 = vmatprep.subr.bf16.mxu0 0
      %677 = vmatpush1.bf16.msra.mxu0 0
      %678 = vmatprep.subr.bf16.mxu0 0
      %679 = vmatpush1.bf16.msra.mxu0 0
      %680 = vmatprep.subr.bf16.mxu0 0
      %681 = vmatpush1.bf16.msra.mxu0 0
      %682 = vmatprep.subr.bf16.mxu0 0
      %683 = vmatpush1.bf16.msra.mxu0 0
      %684 = vmatprep.mubr.bf16.mxu0 0
      %685 = vmatmul.mubr.bf16.gmra.mrb[0].mxu0 %v525
      %v686 = vpop.f32.mrb[0].mxu0
      %v687 = vadd.f32 %v402, %v686
      %v688 = vpop.f32.mrb[0].mxu0
      %v689 = vadd.f32 %v402, %v688
      %v690 = vpop.f32.mrb[0].mxu0
      %v691 = vpop.f32.mrb[0].mxu0
      %692 = vdwg.mxu0
      %693 = vmatprep.subr.bf16.mxu0 %v491
      %694 = vmatpush1.bf16.msra.mxu0 %v490
      %695 = vmatprep.subr.bf16.mxu0 %v553
      %696 = vmatpush1.bf16.msra.mxu0 %v550
      %697 = vmatprep.subr.bf16.mxu0 0
      %698 = vmatpush1.bf16.msra.mxu0 0
      %699 = vmatprep.subr.bf16.mxu0 0
      %700 = vmatpush1.bf16.msra.mxu0 0
      %701 = vmatprep.subr.bf16.mxu0 0
      %702 = vmatpush1.bf16.msra.mxu0 0
      %703 = vmatprep.subr.bf16.mxu0 0
      %704 = vmatpush1.bf16.msra.mxu0 0
      %705 = vmatprep.subr.bf16.mxu0 0
      %706 = vmatpush1.bf16.msra.mxu0 0
      %707 = vmatprep.subr.bf16.mxu0 0
      %708 = vmatpush1.bf16.msra.mxu0 0
      %709 = vmatprep.subr.bf16.mxu0 0
      %710 = vmatpush1.bf16.msra.mxu0 0
      %711 = vmatprep.subr.bf16.mxu0 0
      %712 = vmatpush1.bf16.msra.mxu0 0
      %713 = vmatprep.subr.bf16.mxu0 0
      %714 = vmatpush1.bf16.msra.mxu0 0
      %715 = vmatprep.subr.bf16.mxu0 0
      %716 = vmatpush1.bf16.msra.mxu0 0
      %717 = vmatprep.subr.bf16.mxu0 0
      %718 = vmatpush1.bf16.msra.mxu0 0
      %719 = vmatprep.subr.bf16.mxu0 0
      %720 = vmatpush1.bf16.msra.mxu0 0
      %721 = vmatprep.subr.bf16.mxu0 0
      %722 = vmatpush1.bf16.msra.mxu0 0
      %723 = vmatprep.subr.bf16.mxu0 0
      %724 = vmatpush1.bf16.msra.mxu0 0
      %725 = vmatprep.mubr.bf16.mxu0 0
      %726 = vmatmul.mubr.bf16.gmra.mrb[0].mxu0 %v525
      %v727 = vpop.f32.mrb[0].mxu0
      %v728 = vadd.f32 %v402, %v727
      %v729 = vpop.f32.mrb[0].mxu0
      %v730 = vadd.f32 %v402, %v729
      %v731 = vpop.f32.mrb[0].mxu0
      %v732 = vpop.f32.mrb[0].mxu0
      %733 = vdwg.mxu0
      %734 = vmatprep.subr.bf16.mxu0 %v493
      %735 = vmatpush1.bf16.msra.mxu0 %v492
      %736 = vmatprep.subr.bf16.mxu0 %v559
      %737 = vmatpush1.bf16.msra.mxu0 %v556
      %738 = vmatprep.subr.bf16.mxu0 0
      %739 = vmatpush1.bf16.msra.mxu0 0
      %740 = vmatprep.subr.bf16.mxu0 0
      %741 = vmatpush1.bf16.msra.mxu0 0
      %742 = vmatprep.subr.bf16.mxu0 0
      %743 = vmatpush1.bf16.msra.mxu0 0
      %744 = vmatprep.subr.bf16.mxu0 0
      %745 = vmatpush1.bf16.msra.mxu0 0
      %746 = vmatprep.subr.bf16.mxu0 0
      %747 = vmatpush1.bf16.msra.mxu0 0
      %748 = vmatprep.subr.bf16.mxu0 0
      %749 = vmatpush1.bf16.msra.mxu0 0
      %750 = vmatprep.subr.bf16.mxu0 0
      %751 = vmatpush1.bf16.msra.mxu0 0
      %752 = vmatprep.subr.bf16.mxu0 0
      %753 = vmatpush1.bf16.msra.mxu0 0
      %754 = vmatprep.subr.bf16.mxu0 0
      %755 = vmatpush1.bf16.msra.mxu0 0
      %756 = vmatprep.subr.bf16.mxu0 0
      %757 = vmatpush1.bf16.msra.mxu0 0
      %758 = vmatprep.subr.bf16.mxu0 0
      %759 = vmatpush1.bf16.msra.mxu0 0
      %760 = vmatprep.subr.bf16.mxu0 0
      %761 = vmatpush1.bf16.msra.mxu0 0
      %762 = vmatprep.subr.bf16.mxu0 0
      %763 = vmatpush1.bf16.msra.mxu0 0
      %764 = vmatprep.subr.bf16.mxu0 0
      %765 = vmatpush1.bf16.msra.mxu0 0
      %766 = vmatprep.mubr.bf16.mxu0 0
      %767 = vmatmul.mubr.bf16.gmra.mrb[0].mxu0 %v525
      %v768 = vpop.f32.mrb[0].mxu0
      %v769 = vadd.f32 %v402, %v768
      %v770 = vpop.f32.mrb[0].mxu0
      %v771 = vadd.f32 %v402, %v770
      %v772 = vpop.f32.mrb[0].mxu0
      %v773 = vpop.f32.mrb[0].mxu0
      %774 = vdwg.mxu0
      %775 = vmatprep.subr.bf16.mxu0 %v495
      %776 = vmatpush1.bf16.msra.mxu0 %v494
      %777 = vmatprep.subr.bf16.mxu0 %v565
      %778 = vmatpush1.bf16.msra.mxu0 %v562
      %779 = vmatprep.subr.bf16.mxu0 0
      %780 = vmatpush1.bf16.msra.mxu0 0
      %781 = vmatprep.subr.bf16.mxu0 0
      %782 = vmatpush1.bf16.msra.mxu0 0
      %783 = vmatprep.subr.bf16.mxu0 0
      %784 = vmatpush1.bf16.msra.mxu0 0
      %785 = vmatprep.subr.bf16.mxu0 0
      %786 = vmatpush1.bf16.msra.mxu0 0
      %787 = vmatprep.subr.bf16.mxu0 0
      %788 = vmatpush1.bf16.msra.mxu0 0
      %789 = vmatprep.subr.bf16.mxu0 0
      %790 = vmatpush1.bf16.msra.mxu0 0
      %791 = vmatprep.subr.bf16.mxu0 0
      %792 = vmatpush1.bf16.msra.mxu0 0
      %793 = vmatprep.subr.bf16.mxu0 0
      %794 = vmatpush1.bf16.msra.mxu0 0
      %795 = vmatprep.subr.bf16.mxu0 0
      %796 = vmatpush1.bf16.msra.mxu0 0
      %797 = vmatprep.subr.bf16.mxu0 0
      %798 = vmatpush1.bf16.msra.mxu0 0
      %799 = vmatprep.subr.bf16.mxu0 0
      %800 = vmatpush1.bf16.msra.mxu0 0
      %801 = vmatprep.subr.bf16.mxu0 0
      %802 = vmatpush1.bf16.msra.mxu0 0
      %803 = vmatprep.subr.bf16.mxu0 0
      %804 = vmatpush1.bf16.msra.mxu0 0
      %805 = vmatprep.subr.bf16.mxu0 0
      %806 = vmatpush1.bf16.msra.mxu0 0
      %807 = vmatprep.mubr.bf16.mxu0 0
      %808 = vmatmul.mubr.bf16.gmra.mrb[0].mxu0 %v525
      %v809 = vpop.f32.mrb[0].mxu0
      %v810 = vadd.f32 %v402, %v809
      %v811 = vpop.f32.mrb[0].mxu0
      %v812 = vadd.f32 %v402, %v811
      %v813 = vpop.f32.mrb[0].mxu0
      %v814 = vpop.f32.mrb[0].mxu0
      %815 = vdwg.mxu0
      %816 = vmatprep.subr.bf16.mxu0 0
      %817 = vmatpush1.bf16.msra.mxu0 %v496
      %818 = vmatprep.subr.bf16.mxu0 0
      %819 = vmatpush1.bf16.msra.mxu0 %v568
      %820 = vmatprep.subr.bf16.mxu0 0
      %821 = vmatpush1.bf16.msra.mxu0 0
      %822 = vmatprep.subr.bf16.mxu0 0
      %823 = vmatpush1.bf16.msra.mxu0 0
      %824 = vmatprep.subr.bf16.mxu0 0
      %825 = vmatpush1.bf16.msra.mxu0 0
      %826 = vmatprep.subr.bf16.mxu0 0
      %827 = vmatpush1.bf16.msra.mxu0 0
      %828 = vmatprep.subr.bf16.mxu0 0
      %829 = vmatpush1.bf16.msra.mxu0 0
      %830 = vmatprep.subr.bf16.mxu0 0
      %831 = vmatpush1.bf16.msra.mxu0 0
      %832 = vmatprep.subr.bf16.mxu0 0
      %833 = vmatpush1.bf16.msra.mxu0 0
      %834 = vmatprep.subr.bf16.mxu0 0
      %835 = vmatpush1.bf16.msra.mxu0 0
      %836 = vmatprep.subr.bf16.mxu0 0
      %837 = vmatpush1.bf16.msra.mxu0 0
      %838 = vmatprep.subr.bf16.mxu0 0
      %839 = vmatpush1.bf16.msra.mxu0 0
      %840 = vmatprep.subr.bf16.mxu0 0
      %841 = vmatpush1.bf16.msra.mxu0 0
      %842 = vmatprep.subr.bf16.mxu0 0
      %843 = vmatpush1.bf16.msra.mxu0 0
      %844 = vmatprep.subr.bf16.mxu0 0
      %845 = vmatpush1.bf16.msra.mxu0 0
      %846 = vmatprep.subr.bf16.mxu0 0
      %847 = vmatpush1.bf16.msra.mxu0 0
      %848 = vmatprep.mubr.bf16.mxu0 0
      %849 = vmatmul.mubr.bf16.gmra.mrb[0].mxu0 %v525
      %v850 = vpop.f32.mrb[0].mxu0
      %v851 = vadd.f32 %v402, %v850
      %v852 = vpop.f32.mrb[0].mxu0
      %v853 = vpop.f32.mrb[0].mxu0
      %v854 = vpop.f32.mrb[0].mxu0
      %855 = vdwg.mxu0
      %v856 = vmax.f32 %v605, 0.0
      %v857 = vmax.f32 %v607, 0.0
      %v858 = vmax.f32 %v646, 0.0
      %v859 = vmax.f32 %v648, 0.0
      %v860 = vmax.f32 %v687, 0.0
      %v861 = vmax.f32 %v689, 0.0
      %v862 = vmax.f32 %v728, 0.0
      %v863 = vmax.f32 %v730, 0.0
      %v864 = vmax.f32 %v769, 0.0
      %v865 = vmax.f32 %v771, 0.0
      %v866 = vmax.f32 %v810, 0.0
      %v867 = vmax.f32 %v812, 0.0
      %v868 = vmax.f32 %v851, 0.0
      %870 = vset.pattern.permute.xlu0 0
      %871 = vperm.xlu0 %870, %v369
      %v872 = vpop.permute.xlu0 %871
      %v874 = vmul.f32 %v856, %v872
      %v875 = vmul.f32 %v857, %v872
      %v876 = vmul.f32 %v858, %v872
      %v877 = vmul.f32 %v859, %v872
      %v878 = vmul.f32 %v860, %v872
      %v879 = vmul.f32 %v861, %v872
      %v880 = vmul.f32 %v862, %v872
      %v881 = vmul.f32 %v863, %v872
      %v882 = vmul.f32 %v864, %v872
      %v883 = vmul.f32 %v865, %v872
      %v884 = vmul.f32 %v866, %v872
      %v885 = vmul.f32 %v867, %v872
      %v886 = vmul.f32 %v868, %v872
      %888 = vset.pattern.permute.xlu0 0
      %889 = vperm.xlu0 %888, %v370
      %v890 = vpop.permute.xlu0 %889
      %v892 = vadd.f32 %v874, %v890
      %v893 = vadd.f32 %v875, %v890
      %v894 = vadd.f32 %v876, %v890
      %v895 = vadd.f32 %v877, %v890
      %v896 = vadd.f32 %v878, %v890
      %v897 = vadd.f32 %v879, %v890
      %v898 = vadd.f32 %v880, %v890
      %v899 = vadd.f32 %v881, %v890
      %v900 = vadd.f32 %v882, %v890
      %v901 = vadd.f32 %v883, %v890
      %v902 = vadd.f32 %v884, %v890
      %v903 = vadd.f32 %v885, %v890
      %v904 = vadd.f32 %v886, %v890
      %v905 = vld [vmem:[%s350] sm:$0xff]
      %v906 = vld [vmem:[%s350 + $0x8] sm:$0xff]
      %v907 = vld [vmem:[%s350 + $0x10] sm:$0xff]
      %v908 = vld [vmem:[%s350 + $0x18] sm:$0xff]
      %v909 = vld [vmem:[%s350 + $0x20] sm:$0xff]
      %v910 = vld [vmem:[%s350 + $0x28] sm:$0xff]
      %v911 = vld [vmem:[%s350 + $0x30] sm:$0xf]
      %v912 = vld [vmem:[%s350 + $0x34] sm:$0xff]
      %v913 = vld [vmem:[%s350 + $0x3c] sm:$0xff]
      %v914 = vld [vmem:[%s350 + $0x44] sm:$0xff]
      %v915 = vld [vmem:[%s350 + $0x4c] sm:$0xff]
      %v916 = vld [vmem:[%s350 + $0x54] sm:$0xff]
      %v917 = vld [vmem:[%s350 + $0x5c] sm:$0xff]
      %v918 = vld [vmem:[%s350 + $0x64] sm:$0xf]
      %v919 = vld [vmem:[%s350 + $0x68] sm:$0xff]
      %v920 = vld [vmem:[%s350 + $0x70] sm:$0xff]
      %v921 = vld [vmem:[%s350 + $0x78] sm:$0xff]
      %v922 = vld [vmem:[%s350 + $0x80] sm:$0xff]
      %v923 = vld [vmem:[%s350 + $0x88] sm:$0xff]
      %v924 = vld [vmem:[%s350 + $0x90] sm:$0xff]
      %v925 = vld [vmem:[%s350 + $0x98] sm:$0xf]
      %v926 = vld [vmem:[%s350 + $0x9c] sm:$0x11]
      %v927 = vld [vmem:[%s350 + $0xa4] sm:$0x11]
      %v928 = vld [vmem:[%s350 + $0xac] sm:$0x11]
      %v929 = vld [vmem:[%s350 + $0xb4] sm:$0x11]
      %v930 = vld [vmem:[%s350 + $0xbc] sm:$0x11]
      %v931 = vld [vmem:[%s350 + $0xc4] sm:$0x11]
      %v932 = vld [vmem:[%s350 + $0xcc] sm:$0x1]
      %v961 = vunpack.c.l.b16 %v905
      %v962 = vunpack.c.h.b16 %v905
      %v963 = vunpack.c.l.b16 %v906
      %v964 = vunpack.c.h.b16 %v906
      %v965 = vunpack.c.l.b16 %v907
      %v966 = vunpack.c.h.b16 %v907
      %v967 = vunpack.c.l.b16 %v908
      %v968 = vunpack.c.h.b16 %v908
      %v969 = vunpack.c.l.b16 %v909
      %v970 = vunpack.c.h.b16 %v909
      %v971 = vunpack.c.l.b16 %v910
      %v972 = vunpack.c.h.b16 %v910
      %v973 = vunpack.c.l.b16 %v911
      %v974 = vunpack.c.l.b16 %v912
      %v975 = vunpack.c.h.b16 %v912
      %v976 = vunpack.c.l.b16 %v913
      %v977 = vunpack.c.h.b16 %v913
      %v978 = vunpack.c.l.b16 %v914
      %v979 = vunpack.c.h.b16 %v914
      %v980 = vunpack.c.l.b16 %v915
      %v981 = vunpack.c.h.b16 %v915
      %v982 = vunpack.c.l.b16 %v916
      %v983 = vunpack.c.h.b16 %v916
      %v984 = vunpack.c.l.b16 %v917
      %v985 = vunpack.c.h.b16 %v917
      %v986 = vunpack.c.l.b16 %v918
      %v987 = vunpack.c.l.b16 %v919
      %v988 = vunpack.c.h.b16 %v919
      %v989 = vunpack.c.l.b16 %v920
      %v990 = vunpack.c.h.b16 %v920
      %v991 = vunpack.c.l.b16 %v921
      %v992 = vunpack.c.h.b16 %v921
      %v993 = vunpack.c.l.b16 %v922
      %v994 = vunpack.c.h.b16 %v922
      %v995 = vunpack.c.l.b16 %v923
      %v996 = vunpack.c.h.b16 %v923
      %v997 = vunpack.c.l.b16 %v924
      %v998 = vunpack.c.h.b16 %v924
      %v999 = vunpack.c.l.b16 %v925
      %v1000 = vunpack.c.l.b16 %v926
      %v1001 = vunpack.c.h.b16 %v926
      %v1002 = vunpack.c.l.b16 %v927
      %v1003 = vunpack.c.h.b16 %v927
      %v1004 = vunpack.c.l.b16 %v928
      %v1005 = vunpack.c.h.b16 %v928
      %v1006 = vunpack.c.l.b16 %v929
      %v1007 = vunpack.c.h.b16 %v929
      %v1008 = vunpack.c.l.b16 %v930
      %v1009 = vunpack.c.h.b16 %v930
      %v1010 = vunpack.c.l.b16 %v931
      %v1011 = vunpack.c.h.b16 %v931
      %v1012 = vunpack.c.l.b16 %v932
      %v1013 = vpack.c.b16 %v974, %v961
      %v1014 = vpack.c.b16 %v975, %v962
      %v1015 = vpack.c.b16 %v976, %v963
      %v1016 = vpack.c.b16 %v977, %v964
      %v1017 = vpack.c.b16 %v978, %v965
      %v1018 = vpack.c.b16 %v979, %v966
      %v1019 = vpack.c.b16 %v980, %v967
      %v1020 = vpack.c.b16 %v981, %v968
      %v1021 = vpack.c.b16 %v982, %v969
      %v1022 = vpack.c.b16 %v983, %v970
      %v1023 = vpack.c.b16 %v984, %v971
      %v1024 = vpack.c.b16 %v985, %v972
      %v1025 = vpack.c.b16 %v986, %v973
      %v1026 = vpack.c.b16 %v1000, %v987
      %v1027 = vpack.c.b16 %v1001, %v988
      %v1028 = vpack.c.b16 %v1002, %v989
      %v1029 = vpack.c.b16 %v1003, %v990
      %v1030 = vpack.c.b16 %v1004, %v991
      %v1031 = vpack.c.b16 %v1005, %v992
      %v1032 = vpack.c.b16 %v1006, %v993
      %v1033 = vpack.c.b16 %v1007, %v994
      %v1034 = vpack.c.b16 %v1008, %v995
      %v1035 = vpack.c.b16 %v1009, %v996
      %v1036 = vpack.c.b16 %v1010, %v997
      %v1037 = vpack.c.b16 %v1011, %v998
      %v1038 = vpack.c.b16 %v1012, %v999
      %v1053 = vand.u32 %v1026, %v530
      %v1056 = vand.u32 %v1027, %v530
      %v1059 = vand.u32 %v1028, %v530
      %v1062 = vand.u32 %v1029, %v530
      %v1065 = vand.u32 %v1030, %v530
      %v1068 = vand.u32 %v1031, %v530
      %v1071 = vand.u32 %v1032, %v530
      %v1074 = vand.u32 %v1033, %v530
      %v1077 = vand.u32 %v1034, %v530
      %v1080 = vand.u32 %v1035, %v530
      %v1083 = vand.u32 %v1036, %v530
      %v1086 = vand.u32 %v1037, %v530
      %v1089 = vand.u32 %v1038, %v530
      %1091 = vmatprep.subr.bf16.mxu0 %v1014
      %1092 = vmatpush1.bf16.msra.mxu0 %v1013
      %1093 = vmatprep.subr.bf16.mxu0 %v1056
      %1094 = vmatpush1.bf16.msra.mxu0 %v1053
      %1095 = vmatprep.subr.bf16.mxu0 0
      %1096 = vmatpush1.bf16.msra.mxu0 0
      %1097 = vmatprep.subr.bf16.mxu0 0
      %1098 = vmatpush1.bf16.msra.mxu0 0
      %1099 = vmatprep.subr.bf16.mxu0 0
      %1100 = vmatpush1.bf16.msra.mxu0 0
      %1101 = vmatprep.subr.bf16.mxu0 0
      %1102 = vmatpush1.bf16.msra.mxu0 0
      %1103 = vmatprep.subr.bf16.mxu0 0
      %1104 = vmatpush1.bf16.msra.mxu0 0
      %1105 = vmatprep.subr.bf16.mxu0 0
      %1106 = vmatpush1.bf16.msra.mxu0 0
      %1107 = vmatprep.subr.bf16.mxu0 0
      %1108 = vmatpush1.bf16.msra.mxu0 0
      %1109 = vmatprep.subr.bf16.mxu0 0
      %1110 = vmatpush1.bf16.msra.mxu0 0
      %1111 = vmatprep.subr.bf16.mxu0 0
      %1112 = vmatpush1.bf16.msra.mxu0 0
      %1113 = vmatprep.subr.bf16.mxu0 0
      %1114 = vmatpush1.bf16.msra.mxu0 0
      %1115 = vmatprep.subr.bf16.mxu0 0
      %1116 = vmatpush1.bf16.msra.mxu0 0
      %1117 = vmatprep.subr.bf16.mxu0 0
      %1118 = vmatpush1.bf16.msra.mxu0 0
      %1119 = vmatprep.subr.bf16.mxu0 0
      %1120 = vmatpush1.bf16.msra.mxu0 0
      %1121 = vmatprep.subr.bf16.mxu0 0
      %1122 = vmatpush1.bf16.msra.mxu0 0
      %1123 = vmatprep.mubr.bf16.mxu0 0
      %1124 = vmatmul.mubr.bf16.gmra.mrb[0].mxu0 %v525
      %v1125 = vpop.f32.mrb[0].mxu0
      %v1126 = vadd.f32 %v402, %v1125
      %v1127 = vpop.f32.mrb[0].mxu0
      %v1128 = vadd.f32 %v402, %v1127
      %v1129 = vpop.f32.mrb[0].mxu0
      %v1130 = vpop.f32.mrb[0].mxu0
      %1131 = vdwg.mxu0
      %1132 = vmatprep.subr.bf16.mxu0 %v1016
      %1133 = vmatpush1.bf16.msra.mxu0 %v1015
      %1134 = vmatprep.subr.bf16.mxu0 %v1062
      %1135 = vmatpush1.bf16.msra.mxu0 %v1059
      %1136 = vmatprep.subr.bf16.mxu0 0
      %1137 = vmatpush1.bf16.msra.mxu0 0
      %1138 = vmatprep.subr.bf16.mxu0 0
      %1139 = vmatpush1.bf16.msra.mxu0 0
      %1140 = vmatprep.subr.bf16.mxu0 0
      %1141 = vmatpush1.bf16.msra.mxu0 0
      %1142 = vmatprep.subr.bf16.mxu0 0
      %1143 = vmatpush1.bf16.msra.mxu0 0
      %1144 = vmatprep.subr.bf16.mxu0 0
      %1145 = vmatpush1.bf16.msra.mxu0 0
      %1146 = vmatprep.subr.bf16.mxu0 0
      %1147 = vmatpush1.bf16.msra.mxu0 0
      %1148 = vmatprep.subr.bf16.mxu0 0
      %1149 = vmatpush1.bf16.msra.mxu0 0
      %1150 = vmatprep.subr.bf16.mxu0 0
      %1151 = vmatpush1.bf16.msra.mxu0 0
      %1152 = vmatprep.subr.bf16.mxu0 0
      %1153 = vmatpush1.bf16.msra.mxu0 0
      %1154 = vmatprep.subr.bf16.mxu0 0
      %1155 = vmatpush1.bf16.msra.mxu0 0
      %1156 = vmatprep.subr.bf16.mxu0 0
      %1157 = vmatpush1.bf16.msra.mxu0 0
      %1158 = vmatprep.subr.bf16.mxu0 0
      %1159 = vmatpush1.bf16.msra.mxu0 0
      %1160 = vmatprep.subr.bf16.mxu0 0
      %1161 = vmatpush1.bf16.msra.mxu0 0
      %1162 = vmatprep.subr.bf16.mxu0 0
      %1163 = vmatpush1.bf16.msra.mxu0 0
      %1164 = vmatprep.mubr.bf16.mxu0 0
      %1165 = vmatmul.mubr.bf16.gmra.mrb[0].mxu0 %v525
      %v1166 = vpop.f32.mrb[0].mxu0
      %v1167 = vadd.f32 %v402, %v1166
      %v1168 = vpop.f32.mrb[0].mxu0
      %v1169 = vadd.f32 %v402, %v1168
      %v1170 = vpop.f32.mrb[0].mxu0
      %v1171 = vpop.f32.mrb[0].mxu0
      %1172 = vdwg.mxu0
      %1173 = vmatprep.subr.bf16.mxu0 %v1018
      %1174 = vmatpush1.bf16.msra.mxu0 %v1017
      %1175 = vmatprep.subr.bf16.mxu0 %v1068
      %1176 = vmatpush1.bf16.msra.mxu0 %v1065
      %1177 = vmatprep.subr.bf16.mxu0 0
      %1178 = vmatpush1.bf16.msra.mxu0 0
      %1179 = vmatprep.subr.bf16.mxu0 0
      %1180 = vmatpush1.bf16.msra.mxu0 0
      %1181 = vmatprep.subr.bf16.mxu0 0
      %1182 = vmatpush1.bf16.msra.mxu0 0
      %1183 = vmatprep.subr.bf16.mxu0 0
      %1184 = vmatpush1.bf16.msra.mxu0 0
      %1185 = vmatprep.subr.bf16.mxu0 0
      %1186 = vmatpush1.bf16.msra.mxu0 0
      %1187 = vmatprep.subr.bf16.mxu0 0
      %1188 = vmatpush1.bf16.msra.mxu0 0
      %1189 = vmatprep.subr.bf16.mxu0 0
      %1190 = vmatpush1.bf16.msra.mxu0 0
      %1191 = vmatprep.subr.bf16.mxu0 0
      %1192 = vmatpush1.bf16.msra.mxu0 0
      %1193 = vmatprep.subr.bf16.mxu0 0
      %1194 = vmatpush1.bf16.msra.mxu0 0
      %1195 = vmatprep.subr.bf16.mxu0 0
      %1196 = vmatpush1.bf16.msra.mxu0 0
      %1197 = vmatprep.subr.bf16.mxu0 0
      %1198 = vmatpush1.bf16.msra.mxu0 0
      %1199 = vmatprep.subr.bf16.mxu0 0
      %1200 = vmatpush1.bf16.msra.mxu0 0
      %1201 = vmatprep.subr.bf16.mxu0 0
      %1202 = vmatpush1.bf16.msra.mxu0 0
      %1203 = vmatprep.subr.bf16.mxu0 0
      %1204 = vmatpush1.bf16.msra.mxu0 0
      %1205 = vmatprep.mubr.bf16.mxu0 0
      %1206 = vmatmul.mubr.bf16.gmra.mrb[0].mxu0 %v525
      %v1207 = vpop.f32.mrb[0].mxu0
      %v1208 = vadd.f32 %v402, %v1207
      %v1209 = vpop.f32.mrb[0].mxu0
      %v1210 = vadd.f32 %v402, %v1209
      %v1211 = vpop.f32.mrb[0].mxu0
      %v1212 = vpop.f32.mrb[0].mxu0
      %1213 = vdwg.mxu0
      %1214 = vmatprep.subr.bf16.mxu0 %v1020
      %1215 = vmatpush1.bf16.msra.mxu0 %v1019
      %1216 = vmatprep.subr.bf16.mxu0 %v1074
      %1217 = vmatpush1.bf16.msra.mxu0 %v1071
      %1218 = vmatprep.subr.bf16.mxu0 0
      %1219 = vmatpush1.bf16.msra.mxu0 0
      %1220 = vmatprep.subr.bf16.mxu0 0
      %1221 = vmatpush1.bf16.msra.mxu0 0
      %1222 = vmatprep.subr.bf16.mxu0 0
      %1223 = vmatpush1.bf16.msra.mxu0 0
      %1224 = vmatprep.subr.bf16.mxu0 0
      %1225 = vmatpush1.bf16.msra.mxu0 0
      %1226 = vmatprep.subr.bf16.mxu0 0
      %1227 = vmatpush1.bf16.msra.mxu0 0
      %1228 = vmatprep.subr.bf16.mxu0 0
      %1229 = vmatpush1.bf16.msra.mxu0 0
      %1230 = vmatprep.subr.bf16.mxu0 0
      %1231 = vmatpush1.bf16.msra.mxu0 0
      %1232 = vmatprep.subr.bf16.mxu0 0
      %1233 = vmatpush1.bf16.msra.mxu0 0
      %1234 = vmatprep.subr.bf16.mxu0 0
      %1235 = vmatpush1.bf16.msra.mxu0 0
      %1236 = vmatprep.subr.bf16.mxu0 0
      %1237 = vmatpush1.bf16.msra.mxu0 0
      %1238 = vmatprep.subr.bf16.mxu0 0
      %1239 = vmatpush1.bf16.msra.mxu0 0
      %1240 = vmatprep.subr.bf16.mxu0 0
      %1241 = vmatpush1.bf16.msra.mxu0 0
      %1242 = vmatprep.subr.bf16.mxu0 0
      %1243 = vmatpush1.bf16.msra.mxu0 0
      %1244 = vmatprep.subr.bf16.mxu0 0
      %1245 = vmatpush1.bf16.msra.mxu0 0
      %1246 = vmatprep.mubr.bf16.mxu0 0
      %1247 = vmatmul.mubr.bf16.gmra.mrb[0].mxu0 %v525
      %v1248 = vpop.f32.mrb[0].mxu0
      %v1249 = vadd.f32 %v402, %v1248
      %v1250 = vpop.f32.mrb[0].mxu0
      %v1251 = vadd.f32 %v402, %v1250
      %v1252 = vpop.f32.mrb[0].mxu0
      %v1253 = vpop.f32.mrb[0].mxu0
      %1254 = vdwg.mxu0
      %1255 = vmatprep.subr.bf16.mxu0 %v1022
      %1256 = vmatpush1.bf16.msra.mxu0 %v1021
      %1257 = vmatprep.subr.bf16.mxu0 %v1080
      %1258 = vmatpush1.bf16.msra.mxu0 %v1077
      %1259 = vmatprep.subr.bf16.mxu0 0
      %1260 = vmatpush1.bf16.msra.mxu0 0
      %1261 = vmatprep.subr.bf16.mxu0 0
      %1262 = vmatpush1.bf16.msra.mxu0 0
      %1263 = vmatprep.subr.bf16.mxu0 0
      %1264 = vmatpush1.bf16.msra.mxu0 0
      %1265 = vmatprep.subr.bf16.mxu0 0
      %1266 = vmatpush1.bf16.msra.mxu0 0
      %1267 = vmatprep.subr.bf16.mxu0 0
      %1268 = vmatpush1.bf16.msra.mxu0 0
      %1269 = vmatprep.subr.bf16.mxu0 0
      %1270 = vmatpush1.bf16.msra.mxu0 0
      %1271 = vmatprep.subr.bf16.mxu0 0
      %1272 = vmatpush1.bf16.msra.mxu0 0
      %1273 = vmatprep.subr.bf16.mxu0 0
      %1274 = vmatpush1.bf16.msra.mxu0 0
      %1275 = vmatprep.subr.bf16.mxu0 0
      %1276 = vmatpush1.bf16.msra.mxu0 0
      %1277 = vmatprep.subr.bf16.mxu0 0
      %1278 = vmatpush1.bf16.msra.mxu0 0
      %1279 = vmatprep.subr.bf16.mxu0 0
      %1280 = vmatpush1.bf16.msra.mxu0 0
      %1281 = vmatprep.subr.bf16.mxu0 0
      %1282 = vmatpush1.bf16.msra.mxu0 0
      %1283 = vmatprep.subr.bf16.mxu0 0
      %1284 = vmatpush1.bf16.msra.mxu0 0
      %1285 = vmatprep.subr.bf16.mxu0 0
      %1286 = vmatpush1.bf16.msra.mxu0 0
      %1287 = vmatprep.mubr.bf16.mxu0 0
      %1288 = vmatmul.mubr.bf16.gmra.mrb[0].mxu0 %v525
      %v1289 = vpop.f32.mrb[0].mxu0
      %v1290 = vadd.f32 %v402, %v1289
      %v1291 = vpop.f32.mrb[0].mxu0
      %v1292 = vadd.f32 %v402, %v1291
      %v1293 = vpop.f32.mrb[0].mxu0
      %v1294 = vpop.f32.mrb[0].mxu0
      %1295 = vdwg.mxu0
      %1296 = vmatprep.subr.bf16.mxu0 %v1024
      %1297 = vmatpush1.bf16.msra.mxu0 %v1023
      %1298 = vmatprep.subr.bf16.mxu0 %v1086
      %1299 = vmatpush1.bf16.msra.mxu0 %v1083
      %1300 = vmatprep.subr.bf16.mxu0 0
      %1301 = vmatpush1.bf16.msra.mxu0 0
      %1302 = vmatprep.subr.bf16.mxu0 0
      %1303 = vmatpush1.bf16.msra.mxu0 0
      %1304 = vmatprep.subr.bf16.mxu0 0
      %1305 = vmatpush1.bf16.msra.mxu0 0
      %1306 = vmatprep.subr.bf16.mxu0 0
      %1307 = vmatpush1.bf16.msra.mxu0 0
      %1308 = vmatprep.subr.bf16.mxu0 0
      %1309 = vmatpush1.bf16.msra.mxu0 0
      %1310 = vmatprep.subr.bf16.mxu0 0
      %1311 = vmatpush1.bf16.msra.mxu0 0
      %1312 = vmatprep.subr.bf16.mxu0 0
      %1313 = vmatpush1.bf16.msra.mxu0 0
      %1314 = vmatprep.subr.bf16.mxu0 0
      %1315 = vmatpush1.bf16.msra.mxu0 0
      %1316 = vmatprep.subr.bf16.mxu0 0
      %1317 = vmatpush1.bf16.msra.mxu0 0
      %1318 = vmatprep.subr.bf16.mxu0 0
      %1319 = vmatpush1.bf16.msra.mxu0 0
      %1320 = vmatprep.subr.bf16.mxu0 0
      %1321 = vmatpush1.bf16.msra.mxu0 0
      %1322 = vmatprep.subr.bf16.mxu0 0
      %1323 = vmatpush1.bf16.msra.mxu0 0
      %1324 = vmatprep.subr.bf16.mxu0 0
      %1325 = vmatpush1.bf16.msra.mxu0 0
      %1326 = vmatprep.subr.bf16.mxu0 0
      %1327 = vmatpush1.bf16.msra.mxu0 0
      %1328 = vmatprep.mubr.bf16.mxu0 0
      %1329 = vmatmul.mubr.bf16.gmra.mrb[0].mxu0 %v525
      %v1330 = vpop.f32.mrb[0].mxu0
      %v1331 = vadd.f32 %v402, %v1330
      %v1332 = vpop.f32.mrb[0].mxu0
      %v1333 = vadd.f32 %v402, %v1332
      %v1334 = vpop.f32.mrb[0].mxu0
      %v1335 = vpop.f32.mrb[0].mxu0
      %1336 = vdwg.mxu0
      %1337 = vmatprep.subr.bf16.mxu0 0
      %1338 = vmatpush1.bf16.msra.mxu0 %v1025
      %1339 = vmatprep.subr.bf16.mxu0 0
      %1340 = vmatpush1.bf16.msra.mxu0 %v1089
      %1341 = vmatprep.subr.bf16.mxu0 0
      %1342 = vmatpush1.bf16.msra.mxu0 0
      %1343 = vmatprep.subr.bf16.mxu0 0
      %1344 = vmatpush1.bf16.msra.mxu0 0
      %1345 = vmatprep.subr.bf16.mxu0 0
      %1346 = vmatpush1.bf16.msra.mxu0 0
      %1347 = vmatprep.subr.bf16.mxu0 0
      %1348 = vmatpush1.bf16.msra.mxu0 0
      %1349 = vmatprep.subr.bf16.mxu0 0
      %1350 = vmatpush1.bf16.msra.mxu0 0
      %1351 = vmatprep.subr.bf16.mxu0 0
      %1352 = vmatpush1.bf16.msra.mxu0 0
      %1353 = vmatprep.subr.bf16.mxu0 0
      %1354 = vmatpush1.bf16.msra.mxu0 0
      %1355 = vmatprep.subr.bf16.mxu0 0
      %1356 = vmatpush1.bf16.msra.mxu0 0
      %1357 = vmatprep.subr.bf16.mxu0 0
      %1358 = vmatpush1.bf16.msra.mxu0 0
      %1359 = vmatprep.subr.bf16.mxu0 0
      %1360 = vmatpush1.bf16.msra.mxu0 0
      %1361 = vmatprep.subr.bf16.mxu0 0
      %1362 = vmatpush1.bf16.msra.mxu0 0
      %1363 = vmatprep.subr.bf16.mxu0 0
      %1364 = vmatpush1.bf16.msra.mxu0 0
      %1365 = vmatprep.subr.bf16.mxu0 0
      %1366 = vmatpush1.bf16.msra.mxu0 0
      %1367 = vmatprep.subr.bf16.mxu0 0
      %1368 = vmatpush1.bf16.msra.mxu0 0
      %1369 = vmatprep.mubr.bf16.mxu0 0
      %1370 = vmatmul.mubr.bf16.gmra.mrb[0].mxu0 %v525
      %v1371 = vpop.f32.mrb[0].mxu0
      %v1372 = vadd.f32 %v402, %v1371
      %v1373 = vpop.f32.mrb[0].mxu0
      %v1374 = vpop.f32.mrb[0].mxu0
      %v1375 = vpop.f32.mrb[0].mxu0
      %1376 = vdwg.mxu0
      %v1377 = vmax.f32 %v1126, 0.0
      %v1378 = vmax.f32 %v1128, 0.0
      %v1379 = vmax.f32 %v1167, 0.0
      %v1380 = vmax.f32 %v1169, 0.0
      %v1381 = vmax.f32 %v1208, 0.0
      %v1382 = vmax.f32 %v1210, 0.0
      %v1383 = vmax.f32 %v1249, 0.0
      %v1384 = vmax.f32 %v1251, 0.0
      %v1385 = vmax.f32 %v1290, 0.0
      %v1386 = vmax.f32 %v1292, 0.0
      %v1387 = vmax.f32 %v1331, 0.0
      %v1388 = vmax.f32 %v1333, 0.0
      %v1389 = vmax.f32 %v1372, 0.0
      %v1390 = vmul.f32 %v1377, %v872
      %v1391 = vmul.f32 %v1378, %v872
      %v1392 = vmul.f32 %v1379, %v872
      %v1393 = vmul.f32 %v1380, %v872
      %v1394 = vmul.f32 %v1381, %v872
      %v1395 = vmul.f32 %v1382, %v872
      %v1396 = vmul.f32 %v1383, %v872
      %v1397 = vmul.f32 %v1384, %v872
      %v1398 = vmul.f32 %v1385, %v872
      %v1399 = vmul.f32 %v1386, %v872
      %v1400 = vmul.f32 %v1387, %v872
      %v1401 = vmul.f32 %v1388, %v872
      %v1402 = vmul.f32 %v1389, %v872
      %v1403 = vadd.f32 %v1390, %v890
      %v1404 = vadd.f32 %v1391, %v890
      %v1405 = vadd.f32 %v1392, %v890
      %v1406 = vadd.f32 %v1393, %v890
      %v1407 = vadd.f32 %v1394, %v890
      %v1408 = vadd.f32 %v1395, %v890
      %v1409 = vadd.f32 %v1396, %v890
      %v1410 = vadd.f32 %v1397, %v890
      %v1411 = vadd.f32 %v1398, %v890
      %v1412 = vadd.f32 %v1399, %v890
      %v1413 = vadd.f32 %v1400, %v890
      %v1414 = vadd.f32 %v1401, %v890
      %v1415 = vadd.f32 %v1402, %v890
      %v1416 = vmax.f32 %v892, %v1403
      %v1417 = vmax.f32 %v893, %v1404
      %v1418 = vmax.f32 %v894, %v1405
      %v1419 = vmax.f32 %v895, %v1406
      %v1420 = vmax.f32 %v896, %v1407
      %v1421 = vmax.f32 %v897, %v1408
      %v1422 = vmax.f32 %v898, %v1409
      %v1423 = vmax.f32 %v899, %v1410
      %v1424 = vmax.f32 %v900, %v1411
      %v1425 = vmax.f32 %v901, %v1412
      %v1426 = vmax.f32 %v902, %v1413
      %v1427 = vmax.f32 %v903, %v1414
      %v1428 = vmax.f32 %v904, %v1415
      %v1429 = vld [vmem:[%s355] sm:$0xff]
      %v1430 = vld [vmem:[%s355 + $0x8] sm:$0xff]
      %v1431 = vld [vmem:[%s355 + $0x10] sm:$0xff]
      %v1432 = vld [vmem:[%s355 + $0x18] sm:$0xff]
      %v1433 = vld [vmem:[%s355 + $0x20] sm:$0xff]
      %v1434 = vld [vmem:[%s355 + $0x28] sm:$0xff]
      %v1435 = vld [vmem:[%s355 + $0x30] sm:$0xf]
      %v1436 = vld [vmem:[%s355 + $0x34] sm:$0xff]
      %v1437 = vld [vmem:[%s355 + $0x3c] sm:$0xff]
      %v1438 = vld [vmem:[%s355 + $0x44] sm:$0xff]
      %v1439 = vld [vmem:[%s355 + $0x4c] sm:$0xff]
      %v1440 = vld [vmem:[%s355 + $0x54] sm:$0xff]
      %v1441 = vld [vmem:[%s355 + $0x5c] sm:$0xff]
      %v1442 = vld [vmem:[%s355 + $0x64] sm:$0xf]
      %v1443 = vld [vmem:[%s355 + $0x68] sm:$0xff]
      %v1444 = vld [vmem:[%s355 + $0x70] sm:$0xff]
      %v1445 = vld [vmem:[%s355 + $0x78] sm:$0xff]
      %v1446 = vld [vmem:[%s355 + $0x80] sm:$0xff]
      %v1447 = vld [vmem:[%s355 + $0x88] sm:$0xff]
      %v1448 = vld [vmem:[%s355 + $0x90] sm:$0xff]
      %v1449 = vld [vmem:[%s355 + $0x98] sm:$0xf]
      %v1450 = vld [vmem:[%s355 + $0x9c] sm:$0x11]
      %v1451 = vld [vmem:[%s355 + $0xa4] sm:$0x11]
      %v1452 = vld [vmem:[%s355 + $0xac] sm:$0x11]
      %v1453 = vld [vmem:[%s355 + $0xb4] sm:$0x11]
      %v1454 = vld [vmem:[%s355 + $0xbc] sm:$0x11]
      %v1455 = vld [vmem:[%s355 + $0xc4] sm:$0x11]
      %v1456 = vld [vmem:[%s355 + $0xcc] sm:$0x1]
      %v1485 = vunpack.c.l.b16 %v1429
      %v1486 = vunpack.c.h.b16 %v1429
      %v1487 = vunpack.c.l.b16 %v1430
      %v1488 = vunpack.c.h.b16 %v1430
      %v1489 = vunpack.c.l.b16 %v1431
      %v1490 = vunpack.c.h.b16 %v1431
      %v1491 = vunpack.c.l.b16 %v1432
      %v1492 = vunpack.c.h.b16 %v1432
      %v1493 = vunpack.c.l.b16 %v1433
      %v1494 = vunpack.c.h.b16 %v1433
      %v1495 = vunpack.c.l.b16 %v1434
      %v1496 = vunpack.c.h.b16 %v1434
      %v1497 = vunpack.c.l.b16 %v1435
      %v1498 = vunpack.c.l.b16 %v1436
      %v1499 = vunpack.c.h.b16 %v1436
      %v1500 = vunpack.c.l.b16 %v1437
      %v1501 = vunpack.c.h.b16 %v1437
      %v1502 = vunpack.c.l.b16 %v1438
      %v1503 = vunpack.c.h.b16 %v1438
      %v1504 = vunpack.c.l.b16 %v1439
      %v1505 = vunpack.c.h.b16 %v1439
      %v1506 = vunpack.c.l.b16 %v1440
      %v1507 = vunpack.c.h.b16 %v1440
      %v1508 = vunpack.c.l.b16 %v1441
      %v1509 = vunpack.c.h.b16 %v1441
      %v1510 = vunpack.c.l.b16 %v1442
      %v1511 = vunpack.c.l.b16 %v1443
      %v1512 = vunpack.c.h.b16 %v1443
      %v1513 = vunpack.c.l.b16 %v1444
      %v1514 = vunpack.c.h.b16 %v1444
      %v1515 = vunpack.c.l.b16 %v1445
      %v1516 = vunpack.c.h.b16 %v1445
      %v1517 = vunpack.c.l.b16 %v1446
      %v1518 = vunpack.c.h.b16 %v1446
      %v1519 = vunpack.c.l.b16 %v1447
      %v1520 = vunpack.c.h.b16 %v1447
      %v1521 = vunpack.c.l.b16 %v1448
      %v1522 = vunpack.c.h.b16 %v1448
      %v1523 = vunpack.c.l.b16 %v1449
      %v1524 = vunpack.c.l.b16 %v1450
      %v1525 = vunpack.c.h.b16 %v1450
      %v1526 = vunpack.c.l.b16 %v1451
      %v1527 = vunpack.c.h.b16 %v1451
      %v1528 = vunpack.c.l.b16 %v1452
      %v1529 = vunpack.c.h.b16 %v1452
      %v1530 = vunpack.c.l.b16 %v1453
      %v1531 = vunpack.c.h.b16 %v1453
      %v1532 = vunpack.c.l.b16 %v1454
      %v1533 = vunpack.c.h.b16 %v1454
      %v1534 = vunpack.c.l.b16 %v1455
      %v1535 = vunpack.c.h.b16 %v1455
      %v1536 = vunpack.c.l.b16 %v1456
      %v1537 = vpack.c.b16 %v1498, %v1485
      %v1538 = vpack.c.b16 %v1499, %v1486
      %v1539 = vpack.c.b16 %v1500, %v1487
      %v1540 = vpack.c.b16 %v1501, %v1488
      %v1541 = vpack.c.b16 %v1502, %v1489
      %v1542 = vpack.c.b16 %v1503, %v1490
      %v1543 = vpack.c.b16 %v1504, %v1491
      %v1544 = vpack.c.b16 %v1505, %v1492
      %v1545 = vpack.c.b16 %v1506, %v1493
      %v1546 = vpack.c.b16 %v1507, %v1494
      %v1547 = vpack.c.b16 %v1508, %v1495
      %v1548 = vpack.c.b16 %v1509, %v1496
      %v1549 = vpack.c.b16 %v1510, %v1497
      %v1550 = vpack.c.b16 %v1524, %v1511
      %v1551 = vpack.c.b16 %v1525, %v1512
      %v1552 = vpack.c.b16 %v1526, %v1513
      %v1553 = vpack.c.b16 %v1527, %v1514
      %v1554 = vpack.c.b16 %v1528, %v1515
      %v1555 = vpack.c.b16 %v1529, %v1516
      %v1556 = vpack.c.b16 %v1530, %v1517
      %v1557 = vpack.c.b16 %v1531, %v1518
      %v1558 = vpack.c.b16 %v1532, %v1519
      %v1559 = vpack.c.b16 %v1533, %v1520
      %v1560 = vpack.c.b16 %v1534, %v1521
      %v1561 = vpack.c.b16 %v1535, %v1522
      %v1562 = vpack.c.b16 %v1536, %v1523
      %v1577 = vand.u32 %v1550, %v530
      %v1580 = vand.u32 %v1551, %v530
      %v1583 = vand.u32 %v1552, %v530
      %v1586 = vand.u32 %v1553, %v530
      %v1589 = vand.u32 %v1554, %v530
      %v1592 = vand.u32 %v1555, %v530
      %v1595 = vand.u32 %v1556, %v530
      %v1598 = vand.u32 %v1557, %v530
      %v1601 = vand.u32 %v1558, %v530
      %v1604 = vand.u32 %v1559, %v530
      %v1607 = vand.u32 %v1560, %v530
      %v1610 = vand.u32 %v1561, %v530
      %v1613 = vand.u32 %v1562, %v530
      %1615 = vmatprep.subr.bf16.mxu0 %v1538
      %1616 = vmatpush1.bf16.msra.mxu0 %v1537
      %1617 = vmatprep.subr.bf16.mxu0 %v1580
      %1618 = vmatpush1.bf16.msra.mxu0 %v1577
      %1619 = vmatprep.subr.bf16.mxu0 0
      %1620 = vmatpush1.bf16.msra.mxu0 0
      %1621 = vmatprep.subr.bf16.mxu0 0
      %1622 = vmatpush1.bf16.msra.mxu0 0
      %1623 = vmatprep.subr.bf16.mxu0 0
      %1624 = vmatpush1.bf16.msra.mxu0 0
      %1625 = vmatprep.subr.bf16.mxu0 0
      %1626 = vmatpush1.bf16.msra.mxu0 0
      %1627 = vmatprep.subr.bf16.mxu0 0
      %1628 = vmatpush1.bf16.msra.mxu0 0
      %1629 = vmatprep.subr.bf16.mxu0 0
      %1630 = vmatpush1.bf16.msra.mxu0 0
      %1631 = vmatprep.subr.bf16.mxu0 0
      %1632 = vmatpush1.bf16.msra.mxu0 0
      %1633 = vmatprep.subr.bf16.mxu0 0
      %1634 = vmatpush1.bf16.msra.mxu0 0
      %1635 = vmatprep.subr.bf16.mxu0 0
      %1636 = vmatpush1.bf16.msra.mxu0 0
      %1637 = vmatprep.subr.bf16.mxu0 0
      %1638 = vmatpush1.bf16.msra.mxu0 0
      %1639 = vmatprep.subr.bf16.mxu0 0
      %1640 = vmatpush1.bf16.msra.mxu0 0
      %1641 = vmatprep.subr.bf16.mxu0 0
      %1642 = vmatpush1.bf16.msra.mxu0 0
      %1643 = vmatprep.subr.bf16.mxu0 0
      %1644 = vmatpush1.bf16.msra.mxu0 0
      %1645 = vmatprep.subr.bf16.mxu0 0
      %1646 = vmatpush1.bf16.msra.mxu0 0
      %1647 = vmatprep.mubr.bf16.mxu0 0
      %1648 = vmatmul.mubr.bf16.gmra.mrb[0].mxu0 %v525
      %v1649 = vpop.f32.mrb[0].mxu0
      %v1650 = vadd.f32 %v402, %v1649
      %v1651 = vpop.f32.mrb[0].mxu0
      %v1652 = vadd.f32 %v402, %v1651
      %v1653 = vpop.f32.mrb[0].mxu0
      %v1654 = vpop.f32.mrb[0].mxu0
      %1655 = vdwg.mxu0
      %1656 = vmatprep.subr.bf16.mxu0 %v1540
      %1657 = vmatpush1.bf16.msra.mxu0 %v1539
      %1658 = vmatprep.subr.bf16.mxu0 %v1586
      %1659 = vmatpush1.bf16.msra.mxu0 %v1583
      %1660 = vmatprep.subr.bf16.mxu0 0
      %1661 = vmatpush1.bf16.msra.mxu0 0
      %1662 = vmatprep.subr.bf16.mxu0 0
      %1663 = vmatpush1.bf16.msra.mxu0 0
      %1664 = vmatprep.subr.bf16.mxu0 0
      %1665 = vmatpush1.bf16.msra.mxu0 0
      %1666 = vmatprep.subr.bf16.mxu0 0
      %1667 = vmatpush1.bf16.msra.mxu0 0
      %1668 = vmatprep.subr.bf16.mxu0 0
      %1669 = vmatpush1.bf16.msra.mxu0 0
      %1670 = vmatprep.subr.bf16.mxu0 0
      %1671 = vmatpush1.bf16.msra.mxu0 0
      %1672 = vmatprep.subr.bf16.mxu0 0
      %1673 = vmatpush1.bf16.msra.mxu0 0
      %1674 = vmatprep.subr.bf16.mxu0 0
      %1675 = vmatpush1.bf16.msra.mxu0 0
      %1676 = vmatprep.subr.bf16.mxu0 0
      %1677 = vmatpush1.bf16.msra.mxu0 0
      %1678 = vmatprep.subr.bf16.mxu0 0
      %1679 = vmatpush1.bf16.msra.mxu0 0
      %1680 = vmatprep.subr.bf16.mxu0 0
      %1681 = vmatpush1.bf16.msra.mxu0 0
      %1682 = vmatprep.subr.bf16.mxu0 0
      %1683 = vmatpush1.bf16.msra.mxu0 0
      %1684 = vmatprep.subr.bf16.mxu0 0
      %1685 = vmatpush1.bf16.msra.mxu0 0
      %1686 = vmatprep.subr.bf16.mxu0 0
      %1687 = vmatpush1.bf16.msra.mxu0 0
      %1688 = vmatprep.mubr.bf16.mxu0 0
      %1689 = vmatmul.mubr.bf16.gmra.mrb[0].mxu0 %v525
      %v1690 = vpop.f32.mrb[0].mxu0
      %v1691 = vadd.f32 %v402, %v1690
      %v1692 = vpop.f32.mrb[0].mxu0
      %v1693 = vadd.f32 %v402, %v1692
      %v1694 = vpop.f32.mrb[0].mxu0
      %v1695 = vpop.f32.mrb[0].mxu0
      %1696 = vdwg.mxu0
      %1697 = vmatprep.subr.bf16.mxu0 %v1542
      %1698 = vmatpush1.bf16.msra.mxu0 %v1541
      %1699 = vmatprep.subr.bf16.mxu0 %v1592
      %1700 = vmatpush1.bf16.msra.mxu0 %v1589
      %1701 = vmatprep.subr.bf16.mxu0 0
      %1702 = vmatpush1.bf16.msra.mxu0 0
      %1703 = vmatprep.subr.bf16.mxu0 0
      %1704 = vmatpush1.bf16.msra.mxu0 0
      %1705 = vmatprep.subr.bf16.mxu0 0
      %1706 = vmatpush1.bf16.msra.mxu0 0
      %1707 = vmatprep.subr.bf16.mxu0 0
      %1708 = vmatpush1.bf16.msra.mxu0 0
      %1709 = vmatprep.subr.bf16.mxu0 0
      %1710 = vmatpush1.bf16.msra.mxu0 0
      %1711 = vmatprep.subr.bf16.mxu0 0
      %1712 = vmatpush1.bf16.msra.mxu0 0
      %1713 = vmatprep.subr.bf16.mxu0 0
      %1714 = vmatpush1.bf16.msra.mxu0 0
      %1715 = vmatprep.subr.bf16.mxu0 0
      %1716 = vmatpush1.bf16.msra.mxu0 0
      %1717 = vmatprep.subr.bf16.mxu0 0
      %1718 = vmatpush1.bf16.msra.mxu0 0
      %1719 = vmatprep.subr.bf16.mxu0 0
      %1720 = vmatpush1.bf16.msra.mxu0 0
      %1721 = vmatprep.subr.bf16.mxu0 0
      %1722 = vmatpush1.bf16.msra.mxu0 0
      %1723 = vmatprep.subr.bf16.mxu0 0
      %1724 = vmatpush1.bf16.msra.mxu0 0
      %1725 = vmatprep.subr.bf16.mxu0 0
      %1726 = vmatpush1.bf16.msra.mxu0 0
      %1727 = vmatprep.subr.bf16.mxu0 0
      %1728 = vmatpush1.bf16.msra.mxu0 0
      %1729 = vmatprep.mubr.bf16.mxu0 0
      %1730 = vmatmul.mubr.bf16.gmra.mrb[0].mxu0 %v525
      %v1731 = vpop.f32.mrb[0].mxu0
      %v1732 = vadd.f32 %v402, %v1731
      %v1733 = vpop.f32.mrb[0].mxu0
      %v1734 = vadd.f32 %v402, %v1733
      %v1735 = vpop.f32.mrb[0].mxu0
      %v1736 = vpop.f32.mrb[0].mxu0
      %1737 = vdwg.mxu0
      %1738 = vmatprep.subr.bf16.mxu0 %v1544
      %1739 = vmatpush1.bf16.msra.mxu0 %v1543
      %1740 = vmatprep.subr.bf16.mxu0 %v1598
      %1741 = vmatpush1.bf16.msra.mxu0 %v1595
      %1742 = vmatprep.subr.bf16.mxu0 0
      %1743 = vmatpush1.bf16.msra.mxu0 0
      %1744 = vmatprep.subr.bf16.mxu0 0
      %1745 = vmatpush1.bf16.msra.mxu0 0
      %1746 = vmatprep.subr.bf16.mxu0 0
      %1747 = vmatpush1.bf16.msra.mxu0 0
      %1748 = vmatprep.subr.bf16.mxu0 0
      %1749 = vmatpush1.bf16.msra.mxu0 0
      %1750 = vmatprep.subr.bf16.mxu0 0
      %1751 = vmatpush1.bf16.msra.mxu0 0
      %1752 = vmatprep.subr.bf16.mxu0 0
      %1753 = vmatpush1.bf16.msra.mxu0 0
      %1754 = vmatprep.subr.bf16.mxu0 0
      %1755 = vmatpush1.bf16.msra.mxu0 0
      %1756 = vmatprep.subr.bf16.mxu0 0
      %1757 = vmatpush1.bf16.msra.mxu0 0
      %1758 = vmatprep.subr.bf16.mxu0 0
      %1759 = vmatpush1.bf16.msra.mxu0 0
      %1760 = vmatprep.subr.bf16.mxu0 0
      %1761 = vmatpush1.bf16.msra.mxu0 0
      %1762 = vmatprep.subr.bf16.mxu0 0
      %1763 = vmatpush1.bf16.msra.mxu0 0
      %1764 = vmatprep.subr.bf16.mxu0 0
      %1765 = vmatpush1.bf16.msra.mxu0 0
      %1766 = vmatprep.subr.bf16.mxu0 0
      %1767 = vmatpush1.bf16.msra.mxu0 0
      %1768 = vmatprep.subr.bf16.mxu0 0
      %1769 = vmatpush1.bf16.msra.mxu0 0
      %1770 = vmatprep.mubr.bf16.mxu0 0
      %1771 = vmatmul.mubr.bf16.gmra.mrb[0].mxu0 %v525
      %v1772 = vpop.f32.mrb[0].mxu0
      %v1773 = vadd.f32 %v402, %v1772
      %v1774 = vpop.f32.mrb[0].mxu0
      %v1775 = vadd.f32 %v402, %v1774
      %v1776 = vpop.f32.mrb[0].mxu0
      %v1777 = vpop.f32.mrb[0].mxu0
      %1778 = vdwg.mxu0
      %1779 = vmatprep.subr.bf16.mxu0 %v1546
      %1780 = vmatpush1.bf16.msra.mxu0 %v1545
      %1781 = vmatprep.subr.bf16.mxu0 %v1604
      %1782 = vmatpush1.bf16.msra.mxu0 %v1601
      %1783 = vmatprep.subr.bf16.mxu0 0
      %1784 = vmatpush1.bf16.msra.mxu0 0
      %1785 = vmatprep.subr.bf16.mxu0 0
      %1786 = vmatpush1.bf16.msra.mxu0 0
      %1787 = vmatprep.subr.bf16.mxu0 0
      %1788 = vmatpush1.bf16.msra.mxu0 0
      %1789 = vmatprep.subr.bf16.mxu0 0
      %1790 = vmatpush1.bf16.msra.mxu0 0
      %1791 = vmatprep.subr.bf16.mxu0 0
      %1792 = vmatpush1.bf16.msra.mxu0 0
      %1793 = vmatprep.subr.bf16.mxu0 0
      %1794 = vmatpush1.bf16.msra.mxu0 0
      %1795 = vmatprep.subr.bf16.mxu0 0
      %1796 = vmatpush1.bf16.msra.mxu0 0
      %1797 = vmatprep.subr.bf16.mxu0 0
      %1798 = vmatpush1.bf16.msra.mxu0 0
      %1799 = vmatprep.subr.bf16.mxu0 0
      %1800 = vmatpush1.bf16.msra.mxu0 0
      %1801 = vmatprep.subr.bf16.mxu0 0
      %1802 = vmatpush1.bf16.msra.mxu0 0
      %1803 = vmatprep.subr.bf16.mxu0 0
      %1804 = vmatpush1.bf16.msra.mxu0 0
      %1805 = vmatprep.subr.bf16.mxu0 0
      %1806 = vmatpush1.bf16.msra.mxu0 0
      %1807 = vmatprep.subr.bf16.mxu0 0
      %1808 = vmatpush1.bf16.msra.mxu0 0
      %1809 = vmatprep.subr.bf16.mxu0 0
      %1810 = vmatpush1.bf16.msra.mxu0 0
      %1811 = vmatprep.mubr.bf16.mxu0 0
      %1812 = vmatmul.mubr.bf16.gmra.mrb[0].mxu0 %v525
      %v1813 = vpop.f32.mrb[0].mxu0
      %v1814 = vadd.f32 %v402, %v1813
      %v1815 = vpop.f32.mrb[0].mxu0
      %v1816 = vadd.f32 %v402, %v1815
      %v1817 = vpop.f32.mrb[0].mxu0
      %v1818 = vpop.f32.mrb[0].mxu0
      %1819 = vdwg.mxu0
      %1820 = vmatprep.subr.bf16.mxu0 %v1548
      %1821 = vmatpush1.bf16.msra.mxu0 %v1547
      %1822 = vmatprep.subr.bf16.mxu0 %v1610
      %1823 = vmatpush1.bf16.msra.mxu0 %v1607
      %1824 = vmatprep.subr.bf16.mxu0 0
      %1825 = vmatpush1.bf16.msra.mxu0 0
      %1826 = vmatprep.subr.bf16.mxu0 0
      %1827 = vmatpush1.bf16.msra.mxu0 0
      %1828 = vmatprep.subr.bf16.mxu0 0
      %1829 = vmatpush1.bf16.msra.mxu0 0
      %1830 = vmatprep.subr.bf16.mxu0 0
      %1831 = vmatpush1.bf16.msra.mxu0 0
      %1832 = vmatprep.subr.bf16.mxu0 0
      %1833 = vmatpush1.bf16.msra.mxu0 0
      %1834 = vmatprep.subr.bf16.mxu0 0
      %1835 = vmatpush1.bf16.msra.mxu0 0
      %1836 = vmatprep.subr.bf16.mxu0 0
      %1837 = vmatpush1.bf16.msra.mxu0 0
      %1838 = vmatprep.subr.bf16.mxu0 0
      %1839 = vmatpush1.bf16.msra.mxu0 0
      %1840 = vmatprep.subr.bf16.mxu0 0
      %1841 = vmatpush1.bf16.msra.mxu0 0
      %1842 = vmatprep.subr.bf16.mxu0 0
      %1843 = vmatpush1.bf16.msra.mxu0 0
      %1844 = vmatprep.subr.bf16.mxu0 0
      %1845 = vmatpush1.bf16.msra.mxu0 0
      %1846 = vmatprep.subr.bf16.mxu0 0
      %1847 = vmatpush1.bf16.msra.mxu0 0
      %1848 = vmatprep.subr.bf16.mxu0 0
      %1849 = vmatpush1.bf16.msra.mxu0 0
      %1850 = vmatprep.subr.bf16.mxu0 0
      %1851 = vmatpush1.bf16.msra.mxu0 0
      %1852 = vmatprep.mubr.bf16.mxu0 0
      %1853 = vmatmul.mubr.bf16.gmra.mrb[0].mxu0 %v525
      %v1854 = vpop.f32.mrb[0].mxu0
      %v1855 = vadd.f32 %v402, %v1854
      %v1856 = vpop.f32.mrb[0].mxu0
      %v1857 = vadd.f32 %v402, %v1856
      %v1858 = vpop.f32.mrb[0].mxu0
      %v1859 = vpop.f32.mrb[0].mxu0
      %1860 = vdwg.mxu0
      %1861 = vmatprep.subr.bf16.mxu0 0
      %1862 = vmatpush1.bf16.msra.mxu0 %v1549
      %1863 = vmatprep.subr.bf16.mxu0 0
      %1864 = vmatpush1.bf16.msra.mxu0 %v1613
      %1865 = vmatprep.subr.bf16.mxu0 0
      %1866 = vmatpush1.bf16.msra.mxu0 0
      %1867 = vmatprep.subr.bf16.mxu0 0
      %1868 = vmatpush1.bf16.msra.mxu0 0
      %1869 = vmatprep.subr.bf16.mxu0 0
      %1870 = vmatpush1.bf16.msra.mxu0 0
      %1871 = vmatprep.subr.bf16.mxu0 0
      %1872 = vmatpush1.bf16.msra.mxu0 0
      %1873 = vmatprep.subr.bf16.mxu0 0
      %1874 = vmatpush1.bf16.msra.mxu0 0
      %1875 = vmatprep.subr.bf16.mxu0 0
      %1876 = vmatpush1.bf16.msra.mxu0 0
      %1877 = vmatprep.subr.bf16.mxu0 0
      %1878 = vmatpush1.bf16.msra.mxu0 0
      %1879 = vmatprep.subr.bf16.mxu0 0
      %1880 = vmatpush1.bf16.msra.mxu0 0
      %1881 = vmatprep.subr.bf16.mxu0 0
      %1882 = vmatpush1.bf16.msra.mxu0 0
      %1883 = vmatprep.subr.bf16.mxu0 0
      %1884 = vmatpush1.bf16.msra.mxu0 0
      %1885 = vmatprep.subr.bf16.mxu0 0
      %1886 = vmatpush1.bf16.msra.mxu0 0
      %1887 = vmatprep.subr.bf16.mxu0 0
      %1888 = vmatpush1.bf16.msra.mxu0 0
      %1889 = vmatprep.subr.bf16.mxu0 0
      %1890 = vmatpush1.bf16.msra.mxu0 0
      %1891 = vmatprep.subr.bf16.mxu0 0
      %1892 = vmatpush1.bf16.msra.mxu0 0
      %1893 = vmatprep.mubr.bf16.mxu0 0
      %1894 = vmatmul.mubr.bf16.gmra.mrb[0].mxu0 %v525
      %v1895 = vpop.f32.mrb[0].mxu0
      %v1896 = vadd.f32 %v402, %v1895
      %v1897 = vpop.f32.mrb[0].mxu0
      %v1898 = vpop.f32.mrb[0].mxu0
      %v1899 = vpop.f32.mrb[0].mxu0
      %1900 = vdwg.mxu0
      %v1901 = vmax.f32 %v1650, 0.0
      %v1902 = vmax.f32 %v1652, 0.0
      %v1903 = vmax.f32 %v1691, 0.0
      %v1904 = vmax.f32 %v1693, 0.0
      %v1905 = vmax.f32 %v1732, 0.0
      %v1906 = vmax.f32 %v1734, 0.0
      %v1907 = vmax.f32 %v1773, 0.0
      %v1908 = vmax.f32 %v1775, 0.0
      %v1909 = vmax.f32 %v1814, 0.0
      %v1910 = vmax.f32 %v1816, 0.0
      %v1911 = vmax.f32 %v1855, 0.0
      %v1912 = vmax.f32 %v1857, 0.0
      %v1913 = vmax.f32 %v1896, 0.0
      %v1914 = vmul.f32 %v1901, %v872
      %v1915 = vmul.f32 %v1902, %v872
      %v1916 = vmul.f32 %v1903, %v872
      %v1917 = vmul.f32 %v1904, %v872
      %v1918 = vmul.f32 %v1905, %v872
      %v1919 = vmul.f32 %v1906, %v872
      %v1920 = vmul.f32 %v1907, %v872
      %v1921 = vmul.f32 %v1908, %v872
      %v1922 = vmul.f32 %v1909, %v872
      %v1923 = vmul.f32 %v1910, %v872
      %v1924 = vmul.f32 %v1911, %v872
      %v1925 = vmul.f32 %v1912, %v872
      %v1926 = vmul.f32 %v1913, %v872
      %v1927 = vadd.f32 %v1914, %v890
      %v1928 = vadd.f32 %v1915, %v890
      %v1929 = vadd.f32 %v1916, %v890
      %v1930 = vadd.f32 %v1917, %v890
      %v1931 = vadd.f32 %v1918, %v890
      %v1932 = vadd.f32 %v1919, %v890
      %v1933 = vadd.f32 %v1920, %v890
      %v1934 = vadd.f32 %v1921, %v890
      %v1935 = vadd.f32 %v1922, %v890
      %v1936 = vadd.f32 %v1923, %v890
      %v1937 = vadd.f32 %v1924, %v890
      %v1938 = vadd.f32 %v1925, %v890
      %v1939 = vadd.f32 %v1926, %v890
      %v1940 = vld [vmem:[%s360] sm:$0xff]
      %v1941 = vld [vmem:[%s360 + $0x8] sm:$0xff]
      %v1942 = vld [vmem:[%s360 + $0x10] sm:$0xff]
      %v1943 = vld [vmem:[%s360 + $0x18] sm:$0xff]
      %v1944 = vld [vmem:[%s360 + $0x20] sm:$0xff]
      %v1945 = vld [vmem:[%s360 + $0x28] sm:$0xff]
      %v1946 = vld [vmem:[%s360 + $0x30] sm:$0xf]
      %v1947 = vld [vmem:[%s360 + $0x34] sm:$0xff]
      %v1948 = vld [vmem:[%s360 + $0x3c] sm:$0xff]
      %v1949 = vld [vmem:[%s360 + $0x44] sm:$0xff]
      %v1950 = vld [vmem:[%s360 + $0x4c] sm:$0xff]
      %v1951 = vld [vmem:[%s360 + $0x54] sm:$0xff]
      %v1952 = vld [vmem:[%s360 + $0x5c] sm:$0xff]
      %v1953 = vld [vmem:[%s360 + $0x64] sm:$0xf]
      %v1954 = vld [vmem:[%s360 + $0x68] sm:$0xff]
      %v1955 = vld [vmem:[%s360 + $0x70] sm:$0xff]
      %v1956 = vld [vmem:[%s360 + $0x78] sm:$0xff]
      %v1957 = vld [vmem:[%s360 + $0x80] sm:$0xff]
      %v1958 = vld [vmem:[%s360 + $0x88] sm:$0xff]
      %v1959 = vld [vmem:[%s360 + $0x90] sm:$0xff]
      %v1960 = vld [vmem:[%s360 + $0x98] sm:$0xf]
      %v1961 = vld [vmem:[%s360 + $0x9c] sm:$0x11]
      %v1962 = vld [vmem:[%s360 + $0xa4] sm:$0x11]
      %v1963 = vld [vmem:[%s360 + $0xac] sm:$0x11]
      %v1964 = vld [vmem:[%s360 + $0xb4] sm:$0x11]
      %v1965 = vld [vmem:[%s360 + $0xbc] sm:$0x11]
      %v1966 = vld [vmem:[%s360 + $0xc4] sm:$0x11]
      %v1967 = vld [vmem:[%s360 + $0xcc] sm:$0x1]
      %v1996 = vunpack.c.l.b16 %v1940
      %v1997 = vunpack.c.h.b16 %v1940
      %v1998 = vunpack.c.l.b16 %v1941
      %v1999 = vunpack.c.h.b16 %v1941
      %v2000 = vunpack.c.l.b16 %v1942
      %v2001 = vunpack.c.h.b16 %v1942
      %v2002 = vunpack.c.l.b16 %v1943
      %v2003 = vunpack.c.h.b16 %v1943
      %v2004 = vunpack.c.l.b16 %v1944
      %v2005 = vunpack.c.h.b16 %v1944
      %v2006 = vunpack.c.l.b16 %v1945
      %v2007 = vunpack.c.h.b16 %v1945
      %v2008 = vunpack.c.l.b16 %v1946
      %v2009 = vunpack.c.l.b16 %v1947
      %v2010 = vunpack.c.h.b16 %v1947
      %v2011 = vunpack.c.l.b16 %v1948
      %v2012 = vunpack.c.h.b16 %v1948
      %v2013 = vunpack.c.l.b16 %v1949
      %v2014 = vunpack.c.h.b16 %v1949
      %v2015 = vunpack.c.l.b16 %v1950
      %v2016 = vunpack.c.h.b16 %v1950
      %v2017 = vunpack.c.l.b16 %v1951
      %v2018 = vunpack.c.h.b16 %v1951
      %v2019 = vunpack.c.l.b16 %v1952
      %v2020 = vunpack.c.h.b16 %v1952
      %v2021 = vunpack.c.l.b16 %v1953
      %v2022 = vunpack.c.l.b16 %v1954
      %v2023 = vunpack.c.h.b16 %v1954
      %v2024 = vunpack.c.l.b16 %v1955
      %v2025 = vunpack.c.h.b16 %v1955
      %v2026 = vunpack.c.l.b16 %v1956
      %v2027 = vunpack.c.h.b16 %v1956
      %v2028 = vunpack.c.l.b16 %v1957
      %v2029 = vunpack.c.h.b16 %v1957
      %v2030 = vunpack.c.l.b16 %v1958
      %v2031 = vunpack.c.h.b16 %v1958
      %v2032 = vunpack.c.l.b16 %v1959
      %v2033 = vunpack.c.h.b16 %v1959
      %v2034 = vunpack.c.l.b16 %v1960
      %v2035 = vunpack.c.l.b16 %v1961
      %v2036 = vunpack.c.h.b16 %v1961
      %v2037 = vunpack.c.l.b16 %v1962
      %v2038 = vunpack.c.h.b16 %v1962
      %v2039 = vunpack.c.l.b16 %v1963
      %v2040 = vunpack.c.h.b16 %v1963
      %v2041 = vunpack.c.l.b16 %v1964
      %v2042 = vunpack.c.h.b16 %v1964
      %v2043 = vunpack.c.l.b16 %v1965
      %v2044 = vunpack.c.h.b16 %v1965
      %v2045 = vunpack.c.l.b16 %v1966
      %v2046 = vunpack.c.h.b16 %v1966
      %v2047 = vunpack.c.l.b16 %v1967
      %v2048 = vpack.c.b16 %v2009, %v1996
      %v2049 = vpack.c.b16 %v2010, %v1997
      %v2050 = vpack.c.b16 %v2011, %v1998
      %v2051 = vpack.c.b16 %v2012, %v1999
      %v2052 = vpack.c.b16 %v2013, %v2000
      %v2053 = vpack.c.b16 %v2014, %v2001
      %v2054 = vpack.c.b16 %v2015, %v2002
      %v2055 = vpack.c.b16 %v2016, %v2003
      %v2056 = vpack.c.b16 %v2017, %v2004
      %v2057 = vpack.c.b16 %v2018, %v2005
      %v2058 = vpack.c.b16 %v2019, %v2006
      %v2059 = vpack.c.b16 %v2020, %v2007
      %v2060 = vpack.c.b16 %v2021, %v2008
      %v2061 = vpack.c.b16 %v2035, %v2022
      %v2062 = vpack.c.b16 %v2036, %v2023
      %v2063 = vpack.c.b16 %v2037, %v2024
      %v2064 = vpack.c.b16 %v2038, %v2025
      %v2065 = vpack.c.b16 %v2039, %v2026
      %v2066 = vpack.c.b16 %v2040, %v2027
      %v2067 = vpack.c.b16 %v2041, %v2028
      %v2068 = vpack.c.b16 %v2042, %v2029
      %v2069 = vpack.c.b16 %v2043, %v2030
      %v2070 = vpack.c.b16 %v2044, %v2031
      %v2071 = vpack.c.b16 %v2045, %v2032
      %v2072 = vpack.c.b16 %v2046, %v2033
      %v2073 = vpack.c.b16 %v2047, %v2034
      %v2088 = vand.u32 %v2061, %v530
      %v2091 = vand.u32 %v2062, %v530
      %v2094 = vand.u32 %v2063, %v530
      %v2097 = vand.u32 %v2064, %v530
      %v2100 = vand.u32 %v2065, %v530
      %v2103 = vand.u32 %v2066, %v530
      %v2106 = vand.u32 %v2067, %v530
      %v2109 = vand.u32 %v2068, %v530
      %v2112 = vand.u32 %v2069, %v530
      %v2115 = vand.u32 %v2070, %v530
      %v2118 = vand.u32 %v2071, %v530
      %v2121 = vand.u32 %v2072, %v530
      %v2124 = vand.u32 %v2073, %v530
      %2126 = vmatprep.subr.bf16.mxu0 %v2049
      %2127 = vmatpush1.bf16.msra.mxu0 %v2048
      %2128 = vmatprep.subr.bf16.mxu0 %v2091
      %2129 = vmatpush1.bf16.msra.mxu0 %v2088
      %2130 = vmatprep.subr.bf16.mxu0 0
      %2131 = vmatpush1.bf16.msra.mxu0 0
      %2132 = vmatprep.subr.bf16.mxu0 0
      %2133 = vmatpush1.bf16.msra.mxu0 0
      %2134 = vmatprep.subr.bf16.mxu0 0
      %2135 = vmatpush1.bf16.msra.mxu0 0
      %2136 = vmatprep.subr.bf16.mxu0 0
      %2137 = vmatpush1.bf16.msra.mxu0 0
      %2138 = vmatprep.subr.bf16.mxu0 0
      %2139 = vmatpush1.bf16.msra.mxu0 0
      %2140 = vmatprep.subr.bf16.mxu0 0
      %2141 = vmatpush1.bf16.msra.mxu0 0
      %2142 = vmatprep.subr.bf16.mxu0 0
      %2143 = vmatpush1.bf16.msra.mxu0 0
      %2144 = vmatprep.subr.bf16.mxu0 0
      %2145 = vmatpush1.bf16.msra.mxu0 0
      %2146 = vmatprep.subr.bf16.mxu0 0
      %2147 = vmatpush1.bf16.msra.mxu0 0
      %2148 = vmatprep.subr.bf16.mxu0 0
      %2149 = vmatpush1.bf16.msra.mxu0 0
      %2150 = vmatprep.subr.bf16.mxu0 0
      %2151 = vmatpush1.bf16.msra.mxu0 0
      %2152 = vmatprep.subr.bf16.mxu0 0
      %2153 = vmatpush1.bf16.msra.mxu0 0
      %2154 = vmatprep.subr.bf16.mxu0 0
      %2155 = vmatpush1.bf16.msra.mxu0 0
      %2156 = vmatprep.subr.bf16.mxu0 0
      %2157 = vmatpush1.bf16.msra.mxu0 0
      %2158 = vmatprep.mubr.bf16.mxu0 0
      %2159 = vmatmul.mubr.bf16.gmra.mrb[0].mxu0 %v525
      %v2160 = vpop.f32.mrb[0].mxu0
      %v2161 = vadd.f32 %v402, %v2160
      %v2162 = vpop.f32.mrb[0].mxu0
      %v2163 = vadd.f32 %v402, %v2162
      %v2164 = vpop.f32.mrb[0].mxu0
      %v2165 = vpop.f32.mrb[0].mxu0
      %2166 = vdwg.mxu0
      %2167 = vmatprep.subr.bf16.mxu0 %v2051
      %2168 = vmatpush1.bf16.msra.mxu0 %v2050
      %2169 = vmatprep.subr.bf16.mxu0 %v2097
      %2170 = vmatpush1.bf16.msra.mxu0 %v2094
      %2171 = vmatprep.subr.bf16.mxu0 0
      %2172 = vmatpush1.bf16.msra.mxu0 0
      %2173 = vmatprep.subr.bf16.mxu0 0
      %2174 = vmatpush1.bf16.msra.mxu0 0
      %2175 = vmatprep.subr.bf16.mxu0 0
      %2176 = vmatpush1.bf16.msra.mxu0 0
      %2177 = vmatprep.subr.bf16.mxu0 0
      %2178 = vmatpush1.bf16.msra.mxu0 0
      %2179 = vmatprep.subr.bf16.mxu0 0
      %2180 = vmatpush1.bf16.msra.mxu0 0
      %2181 = vmatprep.subr.bf16.mxu0 0
      %2182 = vmatpush1.bf16.msra.mxu0 0
      %2183 = vmatprep.subr.bf16.mxu0 0
      %2184 = vmatpush1.bf16.msra.mxu0 0
      %2185 = vmatprep.subr.bf16.mxu0 0
      %2186 = vmatpush1.bf16.msra.mxu0 0
      %2187 = vmatprep.subr.bf16.mxu0 0
      %2188 = vmatpush1.bf16.msra.mxu0 0
      %2189 = vmatprep.subr.bf16.mxu0 0
      %2190 = vmatpush1.bf16.msra.mxu0 0
      %2191 = vmatprep.subr.bf16.mxu0 0
      %2192 = vmatpush1.bf16.msra.mxu0 0
      %2193 = vmatprep.subr.bf16.mxu0 0
      %2194 = vmatpush1.bf16.msra.mxu0 0
      %2195 = vmatprep.subr.bf16.mxu0 0
      %2196 = vmatpush1.bf16.msra.mxu0 0
      %2197 = vmatprep.subr.bf16.mxu0 0
      %2198 = vmatpush1.bf16.msra.mxu0 0
      %2199 = vmatprep.mubr.bf16.mxu0 0
      %2200 = vmatmul.mubr.bf16.gmra.mrb[0].mxu0 %v525
      %v2201 = vpop.f32.mrb[0].mxu0
      %v2202 = vadd.f32 %v402, %v2201
      %v2203 = vpop.f32.mrb[0].mxu0
      %v2204 = vadd.f32 %v402, %v2203
      %v2205 = vpop.f32.mrb[0].mxu0
      %v2206 = vpop.f32.mrb[0].mxu0
      %2207 = vdwg.mxu0
      %2208 = vmatprep.subr.bf16.mxu0 %v2053
      %2209 = vmatpush1.bf16.msra.mxu0 %v2052
      %2210 = vmatprep.subr.bf16.mxu0 %v2103
      %2211 = vmatpush1.bf16.msra.mxu0 %v2100
      %2212 = vmatprep.subr.bf16.mxu0 0
      %2213 = vmatpush1.bf16.msra.mxu0 0
      %2214 = vmatprep.subr.bf16.mxu0 0
      %2215 = vmatpush1.bf16.msra.mxu0 0
      %2216 = vmatprep.subr.bf16.mxu0 0
      %2217 = vmatpush1.bf16.msra.mxu0 0
      %2218 = vmatprep.subr.bf16.mxu0 0
      %2219 = vmatpush1.bf16.msra.mxu0 0
      %2220 = vmatprep.subr.bf16.mxu0 0
      %2221 = vmatpush1.bf16.msra.mxu0 0
      %2222 = vmatprep.subr.bf16.mxu0 0
      %2223 = vmatpush1.bf16.msra.mxu0 0
      %2224 = vmatprep.subr.bf16.mxu0 0
      %2225 = vmatpush1.bf16.msra.mxu0 0
      %2226 = vmatprep.subr.bf16.mxu0 0
      %2227 = vmatpush1.bf16.msra.mxu0 0
      %2228 = vmatprep.subr.bf16.mxu0 0
      %2229 = vmatpush1.bf16.msra.mxu0 0
      %2230 = vmatprep.subr.bf16.mxu0 0
      %2231 = vmatpush1.bf16.msra.mxu0 0
      %2232 = vmatprep.subr.bf16.mxu0 0
      %2233 = vmatpush1.bf16.msra.mxu0 0
      %2234 = vmatprep.subr.bf16.mxu0 0
      %2235 = vmatpush1.bf16.msra.mxu0 0
      %2236 = vmatprep.subr.bf16.mxu0 0
      %2237 = vmatpush1.bf16.msra.mxu0 0
      %2238 = vmatprep.subr.bf16.mxu0 0
      %2239 = vmatpush1.bf16.msra.mxu0 0
      %2240 = vmatprep.mubr.bf16.mxu0 0
      %2241 = vmatmul.mubr.bf16.gmra.mrb[0].mxu0 %v525
      %v2242 = vpop.f32.mrb[0].mxu0
      %v2243 = vadd.f32 %v402, %v2242
      %v2244 = vpop.f32.mrb[0].mxu0
      %v2245 = vadd.f32 %v402, %v2244
      %v2246 = vpop.f32.mrb[0].mxu0
      %v2247 = vpop.f32.mrb[0].mxu0
      %2248 = vdwg.mxu0
      %2249 = vmatprep.subr.bf16.mxu0 %v2055
      %2250 = vmatpush1.bf16.msra.mxu0 %v2054
      %2251 = vmatprep.subr.bf16.mxu0 %v2109
      %2252 = vmatpush1.bf16.msra.mxu0 %v2106
      %2253 = vmatprep.subr.bf16.mxu0 0
      %2254 = vmatpush1.bf16.msra.mxu0 0
      %2255 = vmatprep.subr.bf16.mxu0 0
      %2256 = vmatpush1.bf16.msra.mxu0 0
      %2257 = vmatprep.subr.bf16.mxu0 0
      %2258 = vmatpush1.bf16.msra.mxu0 0
      %2259 = vmatprep.subr.bf16.mxu0 0
      %2260 = vmatpush1.bf16.msra.mxu0 0
      %2261 = vmatprep.subr.bf16.mxu0 0
      %2262 = vmatpush1.bf16.msra.mxu0 0
      %2263 = vmatprep.subr.bf16.mxu0 0
      %2264 = vmatpush1.bf16.msra.mxu0 0
      %2265 = vmatprep.subr.bf16.mxu0 0
      %2266 = vmatpush1.bf16.msra.mxu0 0
      %2267 = vmatprep.subr.bf16.mxu0 0
      %2268 = vmatpush1.bf16.msra.mxu0 0
      %2269 = vmatprep.subr.bf16.mxu0 0
      %2270 = vmatpush1.bf16.msra.mxu0 0
      %2271 = vmatprep.subr.bf16.mxu0 0
      %2272 = vmatpush1.bf16.msra.mxu0 0
      %2273 = vmatprep.subr.bf16.mxu0 0
      %2274 = vmatpush1.bf16.msra.mxu0 0
      %2275 = vmatprep.subr.bf16.mxu0 0
      %2276 = vmatpush1.bf16.msra.mxu0 0
      %2277 = vmatprep.subr.bf16.mxu0 0
      %2278 = vmatpush1.bf16.msra.mxu0 0
      %2279 = vmatprep.subr.bf16.mxu0 0
      %2280 = vmatpush1.bf16.msra.mxu0 0
      %2281 = vmatprep.mubr.bf16.mxu0 0
      %2282 = vmatmul.mubr.bf16.gmra.mrb[0].mxu0 %v525
      %v2283 = vpop.f32.mrb[0].mxu0
      %v2284 = vadd.f32 %v402, %v2283
      %v2285 = vpop.f32.mrb[0].mxu0
      %v2286 = vadd.f32 %v402, %v2285
      %v2287 = vpop.f32.mrb[0].mxu0
      %v2288 = vpop.f32.mrb[0].mxu0
      %2289 = vdwg.mxu0
      %2290 = vmatprep.subr.bf16.mxu0 %v2057
      %2291 = vmatpush1.bf16.msra.mxu0 %v2056
      %2292 = vmatprep.subr.bf16.mxu0 %v2115
      %2293 = vmatpush1.bf16.msra.mxu0 %v2112
      %2294 = vmatprep.subr.bf16.mxu0 0
      %2295 = vmatpush1.bf16.msra.mxu0 0
      %2296 = vmatprep.subr.bf16.mxu0 0
      %2297 = vmatpush1.bf16.msra.mxu0 0
      %2298 = vmatprep.subr.bf16.mxu0 0
      %2299 = vmatpush1.bf16.msra.mxu0 0
      %2300 = vmatprep.subr.bf16.mxu0 0
      %2301 = vmatpush1.bf16.msra.mxu0 0
      %2302 = vmatprep.subr.bf16.mxu0 0
      %2303 = vmatpush1.bf16.msra.mxu0 0
      %2304 = vmatprep.subr.bf16.mxu0 0
      %2305 = vmatpush1.bf16.msra.mxu0 0
      %2306 = vmatprep.subr.bf16.mxu0 0
      %2307 = vmatpush1.bf16.msra.mxu0 0
      %2308 = vmatprep.subr.bf16.mxu0 0
      %2309 = vmatpush1.bf16.msra.mxu0 0
      %2310 = vmatprep.subr.bf16.mxu0 0
      %2311 = vmatpush1.bf16.msra.mxu0 0
      %2312 = vmatprep.subr.bf16.mxu0 0
      %2313 = vmatpush1.bf16.msra.mxu0 0
      %2314 = vmatprep.subr.bf16.mxu0 0
      %2315 = vmatpush1.bf16.msra.mxu0 0
      %2316 = vmatprep.subr.bf16.mxu0 0
      %2317 = vmatpush1.bf16.msra.mxu0 0
      %2318 = vmatprep.subr.bf16.mxu0 0
      %2319 = vmatpush1.bf16.msra.mxu0 0
      %2320 = vmatprep.subr.bf16.mxu0 0
      %2321 = vmatpush1.bf16.msra.mxu0 0
      %2322 = vmatprep.mubr.bf16.mxu0 0
      %2323 = vmatmul.mubr.bf16.gmra.mrb[0].mxu0 %v525
      %v2324 = vpop.f32.mrb[0].mxu0
      %v2325 = vadd.f32 %v402, %v2324
      %v2326 = vpop.f32.mrb[0].mxu0
      %v2327 = vadd.f32 %v402, %v2326
      %v2328 = vpop.f32.mrb[0].mxu0
      %v2329 = vpop.f32.mrb[0].mxu0
      %2330 = vdwg.mxu0
      %2331 = vmatprep.subr.bf16.mxu0 %v2059
      %2332 = vmatpush1.bf16.msra.mxu0 %v2058
      %2333 = vmatprep.subr.bf16.mxu0 %v2121
      %2334 = vmatpush1.bf16.msra.mxu0 %v2118
      %2335 = vmatprep.subr.bf16.mxu0 0
      %2336 = vmatpush1.bf16.msra.mxu0 0
      %2337 = vmatprep.subr.bf16.mxu0 0
      %2338 = vmatpush1.bf16.msra.mxu0 0
      %2339 = vmatprep.subr.bf16.mxu0 0
      %2340 = vmatpush1.bf16.msra.mxu0 0
      %2341 = vmatprep.subr.bf16.mxu0 0
      %2342 = vmatpush1.bf16.msra.mxu0 0
      %2343 = vmatprep.subr.bf16.mxu0 0
      %2344 = vmatpush1.bf16.msra.mxu0 0
      %2345 = vmatprep.subr.bf16.mxu0 0
      %2346 = vmatpush1.bf16.msra.mxu0 0
      %2347 = vmatprep.subr.bf16.mxu0 0
      %2348 = vmatpush1.bf16.msra.mxu0 0
      %2349 = vmatprep.subr.bf16.mxu0 0
      %2350 = vmatpush1.bf16.msra.mxu0 0
      %2351 = vmatprep.subr.bf16.mxu0 0
      %2352 = vmatpush1.bf16.msra.mxu0 0
      %2353 = vmatprep.subr.bf16.mxu0 0
      %2354 = vmatpush1.bf16.msra.mxu0 0
      %2355 = vmatprep.subr.bf16.mxu0 0
      %2356 = vmatpush1.bf16.msra.mxu0 0
      %2357 = vmatprep.subr.bf16.mxu0 0
      %2358 = vmatpush1.bf16.msra.mxu0 0
      %2359 = vmatprep.subr.bf16.mxu0 0
      %2360 = vmatpush1.bf16.msra.mxu0 0
      %2361 = vmatprep.subr.bf16.mxu0 0
      %2362 = vmatpush1.bf16.msra.mxu0 0
      %2363 = vmatprep.mubr.bf16.mxu0 0
      %2364 = vmatmul.mubr.bf16.gmra.mrb[0].mxu0 %v525
      %v2365 = vpop.f32.mrb[0].mxu0
      %v2366 = vadd.f32 %v402, %v2365
      %v2367 = vpop.f32.mrb[0].mxu0
      %v2368 = vadd.f32 %v402, %v2367
      %v2369 = vpop.f32.mrb[0].mxu0
      %v2370 = vpop.f32.mrb[0].mxu0
      %2371 = vdwg.mxu0
      %2372 = vmatprep.subr.bf16.mxu0 0
      %2373 = vmatpush1.bf16.msra.mxu0 %v2060
      %2374 = vmatprep.subr.bf16.mxu0 0
      %2375 = vmatpush1.bf16.msra.mxu0 %v2124
      %2376 = vmatprep.subr.bf16.mxu0 0
      %2377 = vmatpush1.bf16.msra.mxu0 0
      %2378 = vmatprep.subr.bf16.mxu0 0
      %2379 = vmatpush1.bf16.msra.mxu0 0
      %2380 = vmatprep.subr.bf16.mxu0 0
      %2381 = vmatpush1.bf16.msra.mxu0 0
      %2382 = vmatprep.subr.bf16.mxu0 0
      %2383 = vmatpush1.bf16.msra.mxu0 0
      %2384 = vmatprep.subr.bf16.mxu0 0
      %2385 = vmatpush1.bf16.msra.mxu0 0
      %2386 = vmatprep.subr.bf16.mxu0 0
      %2387 = vmatpush1.bf16.msra.mxu0 0
      %2388 = vmatprep.subr.bf16.mxu0 0
      %2389 = vmatpush1.bf16.msra.mxu0 0
      %2390 = vmatprep.subr.bf16.mxu0 0
      %2391 = vmatpush1.bf16.msra.mxu0 0
      %2392 = vmatprep.subr.bf16.mxu0 0
      %2393 = vmatpush1.bf16.msra.mxu0 0
      %2394 = vmatprep.subr.bf16.mxu0 0
      %2395 = vmatpush1.bf16.msra.mxu0 0
      %2396 = vmatprep.subr.bf16.mxu0 0
      %2397 = vmatpush1.bf16.msra.mxu0 0
      %2398 = vmatprep.subr.bf16.mxu0 0
      %2399 = vmatpush1.bf16.msra.mxu0 0
      %2400 = vmatprep.subr.bf16.mxu0 0
      %2401 = vmatpush1.bf16.msra.mxu0 0
      %2402 = vmatprep.subr.bf16.mxu0 0
      %2403 = vmatpush1.bf16.msra.mxu0 0
      %2404 = vmatprep.mubr.bf16.mxu0 0
      %2405 = vmatmul.mubr.bf16.gmra.mrb[0].mxu0 %v525
      %v2406 = vpop.f32.mrb[0].mxu0
      %v2407 = vadd.f32 %v402, %v2406
      %v2408 = vpop.f32.mrb[0].mxu0
      %v2409 = vpop.f32.mrb[0].mxu0
      %v2410 = vpop.f32.mrb[0].mxu0
      %2411 = vdwg.mxu0
      %v2412 = vmax.f32 %v2161, 0.0
      %v2413 = vmax.f32 %v2163, 0.0
      %v2414 = vmax.f32 %v2202, 0.0
      %v2415 = vmax.f32 %v2204, 0.0
      %v2416 = vmax.f32 %v2243, 0.0
      %v2417 = vmax.f32 %v2245, 0.0
      %v2418 = vmax.f32 %v2284, 0.0
      %v2419 = vmax.f32 %v2286, 0.0
      %v2420 = vmax.f32 %v2325, 0.0
      %v2421 = vmax.f32 %v2327, 0.0
      %v2422 = vmax.f32 %v2366, 0.0
      %v2423 = vmax.f32 %v2368, 0.0
      %v2424 = vmax.f32 %v2407, 0.0
      %v2425 = vmul.f32 %v2412, %v872
      %v2426 = vmul.f32 %v2413, %v872
      %v2427 = vmul.f32 %v2414, %v872
      %v2428 = vmul.f32 %v2415, %v872
      %v2429 = vmul.f32 %v2416, %v872
      %v2430 = vmul.f32 %v2417, %v872
      %v2431 = vmul.f32 %v2418, %v872
      %v2432 = vmul.f32 %v2419, %v872
      %v2433 = vmul.f32 %v2420, %v872
      %v2434 = vmul.f32 %v2421, %v872
      %v2435 = vmul.f32 %v2422, %v872
      %v2436 = vmul.f32 %v2423, %v872
      %v2437 = vmul.f32 %v2424, %v872
      %v2438 = vadd.f32 %v2425, %v890
      %v2439 = vadd.f32 %v2426, %v890
      %v2440 = vadd.f32 %v2427, %v890
      %v2441 = vadd.f32 %v2428, %v890
      %v2442 = vadd.f32 %v2429, %v890
      %v2443 = vadd.f32 %v2430, %v890
      %v2444 = vadd.f32 %v2431, %v890
      %v2445 = vadd.f32 %v2432, %v890
      %v2446 = vadd.f32 %v2433, %v890
      %v2447 = vadd.f32 %v2434, %v890
      %v2448 = vadd.f32 %v2435, %v890
      %v2449 = vadd.f32 %v2436, %v890
      %v2450 = vadd.f32 %v2437, %v890
      %v2451 = vmax.f32 %v1927, %v2438
      %v2452 = vmax.f32 %v1928, %v2439
      %v2453 = vmax.f32 %v1929, %v2440
      %v2454 = vmax.f32 %v1930, %v2441
      %v2455 = vmax.f32 %v1931, %v2442
      %v2456 = vmax.f32 %v1932, %v2443
      %v2457 = vmax.f32 %v1933, %v2444
      %v2458 = vmax.f32 %v1934, %v2445
      %v2459 = vmax.f32 %v1935, %v2446
      %v2460 = vmax.f32 %v1936, %v2447
      %v2461 = vmax.f32 %v1937, %v2448
      %v2462 = vmax.f32 %v1938, %v2449
      %v2463 = vmax.f32 %v1939, %v2450
      %v2464 = vmax.f32 %v1416, %v2451
      %v2465 = vmax.f32 %v1417, %v2452
      %v2466 = vmax.f32 %v1418, %v2453
      %v2467 = vmax.f32 %v1419, %v2454
      %v2468 = vmax.f32 %v1420, %v2455
      %v2469 = vmax.f32 %v1421, %v2456
      %v2470 = vmax.f32 %v1422, %v2457
      %v2471 = vmax.f32 %v1423, %v2458
      %v2472 = vmax.f32 %v1424, %v2459
      %v2473 = vmax.f32 %v1425, %v2460
      %v2474 = vmax.f32 %v1426, %v2461
      %v2475 = vmax.f32 %v1427, %v2462
      %v2476 = vmax.f32 %v1428, %v2463
      %2477 = vst [vmem:[%s365] sm:$0xff] %v2464
      %2478 = vst [vmem:[%s365 + $0x8] sm:$0xff] %v2465
      %2479 = vst [vmem:[%s365 + $0x10] sm:$0xff] %v2466
      %2480 = vst [vmem:[%s365 + $0x18] sm:$0xff] %v2467
      %2481 = vst [vmem:[%s365 + $0x20] sm:$0xff] %v2468
      %2482 = vst [vmem:[%s365 + $0x28] sm:$0xff] %v2469
      %2483 = vst [vmem:[%s365 + $0x30] sm:$0xff] %v2470
      %2484 = vst [vmem:[%s365 + $0x38] sm:$0xff] %v2471
      %2485 = vst [vmem:[%s365 + $0x40] sm:$0xff] %v2472
      %2486 = vst [vmem:[%s365 + $0x48] sm:$0xff] %v2473
      %2487 = vst [vmem:[%s365 + $0x50] sm:$0xff] %v2474
      %2488 = vst [vmem:[%s365 + $0x58] sm:$0xff] %v2475
      %vm2489 = vcmask 523264
      %2490 = vst.msk [vmem:[%s365 + $0x60] sm:$0xff] %vm2489, %v2476
      %p2491 = scmp.lt.s32.totalorder %s19, 1
      %s2492 = scalar_select %p2491, %s19, 1
      %s2493 = smul.addr %s2492, 13
      %s2494 = smul.addr %s2493, 8
      %s2495 = scalar_lea.vmem %s8, %s2494
      // Predicated region
      $region53: #{cnn_forward.3} parent=51 // pred_check
        %p2496 = pneg %p225
      $region54: #{cnn_forward.3} parent=51 // pred_check_branch
        %2498 = sbr.rel (%p2496) target = $region56
      $region55: #{cnn_forward.3} parent=51 // pred_region
        _
      $region56: #{cnn_forward.3} parent=51 // pred_fallthru
        _
    $region52: #{cnn_forward.3} parent=5 // pred_fallthru
      _
    %p2499 = scmp.le.s32.totalorder 2, %s14
    // Predicated region
    $region57: #{cnn_forward.3} parent=5 // pred_check
      %p2500 = pneg %p2499
    $region58: #{cnn_forward.3} parent=5 // pred_check_branch
      %2502 = sbr.rel (%p2500) target = $region60
    $region59: #{cnn_forward.3} parent=5 // pred_region
      %s2503 = ssub.s32 %s14, 2
      // Predicated region
      $region61: #{cnn_forward.3} parent=59 // pred_check
        %p2504 = pneg %p231
      $region62: #{cnn_forward.3} parent=59 // pred_check_branch
        %2506 = sbr.rel (%p2504) target = $region64
      $region63: #{cnn_forward.3} parent=59 // pred_region
        %p2507 = scmp.lt.s32.totalorder %s20, 1
        %s2508 = scalar_select %p2507, %s20, 1
        %s2509 = smul.addr %s2508, 13
        %s2510 = smul.addr %s2509, 8
        %s2511 = scalar_lea.vmem %s8, %s2510
      $region64: #{cnn_forward.3} parent=59 // pred_fallthru
        _
    $region60: #{cnn_forward.3} parent=5 // pred_fallthru
      _
  $region6: #{cnn_forward.3} parent=0 // loop_footer
    %s18 = sadd.s32 1, %s14
  $region7: #{cnn_forward.3} parent=0 // loop_footer_branch
    %13 = sbr.rel target = $region3
  $region8: #{cnn_forward.3} parent=0 // loop_exit
    _

// kernel: cnn_forward.4
$region0: #{cnn_forward.4}
  #allocation0 [shape = 'u32[]', space=smem, size = 0x4, offset = 0x4, fixed_abs, tag = 'smem constant byte address 0x4 - core index']
  #allocation1 [shape = 'u32[144,128]{1,0:T(1,128)}', space=vmem, size = 0x12000, scoped, tag = 'internal scratch']
  %s0 = inlined_call_operand.vmem [shape: bf16[2,200,400], index: 0, kind: input, shape index: {}]
  %s1 = inlined_call_operand.vmem [shape: bf16[2,200,400], index: 1, kind: input, shape index: {}]
  %s2 = inlined_call_operand.vmem [shape: bf16[2,200,400], index: 2, kind: input, shape index: {}]
  %s3 = inlined_call_operand.vmem [shape: bf16[2,200,400], index: 3, kind: input, shape index: {}]
  %s4 = inlined_call_operand.vmem [shape: bf16[16,200], index: 4, kind: input, shape index: {}]
  %s5 = inlined_call_operand.vmem [shape: f32[16,1], index: 5, kind: input, shape index: {}]
  %s6 = inlined_call_operand.vmem [shape: f32[16,1], index: 6, kind: input, shape index: {}]
  %s7 = inlined_call_operand.vmem [shape: f32[16,1], index: 7, kind: input, shape index: {}]
  %s8 = inlined_call_operand.vmem [shape: f32[2,16,400], index: 8, kind: output, shape index: {}]
  %s9 = sld [smem:[#allocation0]]
  $region65: #{cnn_forward.4} parent=0
    _
  %s11 = ssub.s32 1, %s9
  %s12 = scalar_select 0, %s11, %s9
  loop: start=0, step=1, limit=4
  $region2: #{cnn_forward.4} parent=0 // loop_pre_header
    _
  $region3: #{cnn_forward.4} parent=0 // loop_header
    %s14 = sphi 0, %s18
    %p15 = scmp.ge.s32.totalorder %s14, 4
    %s24 = sphi 0, %s26
    %s27 = sphi 0, %s24
    %s28 = sphi 0, %s27
    %s44 = sphi 0, %s28
    %s50 = sphi 0, %s52
    %s53 = sphi 0, %s50
    %s54 = sphi 0, %s53
    %s70 = sphi 0, %s54
    %s76 = sphi 0, %s78
    %s79 = sphi 0, %s76
    %s80 = sphi 0, %s79
    %s96 = sphi 0, %s80
    %s102 = sphi 0, %s104
    %s105 = sphi 0, %s102
    %s106 = sphi 0, %s105
    %s122 = sphi 0, %s106
    %s126 = sphi 0, %s126
    %s128 = sphi 0, %s126
    %s129 = sphi 0, %s128
    %s143 = sphi 0, %s129
    %s147 = sphi 0, %s147
    %s149 = sphi 0, %s147
    %s150 = sphi 0, %s149
    %s164 = sphi 0, %s150
    %s168 = sphi 0, %s168
    %s170 = sphi 0, %s168
    %s171 = sphi 0, %s170
    %s185 = sphi 0, %s171
    %s189 = sphi 0, %s189
    %s191 = sphi 0, %s189
    %s192 = sphi 0, %s191
    %s206 = sphi 0, %s192
    %s212 = sphi 0, %s214
    %s215 = sphi 0, %s212
    %s216 = sphi 0, %s215
    %s232 = sphi 0, %s216
  $region4: #{cnn_forward.4} parent=0 // loop_header_branch
    %17 = sbr.rel (%p15) target = $region8
  $region5: #{cnn_forward.4} parent=0 // loop_body
    %s19 = ssub.s32 %s14, 1
    %s20 = ssub.s32 %s14, 2
    %s21 = sadd.s32 %s14, 1
    %s22 = ssub.s32 %s14, %s21
    %p23 = scmp.eq.s32.totalorder %s22, 0
    %s25 = sadd.s32 %s24, 1
    %s26 = scalar_select %p23, %s24, %s25
    %p29 = pneg %p23
    %p30 = scmp.eq.s32.totalorder %s14, 1
    %p31 = por %p29, %p30
    %p32 = scmp.ne.s32.totalorder %s24, %s27
    %p33 = scmp.eq.s32.totalorder %s14, 0
    %p34 = por %p32, %p33
    %p35 = scmp.ne.s32.totalorder %s24, %s27
    %p36 = scmp.eq.s32.totalorder %s19, 1
    %p37 = por %p35, %p36
    %p38 = scmp.ne.s32.totalorder %s27, %s28
    %p39 = scmp.eq.s32.totalorder %s19, 0
    %p40 = por %p38, %p39
    %p41 = scmp.ne.s32.totalorder %s27, %s28
    %p42 = scmp.eq.s32.totalorder %s20, 1
    %p43 = por %p41, %p42
    %p45 = scmp.ne.s32.totalorder %s28, %s44
    %p46 = scmp.eq.s32.totalorder %s20, 0
    %p47 = por %p45, %p46
    %s48 = ssub.s32 %s14, %s21
    %p49 = scmp.eq.s32.totalorder %s48, 0
    %s51 = sadd.s32 %s50, 1
    %s52 = scalar_select %p49, %s50, %s51
    %p55 = pneg %p49
    %p56 = scmp.eq.s32.totalorder %s14, 1
    %p57 = por %p55, %p56
    %p58 = scmp.ne.s32.totalorder %s50, %s53
    %p59 = scmp.eq.s32.totalorder %s14, 0
    %p60 = por %p58, %p59
    %p61 = scmp.ne.s32.totalorder %s50, %s53
    %p62 = scmp.eq.s32.totalorder %s19, 1
    %p63 = por %p61, %p62
    %p64 = scmp.ne.s32.totalorder %s53, %s54
    %p65 = scmp.eq.s32.totalorder %s19, 0
    %p66 = por %p64, %p65
    %p67 = scmp.ne.s32.totalorder %s53, %s54
    %p68 = scmp.eq.s32.totalorder %s20, 1
    %p69 = por %p67, %p68
    %p71 = scmp.ne.s32.totalorder %s54, %s70
    %p72 = scmp.eq.s32.totalorder %s20, 0
    %p73 = por %p71, %p72
    %s74 = ssub.s32 %s14, %s21
    %p75 = scmp.eq.s32.totalorder %s74, 0
    %s77 = sadd.s32 %s76, 1
    %s78 = scalar_select %p75, %s76, %s77
    %p81 = pneg %p75
    %p82 = scmp.eq.s32.totalorder %s14, 1
    %p83 = por %p81, %p82
    %p84 = scmp.ne.s32.totalorder %s76, %s79
    %p85 = scmp.eq.s32.totalorder %s14, 0
    %p86 = por %p84, %p85
    %p87 = scmp.ne.s32.totalorder %s76, %s79
    %p88 = scmp.eq.s32.totalorder %s19, 1
    %p89 = por %p87, %p88
    %p90 = scmp.ne.s32.totalorder %s79, %s80
    %p91 = scmp.eq.s32.totalorder %s19, 0
    %p92 = por %p90, %p91
    %p93 = scmp.ne.s32.totalorder %s79, %s80
    %p94 = scmp.eq.s32.totalorder %s20, 1
    %p95 = por %p93, %p94
    %p97 = scmp.ne.s32.totalorder %s80, %s96
    %p98 = scmp.eq.s32.totalorder %s20, 0
    %p99 = por %p97, %p98
    %s100 = ssub.s32 %s14, %s21
    %p101 = scmp.eq.s32.totalorder %s100, 0
    %s103 = sadd.s32 %s102, 1
    %s104 = scalar_select %p101, %s102, %s103
    %p107 = pneg %p101
    %p108 = scmp.eq.s32.totalorder %s14, 1
    %p109 = por %p107, %p108
    %p110 = scmp.ne.s32.totalorder %s102, %s105
    %p111 = scmp.eq.s32.totalorder %s14, 0
    %p112 = por %p110, %p111
    %p113 = scmp.ne.s32.totalorder %s102, %s105
    %p114 = scmp.eq.s32.totalorder %s19, 1
    %p115 = por %p113, %p114
    %p116 = scmp.ne.s32.totalorder %s105, %s106
    %p117 = scmp.eq.s32.totalorder %s19, 0
    %p118 = por %p116, %p117
    %p119 = scmp.ne.s32.totalorder %s105, %s106
    %p120 = scmp.eq.s32.totalorder %s20, 1
    %p121 = por %p119, %p120
    %p123 = scmp.ne.s32.totalorder %s106, %s122
    %p124 = scmp.eq.s32.totalorder %s20, 0
    %p125 = por %p123, %p124
    %s127 = sadd.s32 %s126, 1
    %p130 = scmp.eq.s32.totalorder %s14, 1
    %p131 = scmp.ne.s32.totalorder %s126, %s128
    %p132 = scmp.eq.s32.totalorder %s14, 0
    %p133 = por %p131, %p132
    %p134 = scmp.ne.s32.totalorder %s126, %s128
    %p135 = scmp.eq.s32.totalorder %s19, 1
    %p136 = por %p134, %p135
    %p137 = scmp.ne.s32.totalorder %s128, %s129
    %p138 = scmp.eq.s32.totalorder %s19, 0
    %p139 = por %p137, %p138
    %p140 = scmp.ne.s32.totalorder %s128, %s129
    %p141 = scmp.eq.s32.totalorder %s20, 1
    %p142 = por %p140, %p141
    %p144 = scmp.ne.s32.totalorder %s129, %s143
    %p145 = scmp.eq.s32.totalorder %s20, 0
    %p146 = por %p144, %p145
    %s148 = sadd.s32 %s147, 1
    %p151 = scmp.eq.s32.totalorder %s14, 1
    %p152 = scmp.ne.s32.totalorder %s147, %s149
    %p153 = scmp.eq.s32.totalorder %s14, 0
    %p154 = por %p152, %p153
    %p155 = scmp.ne.s32.totalorder %s147, %s149
    %p156 = scmp.eq.s32.totalorder %s19, 1
    %p157 = por %p155, %p156
    %p158 = scmp.ne.s32.totalorder %s149, %s150
    %p159 = scmp.eq.s32.totalorder %s19, 0
    %p160 = por %p158, %p159
    %p161 = scmp.ne.s32.totalorder %s149, %s150
    %p162 = scmp.eq.s32.totalorder %s20, 1
    %p163 = por %p161, %p162
    %p165 = scmp.ne.s32.totalorder %s150, %s164
    %p166 = scmp.eq.s32.totalorder %s20, 0
    %p167 = por %p165, %p166
    %s169 = sadd.s32 %s168, 1
    %p172 = scmp.eq.s32.totalorder %s14, 1
    %p173 = scmp.ne.s32.totalorder %s168, %s170
    %p174 = scmp.eq.s32.totalorder %s14, 0
    %p175 = por %p173, %p174
    %p176 = scmp.ne.s32.totalorder %s168, %s170
    %p177 = scmp.eq.s32.totalorder %s19, 1
    %p178 = por %p176, %p177
    %p179 = scmp.ne.s32.totalorder %s170, %s171
    %p180 = scmp.eq.s32.totalorder %s19, 0
    %p181 = por %p179, %p180
    %p182 = scmp.ne.s32.totalorder %s170, %s171
    %p183 = scmp.eq.s32.totalorder %s20, 1
    %p184 = por %p182, %p183
    %p186 = scmp.ne.s32.totalorder %s171, %s185
    %p187 = scmp.eq.s32.totalorder %s20, 0
    %p188 = por %p186, %p187
    %s190 = sadd.s32 %s189, 1
    %p193 = scmp.eq.s32.totalorder %s14, 1
    %p194 = scmp.ne.s32.totalorder %s189, %s191
    %p195 = scmp.eq.s32.totalorder %s14, 0
    %p196 = por %p194, %p195
    %p197 = scmp.ne.s32.totalorder %s189, %s191
    %p198 = scmp.eq.s32.totalorder %s19, 1
    %p199 = por %p197, %p198
    %p200 = scmp.ne.s32.totalorder %s191, %s192
    %p201 = scmp.eq.s32.totalorder %s19, 0
    %p202 = por %p200, %p201
    %p203 = scmp.ne.s32.totalorder %s191, %s192
    %p204 = scmp.eq.s32.totalorder %s20, 1
    %p205 = por %p203, %p204
    %p207 = scmp.ne.s32.totalorder %s192, %s206
    %p208 = scmp.eq.s32.totalorder %s20, 0
    %p209 = por %p207, %p208
    %s210 = ssub.s32 %s14, %s21
    %p211 = scmp.eq.s32.totalorder %s210, 0
    %s213 = sadd.s32 %s212, 1
    %s214 = scalar_select %p211, %s212, %s213
    %p217 = pneg %p211
    %p218 = scmp.eq.s32.totalorder %s14, 1
    %p219 = por %p217, %p218
    %p220 = scmp.ne.s32.totalorder %s212, %s215
    %p221 = scmp.eq.s32.totalorder %s14, 0
    %p222 = por %p220, %p221
    %p223 = scmp.ne.s32.totalorder %s212, %s215
    %p224 = scmp.eq.s32.totalorder %s19, 1
    %p225 = por %p223, %p224
    %p226 = scmp.ne.s32.totalorder %s215, %s216
    %p227 = scmp.eq.s32.totalorder %s19, 0
    %p228 = por %p226, %p227
    %p229 = scmp.ne.s32.totalorder %s215, %s216
    %p230 = scmp.eq.s32.totalorder %s20, 1
    %p231 = por %p229, %p230
    %p233 = scmp.ne.s32.totalorder %s216, %s232
    %p234 = scmp.eq.s32.totalorder %s20, 0
    %p235 = por %p233, %p234
    %p236 = scmp.le.s32.totalorder 1, %s14
    %p237 = scmp.lt.s32.totalorder %s14, 3
    %p238 = pnand %p236, %p237
    %p239 = pneg %p238
    // Predicated region
    $region9: #{cnn_forward.4} parent=5 // pred_check
      _
    $region10: #{cnn_forward.4} parent=5 // pred_check_branch
      %241 = sbr.rel (%p238) target = $region12
    $region11: #{cnn_forward.4} parent=5 // pred_region
      %s242 = ssub.s32 %s14, 1
      // Predicated region
      $region13: #{cnn_forward.4} parent=11 // pred_check
        %p243 = pneg %p139
      $region14: #{cnn_forward.4} parent=11 // pred_check_branch
        %245 = sbr.rel (%p243) target = $region16
      $region15: #{cnn_forward.4} parent=11 // pred_region
        _
      $region16: #{cnn_forward.4} parent=11 // pred_fallthru
        _
      // Predicated region
      $region17: #{cnn_forward.4} parent=11 // pred_check
        %p246 = pneg %p160
      $region18: #{cnn_forward.4} parent=11 // pred_check_branch
        %248 = sbr.rel (%p246) target = $region20
      $region19: #{cnn_forward.4} parent=11 // pred_region
        _
      $region20: #{cnn_forward.4} parent=11 // pred_fallthru
        _
      // Predicated region
      $region21: #{cnn_forward.4} parent=11 // pred_check
        %p249 = pneg %p181
      $region22: #{cnn_forward.4} parent=11 // pred_check_branch
        %251 = sbr.rel (%p249) target = $region24
      $region23: #{cnn_forward.4} parent=11 // pred_region
        _
      $region24: #{cnn_forward.4} parent=11 // pred_fallthru
        _
      // Predicated region
      $region25: #{cnn_forward.4} parent=11 // pred_check
        %p252 = pneg %p202
      $region26: #{cnn_forward.4} parent=11 // pred_check_branch
        %254 = sbr.rel (%p252) target = $region28
      $region27: #{cnn_forward.4} parent=11 // pred_region
        _
      $region28: #{cnn_forward.4} parent=11 // pred_fallthru
        _
    $region12: #{cnn_forward.4} parent=5 // pred_fallthru
      _
    %p255 = scmp.lt.s32.totalorder %s14, 2
    // Predicated region
    $region29: #{cnn_forward.4} parent=5 // pred_check
      %p256 = pneg %p255
    $region30: #{cnn_forward.4} parent=5 // pred_check_branch
      %258 = sbr.rel (%p256) target = $region32
    $region31: #{cnn_forward.4} parent=5 // pred_region
      // Predicated region
      $region33: #{cnn_forward.4} parent=31 // pred_check
        %p259 = pneg %p34
      $region34: #{cnn_forward.4} parent=31 // pred_check_branch
        %261 = sbr.rel (%p259) target = $region36
      $region35: #{cnn_forward.4} parent=31 // pred_region
        %p262 = scmp.lt.s32.totalorder %s14, 1
        %s263 = scalar_select %p262, %s14, 1
        %s264 = smul.addr %s263, 100
        %s265 = smul.addr %s264, 4
        %s266 = scalar_lea.vmem %s0, %s265
      $region36: #{cnn_forward.4} parent=31 // pred_fallthru
        _
      // Predicated region
      $region37: #{cnn_forward.4} parent=31 // pred_check
        %p267 = pneg %p60
      $region38: #{cnn_forward.4} parent=31 // pred_check_branch
        %269 = sbr.rel (%p267) target = $region40
      $region39: #{cnn_forward.4} parent=31 // pred_region
        %p270 = scmp.lt.s32.totalorder %s14, 1
        %s271 = scalar_select %p270, %s14, 1
        %s272 = smul.addr %s271, 100
        %s273 = smul.addr %s272, 4
        %s274 = scalar_lea.vmem %s1, %s273
      $region40: #{cnn_forward.4} parent=31 // pred_fallthru
        _
      // Predicated region
      $region41: #{cnn_forward.4} parent=31 // pred_check
        %p275 = pneg %p86
      $region42: #{cnn_forward.4} parent=31 // pred_check_branch
        %277 = sbr.rel (%p275) target = $region44
      $region43: #{cnn_forward.4} parent=31 // pred_region
        %p278 = scmp.lt.s32.totalorder %s14, 1
        %s279 = scalar_select %p278, %s14, 1
        %s280 = smul.addr %s279, 100
        %s281 = smul.addr %s280, 4
        %s282 = scalar_lea.vmem %s2, %s281
      $region44: #{cnn_forward.4} parent=31 // pred_fallthru
        _
      // Predicated region
      $region45: #{cnn_forward.4} parent=31 // pred_check
        %p283 = pneg %p112
      $region46: #{cnn_forward.4} parent=31 // pred_check_branch
        %285 = sbr.rel (%p283) target = $region48
      $region47: #{cnn_forward.4} parent=31 // pred_region
        %p286 = scmp.lt.s32.totalorder %s14, 1
        %s287 = scalar_select %p286, %s14, 1
        %s288 = smul.addr %s287, 100
        %s289 = smul.addr %s288, 4
        %s290 = scalar_lea.vmem %s3, %s289
      $region48: #{cnn_forward.4} parent=31 // pred_fallthru
        _
    $region32: #{cnn_forward.4} parent=5 // pred_fallthru
      _
    %p291 = scmp.le.s32.totalorder 1, %s14
    %p292 = scmp.lt.s32.totalorder %s14, 3
    %p293 = pnand %p291, %p292
    %p294 = pneg %p293
    // Predicated region
    $region49: #{cnn_forward.4} parent=5 // pred_check
      _
    $region50: #{cnn_forward.4} parent=5 // pred_check_branch
      %296 = sbr.rel (%p293) target = $region52
    $region51: #{cnn_forward.4} parent=5 // pred_region
      %s297 = ssub.s32 %s14, 1
      %p298 = scmp.lt.s32.totalorder %s19, 1
      %s299 = scalar_select %p298, %s19, 1
      %s300 = smul.addr %s299, 100
      %s301 = smul.addr %s300, 4
      %s302 = scalar_lea.vmem %s0, %s301
      %p303 = pneg %p40
      %p304 = pneg %p37
      %p305 = scmp.lt.s32.totalorder %s19, 1
      %s306 = scalar_select %p305, %s19, 1
      %s307 = smul.addr %s306, 100
      %s308 = smul.addr %s307, 4
      %s309 = scalar_lea.vmem %s1, %s308
      %p310 = pneg %p66
      %p311 = pneg %p63
      %p312 = scmp.lt.s32.totalorder %s19, 1
      %s313 = scalar_select %p312, %s19, 1
      %s314 = smul.addr %s313, 100
      %s315 = smul.addr %s314, 4
      %s316 = scalar_lea.vmem %s2, %s315
      %p317 = pneg %p92
      %p318 = pneg %p89
      %p319 = scmp.lt.s32.totalorder %s19, 1
      %s320 = scalar_select %p319, %s19, 1
      %s321 = smul.addr %s320, 100
      %s322 = smul.addr %s321, 4
      %s323 = scalar_lea.vmem %s3, %s322
      %p324 = pneg %p118
      %p325 = pneg %p115
      %p326 = pneg %p139
      %p327 = pneg %p136
      %p328 = pneg %p160
      %p329 = pneg %p157
      %p330 = pneg %p181
      %p331 = pneg %p178
      %p332 = pneg %p202
      %p333 = pneg %p199
      %p334 = pneg %p228
      %p335 = pneg %p225
      %p336 = scmp.lt.s32.totalorder %s19, 1
      %s337 = scalar_select %p336, %s19, 1
      %s338 = smul.addr %s337, 8
      %s339 = smul.addr %s338, 8
      %s340 = scalar_lea.vmem %s8, %s339
      %p341 = scmp.lt.s32.totalorder %s19, 1
      %s342 = scalar_select %p341, %s19, 1
      %s343 = smul.addr %s342, 100
      %s344 = smul.addr %s343, 4
      %s345 = scalar_lea.vmem %s0, %s344
      %p346 = scmp.lt.s32.totalorder %s19, 1
      %s347 = scalar_select %p346, %s19, 1
      %s348 = smul.addr %s347, 100
      %s349 = smul.addr %s348, 4
      %s350 = scalar_lea.vmem %s1, %s349
      %p351 = scmp.lt.s32.totalorder %s19, 1
      %s352 = scalar_select %p351, %s19, 1
      %s353 = smul.addr %s352, 100
      %s354 = smul.addr %s353, 4
      %s355 = scalar_lea.vmem %s2, %s354
      %p356 = scmp.lt.s32.totalorder %s19, 1
      %s357 = scalar_select %p356, %s19, 1
      %s358 = smul.addr %s357, 100
      %s359 = smul.addr %s358, 4
      %s360 = scalar_lea.vmem %s3, %s359
      %p361 = scmp.lt.s32.totalorder %s19, 1
      %s362 = scalar_select %p361, %s19, 1
      %s363 = smul.addr %s362, 8
      %s364 = smul.addr %s363, 8
      %s365 = scalar_lea.vmem %s8, %s364
      %v367 = vld [vmem:[%s4] sm:$0xff]
      %v368 = vld [vmem:[%s4 + $0x8] sm:$0xff]
      %v369 = vld [vmem:[%s5] sm:$0xff]
      %v370 = vld [vmem:[%s5 + $0x8] sm:$0xff]
      %v371 = vld [vmem:[%s6] sm:$0xff]
      %v372 = vld [vmem:[%s6 + $0x8] sm:$0xff]
      %v373 = vld [vmem:[%s7] sm:$0xff]
      %v374 = vld [vmem:[%s7 + $0x8] sm:$0xff]
      %v375 = vld [vmem:[%s345] sm:$0xff]
      %v376 = vld [vmem:[%s345 + $0x8] sm:$0xff]
      %v377 = vld [vmem:[%s345 + $0x10] sm:$0xff]
      %v378 = vld [vmem:[%s345 + $0x18] sm:$0xff]
      %v379 = vld [vmem:[%s345 + $0x20] sm:$0xff]
      %v380 = vld [vmem:[%s345 + $0x28] sm:$0xff]
      %v381 = vld [vmem:[%s345 + $0x30] sm:$0xff]
      %v382 = vld [vmem:[%s345 + $0x38] sm:$0xff]
      %v383 = vld [vmem:[%s345 + $0x40] sm:$0xff]
      %v384 = vld [vmem:[%s345 + $0x48] sm:$0xff]
      %v385 = vld [vmem:[%s345 + $0x50] sm:$0xff]
      %v386 = vld [vmem:[%s345 + $0x58] sm:$0xff]
      %v387 = vld [vmem:[%s345 + $0x60] sm:$0xff]
      %v388 = vld [vmem:[%s345 + $0x68] sm:$0xff]
      %v389 = vld [vmem:[%s345 + $0x70] sm:$0xff]
      %v390 = vld [vmem:[%s345 + $0x78] sm:$0xff]
      %v391 = vld [vmem:[%s345 + $0x80] sm:$0xff]
      %v392 = vld [vmem:[%s345 + $0x88] sm:$0xff]
      %v393 = vld [vmem:[%s345 + $0x90] sm:$0xff]
      %v394 = vld [vmem:[%s345 + $0x98] sm:$0xff]
      %v395 = vld [vmem:[%s345 + $0xa0] sm:$0xff]
      %v396 = vld [vmem:[%s345 + $0xa8] sm:$0xff]
      %v397 = vld [vmem:[%s345 + $0xb0] sm:$0xff]
      %v398 = vld [vmem:[%s345 + $0xb8] sm:$0xff]
      %v399 = vld [vmem:[%s345 + $0xc0] sm:$0xff]
      %v400 = vld [vmem:[%s345 + $0xc8] sm:$0xff]
      %v401 = vld [vmem:[%s345 + $0xd0] sm:$0xff]
      %v402 = vld [vmem:[%s345 + $0xd8] sm:$0xff]
      %v403 = vld [vmem:[%s345 + $0xe0] sm:$0xff]
      %v404 = vld [vmem:[%s345 + $0xe8] sm:$0xff]
      %v405 = vld [vmem:[%s345 + $0xf0] sm:$0xff]
      %v406 = vld [vmem:[%s345 + $0xf8] sm:$0xff]
      %v407 = vld [vmem:[%s345 + $0x100] sm:$0xff]
      %v408 = vld [vmem:[%s345 + $0x108] sm:$0xff]
      %v409 = vld [vmem:[%s345 + $0x110] sm:$0xff]
      %v410 = vld [vmem:[%s345 + $0x118] sm:$0xff]
      %v411 = vld [vmem:[%s345 + $0x120] sm:$0xff]
      %v412 = vld [vmem:[%s345 + $0x128] sm:$0xff]
      %v413 = vld [vmem:[%s345 + $0x130] sm:$0xff]
      %v414 = vld [vmem:[%s345 + $0x138] sm:$0xff]
      %v415 = vld [vmem:[%s345 + $0x140] sm:$0xff]
      %v416 = vld [vmem:[%s345 + $0x148] sm:$0xff]
      %v417 = vld [vmem:[%s345 + $0x150] sm:$0xff]
      %v418 = vld [vmem:[%s345 + $0x158] sm:$0xff]
      %v419 = vld [vmem:[%s345 + $0x160] sm:$0xff]
      %v420 = vld [vmem:[%s345 + $0x168] sm:$0xff]
      %v421 = vld [vmem:[%s345 + $0x170] sm:$0xff]
      %v422 = vld [vmem:[%s345 + $0x178] sm:$0xff]
      %v423 = vld [vmem:[%s345 + $0x180] sm:$0xff]
      %v424 = vld [vmem:[%s345 + $0x188] sm:$0xff]
      %426 = vset.pattern.permute.xlu0 0
      %427 = vperm.xlu0 %426, %v369
      %v428 = vpop.permute.xlu0 %427
      %431 = vset.pattern.permute.xlu0 0
      %432 = vperm.xlu0 %431, %v370
      %v433 = vpop.permute.xlu0 %432
      %v437 = vunpack.c.l.b16 %v367
      %v438 = vunpack.c.h.b16 %v367
      %v439 = vunpack.c.l.b16 %v368
      %v440 = vunpack.c.h.b16 %v368
      %v441 = vpack.c.b16 %v439, %v437
      %v442 = vpack.c.b16 %v440, %v438
      %v494 = vunpack.c.l.b16 %v375
      %v495 = vunpack.c.h.b16 %v375
      %v496 = vunpack.c.l.b16 %v376
      %v497 = vunpack.c.h.b16 %v376
      %v498 = vunpack.c.l.b16 %v377
      %v499 = vunpack.c.h.b16 %v377
      %v500 = vunpack.c.l.b16 %v378
      %v501 = vunpack.c.h.b16 %v378
      %v502 = vunpack.c.l.b16 %v379
      %v503 = vunpack.c.h.b16 %v379
      %v504 = vunpack.c.l.b16 %v380
      %v505 = vunpack.c.h.b16 %v380
      %v506 = vunpack.c.l.b16 %v381
      %v507 = vunpack.c.h.b16 %v381
      %v508 = vunpack.c.l.b16 %v382
      %v509 = vunpack.c.h.b16 %v382
      %v510 = vunpack.c.l.b16 %v383
      %v511 = vunpack.c.h.b16 %v383
      %v512 = vunpack.c.l.b16 %v384
      %v513 = vunpack.c.h.b16 %v384
      %v514 = vunpack.c.l.b16 %v385
      %v515 = vunpack.c.h.b16 %v385
      %v516 = vunpack.c.l.b16 %v386
      %v517 = vunpack.c.h.b16 %v386
      %v518 = vunpack.c.l.b16 %v387
      %v519 = vunpack.c.h.b16 %v387
      %v520 = vunpack.c.l.b16 %v388
      %v521 = vunpack.c.h.b16 %v388
      %v522 = vunpack.c.l.b16 %v389
      %v523 = vunpack.c.h.b16 %v389
      %v524 = vunpack.c.l.b16 %v390
      %v525 = vunpack.c.h.b16 %v390
      %v526 = vunpack.c.l.b16 %v391
      %v527 = vunpack.c.h.b16 %v391
      %v528 = vunpack.c.l.b16 %v392
      %v529 = vunpack.c.h.b16 %v392
      %v530 = vunpack.c.l.b16 %v393
      %v531 = vunpack.c.h.b16 %v393
      %v532 = vunpack.c.l.b16 %v394
      %v533 = vunpack.c.h.b16 %v394
      %v534 = vunpack.c.l.b16 %v395
      %v535 = vunpack.c.h.b16 %v395
      %v536 = vunpack.c.l.b16 %v396
      %v537 = vunpack.c.h.b16 %v396
      %v538 = vunpack.c.l.b16 %v397
      %v539 = vunpack.c.h.b16 %v397
      %v540 = vunpack.c.l.b16 %v398
      %v541 = vunpack.c.h.b16 %v398
      %v542 = vunpack.c.l.b16 %v399
      %v543 = vunpack.c.h.b16 %v399
      %v544 = vunpack.c.l.b16 %v400
      %v545 = vunpack.c.h.b16 %v400
      %v546 = vunpack.c.l.b16 %v401
      %v547 = vunpack.c.h.b16 %v401
      %v548 = vunpack.c.l.b16 %v402
      %v549 = vunpack.c.h.b16 %v402
      %v550 = vunpack.c.l.b16 %v403
      %v551 = vunpack.c.h.b16 %v403
      %v552 = vunpack.c.l.b16 %v404
      %v553 = vunpack.c.h.b16 %v404
      %v554 = vunpack.c.l.b16 %v405
      %v555 = vunpack.c.h.b16 %v405
      %v556 = vunpack.c.l.b16 %v406
      %v557 = vunpack.c.h.b16 %v406
      %v558 = vunpack.c.l.b16 %v407
      %v559 = vunpack.c.h.b16 %v407
      %v560 = vunpack.c.l.b16 %v408
      %v561 = vunpack.c.h.b16 %v408
      %v562 = vunpack.c.l.b16 %v409
      %v563 = vunpack.c.h.b16 %v409
      %v564 = vunpack.c.l.b16 %v410
      %v565 = vunpack.c.h.b16 %v410
      %v566 = vunpack.c.l.b16 %v411
      %v567 = vunpack.c.h.b16 %v411
      %v568 = vunpack.c.l.b16 %v412
      %v569 = vunpack.c.h.b16 %v412
      %v570 = vunpack.c.l.b16 %v413
      %v571 = vunpack.c.h.b16 %v413
      %v572 = vunpack.c.l.b16 %v414
      %v573 = vunpack.c.h.b16 %v414
      %v574 = vunpack.c.l.b16 %v415
      %v575 = vunpack.c.h.b16 %v415
      %v576 = vunpack.c.l.b16 %v416
      %v577 = vunpack.c.h.b16 %v416
      %v578 = vunpack.c.l.b16 %v417
      %v579 = vunpack.c.h.b16 %v417
      %v580 = vunpack.c.l.b16 %v418
      %v581 = vunpack.c.h.b16 %v418
      %v582 = vunpack.c.l.b16 %v419
      %v583 = vunpack.c.h.b16 %v419
      %v584 = vunpack.c.l.b16 %v420
      %v585 = vunpack.c.h.b16 %v420
      %v586 = vunpack.c.l.b16 %v421
      %v587 = vunpack.c.h.b16 %v421
      %v588 = vunpack.c.l.b16 %v422
      %v589 = vunpack.c.h.b16 %v422
      %v590 = vunpack.c.l.b16 %v423
      %v591 = vunpack.c.h.b16 %v423
      %v592 = vunpack.c.l.b16 %v424
      %v593 = vunpack.c.h.b16 %v424
      %v594 = vpack.c.b16 %v498, %v494
      %v595 = vpack.c.b16 %v499, %v495
      %v596 = vpack.c.b16 %v500, %v496
      %v597 = vpack.c.b16 %v501, %v497
      %v598 = vpack.c.b16 %v506, %v502
      %v599 = vpack.c.b16 %v507, %v503
      %v600 = vpack.c.b16 %v508, %v504
      %v601 = vpack.c.b16 %v509, %v505
      %v602 = vpack.c.b16 %v514, %v510
      %v603 = vpack.c.b16 %v515, %v511
      %v604 = vpack.c.b16 %v516, %v512
      %v605 = vpack.c.b16 %v517, %v513
      %v606 = vpack.c.b16 %v522, %v518
      %v607 = vpack.c.b16 %v523, %v519
      %v608 = vpack.c.b16 %v524, %v520
      %v609 = vpack.c.b16 %v525, %v521
      %v610 = vpack.c.b16 %v530, %v526
      %v611 = vpack.c.b16 %v531, %v527
      %v612 = vpack.c.b16 %v532, %v528
      %v613 = vpack.c.b16 %v533, %v529
      %v614 = vpack.c.b16 %v538, %v534
      %v615 = vpack.c.b16 %v539, %v535
      %v616 = vpack.c.b16 %v540, %v536
      %v617 = vpack.c.b16 %v541, %v537
      %v618 = vpack.c.b16 %v546, %v542
      %v619 = vpack.c.b16 %v547, %v543
      %v620 = vpack.c.b16 %v548, %v544
      %v621 = vpack.c.b16 %v549, %v545
      %v622 = vpack.c.b16 %v554, %v550
      %v623 = vpack.c.b16 %v555, %v551
      %v624 = vpack.c.b16 %v556, %v552
      %v625 = vpack.c.b16 %v557, %v553
      %v626 = vpack.c.b16 %v562, %v558
      %v627 = vpack.c.b16 %v563, %v559
      %v628 = vpack.c.b16 %v564, %v560
      %v629 = vpack.c.b16 %v565, %v561
      %v630 = vpack.c.b16 %v570, %v566
      %v631 = vpack.c.b16 %v571, %v567
      %v632 = vpack.c.b16 %v572, %v568
      %v633 = vpack.c.b16 %v573, %v569
      %v634 = vpack.c.b16 %v578, %v574
      %v635 = vpack.c.b16 %v579, %v575
      %v636 = vpack.c.b16 %v580, %v576
      %v637 = vpack.c.b16 %v581, %v577
      %v638 = vpack.c.b16 %v586, %v582
      %v639 = vpack.c.b16 %v587, %v583
      %v640 = vpack.c.b16 %v588, %v584
      %v641 = vpack.c.b16 %v589, %v585
      %v642 = vpack.c.b16 %v590, %v590
      %v643 = vpack.c.b16 %v591, %v591
      %v644 = vpack.c.b16 %v592, %v592
      %v645 = vpack.c.b16 %v593, %v593
      %vm694 = vcmask 588800
      %v696 = vsel %vm694, %v442, 0
      %vm698 = vcmask 1043456
      %v700 = vsel %vm698, %v642, 0
      %v703 = vsel %vm698, %v643, 0
      %v706 = vsel %vm698, %v644, 0
      %v709 = vsel %vm698, %v645, 0
      %711 = vmatprep.subr.bf16.mxu0 %v595
      %712 = vmatpush1.bf16.msra.mxu0 %v594
      %713 = vmatprep.subr.bf16.mxu0 %v599
      %714 = vmatpush1.bf16.msra.mxu0 %v598
      %715 = vmatprep.subr.bf16.mxu0 %v603
      %716 = vmatpush1.bf16.msra.mxu0 %v602
      %717 = vmatprep.subr.bf16.mxu0 %v607
      %718 = vmatpush1.bf16.msra.mxu0 %v606
      %719 = vmatprep.subr.bf16.mxu0 %v611
      %720 = vmatpush1.bf16.msra.mxu0 %v610
      %721 = vmatprep.subr.bf16.mxu0 %v615
      %722 = vmatpush1.bf16.msra.mxu0 %v614
      %723 = vmatprep.subr.bf16.mxu0 %v619
      %724 = vmatpush1.bf16.msra.mxu0 %v618
      %725 = vmatprep.subr.bf16.mxu0 %v623
      %726 = vmatpush1.bf16.msra.mxu0 %v622
      %727 = vmatprep.subr.bf16.mxu0 %v627
      %728 = vmatpush1.bf16.msra.mxu0 %v626
      %729 = vmatprep.subr.bf16.mxu0 %v631
      %730 = vmatpush1.bf16.msra.mxu0 %v630
      %731 = vmatprep.subr.bf16.mxu0 %v635
      %732 = vmatpush1.bf16.msra.mxu0 %v634
      %733 = vmatprep.subr.bf16.mxu0 %v639
      %734 = vmatpush1.bf16.msra.mxu0 %v638
      %735 = vmatprep.subr.bf16.mxu0 %v703
      %736 = vmatpush1.bf16.msra.mxu0 %v700
      %737 = vmatprep.subr.bf16.mxu0 0
      %738 = vmatpush1.bf16.msra.mxu0 0
      %739 = vmatprep.subr.bf16.mxu0 0
      %740 = vmatpush1.bf16.msra.mxu0 0
      %741 = vmatprep.subr.bf16.mxu0 0
      %742 = vmatpush1.bf16.msra.mxu0 0
      %743 = vmatprep.mubr.bf16.mxu0 %v696
      %744 = vmatmul.mubr.bf16.gmra.mrb[0].mxu0 %v441
      %v745 = vpop.f32.mrb[0].mxu0
      %v746 = vadd.f32 %v428, %v745
      %v747 = vpop.f32.mrb[0].mxu0
      %v748 = vadd.f32 %v428, %v747
      %v749 = vpop.f32.mrb[0].mxu0
      %v750 = vadd.f32 %v433, %v749
      %v751 = vpop.f32.mrb[0].mxu0
      %v752 = vadd.f32 %v433, %v751
      %753 = vdwg.mxu0
      %754 = vmatprep.subr.bf16.mxu0 %v597
      %755 = vmatpush1.bf16.msra.mxu0 %v596
      %756 = vmatprep.subr.bf16.mxu0 %v601
      %757 = vmatpush1.bf16.msra.mxu0 %v600
      %758 = vmatprep.subr.bf16.mxu0 %v605
      %759 = vmatpush1.bf16.msra.mxu0 %v604
      %760 = vmatprep.subr.bf16.mxu0 %v609
      %761 = vmatpush1.bf16.msra.mxu0 %v608
      %762 = vmatprep.subr.bf16.mxu0 %v613
      %763 = vmatpush1.bf16.msra.mxu0 %v612
      %764 = vmatprep.subr.bf16.mxu0 %v617
      %765 = vmatpush1.bf16.msra.mxu0 %v616
      %766 = vmatprep.subr.bf16.mxu0 %v621
      %767 = vmatpush1.bf16.msra.mxu0 %v620
      %768 = vmatprep.subr.bf16.mxu0 %v625
      %769 = vmatpush1.bf16.msra.mxu0 %v624
      %770 = vmatprep.subr.bf16.mxu0 %v629
      %771 = vmatpush1.bf16.msra.mxu0 %v628
      %772 = vmatprep.subr.bf16.mxu0 %v633
      %773 = vmatpush1.bf16.msra.mxu0 %v632
      %774 = vmatprep.subr.bf16.mxu0 %v637
      %775 = vmatpush1.bf16.msra.mxu0 %v636
      %776 = vmatprep.subr.bf16.mxu0 %v641
      %777 = vmatpush1.bf16.msra.mxu0 %v640
      %778 = vmatprep.subr.bf16.mxu0 %v709
      %779 = vmatpush1.bf16.msra.mxu0 %v706
      %780 = vmatprep.subr.bf16.mxu0 0
      %781 = vmatpush1.bf16.msra.mxu0 0
      %782 = vmatprep.subr.bf16.mxu0 0
      %783 = vmatpush1.bf16.msra.mxu0 0
      %784 = vmatprep.subr.bf16.mxu0 0
      %785 = vmatpush1.bf16.msra.mxu0 0
      %786 = vmatprep.mubr.bf16.mxu0 %v696
      %787 = vmatmul.mubr.bf16.gmra.mrb[0].mxu0 %v441
      %v788 = vpop.f32.mrb[0].mxu0
      %v789 = vadd.f32 %v428, %v788
      %v790 = vpop.f32.mrb[0].mxu0
      %v791 = vadd.f32 %v428, %v790
      %v792 = vpop.f32.mrb[0].mxu0
      %v793 = vadd.f32 %v433, %v792
      %v794 = vpop.f32.mrb[0].mxu0
      %v795 = vadd.f32 %v433, %v794
      %796 = vdwg.mxu0
      %v797 = vmax.f32 %v746, 0.0
      %v798 = vmax.f32 %v748, 0.0
      %v799 = vmax.f32 %v789, 0.0
      %v800 = vmax.f32 %v791, 0.0
      %v801 = vmax.f32 %v750, 0.0
      %v802 = vmax.f32 %v752, 0.0
      %v803 = vmax.f32 %v793, 0.0
      %v804 = vmax.f32 %v795, 0.0
      %806 = vset.pattern.permute.xlu0 0
      %807 = vperm.xlu0 %806, %v371
      %v808 = vpop.permute.xlu0 %807
      %811 = vset.pattern.permute.xlu0 0
      %812 = vperm.xlu0 %811, %v372
      %v813 = vpop.permute.xlu0 %812
      %v815 = vmul.f32 %v797, %v808
      %v816 = vmul.f32 %v798, %v808
      %v817 = vmul.f32 %v799, %v808
      %v818 = vmul.f32 %v800, %v808
      %v819 = vmul.f32 %v801, %v813
      %v820 = vmul.f32 %v802, %v813
      %v821 = vmul.f32 %v803, %v813
      %v822 = vmul.f32 %v804, %v813
      %824 = vset.pattern.permute.xlu0 0
      %825 = vperm.xlu0 %824, %v373
      %v826 = vpop.permute.xlu0 %825
      %829 = vset.pattern.permute.xlu0 0
      %830 = vperm.xlu0 %829, %v374
      %v831 = vpop.permute.xlu0 %830
      %v833 = vadd.f32 %v815, %v826
      %v834 = vadd.f32 %v816, %v826
      %v835 = vadd.f32 %v817, %v826
      %v836 = vadd.f32 %v818, %v826
      %v837 = vadd.f32 %v819, %v831
      %v838 = vadd.f32 %v820, %v831
      %v839 = vadd.f32 %v821, %v831
      %v840 = vadd.f32 %v822, %v831
      %v841 = vld [vmem:[%s350] sm:$0xff]
      %v842 = vld [vmem:[%s350 + $0x8] sm:$0xff]
      %v843 = vld [vmem:[%s350 + $0x10] sm:$0xff]
      %v844 = vld [vmem:[%s350 + $0x18] sm:$0xff]
      %v845 = vld [vmem:[%s350 + $0x20] sm:$0xff]
      %v846 = vld [vmem:[%s350 + $0x28] sm:$0xff]
      %v847 = vld [vmem:[%s350 + $0x30] sm:$0xff]
      %v848 = vld [vmem:[%s350 + $0x38] sm:$0xff]
      %v849 = vld [vmem:[%s350 + $0x40] sm:$0xff]
      %v850 = vld [vmem:[%s350 + $0x48] sm:$0xff]
      %v851 = vld [vmem:[%s350 + $0x50] sm:$0xff]
      %v852 = vld [vmem:[%s350 + $0x58] sm:$0xff]
      %v853 = vld [vmem:[%s350 + $0x60] sm:$0xff]
      %v854 = vld [vmem:[%s350 + $0x68] sm:$0xff]
      %v855 = vld [vmem:[%s350 + $0x70] sm:$0xff]
      %v856 = vld [vmem:[%s350 + $0x78] sm:$0xff]
      %v857 = vld [vmem:[%s350 + $0x80] sm:$0xff]
      %v858 = vld [vmem:[%s350 + $0x88] sm:$0xff]
      %v859 = vld [vmem:[%s350 + $0x90] sm:$0xff]
      %v860 = vld [vmem:[%s350 + $0x98] sm:$0xff]
      %v861 = vld [vmem:[%s350 + $0xa0] sm:$0xff]
      %v862 = vld [vmem:[%s350 + $0xa8] sm:$0xff]
      %v863 = vld [vmem:[%s350 + $0xb0] sm:$0xff]
      %v864 = vld [vmem:[%s350 + $0xb8] sm:$0xff]
      %v865 = vld [vmem:[%s350 + $0xc0] sm:$0xff]
      %v866 = vld [vmem:[%s350 + $0xc8] sm:$0xff]
      %v867 = vld [vmem:[%s350 + $0xd0] sm:$0xff]
      %v868 = vld [vmem:[%s350 + $0xd8] sm:$0xff]
      %v869 = vld [vmem:[%s350 + $0xe0] sm:$0xff]
      %v870 = vld [vmem:[%s350 + $0xe8] sm:$0xff]
      %v871 = vld [vmem:[%s350 + $0xf0] sm:$0xff]
      %v872 = vld [vmem:[%s350 + $0xf8] sm:$0xff]
      %v873 = vld [vmem:[%s350 + $0x100] sm:$0xff]
      %v874 = vld [vmem:[%s350 + $0x108] sm:$0xff]
      %v875 = vld [vmem:[%s350 + $0x110] sm:$0xff]
      %v876 = vld [vmem:[%s350 + $0x118] sm:$0xff]
      %v877 = vld [vmem:[%s350 + $0x120] sm:$0xff]
      %v878 = vld [vmem:[%s350 + $0x128] sm:$0xff]
      %v879 = vld [vmem:[%s350 + $0x130] sm:$0xff]
      %v880 = vld [vmem:[%s350 + $0x138] sm:$0xff]
      %v881 = vld [vmem:[%s350 + $0x140] sm:$0xff]
      %v882 = vld [vmem:[%s350 + $0x148] sm:$0xff]
      %v883 = vld [vmem:[%s350 + $0x150] sm:$0xff]
      %v884 = vld [vmem:[%s350 + $0x158] sm:$0xff]
      %v885 = vld [vmem:[%s350 + $0x160] sm:$0xff]
      %v886 = vld [vmem:[%s350 + $0x168] sm:$0xff]
      %v887 = vld [vmem:[%s350 + $0x170] sm:$0xff]
      %v888 = vld [vmem:[%s350 + $0x178] sm:$0xff]
      %v889 = vld [vmem:[%s350 + $0x180] sm:$0xff]
      %v890 = vld [vmem:[%s350 + $0x188] sm:$0xff]
      %v941 = vunpack.c.l.b16 %v841
      %v942 = vunpack.c.h.b16 %v841
      %v943 = vunpack.c.l.b16 %v842
      %v944 = vunpack.c.h.b16 %v842
      %v945 = vunpack.c.l.b16 %v843
      %v946 = vunpack.c.h.b16 %v843
      %v947 = vunpack.c.l.b16 %v844
      %v948 = vunpack.c.h.b16 %v844
      %v949 = vunpack.c.l.b16 %v845
      %v950 = vunpack.c.h.b16 %v845
      %v951 = vunpack.c.l.b16 %v846
      %v952 = vunpack.c.h.b16 %v846
      %v953 = vunpack.c.l.b16 %v847
      %v954 = vunpack.c.h.b16 %v847
      %v955 = vunpack.c.l.b16 %v848
      %v956 = vunpack.c.h.b16 %v848
      %v957 = vunpack.c.l.b16 %v849
      %v958 = vunpack.c.h.b16 %v849
      %v959 = vunpack.c.l.b16 %v850
      %v960 = vunpack.c.h.b16 %v850
      %v961 = vunpack.c.l.b16 %v851
      %v962 = vunpack.c.h.b16 %v851
      %v963 = vunpack.c.l.b16 %v852
      %v964 = vunpack.c.h.b16 %v852
      %v965 = vunpack.c.l.b16 %v853
      %v966 = vunpack.c.h.b16 %v853
      %v967 = vunpack.c.l.b16 %v854
      %v968 = vunpack.c.h.b16 %v854
      %v969 = vunpack.c.l.b16 %v855
      %v970 = vunpack.c.h.b16 %v855
      %v971 = vunpack.c.l.b16 %v856
      %v972 = vunpack.c.h.b16 %v856
      %v973 = vunpack.c.l.b16 %v857
      %v974 = vunpack.c.h.b16 %v857
      %v975 = vunpack.c.l.b16 %v858
      %v976 = vunpack.c.h.b16 %v858
      %v977 = vunpack.c.l.b16 %v859
      %v978 = vunpack.c.h.b16 %v859
      %v979 = vunpack.c.l.b16 %v860
      %v980 = vunpack.c.h.b16 %v860
      %v981 = vunpack.c.l.b16 %v861
      %v982 = vunpack.c.h.b16 %v861
      %v983 = vunpack.c.l.b16 %v862
      %v984 = vunpack.c.h.b16 %v862
      %v985 = vunpack.c.l.b16 %v863
      %v986 = vunpack.c.h.b16 %v863
      %v987 = vunpack.c.l.b16 %v864
      %v988 = vunpack.c.h.b16 %v864
      %v989 = vunpack.c.l.b16 %v865
      %v990 = vunpack.c.h.b16 %v865
      %v991 = vunpack.c.l.b16 %v866
      %v992 = vunpack.c.h.b16 %v866
      %v993 = vunpack.c.l.b16 %v867
      %v994 = vunpack.c.h.b16 %v867
      %v995 = vunpack.c.l.b16 %v868
      %v996 = vunpack.c.h.b16 %v868
      %v997 = vunpack.c.l.b16 %v869
      %v998 = vunpack.c.h.b16 %v869
      %v999 = vunpack.c.l.b16 %v870
      %v1000 = vunpack.c.h.b16 %v870
      %v1001 = vunpack.c.l.b16 %v871
      %v1002 = vunpack.c.h.b16 %v871
      %v1003 = vunpack.c.l.b16 %v872
      %v1004 = vunpack.c.h.b16 %v872
      %v1005 = vunpack.c.l.b16 %v873
      %v1006 = vunpack.c.h.b16 %v873
      %v1007 = vunpack.c.l.b16 %v874
      %v1008 = vunpack.c.h.b16 %v874
      %v1009 = vunpack.c.l.b16 %v875
      %v1010 = vunpack.c.h.b16 %v875
      %v1011 = vunpack.c.l.b16 %v876
      %v1012 = vunpack.c.h.b16 %v876
      %v1013 = vunpack.c.l.b16 %v877
      %v1014 = vunpack.c.h.b16 %v877
      %v1015 = vunpack.c.l.b16 %v878
      %v1016 = vunpack.c.h.b16 %v878
      %v1017 = vunpack.c.l.b16 %v879
      %v1018 = vunpack.c.h.b16 %v879
      %v1019 = vunpack.c.l.b16 %v880
      %v1020 = vunpack.c.h.b16 %v880
      %v1021 = vunpack.c.l.b16 %v881
      %v1022 = vunpack.c.h.b16 %v881
      %v1023 = vunpack.c.l.b16 %v882
      %v1024 = vunpack.c.h.b16 %v882
      %v1025 = vunpack.c.l.b16 %v883
      %v1026 = vunpack.c.h.b16 %v883
      %v1027 = vunpack.c.l.b16 %v884
      %v1028 = vunpack.c.h.b16 %v884
      %v1029 = vunpack.c.l.b16 %v885
      %v1030 = vunpack.c.h.b16 %v885
      %v1031 = vunpack.c.l.b16 %v886
      %v1032 = vunpack.c.h.b16 %v886
      %v1033 = vunpack.c.l.b16 %v887
      %v1034 = vunpack.c.h.b16 %v887
      %v1035 = vunpack.c.l.b16 %v888
      %v1036 = vunpack.c.h.b16 %v888
      %v1037 = vunpack.c.l.b16 %v889
      %v1038 = vunpack.c.h.b16 %v889
      %v1039 = vunpack.c.l.b16 %v890
      %v1040 = vunpack.c.h.b16 %v890
      %v1041 = vpack.c.b16 %v945, %v941
      %v1042 = vpack.c.b16 %v946, %v942
      %v1043 = vpack.c.b16 %v947, %v943
      %v1044 = vpack.c.b16 %v948, %v944
      %v1045 = vpack.c.b16 %v953, %v949
      %v1046 = vpack.c.b16 %v954, %v950
      %v1047 = vpack.c.b16 %v955, %v951
      %v1048 = vpack.c.b16 %v956, %v952
      %v1049 = vpack.c.b16 %v961, %v957
      %v1050 = vpack.c.b16 %v962, %v958
      %v1051 = vpack.c.b16 %v963, %v959
      %v1052 = vpack.c.b16 %v964, %v960
      %v1053 = vpack.c.b16 %v969, %v965
      %v1054 = vpack.c.b16 %v970, %v966
      %v1055 = vpack.c.b16 %v971, %v967
      %v1056 = vpack.c.b16 %v972, %v968
      %v1057 = vpack.c.b16 %v977, %v973
      %v1058 = vpack.c.b16 %v978, %v974
      %v1059 = vpack.c.b16 %v979, %v975
      %v1060 = vpack.c.b16 %v980, %v976
      %v1061 = vpack.c.b16 %v985, %v981
      %v1062 = vpack.c.b16 %v986, %v982
      %v1063 = vpack.c.b16 %v987, %v983
      %v1064 = vpack.c.b16 %v988, %v984
      %v1065 = vpack.c.b16 %v993, %v989
      %v1066 = vpack.c.b16 %v994, %v990
      %v1067 = vpack.c.b16 %v995, %v991
      %v1068 = vpack.c.b16 %v996, %v992
      %v1069 = vpack.c.b16 %v1001, %v997
      %v1070 = vpack.c.b16 %v1002, %v998
      %v1071 = vpack.c.b16 %v1003, %v999
      %v1072 = vpack.c.b16 %v1004, %v1000
      %v1073 = vpack.c.b16 %v1009, %v1005
      %v1074 = vpack.c.b16 %v1010, %v1006
      %v1075 = vpack.c.b16 %v1011, %v1007
      %v1076 = vpack.c.b16 %v1012, %v1008
      %v1077 = vpack.c.b16 %v1017, %v1013
      %v1078 = vpack.c.b16 %v1018, %v1014
      %v1079 = vpack.c.b16 %v1019, %v1015
      %v1080 = vpack.c.b16 %v1020, %v1016
      %v1081 = vpack.c.b16 %v1025, %v1021
      %v1082 = vpack.c.b16 %v1026, %v1022
      %v1083 = vpack.c.b16 %v1027, %v1023
      %v1084 = vpack.c.b16 %v1028, %v1024
      %v1085 = vpack.c.b16 %v1033, %v1029
      %v1086 = vpack.c.b16 %v1034, %v1030
      %v1087 = vpack.c.b16 %v1035, %v1031
      %v1088 = vpack.c.b16 %v1036, %v1032
      %v1089 = vpack.c.b16 %v1037, %v1037
      %v1090 = vpack.c.b16 %v1038, %v1038
      %v1091 = vpack.c.b16 %v1039, %v1039
      %v1092 = vpack.c.b16 %v1040, %v1040
      %v1142 = vsel %vm698, %v1089, 0
      %v1145 = vsel %vm698, %v1090, 0
      %v1148 = vsel %vm698, %v1091, 0
      %v1151 = vsel %vm698, %v1092, 0
      %1153 = vmatprep.subr.bf16.mxu0 %v1042
      %1154 = vmatpush1.bf16.msra.mxu0 %v1041
      %1155 = vmatprep.subr.bf16.mxu0 %v1046
      %1156 = vmatpush1.bf16.msra.mxu0 %v1045
      %1157 = vmatprep.subr.bf16.mxu0 %v1050
      %1158 = vmatpush1.bf16.msra.mxu0 %v1049
      %1159 = vmatprep.subr.bf16.mxu0 %v1054
      %1160 = vmatpush1.bf16.msra.mxu0 %v1053
      %1161 = vmatprep.subr.bf16.mxu0 %v1058
      %1162 = vmatpush1.bf16.msra.mxu0 %v1057
      %1163 = vmatprep.subr.bf16.mxu0 %v1062
      %1164 = vmatpush1.bf16.msra.mxu0 %v1061
      %1165 = vmatprep.subr.bf16.mxu0 %v1066
      %1166 = vmatpush1.bf16.msra.mxu0 %v1065
      %1167 = vmatprep.subr.bf16.mxu0 %v1070
      %1168 = vmatpush1.bf16.msra.mxu0 %v1069
      %1169 = vmatprep.subr.bf16.mxu0 %v1074
      %1170 = vmatpush1.bf16.msra.mxu0 %v1073
      %1171 = vmatprep.subr.bf16.mxu0 %v1078
      %1172 = vmatpush1.bf16.msra.mxu0 %v1077
      %1173 = vmatprep.subr.bf16.mxu0 %v1082
      %1174 = vmatpush1.bf16.msra.mxu0 %v1081
      %1175 = vmatprep.subr.bf16.mxu0 %v1086
      %1176 = vmatpush1.bf16.msra.mxu0 %v1085
      %1177 = vmatprep.subr.bf16.mxu0 %v1145
      %1178 = vmatpush1.bf16.msra.mxu0 %v1142
      %1179 = vmatprep.subr.bf16.mxu0 0
      %1180 = vmatpush1.bf16.msra.mxu0 0
      %1181 = vmatprep.subr.bf16.mxu0 0
      %1182 = vmatpush1.bf16.msra.mxu0 0
      %1183 = vmatprep.subr.bf16.mxu0 0
      %1184 = vmatpush1.bf16.msra.mxu0 0
      %1185 = vmatprep.mubr.bf16.mxu0 %v696
      %1186 = vmatmul.mubr.bf16.gmra.mrb[0].mxu0 %v441
      %v1187 = vpop.f32.mrb[0].mxu0
      %v1188 = vadd.f32 %v428, %v1187
      %v1189 = vpop.f32.mrb[0].mxu0
      %v1190 = vadd.f32 %v428, %v1189
      %v1191 = vpop.f32.mrb[0].mxu0
      %v1192 = vadd.f32 %v433, %v1191
      %v1193 = vpop.f32.mrb[0].mxu0
      %v1194 = vadd.f32 %v433, %v1193
      %1195 = vdwg.mxu0
      %1196 = vmatprep.subr.bf16.mxu0 %v1044
      %1197 = vmatpush1.bf16.msra.mxu0 %v1043
      %1198 = vmatprep.subr.bf16.mxu0 %v1048
      %1199 = vmatpush1.bf16.msra.mxu0 %v1047
      %1200 = vmatprep.subr.bf16.mxu0 %v1052
      %1201 = vmatpush1.bf16.msra.mxu0 %v1051
      %1202 = vmatprep.subr.bf16.mxu0 %v1056
      %1203 = vmatpush1.bf16.msra.mxu0 %v1055
      %1204 = vmatprep.subr.bf16.mxu0 %v1060
      %1205 = vmatpush1.bf16.msra.mxu0 %v1059
      %1206 = vmatprep.subr.bf16.mxu0 %v1064
      %1207 = vmatpush1.bf16.msra.mxu0 %v1063
      %1208 = vmatprep.subr.bf16.mxu0 %v1068
      %1209 = vmatpush1.bf16.msra.mxu0 %v1067
      %1210 = vmatprep.subr.bf16.mxu0 %v1072
      %1211 = vmatpush1.bf16.msra.mxu0 %v1071
      %1212 = vmatprep.subr.bf16.mxu0 %v1076
      %1213 = vmatpush1.bf16.msra.mxu0 %v1075
      %1214 = vmatprep.subr.bf16.mxu0 %v1080
      %1215 = vmatpush1.bf16.msra.mxu0 %v1079
      %1216 = vmatprep.subr.bf16.mxu0 %v1084
      %1217 = vmatpush1.bf16.msra.mxu0 %v1083
      %1218 = vmatprep.subr.bf16.mxu0 %v1088
      %1219 = vmatpush1.bf16.msra.mxu0 %v1087
      %1220 = vmatprep.subr.bf16.mxu0 %v1151
      %1221 = vmatpush1.bf16.msra.mxu0 %v1148
      %1222 = vmatprep.subr.bf16.mxu0 0
      %1223 = vmatpush1.bf16.msra.mxu0 0
      %1224 = vmatprep.subr.bf16.mxu0 0
      %1225 = vmatpush1.bf16.msra.mxu0 0
      %1226 = vmatprep.subr.bf16.mxu0 0
      %1227 = vmatpush1.bf16.msra.mxu0 0
      %1228 = vmatprep.mubr.bf16.mxu0 %v696
      %1229 = vmatmul.mubr.bf16.gmra.mrb[0].mxu0 %v441
      %v1230 = vpop.f32.mrb[0].mxu0
      %v1231 = vadd.f32 %v428, %v1230
      %v1232 = vpop.f32.mrb[0].mxu0
      %v1233 = vadd.f32 %v428, %v1232
      %v1234 = vpop.f32.mrb[0].mxu0
      %v1235 = vadd.f32 %v433, %v1234
      %v1236 = vpop.f32.mrb[0].mxu0
      %v1237 = vadd.f32 %v433, %v1236
      %1238 = vdwg.mxu0
      %v1239 = vmax.f32 %v1188, 0.0
      %v1240 = vmax.f32 %v1190, 0.0
      %v1241 = vmax.f32 %v1231, 0.0
      %v1242 = vmax.f32 %v1233, 0.0
      %v1243 = vmax.f32 %v1192, 0.0
      %v1244 = vmax.f32 %v1194, 0.0
      %v1245 = vmax.f32 %v1235, 0.0
      %v1246 = vmax.f32 %v1237, 0.0
      %v1247 = vmul.f32 %v1239, %v808
      %v1248 = vmul.f32 %v1240, %v808
      %v1249 = vmul.f32 %v1241, %v808
      %v1250 = vmul.f32 %v1242, %v808
      %v1251 = vmul.f32 %v1243, %v813
      %v1252 = vmul.f32 %v1244, %v813
      %v1253 = vmul.f32 %v1245, %v813
      %v1254 = vmul.f32 %v1246, %v813
      %v1255 = vadd.f32 %v1247, %v826
      %v1256 = vadd.f32 %v1248, %v826
      %v1257 = vadd.f32 %v1249, %v826
      %v1258 = vadd.f32 %v1250, %v826
      %v1259 = vadd.f32 %v1251, %v831
      %v1260 = vadd.f32 %v1252, %v831
      %v1261 = vadd.f32 %v1253, %v831
      %v1262 = vadd.f32 %v1254, %v831
      %v1263 = vmax.f32 %v833, %v1255
      %v1264 = vmax.f32 %v834, %v1256
      %v1265 = vmax.f32 %v835, %v1257
      %v1266 = vmax.f32 %v836, %v1258
      %v1267 = vmax.f32 %v837, %v1259
      %v1268 = vmax.f32 %v838, %v1260
      %v1269 = vmax.f32 %v839, %v1261
      %v1270 = vmax.f32 %v840, %v1262
      %v1271 = vld [vmem:[%s355] sm:$0xff]
      %v1272 = vld [vmem:[%s355 + $0x8] sm:$0xff]
      %v1273 = vld [vmem:[%s355 + $0x10] sm:$0xff]
      %v1274 = vld [vmem:[%s355 + $0x18] sm:$0xff]
      %v1275 = vld [vmem:[%s355 + $0x20] sm:$0xff]
      %v1276 = vld [vmem:[%s355 + $0x28] sm:$0xff]
      %v1277 = vld [vmem:[%s355 + $0x30] sm:$0xff]
      %v1278 = vld [vmem:[%s355 + $0x38] sm:$0xff]
      %v1279 = vld [vmem:[%s355 + $0x40] sm:$0xff]
      %v1280 = vld [vmem:[%s355 + $0x48] sm:$0xff]
      %v1281 = vld [vmem:[%s355 + $0x50] sm:$0xff]
      %v1282 = vld [vmem:[%s355 + $0x58] sm:$0xff]
      %v1283 = vld [vmem:[%s355 + $0x60] sm:$0xff]
      %v1284 = vld [vmem:[%s355 + $0x68] sm:$0xff]
      %v1285 = vld [vmem:[%s355 + $0x70] sm:$0xff]
      %v1286 = vld [vmem:[%s355 + $0x78] sm:$0xff]
      %v1287 = vld [vmem:[%s355 + $0x80] sm:$0xff]
      %v1288 = vld [vmem:[%s355 + $0x88] sm:$0xff]
      %v1289 = vld [vmem:[%s355 + $0x90] sm:$0xff]
      %v1290 = vld [vmem:[%s355 + $0x98] sm:$0xff]
      %v1291 = vld [vmem:[%s355 + $0xa0] sm:$0xff]
      %v1292 = vld [vmem:[%s355 + $0xa8] sm:$0xff]
      %v1293 = vld [vmem:[%s355 + $0xb0] sm:$0xff]
      %v1294 = vld [vmem:[%s355 + $0xb8] sm:$0xff]
      %v1295 = vld [vmem:[%s355 + $0xc0] sm:$0xff]
      %v1296 = vld [vmem:[%s355 + $0xc8] sm:$0xff]
      %v1297 = vld [vmem:[%s355 + $0xd0] sm:$0xff]
      %v1298 = vld [vmem:[%s355 + $0xd8] sm:$0xff]
      %v1299 = vld [vmem:[%s355 + $0xe0] sm:$0xff]
      %v1300 = vld [vmem:[%s355 + $0xe8] sm:$0xff]
      %v1301 = vld [vmem:[%s355 + $0xf0] sm:$0xff]
      %v1302 = vld [vmem:[%s355 + $0xf8] sm:$0xff]
      %v1303 = vld [vmem:[%s355 + $0x100] sm:$0xff]
      %v1304 = vld [vmem:[%s355 + $0x108] sm:$0xff]
      %v1305 = vld [vmem:[%s355 + $0x110] sm:$0xff]
      %v1306 = vld [vmem:[%s355 + $0x118] sm:$0xff]
      %v1307 = vld [vmem:[%s355 + $0x120] sm:$0xff]
      %v1308 = vld [vmem:[%s355 + $0x128] sm:$0xff]
      %v1309 = vld [vmem:[%s355 + $0x130] sm:$0xff]
      %v1310 = vld [vmem:[%s355 + $0x138] sm:$0xff]
      %v1311 = vld [vmem:[%s355 + $0x140] sm:$0xff]
      %v1312 = vld [vmem:[%s355 + $0x148] sm:$0xff]
      %v1313 = vld [vmem:[%s355 + $0x150] sm:$0xff]
      %v1314 = vld [vmem:[%s355 + $0x158] sm:$0xff]
      %v1315 = vld [vmem:[%s355 + $0x160] sm:$0xff]
      %v1316 = vld [vmem:[%s355 + $0x168] sm:$0xff]
      %v1317 = vld [vmem:[%s355 + $0x170] sm:$0xff]
      %v1318 = vld [vmem:[%s355 + $0x178] sm:$0xff]
      %v1319 = vld [vmem:[%s355 + $0x180] sm:$0xff]
      %v1320 = vld [vmem:[%s355 + $0x188] sm:$0xff]
      %v1371 = vunpack.c.l.b16 %v1271
      %v1372 = vunpack.c.h.b16 %v1271
      %v1373 = vunpack.c.l.b16 %v1272
      %v1374 = vunpack.c.h.b16 %v1272
      %v1375 = vunpack.c.l.b16 %v1273
      %v1376 = vunpack.c.h.b16 %v1273
      %v1377 = vunpack.c.l.b16 %v1274
      %v1378 = vunpack.c.h.b16 %v1274
      %v1379 = vunpack.c.l.b16 %v1275
      %v1380 = vunpack.c.h.b16 %v1275
      %v1381 = vunpack.c.l.b16 %v1276
      %v1382 = vunpack.c.h.b16 %v1276
      %v1383 = vunpack.c.l.b16 %v1277
      %v1384 = vunpack.c.h.b16 %v1277
      %v1385 = vunpack.c.l.b16 %v1278
      %v1386 = vunpack.c.h.b16 %v1278
      %v1387 = vunpack.c.l.b16 %v1279
      %v1388 = vunpack.c.h.b16 %v1279
      %v1389 = vunpack.c.l.b16 %v1280
      %v1390 = vunpack.c.h.b16 %v1280
      %v1391 = vunpack.c.l.b16 %v1281
      %v1392 = vunpack.c.h.b16 %v1281
      %v1393 = vunpack.c.l.b16 %v1282
      %v1394 = vunpack.c.h.b16 %v1282
      %v1395 = vunpack.c.l.b16 %v1283
      %v1396 = vunpack.c.h.b16 %v1283
      %v1397 = vunpack.c.l.b16 %v1284
      %v1398 = vunpack.c.h.b16 %v1284
      %v1399 = vunpack.c.l.b16 %v1285
      %v1400 = vunpack.c.h.b16 %v1285
      %v1401 = vunpack.c.l.b16 %v1286
      %v1402 = vunpack.c.h.b16 %v1286
      %v1403 = vunpack.c.l.b16 %v1287
      %v1404 = vunpack.c.h.b16 %v1287
      %v1405 = vunpack.c.l.b16 %v1288
      %v1406 = vunpack.c.h.b16 %v1288
      %v1407 = vunpack.c.l.b16 %v1289
      %v1408 = vunpack.c.h.b16 %v1289
      %v1409 = vunpack.c.l.b16 %v1290
      %v1410 = vunpack.c.h.b16 %v1290
      %v1411 = vunpack.c.l.b16 %v1291
      %v1412 = vunpack.c.h.b16 %v1291
      %v1413 = vunpack.c.l.b16 %v1292
      %v1414 = vunpack.c.h.b16 %v1292
      %v1415 = vunpack.c.l.b16 %v1293
      %v1416 = vunpack.c.h.b16 %v1293
      %v1417 = vunpack.c.l.b16 %v1294
      %v1418 = vunpack.c.h.b16 %v1294
      %v1419 = vunpack.c.l.b16 %v1295
      %v1420 = vunpack.c.h.b16 %v1295
      %v1421 = vunpack.c.l.b16 %v1296
      %v1422 = vunpack.c.h.b16 %v1296
      %v1423 = vunpack.c.l.b16 %v1297
      %v1424 = vunpack.c.h.b16 %v1297
      %v1425 = vunpack.c.l.b16 %v1298
      %v1426 = vunpack.c.h.b16 %v1298
      %v1427 = vunpack.c.l.b16 %v1299
      %v1428 = vunpack.c.h.b16 %v1299
      %v1429 = vunpack.c.l.b16 %v1300
      %v1430 = vunpack.c.h.b16 %v1300
      %v1431 = vunpack.c.l.b16 %v1301
      %v1432 = vunpack.c.h.b16 %v1301
      %v1433 = vunpack.c.l.b16 %v1302
      %v1434 = vunpack.c.h.b16 %v1302
      %v1435 = vunpack.c.l.b16 %v1303
      %v1436 = vunpack.c.h.b16 %v1303
      %v1437 = vunpack.c.l.b16 %v1304
      %v1438 = vunpack.c.h.b16 %v1304
      %v1439 = vunpack.c.l.b16 %v1305
      %v1440 = vunpack.c.h.b16 %v1305
      %v1441 = vunpack.c.l.b16 %v1306
      %v1442 = vunpack.c.h.b16 %v1306
      %v1443 = vunpack.c.l.b16 %v1307
      %v1444 = vunpack.c.h.b16 %v1307
      %v1445 = vunpack.c.l.b16 %v1308
      %v1446 = vunpack.c.h.b16 %v1308
      %v1447 = vunpack.c.l.b16 %v1309
      %v1448 = vunpack.c.h.b16 %v1309
      %v1449 = vunpack.c.l.b16 %v1310
      %v1450 = vunpack.c.h.b16 %v1310
      %v1451 = vunpack.c.l.b16 %v1311
      %v1452 = vunpack.c.h.b16 %v1311
      %v1453 = vunpack.c.l.b16 %v1312
      %v1454 = vunpack.c.h.b16 %v1312
      %v1455 = vunpack.c.l.b16 %v1313
      %v1456 = vunpack.c.h.b16 %v1313
      %v1457 = vunpack.c.l.b16 %v1314
      %v1458 = vunpack.c.h.b16 %v1314
      %v1459 = vunpack.c.l.b16 %v1315
      %v1460 = vunpack.c.h.b16 %v1315
      %v1461 = vunpack.c.l.b16 %v1316
      %v1462 = vunpack.c.h.b16 %v1316
      %v1463 = vunpack.c.l.b16 %v1317
      %v1464 = vunpack.c.h.b16 %v1317
      %v1465 = vunpack.c.l.b16 %v1318
      %v1466 = vunpack.c.h.b16 %v1318
      %v1467 = vunpack.c.l.b16 %v1319
      %v1468 = vunpack.c.h.b16 %v1319
      %v1469 = vunpack.c.l.b16 %v1320
      %v1470 = vunpack.c.h.b16 %v1320
      %v1471 = vpack.c.b16 %v1375, %v1371
      %v1472 = vpack.c.b16 %v1376, %v1372
      %v1473 = vpack.c.b16 %v1377, %v1373
      %v1474 = vpack.c.b16 %v1378, %v1374
      %v1475 = vpack.c.b16 %v1383, %v1379
      %v1476 = vpack.c.b16 %v1384, %v1380
      %v1477 = vpack.c.b16 %v1385, %v1381
      %v1478 = vpack.c.b16 %v1386, %v1382
      %v1479 = vpack.c.b16 %v1391, %v1387
      %v1480 = vpack.c.b16 %v1392, %v1388
      %v1481 = vpack.c.b16 %v1393, %v1389
      %v1482 = vpack.c.b16 %v1394, %v1390
      %v1483 = vpack.c.b16 %v1399, %v1395
      %v1484 = vpack.c.b16 %v1400, %v1396
      %v1485 = vpack.c.b16 %v1401, %v1397
      %v1486 = vpack.c.b16 %v1402, %v1398
      %v1487 = vpack.c.b16 %v1407, %v1403
      %v1488 = vpack.c.b16 %v1408, %v1404
      %v1489 = vpack.c.b16 %v1409, %v1405
      %v1490 = vpack.c.b16 %v1410, %v1406
      %v1491 = vpack.c.b16 %v1415, %v1411
      %v1492 = vpack.c.b16 %v1416, %v1412
      %v1493 = vpack.c.b16 %v1417, %v1413
      %v1494 = vpack.c.b16 %v1418, %v1414
      %v1495 = vpack.c.b16 %v1423, %v1419
      %v1496 = vpack.c.b16 %v1424, %v1420
      %v1497 = vpack.c.b16 %v1425, %v1421
      %v1498 = vpack.c.b16 %v1426, %v1422
      %v1499 = vpack.c.b16 %v1431, %v1427
      %v1500 = vpack.c.b16 %v1432, %v1428
      %v1501 = vpack.c.b16 %v1433, %v1429
      %v1502 = vpack.c.b16 %v1434, %v1430
      %v1503 = vpack.c.b16 %v1439, %v1435
      %v1504 = vpack.c.b16 %v1440, %v1436
      %v1505 = vpack.c.b16 %v1441, %v1437
      %v1506 = vpack.c.b16 %v1442, %v1438
      %v1507 = vpack.c.b16 %v1447, %v1443
      %v1508 = vpack.c.b16 %v1448, %v1444
      %v1509 = vpack.c.b16 %v1449, %v1445
      %v1510 = vpack.c.b16 %v1450, %v1446
      %v1511 = vpack.c.b16 %v1455, %v1451
      %v1512 = vpack.c.b16 %v1456, %v1452
      %v1513 = vpack.c.b16 %v1457, %v1453
      %v1514 = vpack.c.b16 %v1458, %v1454
      %v1515 = vpack.c.b16 %v1463, %v1459
      %v1516 = vpack.c.b16 %v1464, %v1460
      %v1517 = vpack.c.b16 %v1465, %v1461
      %v1518 = vpack.c.b16 %v1466, %v1462
      %v1519 = vpack.c.b16 %v1467, %v1467
      %v1520 = vpack.c.b16 %v1468, %v1468
      %v1521 = vpack.c.b16 %v1469, %v1469
      %v1522 = vpack.c.b16 %v1470, %v1470
      %v1572 = vsel %vm698, %v1519, 0
      %v1575 = vsel %vm698, %v1520, 0
      %v1578 = vsel %vm698, %v1521, 0
      %v1581 = vsel %vm698, %v1522, 0
      %1583 = vmatprep.subr.bf16.mxu0 %v1472
      %1584 = vmatpush1.bf16.msra.mxu0 %v1471
      %1585 = vmatprep.subr.bf16.mxu0 %v1476
      %1586 = vmatpush1.bf16.msra.mxu0 %v1475
      %1587 = vmatprep.subr.bf16.mxu0 %v1480
      %1588 = vmatpush1.bf16.msra.mxu0 %v1479
      %1589 = vmatprep.subr.bf16.mxu0 %v1484
      %1590 = vmatpush1.bf16.msra.mxu0 %v1483
      %1591 = vmatprep.subr.bf16.mxu0 %v1488
      %1592 = vmatpush1.bf16.msra.mxu0 %v1487
      %1593 = vmatprep.subr.bf16.mxu0 %v1492
      %1594 = vmatpush1.bf16.msra.mxu0 %v1491
      %1595 = vmatprep.subr.bf16.mxu0 %v1496
      %1596 = vmatpush1.bf16.msra.mxu0 %v1495
      %1597 = vmatprep.subr.bf16.mxu0 %v1500
      %1598 = vmatpush1.bf16.msra.mxu0 %v1499
      %1599 = vmatprep.subr.bf16.mxu0 %v1504
      %1600 = vmatpush1.bf16.msra.mxu0 %v1503
      %1601 = vmatprep.subr.bf16.mxu0 %v1508
      %1602 = vmatpush1.bf16.msra.mxu0 %v1507
      %1603 = vmatprep.subr.bf16.mxu0 %v1512
      %1604 = vmatpush1.bf16.msra.mxu0 %v1511
      %1605 = vmatprep.subr.bf16.mxu0 %v1516
      %1606 = vmatpush1.bf16.msra.mxu0 %v1515
      %1607 = vmatprep.subr.bf16.mxu0 %v1575
      %1608 = vmatpush1.bf16.msra.mxu0 %v1572
      %1609 = vmatprep.subr.bf16.mxu0 0
      %1610 = vmatpush1.bf16.msra.mxu0 0
      %1611 = vmatprep.subr.bf16.mxu0 0
      %1612 = vmatpush1.bf16.msra.mxu0 0
      %1613 = vmatprep.subr.bf16.mxu0 0
      %1614 = vmatpush1.bf16.msra.mxu0 0
      %1615 = vmatprep.mubr.bf16.mxu0 %v696
      %1616 = vmatmul.mubr.bf16.gmra.mrb[0].mxu0 %v441
      %v1617 = vpop.f32.mrb[0].mxu0
      %v1618 = vadd.f32 %v428, %v1617
      %v1619 = vpop.f32.mrb[0].mxu0
      %v1620 = vadd.f32 %v428, %v1619
      %v1621 = vpop.f32.mrb[0].mxu0
      %v1622 = vadd.f32 %v433, %v1621
      %v1623 = vpop.f32.mrb[0].mxu0
      %v1624 = vadd.f32 %v433, %v1623
      %1625 = vdwg.mxu0
      %1626 = vmatprep.subr.bf16.mxu0 %v1474
      %1627 = vmatpush1.bf16.msra.mxu0 %v1473
      %1628 = vmatprep.subr.bf16.mxu0 %v1478
      %1629 = vmatpush1.bf16.msra.mxu0 %v1477
      %1630 = vmatprep.subr.bf16.mxu0 %v1482
      %1631 = vmatpush1.bf16.msra.mxu0 %v1481
      %1632 = vmatprep.subr.bf16.mxu0 %v1486
      %1633 = vmatpush1.bf16.msra.mxu0 %v1485
      %1634 = vmatprep.subr.bf16.mxu0 %v1490
      %1635 = vmatpush1.bf16.msra.mxu0 %v1489
      %1636 = vmatprep.subr.bf16.mxu0 %v1494
      %1637 = vmatpush1.bf16.msra.mxu0 %v1493
      %1638 = vmatprep.subr.bf16.mxu0 %v1498
      %1639 = vmatpush1.bf16.msra.mxu0 %v1497
      %1640 = vmatprep.subr.bf16.mxu0 %v1502
      %1641 = vmatpush1.bf16.msra.mxu0 %v1501
      %1642 = vmatprep.subr.bf16.mxu0 %v1506
      %1643 = vmatpush1.bf16.msra.mxu0 %v1505
      %1644 = vmatprep.subr.bf16.mxu0 %v1510
      %1645 = vmatpush1.bf16.msra.mxu0 %v1509
      %1646 = vmatprep.subr.bf16.mxu0 %v1514
      %1647 = vmatpush1.bf16.msra.mxu0 %v1513
      %1648 = vmatprep.subr.bf16.mxu0 %v1518
      %1649 = vmatpush1.bf16.msra.mxu0 %v1517
      %1650 = vmatprep.subr.bf16.mxu0 %v1581
      %1651 = vmatpush1.bf16.msra.mxu0 %v1578
      %1652 = vmatprep.subr.bf16.mxu0 0
      %1653 = vmatpush1.bf16.msra.mxu0 0
      %1654 = vmatprep.subr.bf16.mxu0 0
      %1655 = vmatpush1.bf16.msra.mxu0 0
      %1656 = vmatprep.subr.bf16.mxu0 0
      %1657 = vmatpush1.bf16.msra.mxu0 0
      %1658 = vmatprep.mubr.bf16.mxu0 %v696
      %1659 = vmatmul.mubr.bf16.gmra.mrb[0].mxu0 %v441
      %v1660 = vpop.f32.mrb[0].mxu0
      %v1661 = vadd.f32 %v428, %v1660
      %v1662 = vpop.f32.mrb[0].mxu0
      %v1663 = vadd.f32 %v428, %v1662
      %v1664 = vpop.f32.mrb[0].mxu0
      %v1665 = vadd.f32 %v433, %v1664
      %v1666 = vpop.f32.mrb[0].mxu0
      %v1667 = vadd.f32 %v433, %v1666
      %1668 = vdwg.mxu0
      %v1669 = vmax.f32 %v1618, 0.0
      %v1670 = vmax.f32 %v1620, 0.0
      %v1671 = vmax.f32 %v1661, 0.0
      %v1672 = vmax.f32 %v1663, 0.0
      %v1673 = vmax.f32 %v1622, 0.0
      %v1674 = vmax.f32 %v1624, 0.0
      %v1675 = vmax.f32 %v1665, 0.0
      %v1676 = vmax.f32 %v1667, 0.0
      %v1677 = vmul.f32 %v1669, %v808
      %v1678 = vmul.f32 %v1670, %v808
      %v1679 = vmul.f32 %v1671, %v808
      %v1680 = vmul.f32 %v1672, %v808
      %v1681 = vmul.f32 %v1673, %v813
      %v1682 = vmul.f32 %v1674, %v813
      %v1683 = vmul.f32 %v1675, %v813
      %v1684 = vmul.f32 %v1676, %v813
      %v1685 = vadd.f32 %v1677, %v826
      %v1686 = vadd.f32 %v1678, %v826
      %v1687 = vadd.f32 %v1679, %v826
      %v1688 = vadd.f32 %v1680, %v826
      %v1689 = vadd.f32 %v1681, %v831
      %v1690 = vadd.f32 %v1682, %v831
      %v1691 = vadd.f32 %v1683, %v831
      %v1692 = vadd.f32 %v1684, %v831
      %v1693 = vld [vmem:[%s360] sm:$0xff]
      %v1694 = vld [vmem:[%s360 + $0x8] sm:$0xff]
      %v1695 = vld [vmem:[%s360 + $0x10] sm:$0xff]
      %v1696 = vld [vmem:[%s360 + $0x18] sm:$0xff]
      %v1697 = vld [vmem:[%s360 + $0x20] sm:$0xff]
      %v1698 = vld [vmem:[%s360 + $0x28] sm:$0xff]
      %v1699 = vld [vmem:[%s360 + $0x30] sm:$0xff]
      %v1700 = vld [vmem:[%s360 + $0x38] sm:$0xff]
      %v1701 = vld [vmem:[%s360 + $0x40] sm:$0xff]
      %v1702 = vld [vmem:[%s360 + $0x48] sm:$0xff]
      %v1703 = vld [vmem:[%s360 + $0x50] sm:$0xff]
      %v1704 = vld [vmem:[%s360 + $0x58] sm:$0xff]
      %v1705 = vld [vmem:[%s360 + $0x60] sm:$0xff]
      %v1706 = vld [vmem:[%s360 + $0x68] sm:$0xff]
      %v1707 = vld [vmem:[%s360 + $0x70] sm:$0xff]
      %v1708 = vld [vmem:[%s360 + $0x78] sm:$0xff]
      %v1709 = vld [vmem:[%s360 + $0x80] sm:$0xff]
      %v1710 = vld [vmem:[%s360 + $0x88] sm:$0xff]
      %v1711 = vld [vmem:[%s360 + $0x90] sm:$0xff]
      %v1712 = vld [vmem:[%s360 + $0x98] sm:$0xff]
      %v1713 = vld [vmem:[%s360 + $0xa0] sm:$0xff]
      %v1714 = vld [vmem:[%s360 + $0xa8] sm:$0xff]
      %v1715 = vld [vmem:[%s360 + $0xb0] sm:$0xff]
      %v1716 = vld [vmem:[%s360 + $0xb8] sm:$0xff]
      %v1717 = vld [vmem:[%s360 + $0xc0] sm:$0xff]
      %v1718 = vld [vmem:[%s360 + $0xc8] sm:$0xff]
      %v1719 = vld [vmem:[%s360 + $0xd0] sm:$0xff]
      %v1720 = vld [vmem:[%s360 + $0xd8] sm:$0xff]
      %v1721 = vld [vmem:[%s360 + $0xe0] sm:$0xff]
      %v1722 = vld [vmem:[%s360 + $0xe8] sm:$0xff]
      %v1723 = vld [vmem:[%s360 + $0xf0] sm:$0xff]
      %v1724 = vld [vmem:[%s360 + $0xf8] sm:$0xff]
      %v1725 = vld [vmem:[%s360 + $0x100] sm:$0xff]
      %v1726 = vld [vmem:[%s360 + $0x108] sm:$0xff]
      %v1727 = vld [vmem:[%s360 + $0x110] sm:$0xff]
      %v1728 = vld [vmem:[%s360 + $0x118] sm:$0xff]
      %v1729 = vld [vmem:[%s360 + $0x120] sm:$0xff]
      %v1730 = vld [vmem:[%s360 + $0x128] sm:$0xff]
      %v1731 = vld [vmem:[%s360 + $0x130] sm:$0xff]
      %v1732 = vld [vmem:[%s360 + $0x138] sm:$0xff]
      %v1733 = vld [vmem:[%s360 + $0x140] sm:$0xff]
      %v1734 = vld [vmem:[%s360 + $0x148] sm:$0xff]
      %v1735 = vld [vmem:[%s360 + $0x150] sm:$0xff]
      %v1736 = vld [vmem:[%s360 + $0x158] sm:$0xff]
      %v1737 = vld [vmem:[%s360 + $0x160] sm:$0xff]
      %v1738 = vld [vmem:[%s360 + $0x168] sm:$0xff]
      %v1739 = vld [vmem:[%s360 + $0x170] sm:$0xff]
      %v1740 = vld [vmem:[%s360 + $0x178] sm:$0xff]
      %v1741 = vld [vmem:[%s360 + $0x180] sm:$0xff]
      %v1742 = vld [vmem:[%s360 + $0x188] sm:$0xff]
      %v1793 = vunpack.c.l.b16 %v1693
      %v1794 = vunpack.c.h.b16 %v1693
      %v1795 = vunpack.c.l.b16 %v1694
      %v1796 = vunpack.c.h.b16 %v1694
      %v1797 = vunpack.c.l.b16 %v1695
      %v1798 = vunpack.c.h.b16 %v1695
      %v1799 = vunpack.c.l.b16 %v1696
      %v1800 = vunpack.c.h.b16 %v1696
      %v1801 = vunpack.c.l.b16 %v1697
      %v1802 = vunpack.c.h.b16 %v1697
      %v1803 = vunpack.c.l.b16 %v1698
      %v1804 = vunpack.c.h.b16 %v1698
      %v1805 = vunpack.c.l.b16 %v1699
      %v1806 = vunpack.c.h.b16 %v1699
      %v1807 = vunpack.c.l.b16 %v1700
      %v1808 = vunpack.c.h.b16 %v1700
      %v1809 = vunpack.c.l.b16 %v1701
      %v1810 = vunpack.c.h.b16 %v1701
      %v1811 = vunpack.c.l.b16 %v1702
      %v1812 = vunpack.c.h.b16 %v1702
      %v1813 = vunpack.c.l.b16 %v1703
      %v1814 = vunpack.c.h.b16 %v1703
      %v1815 = vunpack.c.l.b16 %v1704
      %v1816 = vunpack.c.h.b16 %v1704
      %v1817 = vunpack.c.l.b16 %v1705
      %v1818 = vunpack.c.h.b16 %v1705
      %v1819 = vunpack.c.l.b16 %v1706
      %v1820 = vunpack.c.h.b16 %v1706
      %v1821 = vunpack.c.l.b16 %v1707
      %v1822 = vunpack.c.h.b16 %v1707
      %v1823 = vunpack.c.l.b16 %v1708
      %v1824 = vunpack.c.h.b16 %v1708
      %v1825 = vunpack.c.l.b16 %v1709
      %v1826 = vunpack.c.h.b16 %v1709
      %v1827 = vunpack.c.l.b16 %v1710
      %v1828 = vunpack.c.h.b16 %v1710
      %v1829 = vunpack.c.l.b16 %v1711
      %v1830 = vunpack.c.h.b16 %v1711
      %v1831 = vunpack.c.l.b16 %v1712
      %v1832 = vunpack.c.h.b16 %v1712
      %v1833 = vunpack.c.l.b16 %v1713
      %v1834 = vunpack.c.h.b16 %v1713
      %v1835 = vunpack.c.l.b16 %v1714
      %v1836 = vunpack.c.h.b16 %v1714
      %v1837 = vunpack.c.l.b16 %v1715
      %v1838 = vunpack.c.h.b16 %v1715
      %v1839 = vunpack.c.l.b16 %v1716
      %v1840 = vunpack.c.h.b16 %v1716
      %v1841 = vunpack.c.l.b16 %v1717
      %v1842 = vunpack.c.h.b16 %v1717
      %v1843 = vunpack.c.l.b16 %v1718
      %v1844 = vunpack.c.h.b16 %v1718
      %v1845 = vunpack.c.l.b16 %v1719
      %v1846 = vunpack.c.h.b16 %v1719
      %v1847 = vunpack.c.l.b16 %v1720
      %v1848 = vunpack.c.h.b16 %v1720
      %v1849 = vunpack.c.l.b16 %v1721
      %v1850 = vunpack.c.h.b16 %v1721
      %v1851 = vunpack.c.l.b16 %v1722
      %v1852 = vunpack.c.h.b16 %v1722
      %v1853 = vunpack.c.l.b16 %v1723
      %v1854 = vunpack.c.h.b16 %v1723
      %v1855 = vunpack.c.l.b16 %v1724
      %v1856 = vunpack.c.h.b16 %v1724
      %v1857 = vunpack.c.l.b16 %v1725
      %v1858 = vunpack.c.h.b16 %v1725
      %v1859 = vunpack.c.l.b16 %v1726
      %v1860 = vunpack.c.h.b16 %v1726
      %v1861 = vunpack.c.l.b16 %v1727
      %v1862 = vunpack.c.h.b16 %v1727
      %v1863 = vunpack.c.l.b16 %v1728
      %v1864 = vunpack.c.h.b16 %v1728
      %v1865 = vunpack.c.l.b16 %v1729
      %v1866 = vunpack.c.h.b16 %v1729
      %v1867 = vunpack.c.l.b16 %v1730
      %v1868 = vunpack.c.h.b16 %v1730
      %v1869 = vunpack.c.l.b16 %v1731
      %v1870 = vunpack.c.h.b16 %v1731
      %v1871 = vunpack.c.l.b16 %v1732
      %v1872 = vunpack.c.h.b16 %v1732
      %v1873 = vunpack.c.l.b16 %v1733
      %v1874 = vunpack.c.h.b16 %v1733
      %v1875 = vunpack.c.l.b16 %v1734
      %v1876 = vunpack.c.h.b16 %v1734
      %v1877 = vunpack.c.l.b16 %v1735
      %v1878 = vunpack.c.h.b16 %v1735
      %v1879 = vunpack.c.l.b16 %v1736
      %v1880 = vunpack.c.h.b16 %v1736
      %v1881 = vunpack.c.l.b16 %v1737
      %v1882 = vunpack.c.h.b16 %v1737
      %v1883 = vunpack.c.l.b16 %v1738
      %v1884 = vunpack.c.h.b16 %v1738
      %v1885 = vunpack.c.l.b16 %v1739
      %v1886 = vunpack.c.h.b16 %v1739
      %v1887 = vunpack.c.l.b16 %v1740
      %v1888 = vunpack.c.h.b16 %v1740
      %v1889 = vunpack.c.l.b16 %v1741
      %v1890 = vunpack.c.h.b16 %v1741
      %v1891 = vunpack.c.l.b16 %v1742
      %v1892 = vunpack.c.h.b16 %v1742
      %v1893 = vpack.c.b16 %v1797, %v1793
      %v1894 = vpack.c.b16 %v1798, %v1794
      %v1895 = vpack.c.b16 %v1799, %v1795
      %v1896 = vpack.c.b16 %v1800, %v1796
      %v1897 = vpack.c.b16 %v1805, %v1801
      %v1898 = vpack.c.b16 %v1806, %v1802
      %v1899 = vpack.c.b16 %v1807, %v1803
      %v1900 = vpack.c.b16 %v1808, %v1804
      %v1901 = vpack.c.b16 %v1813, %v1809
      %v1902 = vpack.c.b16 %v1814, %v1810
      %v1903 = vpack.c.b16 %v1815, %v1811
      %v1904 = vpack.c.b16 %v1816, %v1812
      %v1905 = vpack.c.b16 %v1821, %v1817
      %v1906 = vpack.c.b16 %v1822, %v1818
      %v1907 = vpack.c.b16 %v1823, %v1819
      %v1908 = vpack.c.b16 %v1824, %v1820
      %v1909 = vpack.c.b16 %v1829, %v1825
      %v1910 = vpack.c.b16 %v1830, %v1826
      %v1911 = vpack.c.b16 %v1831, %v1827
      %v1912 = vpack.c.b16 %v1832, %v1828
      %v1913 = vpack.c.b16 %v1837, %v1833
      %v1914 = vpack.c.b16 %v1838, %v1834
      %v1915 = vpack.c.b16 %v1839, %v1835
      %v1916 = vpack.c.b16 %v1840, %v1836
      %v1917 = vpack.c.b16 %v1845, %v1841
      %v1918 = vpack.c.b16 %v1846, %v1842
      %v1919 = vpack.c.b16 %v1847, %v1843
      %v1920 = vpack.c.b16 %v1848, %v1844
      %v1921 = vpack.c.b16 %v1853, %v1849
      %v1922 = vpack.c.b16 %v1854, %v1850
      %v1923 = vpack.c.b16 %v1855, %v1851
      %v1924 = vpack.c.b16 %v1856, %v1852
      %v1925 = vpack.c.b16 %v1861, %v1857
      %v1926 = vpack.c.b16 %v1862, %v1858
      %v1927 = vpack.c.b16 %v1863, %v1859
      %v1928 = vpack.c.b16 %v1864, %v1860
      %v1929 = vpack.c.b16 %v1869, %v1865
      %v1930 = vpack.c.b16 %v1870, %v1866
      %v1931 = vpack.c.b16 %v1871, %v1867
      %v1932 = vpack.c.b16 %v1872, %v1868
      %v1933 = vpack.c.b16 %v1877, %v1873
      %v1934 = vpack.c.b16 %v1878, %v1874
      %v1935 = vpack.c.b16 %v1879, %v1875
      %v1936 = vpack.c.b16 %v1880, %v1876
      %v1937 = vpack.c.b16 %v1885, %v1881
      %v1938 = vpack.c.b16 %v1886, %v1882
      %v1939 = vpack.c.b16 %v1887, %v1883
      %v1940 = vpack.c.b16 %v1888, %v1884
      %v1941 = vpack.c.b16 %v1889, %v1889
      %v1942 = vpack.c.b16 %v1890, %v1890
      %v1943 = vpack.c.b16 %v1891, %v1891
      %v1944 = vpack.c.b16 %v1892, %v1892
      %v1994 = vsel %vm698, %v1941, 0
      %v1997 = vsel %vm698, %v1942, 0
      %v2000 = vsel %vm698, %v1943, 0
      %v2003 = vsel %vm698, %v1944, 0
      %2005 = vmatprep.subr.bf16.mxu0 %v1894
      %2006 = vmatpush1.bf16.msra.mxu0 %v1893
      %2007 = vmatprep.subr.bf16.mxu0 %v1898
      %2008 = vmatpush1.bf16.msra.mxu0 %v1897
      %2009 = vmatprep.subr.bf16.mxu0 %v1902
      %2010 = vmatpush1.bf16.msra.mxu0 %v1901
      %2011 = vmatprep.subr.bf16.mxu0 %v1906
      %2012 = vmatpush1.bf16.msra.mxu0 %v1905
      %2013 = vmatprep.subr.bf16.mxu0 %v1910
      %2014 = vmatpush1.bf16.msra.mxu0 %v1909
      %2015 = vmatprep.subr.bf16.mxu0 %v1914
      %2016 = vmatpush1.bf16.msra.mxu0 %v1913
      %2017 = vmatprep.subr.bf16.mxu0 %v1918
      %2018 = vmatpush1.bf16.msra.mxu0 %v1917
      %2019 = vmatprep.subr.bf16.mxu0 %v1922
      %2020 = vmatpush1.bf16.msra.mxu0 %v1921
      %2021 = vmatprep.subr.bf16.mxu0 %v1926
      %2022 = vmatpush1.bf16.msra.mxu0 %v1925
      %2023 = vmatprep.subr.bf16.mxu0 %v1930
      %2024 = vmatpush1.bf16.msra.mxu0 %v1929
      %2025 = vmatprep.subr.bf16.mxu0 %v1934
      %2026 = vmatpush1.bf16.msra.mxu0 %v1933
      %2027 = vmatprep.subr.bf16.mxu0 %v1938
      %2028 = vmatpush1.bf16.msra.mxu0 %v1937
      %2029 = vmatprep.subr.bf16.mxu0 %v1997
      %2030 = vmatpush1.bf16.msra.mxu0 %v1994
      %2031 = vmatprep.subr.bf16.mxu0 0
      %2032 = vmatpush1.bf16.msra.mxu0 0
      %2033 = vmatprep.subr.bf16.mxu0 0
      %2034 = vmatpush1.bf16.msra.mxu0 0
      %2035 = vmatprep.subr.bf16.mxu0 0
      %2036 = vmatpush1.bf16.msra.mxu0 0
      %2037 = vmatprep.mubr.bf16.mxu0 %v696
      %2038 = vmatmul.mubr.bf16.gmra.mrb[0].mxu0 %v441
      %v2039 = vpop.f32.mrb[0].mxu0
      %v2040 = vadd.f32 %v428, %v2039
      %v2041 = vpop.f32.mrb[0].mxu0
      %v2042 = vadd.f32 %v428, %v2041
      %v2043 = vpop.f32.mrb[0].mxu0
      %v2044 = vadd.f32 %v433, %v2043
      %v2045 = vpop.f32.mrb[0].mxu0
      %v2046 = vadd.f32 %v433, %v2045
      %2047 = vdwg.mxu0
      %2048 = vmatprep.subr.bf16.mxu0 %v1896
      %2049 = vmatpush1.bf16.msra.mxu0 %v1895
      %2050 = vmatprep.subr.bf16.mxu0 %v1900
      %2051 = vmatpush1.bf16.msra.mxu0 %v1899
      %2052 = vmatprep.subr.bf16.mxu0 %v1904
      %2053 = vmatpush1.bf16.msra.mxu0 %v1903
      %2054 = vmatprep.subr.bf16.mxu0 %v1908
      %2055 = vmatpush1.bf16.msra.mxu0 %v1907
      %2056 = vmatprep.subr.bf16.mxu0 %v1912
      %2057 = vmatpush1.bf16.msra.mxu0 %v1911
      %2058 = vmatprep.subr.bf16.mxu0 %v1916
      %2059 = vmatpush1.bf16.msra.mxu0 %v1915
      %2060 = vmatprep.subr.bf16.mxu0 %v1920
      %2061 = vmatpush1.bf16.msra.mxu0 %v1919
      %2062 = vmatprep.subr.bf16.mxu0 %v1924
      %2063 = vmatpush1.bf16.msra.mxu0 %v1923
      %2064 = vmatprep.subr.bf16.mxu0 %v1928
      %2065 = vmatpush1.bf16.msra.mxu0 %v1927
      %2066 = vmatprep.subr.bf16.mxu0 %v1932
      %2067 = vmatpush1.bf16.msra.mxu0 %v1931
      %2068 = vmatprep.subr.bf16.mxu0 %v1936
      %2069 = vmatpush1.bf16.msra.mxu0 %v1935
      %2070 = vmatprep.subr.bf16.mxu0 %v1940
      %2071 = vmatpush1.bf16.msra.mxu0 %v1939
      %2072 = vmatprep.subr.bf16.mxu0 %v2003
      %2073 = vmatpush1.bf16.msra.mxu0 %v2000
      %2074 = vmatprep.subr.bf16.mxu0 0
      %2075 = vmatpush1.bf16.msra.mxu0 0
      %2076 = vmatprep.subr.bf16.mxu0 0
      %2077 = vmatpush1.bf16.msra.mxu0 0
      %2078 = vmatprep.subr.bf16.mxu0 0
      %2079 = vmatpush1.bf16.msra.mxu0 0
      %2080 = vmatprep.mubr.bf16.mxu0 %v696
      %2081 = vmatmul.mubr.bf16.gmra.mrb[0].mxu0 %v441
      %v2082 = vpop.f32.mrb[0].mxu0
      %v2083 = vadd.f32 %v428, %v2082
      %v2084 = vpop.f32.mrb[0].mxu0
      %v2085 = vadd.f32 %v428, %v2084
      %v2086 = vpop.f32.mrb[0].mxu0
      %v2087 = vadd.f32 %v433, %v2086
      %v2088 = vpop.f32.mrb[0].mxu0
      %v2089 = vadd.f32 %v433, %v2088
      %2090 = vdwg.mxu0
      %v2091 = vmax.f32 %v2040, 0.0
      %v2092 = vmax.f32 %v2042, 0.0
      %v2093 = vmax.f32 %v2083, 0.0
      %v2094 = vmax.f32 %v2085, 0.0
      %v2095 = vmax.f32 %v2044, 0.0
      %v2096 = vmax.f32 %v2046, 0.0
      %v2097 = vmax.f32 %v2087, 0.0
      %v2098 = vmax.f32 %v2089, 0.0
      %v2099 = vmul.f32 %v2091, %v808
      %v2100 = vmul.f32 %v2092, %v808
      %v2101 = vmul.f32 %v2093, %v808
      %v2102 = vmul.f32 %v2094, %v808
      %v2103 = vmul.f32 %v2095, %v813
      %v2104 = vmul.f32 %v2096, %v813
      %v2105 = vmul.f32 %v2097, %v813
      %v2106 = vmul.f32 %v2098, %v813
      %v2107 = vadd.f32 %v2099, %v826
      %v2108 = vadd.f32 %v2100, %v826
      %v2109 = vadd.f32 %v2101, %v826
      %v2110 = vadd.f32 %v2102, %v826
      %v2111 = vadd.f32 %v2103, %v831
      %v2112 = vadd.f32 %v2104, %v831
      %v2113 = vadd.f32 %v2105, %v831
      %v2114 = vadd.f32 %v2106, %v831
      %v2115 = vmax.f32 %v1685, %v2107
      %v2116 = vmax.f32 %v1686, %v2108
      %v2117 = vmax.f32 %v1687, %v2109
      %v2118 = vmax.f32 %v1688, %v2110
      %v2119 = vmax.f32 %v1689, %v2111
      %v2120 = vmax.f32 %v1690, %v2112
      %v2121 = vmax.f32 %v1691, %v2113
      %v2122 = vmax.f32 %v1692, %v2114
      %v2123 = vmax.f32 %v1263, %v2115
      %v2124 = vmax.f32 %v1264, %v2116
      %v2125 = vmax.f32 %v1265, %v2117
      %v2126 = vmax.f32 %v1266, %v2118
      %v2127 = vmax.f32 %v1267, %v2119
      %v2128 = vmax.f32 %v1268, %v2120
      %v2129 = vmax.f32 %v1269, %v2121
      %v2130 = vmax.f32 %v1270, %v2122
      %2131 = vst [vmem:[%s365] sm:$0xff] %v2123
      %2132 = vst [vmem:[%s365 + $0x8] sm:$0xff] %v2124
      %2133 = vst [vmem:[%s365 + $0x10] sm:$0xff] %v2125
      %vm2134 = vcmask 130048
      %2135 = vst.msk [vmem:[%s365 + $0x18] sm:$0xff] %vm2134, %v2126
      %2136 = vst [vmem:[%s365 + $0x20] sm:$0xff] %v2127
      %2137 = vst [vmem:[%s365 + $0x28] sm:$0xff] %v2128
      %2138 = vst [vmem:[%s365 + $0x30] sm:$0xff] %v2129
      %2139 = vst.msk [vmem:[%s365 + $0x38] sm:$0xff] %vm2134, %v2130
      %p2140 = scmp.lt.s32.totalorder %s19, 1
      %s2141 = scalar_select %p2140, %s19, 1
      %s2142 = smul.addr %s2141, 8
      %s2143 = smul.addr %s2142, 8
      %s2144 = scalar_lea.vmem %s8, %s2143
      // Predicated region
      $region53: #{cnn_forward.4} parent=51 // pred_check
        %p2145 = pneg %p225
      $region54: #{cnn_forward.4} parent=51 // pred_check_branch
        %2147 = sbr.rel (%p2145) target = $region56
      $region55: #{cnn_forward.4} parent=51 // pred_region
        _
      $region56: #{cnn_forward.4} parent=51 // pred_fallthru
        _
    $region52: #{cnn_forward.4} parent=5 // pred_fallthru
      _
    %p2148 = scmp.le.s32.totalorder 2, %s14
    // Predicated region
    $region57: #{cnn_forward.4} parent=5 // pred_check
      %p2149 = pneg %p2148
    $region58: #{cnn_forward.4} parent=5 // pred_check_branch
      %2151 = sbr.rel (%p2149) target = $region60
    $region59: #{cnn_forward.4} parent=5 // pred_region
      %s2152 = ssub.s32 %s14, 2
      // Predicated region
      $region61: #{cnn_forward.4} parent=59 // pred_check
        %p2153 = pneg %p231
      $region62: #{cnn_forward.4} parent=59 // pred_check_branch
        %2155 = sbr.rel (%p2153) target = $region64
      $region63: #{cnn_forward.4} parent=59 // pred_region
        %p2156 = scmp.lt.s32.totalorder %s20, 1
        %s2157 = scalar_select %p2156, %s20, 1
        %s2158 = smul.addr %s2157, 8
        %s2159 = smul.addr %s2158, 8
        %s2160 = scalar_lea.vmem %s8, %s2159
      $region64: #{cnn_forward.4} parent=59 // pred_fallthru
        _
    $region60: #{cnn_forward.4} parent=5 // pred_fallthru
      _
  $region6: #{cnn_forward.4} parent=0 // loop_footer
    %s18 = sadd.s32 1, %s14
  $region7: #{cnn_forward.4} parent=0 // loop_footer_branch
    %13 = sbr.rel target = $region3
  $region8: #{cnn_forward.4} parent=0 // loop_exit
    _

// kernel: cnn_forward.5
$region0: #{cnn_forward.5}
  #allocation0 [shape = 'u32[]', space=smem, size = 0x4, offset = 0x4, fixed_abs, tag = 'smem constant byte address 0x4 - core index']
  #allocation1 [shape = 'u32[144,128]{1,0:T(1,128)}', space=vmem, size = 0x12000, scoped, tag = 'internal scratch']
  #allocation2 [shape = 'f32[1,1]{1,0:T(1,128)S(1)}', space=vmem, size = 0x200, scoped, tag = 'scoped memory for cnn_forward.5']
  %s0 = inlined_call_operand.vmem [shape: bf16[2,6400], index: 0, kind: input, shape index: {}]
  %s1 = inlined_call_operand.vmem [shape: bf16[6400,128], index: 1, kind: input, shape index: {}]
  %s2 = inlined_call_operand.vmem [shape: f32[1,128], index: 2, kind: input, shape index: {}]
  %s3 = inlined_call_operand.vmem [shape: f32[128,1], index: 3, kind: input, shape index: {}]
  %s4 = inlined_call_operand.<no memory space> [shape: f32[1,1], index: 4, kind: input, shape index: {}]
  %s5 = inlined_call_operand.vmem [shape: f32[2,1], index: 5, kind: output, shape index: {}]
  %s6 = sld [smem:[#allocation0]]
  $region30: #{cnn_forward.5} parent=0
    _
  %s8 = ssub.s32 1, %s6
  %s9 = scalar_select 0, %s8, %s6
  %v10 = vstv %s4
  %11 = vst [vmem:[#allocation2] sm:$0x1] %v10
  // Predicated region
  $region2: #{cnn_forward.5} parent=0 // pred_check
    _
  $region3: #{cnn_forward.5} parent=0 // pred_check_branch
    %13 = sbr.rel (0) target = $region5
  $region4: #{cnn_forward.5} parent=0 // pred_region
    _
  $region5: #{cnn_forward.5} parent=0 // pred_fallthru
    _
  // Predicated region
  $region6: #{cnn_forward.5} parent=0 // pred_check
    _
  $region7: #{cnn_forward.5} parent=0 // pred_check_branch
    %15 = sbr.rel (0) target = $region9
  $region8: #{cnn_forward.5} parent=0 // pred_region
    _
  $region9: #{cnn_forward.5} parent=0 // pred_fallthru
    _
  // Predicated region
  $region10: #{cnn_forward.5} parent=0 // pred_check
    _
  $region11: #{cnn_forward.5} parent=0 // pred_check_branch
    %17 = sbr.rel (0) target = $region13
  $region12: #{cnn_forward.5} parent=0 // pred_region
    _
  $region13: #{cnn_forward.5} parent=0 // pred_fallthru
    _
  // Predicated region
  $region14: #{cnn_forward.5} parent=0 // pred_check
    _
  $region15: #{cnn_forward.5} parent=0 // pred_check_branch
    %19 = sbr.rel (0) target = $region17
  $region16: #{cnn_forward.5} parent=0 // pred_region
    _
  $region17: #{cnn_forward.5} parent=0 // pred_fallthru
    _
  // Predicated region
  $region18: #{cnn_forward.5} parent=0 // pred_check
    _
  $region19: #{cnn_forward.5} parent=0 // pred_check_branch
    %21 = sbr.rel (0) target = $region21
  $region20: #{cnn_forward.5} parent=0 // pred_region
    _
  $region21: #{cnn_forward.5} parent=0 // pred_fallthru
    _
  %v23 = vld [vmem:[%s0] sm:$0xff]
  %v24 = vld [vmem:[%s0 + $0x8] sm:$0xff]
  %v25 = vld [vmem:[%s0 + $0x10] sm:$0xff]
  %v26 = vld [vmem:[%s0 + $0x18] sm:$0xff]
  %v27 = vld [vmem:[%s0 + $0x20] sm:$0xff]
  %v28 = vld [vmem:[%s0 + $0x28] sm:$0xff]
  %v29 = vld [vmem:[%s0 + $0x30] sm:$0x3]
  %v30 = vld [vmem:[%s1] sm:$0xf]
  %v31 = vld [vmem:[%s1 + $0x4] sm:$0xf]
  %v32 = vld [vmem:[%s1 + $0x8] sm:$0xf]
  %v33 = vld [vmem:[%s1 + $0xc] sm:$0xf]
  %v34 = vld [vmem:[%s1 + $0x10] sm:$0xf]
  %v35 = vld [vmem:[%s1 + $0x14] sm:$0xf]
  %v36 = vld [vmem:[%s1 + $0x18] sm:$0xf]
  %v37 = vld [vmem:[%s1 + $0x1c] sm:$0xf]
  %v38 = vld [vmem:[%s1 + $0x20] sm:$0xf]
  %v39 = vld [vmem:[%s1 + $0x24] sm:$0xf]
  %v40 = vld [vmem:[%s1 + $0x28] sm:$0xf]
  %v41 = vld [vmem:[%s1 + $0x2c] sm:$0xf]
  %v42 = vld [vmem:[%s1 + $0x30] sm:$0xf]
  %v43 = vld [vmem:[%s1 + $0x34] sm:$0xf]
  %v44 = vld [vmem:[%s1 + $0x38] sm:$0xf]
  %v45 = vld [vmem:[%s1 + $0x3c] sm:$0xf]
  %v46 = vld [vmem:[%s1 + $0x40] sm:$0xf]
  %v47 = vld [vmem:[%s1 + $0x44] sm:$0xf]
  %v48 = vld [vmem:[%s1 + $0x48] sm:$0xf]
  %v49 = vld [vmem:[%s1 + $0x4c] sm:$0xf]
  %v50 = vld [vmem:[%s1 + $0x50] sm:$0xf]
  %v51 = vld [vmem:[%s1 + $0x54] sm:$0xf]
  %v52 = vld [vmem:[%s1 + $0x58] sm:$0xf]
  %v53 = vld [vmem:[%s1 + $0x5c] sm:$0xf]
  %v54 = vld [vmem:[%s1 + $0x60] sm:$0xf]
  %v55 = vld [vmem:[%s1 + $0x64] sm:$0xf]
  %v56 = vld [vmem:[%s1 + $0x68] sm:$0xf]
  %v57 = vld [vmem:[%s1 + $0x6c] sm:$0xf]
  %v58 = vld [vmem:[%s1 + $0x70] sm:$0xf]
  %v59 = vld [vmem:[%s1 + $0x74] sm:$0xf]
  %v60 = vld [vmem:[%s1 + $0x78] sm:$0xf]
  %v61 = vld [vmem:[%s1 + $0x7c] sm:$0xf]
  %v62 = vld [vmem:[%s1 + $0x80] sm:$0xf]
  %v63 = vld [vmem:[%s1 + $0x84] sm:$0xf]
  %v64 = vld [vmem:[%s1 + $0x88] sm:$0xf]
  %v65 = vld [vmem:[%s1 + $0x8c] sm:$0xf]
  %v66 = vld [vmem:[%s1 + $0x90] sm:$0xf]
  %v67 = vld [vmem:[%s1 + $0x94] sm:$0xf]
  %v68 = vld [vmem:[%s1 + $0x98] sm:$0xf]
  %v69 = vld [vmem:[%s1 + $0x9c] sm:$0xf]
  %v70 = vld [vmem:[%s1 + $0xa0] sm:$0xf]
  %v71 = vld [vmem:[%s1 + $0xa4] sm:$0xf]
  %v72 = vld [vmem:[%s1 + $0xa8] sm:$0xf]
  %v73 = vld [vmem:[%s1 + $0xac] sm:$0xf]
  %v74 = vld [vmem:[%s1 + $0xb0] sm:$0xf]
  %v75 = vld [vmem:[%s1 + $0xb4] sm:$0xf]
  %v76 = vld [vmem:[%s1 + $0xb8] sm:$0xf]
  %v77 = vld [vmem:[%s1 + $0xbc] sm:$0xf]
  %v78 = vld [vmem:[%s1 + $0xc0] sm:$0xf]
  %v79 = vld [vmem:[%s1 + $0xc4] sm:$0xf]
  %v80 = vld [vmem:[%s1 + $0xc8] sm:$0xf]
  %v81 = vld [vmem:[%s1 + $0xcc] sm:$0xf]
  %v82 = vld [vmem:[%s1 + $0xd0] sm:$0xf]
  %v83 = vld [vmem:[%s1 + $0xd4] sm:$0xf]
  %v84 = vld [vmem:[%s1 + $0xd8] sm:$0xf]
  %v85 = vld [vmem:[%s1 + $0xdc] sm:$0xf]
  %v86 = vld [vmem:[%s1 + $0xe0] sm:$0xf]
  %v87 = vld [vmem:[%s1 + $0xe4] sm:$0xf]
  %v88 = vld [vmem:[%s1 + $0xe8] sm:$0xf]
  %v89 = vld [vmem:[%s1 + $0xec] sm:$0xf]
  %v90 = vld [vmem:[%s1 + $0xf0] sm:$0xf]
  %v91 = vld [vmem:[%s1 + $0xf4] sm:$0xf]
  %v92 = vld [vmem:[%s1 + $0xf8] sm:$0xf]
  %v93 = vld [vmem:[%s1 + $0xfc] sm:$0xf]
  %v94 = vld [vmem:[%s1 + $0x100] sm:$0xf]
  %v95 = vld [vmem:[%s1 + $0x104] sm:$0xf]
  %v96 = vld [vmem:[%s1 + $0x108] sm:$0xf]
  %v97 = vld [vmem:[%s1 + $0x10c] sm:$0xf]
  %v98 = vld [vmem:[%s1 + $0x110] sm:$0xf]
  %v99 = vld [vmem:[%s1 + $0x114] sm:$0xf]
  %v100 = vld [vmem:[%s1 + $0x118] sm:$0xf]
  %v101 = vld [vmem:[%s1 + $0x11c] sm:$0xf]
  %v102 = vld [vmem:[%s1 + $0x120] sm:$0xf]
  %v103 = vld [vmem:[%s1 + $0x124] sm:$0xf]
  %v104 = vld [vmem:[%s1 + $0x128] sm:$0xf]
  %v105 = vld [vmem:[%s1 + $0x12c] sm:$0xf]
  %v106 = vld [vmem:[%s1 + $0x130] sm:$0xf]
  %v107 = vld [vmem:[%s1 + $0x134] sm:$0xf]
  %v108 = vld [vmem:[%s1 + $0x138] sm:$0xf]
  %v109 = vld [vmem:[%s1 + $0x13c] sm:$0xf]
  %v110 = vld [vmem:[%s1 + $0x140] sm:$0xf]
  %v111 = vld [vmem:[%s1 + $0x144] sm:$0xf]
  %v112 = vld [vmem:[%s1 + $0x148] sm:$0xf]
  %v113 = vld [vmem:[%s1 + $0x14c] sm:$0xf]
  %v114 = vld [vmem:[%s1 + $0x150] sm:$0xf]
  %v115 = vld [vmem:[%s1 + $0x154] sm:$0xf]
  %v116 = vld [vmem:[%s1 + $0x158] sm:$0xf]
  %v117 = vld [vmem:[%s1 + $0x15c] sm:$0xf]
  %v118 = vld [vmem:[%s1 + $0x160] sm:$0xf]
  %v119 = vld [vmem:[%s1 + $0x164] sm:$0xf]
  %v120 = vld [vmem:[%s1 + $0x168] sm:$0xf]
  %v121 = vld [vmem:[%s1 + $0x16c] sm:$0xf]
  %v122 = vld [vmem:[%s1 + $0x170] sm:$0xf]
  %v123 = vld [vmem:[%s1 + $0x174] sm:$0xf]
  %v124 = vld [vmem:[%s1 + $0x178] sm:$0xf]
  %v125 = vld [vmem:[%s1 + $0x17c] sm:$0xf]
  %v126 = vld [vmem:[%s1 + $0x180] sm:$0xf]
  %v127 = vld [vmem:[%s1 + $0x184] sm:$0xf]
  %v128 = vld [vmem:[%s1 + $0x188] sm:$0xf]
  %v129 = vld [vmem:[%s1 + $0x18c] sm:$0xf]
  %v130 = vld [vmem:[%s1 + $0x190] sm:$0xf]
  %v131 = vld [vmem:[%s1 + $0x194] sm:$0xf]
  %v132 = vld [vmem:[%s1 + $0x198] sm:$0xf]
  %v133 = vld [vmem:[%s1 + $0x19c] sm:$0xf]
  %v134 = vld [vmem:[%s1 + $0x1a0] sm:$0xf]
  %v135 = vld [vmem:[%s1 + $0x1a4] sm:$0xf]
  %v136 = vld [vmem:[%s1 + $0x1a8] sm:$0xf]
  %v137 = vld [vmem:[%s1 + $0x1ac] sm:$0xf]
  %v138 = vld [vmem:[%s1 + $0x1b0] sm:$0xf]
  %v139 = vld [vmem:[%s1 + $0x1b4] sm:$0xf]
  %v140 = vld [vmem:[%s1 + $0x1b8] sm:$0xf]
  %v141 = vld [vmem:[%s1 + $0x1bc] sm:$0xf]
  %v142 = vld [vmem:[%s1 + $0x1c0] sm:$0xf]
  %v143 = vld [vmem:[%s1 + $0x1c4] sm:$0xf]
  %v144 = vld [vmem:[%s1 + $0x1c8] sm:$0xf]
  %v145 = vld [vmem:[%s1 + $0x1cc] sm:$0xf]
  %v146 = vld [vmem:[%s1 + $0x1d0] sm:$0xf]
  %v147 = vld [vmem:[%s1 + $0x1d4] sm:$0xf]
  %v148 = vld [vmem:[%s1 + $0x1d8] sm:$0xf]
  %v149 = vld [vmem:[%s1 + $0x1dc] sm:$0xf]
  %v150 = vld [vmem:[%s1 + $0x1e0] sm:$0xf]
  %v151 = vld [vmem:[%s1 + $0x1e4] sm:$0xf]
  %v152 = vld [vmem:[%s1 + $0x1e8] sm:$0xf]
  %v153 = vld [vmem:[%s1 + $0x1ec] sm:$0xf]
  %v154 = vld [vmem:[%s1 + $0x1f0] sm:$0xf]
  %v155 = vld [vmem:[%s1 + $0x1f4] sm:$0xf]
  %v156 = vld [vmem:[%s1 + $0x1f8] sm:$0xf]
  %v157 = vld [vmem:[%s1 + $0x1fc] sm:$0xf]
  %v158 = vld [vmem:[%s1 + $0x200] sm:$0xf]
  %v159 = vld [vmem:[%s1 + $0x204] sm:$0xf]
  %v160 = vld [vmem:[%s1 + $0x208] sm:$0xf]
  %v161 = vld [vmem:[%s1 + $0x20c] sm:$0xf]
  %v162 = vld [vmem:[%s1 + $0x210] sm:$0xf]
  %v163 = vld [vmem:[%s1 + $0x214] sm:$0xf]
  %v164 = vld [vmem:[%s1 + $0x218] sm:$0xf]
  %v165 = vld [vmem:[%s1 + $0x21c] sm:$0xf]
  %v166 = vld [vmem:[%s1 + $0x220] sm:$0xf]
  %v167 = vld [vmem:[%s1 + $0x224] sm:$0xf]
  %v168 = vld [vmem:[%s1 + $0x228] sm:$0xf]
  %v169 = vld [vmem:[%s1 + $0x22c] sm:$0xf]
  %v170 = vld [vmem:[%s1 + $0x230] sm:$0xf]
  %v171 = vld [vmem:[%s1 + $0x234] sm:$0xf]
  %v172 = vld [vmem:[%s1 + $0x238] sm:$0xf]
  %v173 = vld [vmem:[%s1 + $0x23c] sm:$0xf]
  %v174 = vld [vmem:[%s1 + $0x240] sm:$0xf]
  %v175 = vld [vmem:[%s1 + $0x244] sm:$0xf]
  %v176 = vld [vmem:[%s1 + $0x248] sm:$0xf]
  %v177 = vld [vmem:[%s1 + $0x24c] sm:$0xf]
  %v178 = vld [vmem:[%s1 + $0x250] sm:$0xf]
  %v179 = vld [vmem:[%s1 + $0x254] sm:$0xf]
  %v180 = vld [vmem:[%s1 + $0x258] sm:$0xf]
  %v181 = vld [vmem:[%s1 + $0x25c] sm:$0xf]
  %v182 = vld [vmem:[%s1 + $0x260] sm:$0xf]
  %v183 = vld [vmem:[%s1 + $0x264] sm:$0xf]
  %v184 = vld [vmem:[%s1 + $0x268] sm:$0xf]
  %v185 = vld [vmem:[%s1 + $0x26c] sm:$0xf]
  %v186 = vld [vmem:[%s1 + $0x270] sm:$0xf]
  %v187 = vld [vmem:[%s1 + $0x274] sm:$0xf]
  %v188 = vld [vmem:[%s1 + $0x278] sm:$0xf]
  %v189 = vld [vmem:[%s1 + $0x27c] sm:$0xf]
  %v190 = vld [vmem:[%s1 + $0x280] sm:$0xf]
  %v191 = vld [vmem:[%s1 + $0x284] sm:$0xf]
  %v192 = vld [vmem:[%s1 + $0x288] sm:$0xf]
  %v193 = vld [vmem:[%s1 + $0x28c] sm:$0xf]
  %v194 = vld [vmem:[%s1 + $0x290] sm:$0xf]
  %v195 = vld [vmem:[%s1 + $0x294] sm:$0xf]
  %v196 = vld [vmem:[%s1 + $0x298] sm:$0xf]
  %v197 = vld [vmem:[%s1 + $0x29c] sm:$0xf]
  %v198 = vld [vmem:[%s1 + $0x2a0] sm:$0xf]
  %v199 = vld [vmem:[%s1 + $0x2a4] sm:$0xf]
  %v200 = vld [vmem:[%s1 + $0x2a8] sm:$0xf]
  %v201 = vld [vmem:[%s1 + $0x2ac] sm:$0xf]
  %v202 = vld [vmem:[%s1 + $0x2b0] sm:$0xf]
  %v203 = vld [vmem:[%s1 + $0x2b4] sm:$0xf]
  %v204 = vld [vmem:[%s1 + $0x2b8] sm:$0xf]
  %v205 = vld [vmem:[%s1 + $0x2bc] sm:$0xf]
  %v206 = vld [vmem:[%s1 + $0x2c0] sm:$0xf]
  %v207 = vld [vmem:[%s1 + $0x2c4] sm:$0xf]
  %v208 = vld [vmem:[%s1 + $0x2c8] sm:$0xf]
  %v209 = vld [vmem:[%s1 + $0x2cc] sm:$0xf]
  %v210 = vld [vmem:[%s1 + $0x2d0] sm:$0xf]
  %v211 = vld [vmem:[%s1 + $0x2d4] sm:$0xf]
  %v212 = vld [vmem:[%s1 + $0x2d8] sm:$0xf]
  %v213 = vld [vmem:[%s1 + $0x2dc] sm:$0xf]
  %v214 = vld [vmem:[%s1 + $0x2e0] sm:$0xf]
  %v215 = vld [vmem:[%s1 + $0x2e4] sm:$0xf]
  %v216 = vld [vmem:[%s1 + $0x2e8] sm:$0xf]
  %v217 = vld [vmem:[%s1 + $0x2ec] sm:$0xf]
  %v218 = vld [vmem:[%s1 + $0x2f0] sm:$0xf]
  %v219 = vld [vmem:[%s1 + $0x2f4] sm:$0xf]
  %v220 = vld [vmem:[%s1 + $0x2f8] sm:$0xf]
  %v221 = vld [vmem:[%s1 + $0x2fc] sm:$0xf]
  %v222 = vld [vmem:[%s1 + $0x300] sm:$0xf]
  %v223 = vld [vmem:[%s1 + $0x304] sm:$0xf]
  %v224 = vld [vmem:[%s1 + $0x308] sm:$0xf]
  %v225 = vld [vmem:[%s1 + $0x30c] sm:$0xf]
  %v226 = vld [vmem:[%s1 + $0x310] sm:$0xf]
  %v227 = vld [vmem:[%s1 + $0x314] sm:$0xf]
  %v228 = vld [vmem:[%s1 + $0x318] sm:$0xf]
  %v229 = vld [vmem:[%s1 + $0x31c] sm:$0xf]
  %v230 = vld [vmem:[%s1 + $0x320] sm:$0xf]
  %v231 = vld [vmem:[%s1 + $0x324] sm:$0xf]
  %v232 = vld [vmem:[%s1 + $0x328] sm:$0xf]
  %v233 = vld [vmem:[%s1 + $0x32c] sm:$0xf]
  %v234 = vld [vmem:[%s1 + $0x330] sm:$0xf]
  %v235 = vld [vmem:[%s1 + $0x334] sm:$0xf]
  %v236 = vld [vmem:[%s1 + $0x338] sm:$0xf]
  %v237 = vld [vmem:[%s1 + $0x33c] sm:$0xf]
  %v238 = vld [vmem:[%s1 + $0x340] sm:$0xf]
  %v239 = vld [vmem:[%s1 + $0x344] sm:$0xf]
  %v240 = vld [vmem:[%s1 + $0x348] sm:$0xf]
  %v241 = vld [vmem:[%s1 + $0x34c] sm:$0xf]
  %v242 = vld [vmem:[%s1 + $0x350] sm:$0xf]
  %v243 = vld [vmem:[%s1 + $0x354] sm:$0xf]
  %v244 = vld [vmem:[%s1 + $0x358] sm:$0xf]
  %v245 = vld [vmem:[%s1 + $0x35c] sm:$0xf]
  %v246 = vld [vmem:[%s1 + $0x360] sm:$0xf]
  %v247 = vld [vmem:[%s1 + $0x364] sm:$0xf]
  %v248 = vld [vmem:[%s1 + $0x368] sm:$0xf]
  %v249 = vld [vmem:[%s1 + $0x36c] sm:$0xf]
  %v250 = vld [vmem:[%s1 + $0x370] sm:$0xf]
  %v251 = vld [vmem:[%s1 + $0x374] sm:$0xf]
  %v252 = vld [vmem:[%s1 + $0x378] sm:$0xf]
  %v253 = vld [vmem:[%s1 + $0x37c] sm:$0xf]
  %v254 = vld [vmem:[%s1 + $0x380] sm:$0xf]
  %v255 = vld [vmem:[%s1 + $0x384] sm:$0xf]
  %v256 = vld [vmem:[%s1 + $0x388] sm:$0xf]
  %v257 = vld [vmem:[%s1 + $0x38c] sm:$0xf]
  %v258 = vld [vmem:[%s1 + $0x390] sm:$0xf]
  %v259 = vld [vmem:[%s1 + $0x394] sm:$0xf]
  %v260 = vld [vmem:[%s1 + $0x398] sm:$0xf]
  %v261 = vld [vmem:[%s1 + $0x39c] sm:$0xf]
  %v262 = vld [vmem:[%s1 + $0x3a0] sm:$0xf]
  %v263 = vld [vmem:[%s1 + $0x3a4] sm:$0xf]
  %v264 = vld [vmem:[%s1 + $0x3a8] sm:$0xf]
  %v265 = vld [vmem:[%s1 + $0x3ac] sm:$0xf]
  %v266 = vld [vmem:[%s1 + $0x3b0] sm:$0xf]
  %v267 = vld [vmem:[%s1 + $0x3b4] sm:$0xf]
  %v268 = vld [vmem:[%s1 + $0x3b8] sm:$0xf]
  %v269 = vld [vmem:[%s1 + $0x3bc] sm:$0xf]
  %v270 = vld [vmem:[%s1 + $0x3c0] sm:$0xf]
  %v271 = vld [vmem:[%s1 + $0x3c4] sm:$0xf]
  %v272 = vld [vmem:[%s1 + $0x3c8] sm:$0xf]
  %v273 = vld [vmem:[%s1 + $0x3cc] sm:$0xf]
  %v274 = vld [vmem:[%s1 + $0x3d0] sm:$0xf]
  %v275 = vld [vmem:[%s1 + $0x3d4] sm:$0xf]
  %v276 = vld [vmem:[%s1 + $0x3d8] sm:$0xf]
  %v277 = vld [vmem:[%s1 + $0x3dc] sm:$0xf]
  %v278 = vld [vmem:[%s1 + $0x3e0] sm:$0xf]
  %v279 = vld [vmem:[%s1 + $0x3e4] sm:$0xf]
  %v280 = vld [vmem:[%s1 + $0x3e8] sm:$0xf]
  %v281 = vld [vmem:[%s1 + $0x3ec] sm:$0xf]
  %v282 = vld [vmem:[%s1 + $0x3f0] sm:$0xf]
  %v283 = vld [vmem:[%s1 + $0x3f4] sm:$0xf]
  %v284 = vld [vmem:[%s1 + $0x3f8] sm:$0xf]
  %v285 = vld [vmem:[%s1 + $0x3fc] sm:$0xf]
  %v286 = vld [vmem:[%s1 + $0x400] sm:$0xf]
  %v287 = vld [vmem:[%s1 + $0x404] sm:$0xf]
  %v288 = vld [vmem:[%s1 + $0x408] sm:$0xf]
  %v289 = vld [vmem:[%s1 + $0x40c] sm:$0xf]
  %v290 = vld [vmem:[%s1 + $0x410] sm:$0xf]
  %v291 = vld [vmem:[%s1 + $0x414] sm:$0xf]
  %v292 = vld [vmem:[%s1 + $0x418] sm:$0xf]
  %v293 = vld [vmem:[%s1 + $0x41c] sm:$0xf]
  %v294 = vld [vmem:[%s1 + $0x420] sm:$0xf]
  %v295 = vld [vmem:[%s1 + $0x424] sm:$0xf]
  %v296 = vld [vmem:[%s1 + $0x428] sm:$0xf]
  %v297 = vld [vmem:[%s1 + $0x42c] sm:$0xf]
  %v298 = vld [vmem:[%s1 + $0x430] sm:$0xf]
  %v299 = vld [vmem:[%s1 + $0x434] sm:$0xf]
  %v300 = vld [vmem:[%s1 + $0x438] sm:$0xf]
  %v301 = vld [vmem:[%s1 + $0x43c] sm:$0xf]
  %v302 = vld [vmem:[%s1 + $0x440] sm:$0xf]
  %v303 = vld [vmem:[%s1 + $0x444] sm:$0xf]
  %v304 = vld [vmem:[%s1 + $0x448] sm:$0xf]
  %v305 = vld [vmem:[%s1 + $0x44c] sm:$0xf]
  %v306 = vld [vmem:[%s1 + $0x450] sm:$0xf]
  %v307 = vld [vmem:[%s1 + $0x454] sm:$0xf]
  %v308 = vld [vmem:[%s1 + $0x458] sm:$0xf]
  %v309 = vld [vmem:[%s1 + $0x45c] sm:$0xf]
  %v310 = vld [vmem:[%s1 + $0x460] sm:$0xf]
  %v311 = vld [vmem:[%s1 + $0x464] sm:$0xf]
  %v312 = vld [vmem:[%s1 + $0x468] sm:$0xf]
  %v313 = vld [vmem:[%s1 + $0x46c] sm:$0xf]
  %v314 = vld [vmem:[%s1 + $0x470] sm:$0xf]
  %v315 = vld [vmem:[%s1 + $0x474] sm:$0xf]
  %v316 = vld [vmem:[%s1 + $0x478] sm:$0xf]
  %v317 = vld [vmem:[%s1 + $0x47c] sm:$0xf]
  %v318 = vld [vmem:[%s1 + $0x480] sm:$0xf]
  %v319 = vld [vmem:[%s1 + $0x484] sm:$0xf]
  %v320 = vld [vmem:[%s1 + $0x488] sm:$0xf]
  %v321 = vld [vmem:[%s1 + $0x48c] sm:$0xf]
  %v322 = vld [vmem:[%s1 + $0x490] sm:$0xf]
  %v323 = vld [vmem:[%s1 + $0x494] sm:$0xf]
  %v324 = vld [vmem:[%s1 + $0x498] sm:$0xf]
  %v325 = vld [vmem:[%s1 + $0x49c] sm:$0xf]
  %v326 = vld [vmem:[%s1 + $0x4a0] sm:$0xf]
  %v327 = vld [vmem:[%s1 + $0x4a4] sm:$0xf]
  %v328 = vld [vmem:[%s1 + $0x4a8] sm:$0xf]
  %v329 = vld [vmem:[%s1 + $0x4ac] sm:$0xf]
  %v330 = vld [vmem:[%s1 + $0x4b0] sm:$0xf]
  %v331 = vld [vmem:[%s1 + $0x4b4] sm:$0xf]
  %v332 = vld [vmem:[%s1 + $0x4b8] sm:$0xf]
  %v333 = vld [vmem:[%s1 + $0x4bc] sm:$0xf]
  %v334 = vld [vmem:[%s1 + $0x4c0] sm:$0xf]
  %v335 = vld [vmem:[%s1 + $0x4c4] sm:$0xf]
  %v336 = vld [vmem:[%s1 + $0x4c8] sm:$0xf]
  %v337 = vld [vmem:[%s1 + $0x4cc] sm:$0xf]
  %v338 = vld [vmem:[%s1 + $0x4d0] sm:$0xf]
  %v339 = vld [vmem:[%s1 + $0x4d4] sm:$0xf]
  %v340 = vld [vmem:[%s1 + $0x4d8] sm:$0xf]
  %v341 = vld [vmem:[%s1 + $0x4dc] sm:$0xf]
  %v342 = vld [vmem:[%s1 + $0x4e0] sm:$0xf]
  %v343 = vld [vmem:[%s1 + $0x4e4] sm:$0xf]
  %v344 = vld [vmem:[%s1 + $0x4e8] sm:$0xf]
  %v345 = vld [vmem:[%s1 + $0x4ec] sm:$0xf]
  %v346 = vld [vmem:[%s1 + $0x4f0] sm:$0xf]
  %v347 = vld [vmem:[%s1 + $0x4f4] sm:$0xf]
  %v348 = vld [vmem:[%s1 + $0x4f8] sm:$0xf]
  %v349 = vld [vmem:[%s1 + $0x4fc] sm:$0xf]
  %v350 = vld [vmem:[%s1 + $0x500] sm:$0xf]
  %v351 = vld [vmem:[%s1 + $0x504] sm:$0xf]
  %v352 = vld [vmem:[%s1 + $0x508] sm:$0xf]
  %v353 = vld [vmem:[%s1 + $0x50c] sm:$0xf]
  %v354 = vld [vmem:[%s1 + $0x510] sm:$0xf]
  %v355 = vld [vmem:[%s1 + $0x514] sm:$0xf]
  %v356 = vld [vmem:[%s1 + $0x518] sm:$0xf]
  %v357 = vld [vmem:[%s1 + $0x51c] sm:$0xf]
  %v358 = vld [vmem:[%s1 + $0x520] sm:$0xf]
  %v359 = vld [vmem:[%s1 + $0x524] sm:$0xf]
  %v360 = vld [vmem:[%s1 + $0x528] sm:$0xf]
  %v361 = vld [vmem:[%s1 + $0x52c] sm:$0xf]
  %v362 = vld [vmem:[%s1 + $0x530] sm:$0xf]
  %v363 = vld [vmem:[%s1 + $0x534] sm:$0xf]
  %v364 = vld [vmem:[%s1 + $0x538] sm:$0xf]
  %v365 = vld [vmem:[%s1 + $0x53c] sm:$0xf]
  %v366 = vld [vmem:[%s1 + $0x540] sm:$0xf]
  %v367 = vld [vmem:[%s1 + $0x544] sm:$0xf]
  %v368 = vld [vmem:[%s1 + $0x548] sm:$0xf]
  %v369 = vld [vmem:[%s1 + $0x54c] sm:$0xf]
  %v370 = vld [vmem:[%s1 + $0x550] sm:$0xf]
  %v371 = vld [vmem:[%s1 + $0x554] sm:$0xf]
  %v372 = vld [vmem:[%s1 + $0x558] sm:$0xf]
  %v373 = vld [vmem:[%s1 + $0x55c] sm:$0xf]
  %v374 = vld [vmem:[%s1 + $0x560] sm:$0xf]
  %v375 = vld [vmem:[%s1 + $0x564] sm:$0xf]
  %v376 = vld [vmem:[%s1 + $0x568] sm:$0xf]
  %v377 = vld [vmem:[%s1 + $0x56c] sm:$0xf]
  %v378 = vld [vmem:[%s1 + $0x570] sm:$0xf]
  %v379 = vld [vmem:[%s1 + $0x574] sm:$0xf]
  %v380 = vld [vmem:[%s1 + $0x578] sm:$0xf]
  %v381 = vld [vmem:[%s1 + $0x57c] sm:$0xf]
  %v382 = vld [vmem:[%s1 + $0x580] sm:$0xf]
  %v383 = vld [vmem:[%s1 + $0x584] sm:$0xf]
  %v384 = vld [vmem:[%s1 + $0x588] sm:$0xf]
  %v385 = vld [vmem:[%s1 + $0x58c] sm:$0xf]
  %v386 = vld [vmem:[%s1 + $0x590] sm:$0xf]
  %v387 = vld [vmem:[%s1 + $0x594] sm:$0xf]
  %v388 = vld [vmem:[%s1 + $0x598] sm:$0xf]
  %v389 = vld [vmem:[%s1 + $0x59c] sm:$0xf]
  %v390 = vld [vmem:[%s1 + $0x5a0] sm:$0xf]
  %v391 = vld [vmem:[%s1 + $0x5a4] sm:$0xf]
  %v392 = vld [vmem:[%s1 + $0x5a8] sm:$0xf]
  %v393 = vld [vmem:[%s1 + $0x5ac] sm:$0xf]
  %v394 = vld [vmem:[%s1 + $0x5b0] sm:$0xf]
  %v395 = vld [vmem:[%s1 + $0x5b4] sm:$0xf]
  %v396 = vld [vmem:[%s1 + $0x5b8] sm:$0xf]
  %v397 = vld [vmem:[%s1 + $0x5bc] sm:$0xf]
  %v398 = vld [vmem:[%s1 + $0x5c0] sm:$0xf]
  %v399 = vld [vmem:[%s1 + $0x5c4] sm:$0xf]
  %v400 = vld [vmem:[%s1 + $0x5c8] sm:$0xf]
  %v401 = vld [vmem:[%s1 + $0x5cc] sm:$0xf]
  %v402 = vld [vmem:[%s1 + $0x5d0] sm:$0xf]
  %v403 = vld [vmem:[%s1 + $0x5d4] sm:$0xf]
  %v404 = vld [vmem:[%s1 + $0x5d8] sm:$0xf]
  %v405 = vld [vmem:[%s1 + $0x5dc] sm:$0xf]
  %v406 = vld [vmem:[%s1 + $0x5e0] sm:$0xf]
  %v407 = vld [vmem:[%s1 + $0x5e4] sm:$0xf]
  %v408 = vld [vmem:[%s1 + $0x5e8] sm:$0xf]
  %v409 = vld [vmem:[%s1 + $0x5ec] sm:$0xf]
  %v410 = vld [vmem:[%s1 + $0x5f0] sm:$0xf]
  %v411 = vld [vmem:[%s1 + $0x5f4] sm:$0xf]
  %v412 = vld [vmem:[%s1 + $0x5f8] sm:$0xf]
  %v413 = vld [vmem:[%s1 + $0x5fc] sm:$0xf]
  %v414 = vld [vmem:[%s1 + $0x600] sm:$0xf]
  %v415 = vld [vmem:[%s1 + $0x604] sm:$0xf]
  %v416 = vld [vmem:[%s1 + $0x608] sm:$0xf]
  %v417 = vld [vmem:[%s1 + $0x60c] sm:$0xf]
  %v418 = vld [vmem:[%s1 + $0x610] sm:$0xf]
  %v419 = vld [vmem:[%s1 + $0x614] sm:$0xf]
  %v420 = vld [vmem:[%s1 + $0x618] sm:$0xf]
  %v421 = vld [vmem:[%s1 + $0x61c] sm:$0xf]
  %v422 = vld [vmem:[%s1 + $0x620] sm:$0xf]
  %v423 = vld [vmem:[%s1 + $0x624] sm:$0xf]
  %v424 = vld [vmem:[%s1 + $0x628] sm:$0xf]
  %v425 = vld [vmem:[%s1 + $0x62c] sm:$0xf]
  %v426 = vld [vmem:[%s1 + $0x630] sm:$0xf]
  %v427 = vld [vmem:[%s1 + $0x634] sm:$0xf]
  %v428 = vld [vmem:[%s1 + $0x638] sm:$0xf]
  %v429 = vld [vmem:[%s1 + $0x63c] sm:$0xf]
  %v430 = vld [vmem:[%s1 + $0x640] sm:$0xf]
  %v431 = vld [vmem:[%s1 + $0x644] sm:$0xf]
  %v432 = vld [vmem:[%s1 + $0x648] sm:$0xf]
  %v433 = vld [vmem:[%s1 + $0x64c] sm:$0xf]
  %v434 = vld [vmem:[%s1 + $0x650] sm:$0xf]
  %v435 = vld [vmem:[%s1 + $0x654] sm:$0xf]
  %v436 = vld [vmem:[%s1 + $0x658] sm:$0xf]
  %v437 = vld [vmem:[%s1 + $0x65c] sm:$0xf]
  %v438 = vld [vmem:[%s1 + $0x660] sm:$0xf]
  %v439 = vld [vmem:[%s1 + $0x664] sm:$0xf]
  %v440 = vld [vmem:[%s1 + $0x668] sm:$0xf]
  %v441 = vld [vmem:[%s1 + $0x66c] sm:$0xf]
  %v442 = vld [vmem:[%s1 + $0x670] sm:$0xf]
  %v443 = vld [vmem:[%s1 + $0x674] sm:$0xf]
  %v444 = vld [vmem:[%s1 + $0x678] sm:$0xf]
  %v445 = vld [vmem:[%s1 + $0x67c] sm:$0xf]
  %v446 = vld [vmem:[%s1 + $0x680] sm:$0xf]
  %v447 = vld [vmem:[%s1 + $0x684] sm:$0xf]
  %v448 = vld [vmem:[%s1 + $0x688] sm:$0xf]
  %v449 = vld [vmem:[%s1 + $0x68c] sm:$0xf]
  %v450 = vld [vmem:[%s1 + $0x690] sm:$0xf]
  %v451 = vld [vmem:[%s1 + $0x694] sm:$0xf]
  %v452 = vld [vmem:[%s1 + $0x698] sm:$0xf]
  %v453 = vld [vmem:[%s1 + $0x69c] sm:$0xf]
  %v454 = vld [vmem:[%s1 + $0x6a0] sm:$0xf]
  %v455 = vld [vmem:[%s1 + $0x6a4] sm:$0xf]
  %v456 = vld [vmem:[%s1 + $0x6a8] sm:$0xf]
  %v457 = vld [vmem:[%s1 + $0x6ac] sm:$0xf]
  %v458 = vld [vmem:[%s1 + $0x6b0] sm:$0xf]
  %v459 = vld [vmem:[%s1 + $0x6b4] sm:$0xf]
  %v460 = vld [vmem:[%s1 + $0x6b8] sm:$0xf]
  %v461 = vld [vmem:[%s1 + $0x6bc] sm:$0xf]
  %v462 = vld [vmem:[%s1 + $0x6c0] sm:$0xf]
  %v463 = vld [vmem:[%s1 + $0x6c4] sm:$0xf]
  %v464 = vld [vmem:[%s1 + $0x6c8] sm:$0xf]
  %v465 = vld [vmem:[%s1 + $0x6cc] sm:$0xf]
  %v466 = vld [vmem:[%s1 + $0x6d0] sm:$0xf]
  %v467 = vld [vmem:[%s1 + $0x6d4] sm:$0xf]
  %v468 = vld [vmem:[%s1 + $0x6d8] sm:$0xf]
  %v469 = vld [vmem:[%s1 + $0x6dc] sm:$0xf]
  %v470 = vld [vmem:[%s1 + $0x6e0] sm:$0xf]
  %v471 = vld [vmem:[%s1 + $0x6e4] sm:$0xf]
  %v472 = vld [vmem:[%s1 + $0x6e8] sm:$0xf]
  %v473 = vld [vmem:[%s1 + $0x6ec] sm:$0xf]
  %v474 = vld [vmem:[%s1 + $0x6f0] sm:$0xf]
  %v475 = vld [vmem:[%s1 + $0x6f4] sm:$0xf]
  %v476 = vld [vmem:[%s1 + $0x6f8] sm:$0xf]
  %v477 = vld [vmem:[%s1 + $0x6fc] sm:$0xf]
  %v478 = vld [vmem:[%s1 + $0x700] sm:$0xf]
  %v479 = vld [vmem:[%s1 + $0x704] sm:$0xf]
  %v480 = vld [vmem:[%s1 + $0x708] sm:$0xf]
  %v481 = vld [vmem:[%s1 + $0x70c] sm:$0xf]
  %v482 = vld [vmem:[%s1 + $0x710] sm:$0xf]
  %v483 = vld [vmem:[%s1 + $0x714] sm:$0xf]
  %v484 = vld [vmem:[%s1 + $0x718] sm:$0xf]
  %v485 = vld [vmem:[%s1 + $0x71c] sm:$0xf]
  %v486 = vld [vmem:[%s1 + $0x720] sm:$0xf]
  %v487 = vld [vmem:[%s1 + $0x724] sm:$0xf]
  %v488 = vld [vmem:[%s1 + $0x728] sm:$0xf]
  %v489 = vld [vmem:[%s1 + $0x72c] sm:$0xf]
  %v490 = vld [vmem:[%s1 + $0x730] sm:$0xf]
  %v491 = vld [vmem:[%s1 + $0x734] sm:$0xf]
  %v492 = vld [vmem:[%s1 + $0x738] sm:$0xf]
  %v493 = vld [vmem:[%s1 + $0x73c] sm:$0xf]
  %v494 = vld [vmem:[%s1 + $0x740] sm:$0xf]
  %v495 = vld [vmem:[%s1 + $0x744] sm:$0xf]
  %v496 = vld [vmem:[%s1 + $0x748] sm:$0xf]
  %v497 = vld [vmem:[%s1 + $0x74c] sm:$0xf]
  %v498 = vld [vmem:[%s1 + $0x750] sm:$0xf]
  %v499 = vld [vmem:[%s1 + $0x754] sm:$0xf]
  %v500 = vld [vmem:[%s1 + $0x758] sm:$0xf]
  %v501 = vld [vmem:[%s1 + $0x75c] sm:$0xf]
  %v502 = vld [vmem:[%s1 + $0x760] sm:$0xf]
  %v503 = vld [vmem:[%s1 + $0x764] sm:$0xf]
  %v504 = vld [vmem:[%s1 + $0x768] sm:$0xf]
  %v505 = vld [vmem:[%s1 + $0x76c] sm:$0xf]
  %v506 = vld [vmem:[%s1 + $0x770] sm:$0xf]
  %v507 = vld [vmem:[%s1 + $0x774] sm:$0xf]
  %v508 = vld [vmem:[%s1 + $0x778] sm:$0xf]
  %v509 = vld [vmem:[%s1 + $0x77c] sm:$0xf]
  %v510 = vld [vmem:[%s1 + $0x780] sm:$0xf]
  %v511 = vld [vmem:[%s1 + $0x784] sm:$0xf]
  %v512 = vld [vmem:[%s1 + $0x788] sm:$0xf]
  %v513 = vld [vmem:[%s1 + $0x78c] sm:$0xf]
  %v514 = vld [vmem:[%s1 + $0x790] sm:$0xf]
  %v515 = vld [vmem:[%s1 + $0x794] sm:$0xf]
  %v516 = vld [vmem:[%s1 + $0x798] sm:$0xf]
  %v517 = vld [vmem:[%s1 + $0x79c] sm:$0xf]
  %v518 = vld [vmem:[%s1 + $0x7a0] sm:$0xf]
  %v519 = vld [vmem:[%s1 + $0x7a4] sm:$0xf]
  %v520 = vld [vmem:[%s1 + $0x7a8] sm:$0xf]
  %v521 = vld [vmem:[%s1 + $0x7ac] sm:$0xf]
  %v522 = vld [vmem:[%s1 + $0x7b0] sm:$0xf]
  %v523 = vld [vmem:[%s1 + $0x7b4] sm:$0xf]
  %v524 = vld [vmem:[%s1 + $0x7b8] sm:$0xf]
  %v525 = vld [vmem:[%s1 + $0x7bc] sm:$0xf]
  %v526 = vld [vmem:[%s1 + $0x7c0] sm:$0xf]
  %v527 = vld [vmem:[%s1 + $0x7c4] sm:$0xf]
  %v528 = vld [vmem:[%s1 + $0x7c8] sm:$0xf]
  %v529 = vld [vmem:[%s1 + $0x7cc] sm:$0xf]
  %v530 = vld [vmem:[%s1 + $0x7d0] sm:$0xf]
  %v531 = vld [vmem:[%s1 + $0x7d4] sm:$0xf]
  %v532 = vld [vmem:[%s1 + $0x7d8] sm:$0xf]
  %v533 = vld [vmem:[%s1 + $0x7dc] sm:$0xf]
  %v534 = vld [vmem:[%s1 + $0x7e0] sm:$0xf]
  %v535 = vld [vmem:[%s1 + $0x7e4] sm:$0xf]
  %v536 = vld [vmem:[%s1 + $0x7e8] sm:$0xf]
  %v537 = vld [vmem:[%s1 + $0x7ec] sm:$0xf]
  %v538 = vld [vmem:[%s1 + $0x7f0] sm:$0xf]
  %v539 = vld [vmem:[%s1 + $0x7f4] sm:$0xf]
  %v540 = vld [vmem:[%s1 + $0x7f8] sm:$0xf]
  %v541 = vld [vmem:[%s1 + $0x7fc] sm:$0xf]
  %v542 = vld [vmem:[%s1 + $0x800] sm:$0xf]
  %v543 = vld [vmem:[%s1 + $0x804] sm:$0xf]
  %v544 = vld [vmem:[%s1 + $0x808] sm:$0xf]
  %v545 = vld [vmem:[%s1 + $0x80c] sm:$0xf]
  %v546 = vld [vmem:[%s1 + $0x810] sm:$0xf]
  %v547 = vld [vmem:[%s1 + $0x814] sm:$0xf]
  %v548 = vld [vmem:[%s1 + $0x818] sm:$0xf]
  %v549 = vld [vmem:[%s1 + $0x81c] sm:$0xf]
  %v550 = vld [vmem:[%s1 + $0x820] sm:$0xf]
  %v551 = vld [vmem:[%s1 + $0x824] sm:$0xf]
  %v552 = vld [vmem:[%s1 + $0x828] sm:$0xf]
  %v553 = vld [vmem:[%s1 + $0x82c] sm:$0xf]
  %v554 = vld [vmem:[%s1 + $0x830] sm:$0xf]
  %v555 = vld [vmem:[%s1 + $0x834] sm:$0xf]
  %v556 = vld [vmem:[%s1 + $0x838] sm:$0xf]
  %v557 = vld [vmem:[%s1 + $0x83c] sm:$0xf]
  %v558 = vld [vmem:[%s1 + $0x840] sm:$0xf]
  %v559 = vld [vmem:[%s1 + $0x844] sm:$0xf]
  %v560 = vld [vmem:[%s1 + $0x848] sm:$0xf]
  %v561 = vld [vmem:[%s1 + $0x84c] sm:$0xf]
  %v562 = vld [vmem:[%s1 + $0x850] sm:$0xf]
  %v563 = vld [vmem:[%s1 + $0x854] sm:$0xf]
  %v564 = vld [vmem:[%s1 + $0x858] sm:$0xf]
  %v565 = vld [vmem:[%s1 + $0x85c] sm:$0xf]
  %v566 = vld [vmem:[%s1 + $0x860] sm:$0xf]
  %v567 = vld [vmem:[%s1 + $0x864] sm:$0xf]
  %v568 = vld [vmem:[%s1 + $0x868] sm:$0xf]
  %v569 = vld [vmem:[%s1 + $0x86c] sm:$0xf]
  %v570 = vld [vmem:[%s1 + $0x870] sm:$0xf]
  %v571 = vld [vmem:[%s1 + $0x874] sm:$0xf]
  %v572 = vld [vmem:[%s1 + $0x878] sm:$0xf]
  %v573 = vld [vmem:[%s1 + $0x87c] sm:$0xf]
  %v574 = vld [vmem:[%s1 + $0x880] sm:$0xf]
  %v575 = vld [vmem:[%s1 + $0x884] sm:$0xf]
  %v576 = vld [vmem:[%s1 + $0x888] sm:$0xf]
  %v577 = vld [vmem:[%s1 + $0x88c] sm:$0xf]
  %v578 = vld [vmem:[%s1 + $0x890] sm:$0xf]
  %v579 = vld [vmem:[%s1 + $0x894] sm:$0xf]
  %v580 = vld [vmem:[%s1 + $0x898] sm:$0xf]
  %v581 = vld [vmem:[%s1 + $0x89c] sm:$0xf]
  %v582 = vld [vmem:[%s1 + $0x8a0] sm:$0xf]
  %v583 = vld [vmem:[%s1 + $0x8a4] sm:$0xf]
  %v584 = vld [vmem:[%s1 + $0x8a8] sm:$0xf]
  %v585 = vld [vmem:[%s1 + $0x8ac] sm:$0xf]
  %v586 = vld [vmem:[%s1 + $0x8b0] sm:$0xf]
  %v587 = vld [vmem:[%s1 + $0x8b4] sm:$0xf]
  %v588 = vld [vmem:[%s1 + $0x8b8] sm:$0xf]
  %v589 = vld [vmem:[%s1 + $0x8bc] sm:$0xf]
  %v590 = vld [vmem:[%s1 + $0x8c0] sm:$0xf]
  %v591 = vld [vmem:[%s1 + $0x8c4] sm:$0xf]
  %v592 = vld [vmem:[%s1 + $0x8c8] sm:$0xf]
  %v593 = vld [vmem:[%s1 + $0x8cc] sm:$0xf]
  %v594 = vld [vmem:[%s1 + $0x8d0] sm:$0xf]
  %v595 = vld [vmem:[%s1 + $0x8d4] sm:$0xf]
  %v596 = vld [vmem:[%s1 + $0x8d8] sm:$0xf]
  %v597 = vld [vmem:[%s1 + $0x8dc] sm:$0xf]
  %v598 = vld [vmem:[%s1 + $0x8e0] sm:$0xf]
  %v599 = vld [vmem:[%s1 + $0x8e4] sm:$0xf]
  %v600 = vld [vmem:[%s1 + $0x8e8] sm:$0xf]
  %v601 = vld [vmem:[%s1 + $0x8ec] sm:$0xf]
  %v602 = vld [vmem:[%s1 + $0x8f0] sm:$0xf]
  %v603 = vld [vmem:[%s1 + $0x8f4] sm:$0xf]
  %v604 = vld [vmem:[%s1 + $0x8f8] sm:$0xf]
  %v605 = vld [vmem:[%s1 + $0x8fc] sm:$0xf]
  %v606 = vld [vmem:[%s1 + $0x900] sm:$0xf]
  %v607 = vld [vmem:[%s1 + $0x904] sm:$0xf]
  %v608 = vld [vmem:[%s1 + $0x908] sm:$0xf]
  %v609 = vld [vmem:[%s1 + $0x90c] sm:$0xf]
  %v610 = vld [vmem:[%s1 + $0x910] sm:$0xf]
  %v611 = vld [vmem:[%s1 + $0x914] sm:$0xf]
  %v612 = vld [vmem:[%s1 + $0x918] sm:$0xf]
  %v613 = vld [vmem:[%s1 + $0x91c] sm:$0xf]
  %v614 = vld [vmem:[%s1 + $0x920] sm:$0xf]
  %v615 = vld [vmem:[%s1 + $0x924] sm:$0xf]
  %v616 = vld [vmem:[%s1 + $0x928] sm:$0xf]
  %v617 = vld [vmem:[%s1 + $0x92c] sm:$0xf]
  %v618 = vld [vmem:[%s1 + $0x930] sm:$0xf]
  %v619 = vld [vmem:[%s1 + $0x934] sm:$0xf]
  %v620 = vld [vmem:[%s1 + $0x938] sm:$0xf]
  %v621 = vld [vmem:[%s1 + $0x93c] sm:$0xf]
  %v622 = vld [vmem:[%s1 + $0x940] sm:$0xf]
  %v623 = vld [vmem:[%s1 + $0x944] sm:$0xf]
  %v624 = vld [vmem:[%s1 + $0x948] sm:$0xf]
  %v625 = vld [vmem:[%s1 + $0x94c] sm:$0xf]
  %v626 = vld [vmem:[%s1 + $0x950] sm:$0xf]
  %v627 = vld [vmem:[%s1 + $0x954] sm:$0xf]
  %v628 = vld [vmem:[%s1 + $0x958] sm:$0xf]
  %v629 = vld [vmem:[%s1 + $0x95c] sm:$0xf]
  %v630 = vld [vmem:[%s1 + $0x960] sm:$0xf]
  %v631 = vld [vmem:[%s1 + $0x964] sm:$0xf]
  %v632 = vld [vmem:[%s1 + $0x968] sm:$0xf]
  %v633 = vld [vmem:[%s1 + $0x96c] sm:$0xf]
  %v634 = vld [vmem:[%s1 + $0x970] sm:$0xf]
  %v635 = vld [vmem:[%s1 + $0x974] sm:$0xf]
  %v636 = vld [vmem:[%s1 + $0x978] sm:$0xf]
  %v637 = vld [vmem:[%s1 + $0x97c] sm:$0xf]
  %v638 = vld [vmem:[%s1 + $0x980] sm:$0xf]
  %v639 = vld [vmem:[%s1 + $0x984] sm:$0xf]
  %v640 = vld [vmem:[%s1 + $0x988] sm:$0xf]
  %v641 = vld [vmem:[%s1 + $0x98c] sm:$0xf]
  %v642 = vld [vmem:[%s1 + $0x990] sm:$0xf]
  %v643 = vld [vmem:[%s1 + $0x994] sm:$0xf]
  %v644 = vld [vmem:[%s1 + $0x998] sm:$0xf]
  %v645 = vld [vmem:[%s1 + $0x99c] sm:$0xf]
  %v646 = vld [vmem:[%s1 + $0x9a0] sm:$0xf]
  %v647 = vld [vmem:[%s1 + $0x9a4] sm:$0xf]
  %v648 = vld [vmem:[%s1 + $0x9a8] sm:$0xf]
  %v649 = vld [vmem:[%s1 + $0x9ac] sm:$0xf]
  %v650 = vld [vmem:[%s1 + $0x9b0] sm:$0xf]
  %v651 = vld [vmem:[%s1 + $0x9b4] sm:$0xf]
  %v652 = vld [vmem:[%s1 + $0x9b8] sm:$0xf]
  %v653 = vld [vmem:[%s1 + $0x9bc] sm:$0xf]
  %v654 = vld [vmem:[%s1 + $0x9c0] sm:$0xf]
  %v655 = vld [vmem:[%s1 + $0x9c4] sm:$0xf]
  %v656 = vld [vmem:[%s1 + $0x9c8] sm:$0xf]
  %v657 = vld [vmem:[%s1 + $0x9cc] sm:$0xf]
  %v658 = vld [vmem:[%s1 + $0x9d0] sm:$0xf]
  %v659 = vld [vmem:[%s1 + $0x9d4] sm:$0xf]
  %v660 = vld [vmem:[%s1 + $0x9d8] sm:$0xf]
  %v661 = vld [vmem:[%s1 + $0x9dc] sm:$0xf]
  %v662 = vld [vmem:[%s1 + $0x9e0] sm:$0xf]
  %v663 = vld [vmem:[%s1 + $0x9e4] sm:$0xf]
  %v664 = vld [vmem:[%s1 + $0x9e8] sm:$0xf]
  %v665 = vld [vmem:[%s1 + $0x9ec] sm:$0xf]
  %v666 = vld [vmem:[%s1 + $0x9f0] sm:$0xf]
  %v667 = vld [vmem:[%s1 + $0x9f4] sm:$0xf]
  %v668 = vld [vmem:[%s1 + $0x9f8] sm:$0xf]
  %v669 = vld [vmem:[%s1 + $0x9fc] sm:$0xf]
  %v670 = vld [vmem:[%s1 + $0xa00] sm:$0xf]
  %v671 = vld [vmem:[%s1 + $0xa04] sm:$0xf]
  %v672 = vld [vmem:[%s1 + $0xa08] sm:$0xf]
  %v673 = vld [vmem:[%s1 + $0xa0c] sm:$0xf]
  %v674 = vld [vmem:[%s1 + $0xa10] sm:$0xf]
  %v675 = vld [vmem:[%s1 + $0xa14] sm:$0xf]
  %v676 = vld [vmem:[%s1 + $0xa18] sm:$0xf]
  %v677 = vld [vmem:[%s1 + $0xa1c] sm:$0xf]
  %v678 = vld [vmem:[%s1 + $0xa20] sm:$0xf]
  %v679 = vld [vmem:[%s1 + $0xa24] sm:$0xf]
  %v680 = vld [vmem:[%s1 + $0xa28] sm:$0xf]
  %v681 = vld [vmem:[%s1 + $0xa2c] sm:$0xf]
  %v682 = vld [vmem:[%s1 + $0xa30] sm:$0xf]
  %v683 = vld [vmem:[%s1 + $0xa34] sm:$0xf]
  %v684 = vld [vmem:[%s1 + $0xa38] sm:$0xf]
  %v685 = vld [vmem:[%s1 + $0xa3c] sm:$0xf]
  %v686 = vld [vmem:[%s1 + $0xa40] sm:$0xf]
  %v687 = vld [vmem:[%s1 + $0xa44] sm:$0xf]
  %v688 = vld [vmem:[%s1 + $0xa48] sm:$0xf]
  %v689 = vld [vmem:[%s1 + $0xa4c] sm:$0xf]
  %v690 = vld [vmem:[%s1 + $0xa50] sm:$0xf]
  %v691 = vld [vmem:[%s1 + $0xa54] sm:$0xf]
  %v692 = vld [vmem:[%s1 + $0xa58] sm:$0xf]
  %v693 = vld [vmem:[%s1 + $0xa5c] sm:$0xf]
  %v694 = vld [vmem:[%s1 + $0xa60] sm:$0xf]
  %v695 = vld [vmem:[%s1 + $0xa64] sm:$0xf]
  %v696 = vld [vmem:[%s1 + $0xa68] sm:$0xf]
  %v697 = vld [vmem:[%s1 + $0xa6c] sm:$0xf]
  %v698 = vld [vmem:[%s1 + $0xa70] sm:$0xf]
  %v699 = vld [vmem:[%s1 + $0xa74] sm:$0xf]
  %v700 = vld [vmem:[%s1 + $0xa78] sm:$0xf]
  %v701 = vld [vmem:[%s1 + $0xa7c] sm:$0xf]
  %v702 = vld [vmem:[%s1 + $0xa80] sm:$0xf]
  %v703 = vld [vmem:[%s1 + $0xa84] sm:$0xf]
  %v704 = vld [vmem:[%s1 + $0xa88] sm:$0xf]
  %v705 = vld [vmem:[%s1 + $0xa8c] sm:$0xf]
  %v706 = vld [vmem:[%s1 + $0xa90] sm:$0xf]
  %v707 = vld [vmem:[%s1 + $0xa94] sm:$0xf]
  %v708 = vld [vmem:[%s1 + $0xa98] sm:$0xf]
  %v709 = vld [vmem:[%s1 + $0xa9c] sm:$0xf]
  %v710 = vld [vmem:[%s1 + $0xaa0] sm:$0xf]
  %v711 = vld [vmem:[%s1 + $0xaa4] sm:$0xf]
  %v712 = vld [vmem:[%s1 + $0xaa8] sm:$0xf]
  %v713 = vld [vmem:[%s1 + $0xaac] sm:$0xf]
  %v714 = vld [vmem:[%s1 + $0xab0] sm:$0xf]
  %v715 = vld [vmem:[%s1 + $0xab4] sm:$0xf]
  %v716 = vld [vmem:[%s1 + $0xab8] sm:$0xf]
  %v717 = vld [vmem:[%s1 + $0xabc] sm:$0xf]
  %v718 = vld [vmem:[%s1 + $0xac0] sm:$0xf]
  %v719 = vld [vmem:[%s1 + $0xac4] sm:$0xf]
  %v720 = vld [vmem:[%s1 + $0xac8] sm:$0xf]
  %v721 = vld [vmem:[%s1 + $0xacc] sm:$0xf]
  %v722 = vld [vmem:[%s1 + $0xad0] sm:$0xf]
  %v723 = vld [vmem:[%s1 + $0xad4] sm:$0xf]
  %v724 = vld [vmem:[%s1 + $0xad8] sm:$0xf]
  %v725 = vld [vmem:[%s1 + $0xadc] sm:$0xf]
  %v726 = vld [vmem:[%s1 + $0xae0] sm:$0xf]
  %v727 = vld [vmem:[%s1 + $0xae4] sm:$0xf]
  %v728 = vld [vmem:[%s1 + $0xae8] sm:$0xf]
  %v729 = vld [vmem:[%s1 + $0xaec] sm:$0xf]
  %v730 = vld [vmem:[%s1 + $0xaf0] sm:$0xf]
  %v731 = vld [vmem:[%s1 + $0xaf4] sm:$0xf]
  %v732 = vld [vmem:[%s1 + $0xaf8] sm:$0xf]
  %v733 = vld [vmem:[%s1 + $0xafc] sm:$0xf]
  %v734 = vld [vmem:[%s1 + $0xb00] sm:$0xf]
  %v735 = vld [vmem:[%s1 + $0xb04] sm:$0xf]
  %v736 = vld [vmem:[%s1 + $0xb08] sm:$0xf]
  %v737 = vld [vmem:[%s1 + $0xb0c] sm:$0xf]
  %v738 = vld [vmem:[%s1 + $0xb10] sm:$0xf]
  %v739 = vld [vmem:[%s1 + $0xb14] sm:$0xf]
  %v740 = vld [vmem:[%s1 + $0xb18] sm:$0xf]
  %v741 = vld [vmem:[%s1 + $0xb1c] sm:$0xf]
  %v742 = vld [vmem:[%s1 + $0xb20] sm:$0xf]
  %v743 = vld [vmem:[%s1 + $0xb24] sm:$0xf]
  %v744 = vld [vmem:[%s1 + $0xb28] sm:$0xf]
  %v745 = vld [vmem:[%s1 + $0xb2c] sm:$0xf]
  %v746 = vld [vmem:[%s1 + $0xb30] sm:$0xf]
  %v747 = vld [vmem:[%s1 + $0xb34] sm:$0xf]
  %v748 = vld [vmem:[%s1 + $0xb38] sm:$0xf]
  %v749 = vld [vmem:[%s1 + $0xb3c] sm:$0xf]
  %v750 = vld [vmem:[%s1 + $0xb40] sm:$0xf]
  %v751 = vld [vmem:[%s1 + $0xb44] sm:$0xf]
  %v752 = vld [vmem:[%s1 + $0xb48] sm:$0xf]
  %v753 = vld [vmem:[%s1 + $0xb4c] sm:$0xf]
  %v754 = vld [vmem:[%s1 + $0xb50] sm:$0xf]
  %v755 = vld [vmem:[%s1 + $0xb54] sm:$0xf]
  %v756 = vld [vmem:[%s1 + $0xb58] sm:$0xf]
  %v757 = vld [vmem:[%s1 + $0xb5c] sm:$0xf]
  %v758 = vld [vmem:[%s1 + $0xb60] sm:$0xf]
  %v759 = vld [vmem:[%s1 + $0xb64] sm:$0xf]
  %v760 = vld [vmem:[%s1 + $0xb68] sm:$0xf]
  %v761 = vld [vmem:[%s1 + $0xb6c] sm:$0xf]
  %v762 = vld [vmem:[%s1 + $0xb70] sm:$0xf]
  %v763 = vld [vmem:[%s1 + $0xb74] sm:$0xf]
  %v764 = vld [vmem:[%s1 + $0xb78] sm:$0xf]
  %v765 = vld [vmem:[%s1 + $0xb7c] sm:$0xf]
  %v766 = vld [vmem:[%s1 + $0xb80] sm:$0xf]
  %v767 = vld [vmem:[%s1 + $0xb84] sm:$0xf]
  %v768 = vld [vmem:[%s1 + $0xb88] sm:$0xf]
  %v769 = vld [vmem:[%s1 + $0xb8c] sm:$0xf]
  %v770 = vld [vmem:[%s1 + $0xb90] sm:$0xf]
  %v771 = vld [vmem:[%s1 + $0xb94] sm:$0xf]
  %v772 = vld [vmem:[%s1 + $0xb98] sm:$0xf]
  %v773 = vld [vmem:[%s1 + $0xb9c] sm:$0xf]
  %v774 = vld [vmem:[%s1 + $0xba0] sm:$0xf]
  %v775 = vld [vmem:[%s1 + $0xba4] sm:$0xf]
  %v776 = vld [vmem:[%s1 + $0xba8] sm:$0xf]
  %v777 = vld [vmem:[%s1 + $0xbac] sm:$0xf]
  %v778 = vld [vmem:[%s1 + $0xbb0] sm:$0xf]
  %v779 = vld [vmem:[%s1 + $0xbb4] sm:$0xf]
  %v780 = vld [vmem:[%s1 + $0xbb8] sm:$0xf]
  %v781 = vld [vmem:[%s1 + $0xbbc] sm:$0xf]
  %v782 = vld [vmem:[%s1 + $0xbc0] sm:$0xf]
  %v783 = vld [vmem:[%s1 + $0xbc4] sm:$0xf]
  %v784 = vld [vmem:[%s1 + $0xbc8] sm:$0xf]
  %v785 = vld [vmem:[%s1 + $0xbcc] sm:$0xf]
  %v786 = vld [vmem:[%s1 + $0xbd0] sm:$0xf]
  %v787 = vld [vmem:[%s1 + $0xbd4] sm:$0xf]
  %v788 = vld [vmem:[%s1 + $0xbd8] sm:$0xf]
  %v789 = vld [vmem:[%s1 + $0xbdc] sm:$0xf]
  %v790 = vld [vmem:[%s1 + $0xbe0] sm:$0xf]
  %v791 = vld [vmem:[%s1 + $0xbe4] sm:$0xf]
  %v792 = vld [vmem:[%s1 + $0xbe8] sm:$0xf]
  %v793 = vld [vmem:[%s1 + $0xbec] sm:$0xf]
  %v794 = vld [vmem:[%s1 + $0xbf0] sm:$0xf]
  %v795 = vld [vmem:[%s1 + $0xbf4] sm:$0xf]
  %v796 = vld [vmem:[%s1 + $0xbf8] sm:$0xf]
  %v797 = vld [vmem:[%s1 + $0xbfc] sm:$0xf]
  %v798 = vld [vmem:[%s1 + $0xc00] sm:$0xf]
  %v799 = vld [vmem:[%s1 + $0xc04] sm:$0xf]
  %v800 = vld [vmem:[%s1 + $0xc08] sm:$0xf]
  %v801 = vld [vmem:[%s1 + $0xc0c] sm:$0xf]
  %v802 = vld [vmem:[%s1 + $0xc10] sm:$0xf]
  %v803 = vld [vmem:[%s1 + $0xc14] sm:$0xf]
  %v804 = vld [vmem:[%s1 + $0xc18] sm:$0xf]
  %v805 = vld [vmem:[%s1 + $0xc1c] sm:$0xf]
  %v806 = vld [vmem:[%s1 + $0xc20] sm:$0xf]
  %v807 = vld [vmem:[%s1 + $0xc24] sm:$0xf]
  %v808 = vld [vmem:[%s1 + $0xc28] sm:$0xf]
  %v809 = vld [vmem:[%s1 + $0xc2c] sm:$0xf]
  %v810 = vld [vmem:[%s1 + $0xc30] sm:$0xf]
  %v811 = vld [vmem:[%s1 + $0xc34] sm:$0xf]
  %v812 = vld [vmem:[%s1 + $0xc38] sm:$0xf]
  %v813 = vld [vmem:[%s1 + $0xc3c] sm:$0xf]
  %v814 = vld [vmem:[%s1 + $0xc40] sm:$0xf]
  %v815 = vld [vmem:[%s1 + $0xc44] sm:$0xf]
  %v816 = vld [vmem:[%s1 + $0xc48] sm:$0xf]
  %v817 = vld [vmem:[%s1 + $0xc4c] sm:$0xf]
  %v818 = vld [vmem:[%s1 + $0xc50] sm:$0xf]
  %v819 = vld [vmem:[%s1 + $0xc54] sm:$0xf]
  %v820 = vld [vmem:[%s1 + $0xc58] sm:$0xf]
  %v821 = vld [vmem:[%s1 + $0xc5c] sm:$0xf]
  %v822 = vld [vmem:[%s1 + $0xc60] sm:$0xf]
  %v823 = vld [vmem:[%s1 + $0xc64] sm:$0xf]
  %v824 = vld [vmem:[%s1 + $0xc68] sm:$0xf]
  %v825 = vld [vmem:[%s1 + $0xc6c] sm:$0xf]
  %v826 = vld [vmem:[%s1 + $0xc70] sm:$0xf]
  %v827 = vld [vmem:[%s1 + $0xc74] sm:$0xf]
  %v828 = vld [vmem:[%s1 + $0xc78] sm:$0xf]
  %v829 = vld [vmem:[%s1 + $0xc7c] sm:$0xf]
  %v830 = vld [vmem:[%s2] sm:$0x1]
  %v832 = vlaneseq
  %v833 = vshrl.u32 %v832, 7
  %v834 = vsub.s32 0, %v833
  %v835 = vrot.slane %v830, %v834
  %v844 = vcombine.high %v23, %v23
  %v846 = vunpack.c.l.s4 1966171168
  %v847 = vunpack.c.0.s8 %v846
  %v848 = vlaneseq
  %v849 = vshrl.u32 %v848, 7
  %v850 = vsub.s32 %v847, %v849
  %v851 = vrot.slane %v23, %v850
  %v853 = vunpack.c.l.s4 1966171168
  %v854 = vunpack.c.0.s8 %v853
  %v855 = vlaneseq
  %v856 = vshrl.u32 %v855, 7
  %v857 = vsub.s32 %v854, %v856
  %v858 = vrot.slane %v844, %v857
  %v859 = vcombine.high %v851, %v851
  %v860 = vcombine.high %v858, %v858
  %v862 = vunpack.c.l.s4 1966171168
  %v863 = vunpack.c.0.s8 %v862
  %v864 = vlaneseq
  %v865 = vshrl.u32 %v864, 7
  %v866 = vsub.s32 %v863, %v865
  %v867 = vrot.slane %v851, %v866
  %v869 = vunpack.c.l.s4 1966171168
  %v870 = vunpack.c.0.s8 %v869
  %v871 = vlaneseq
  %v872 = vshrl.u32 %v871, 7
  %v873 = vsub.s32 %v870, %v872
  %v874 = vrot.slane %v858, %v873
  %v876 = vunpack.c.l.s4 1966171168
  %v877 = vunpack.c.0.s8 %v876
  %v878 = vlaneseq
  %v879 = vshrl.u32 %v878, 7
  %v880 = vsub.s32 %v877, %v879
  %v881 = vrot.slane %v859, %v880
  %v883 = vunpack.c.l.s4 1966171168
  %v884 = vunpack.c.0.s8 %v883
  %v885 = vlaneseq
  %v886 = vshrl.u32 %v885, 7
  %v887 = vsub.s32 %v884, %v886
  %v888 = vrot.slane %v860, %v887
  %v889 = vcombine.high %v867, %v867
  %v890 = vcombine.high %v874, %v874
  %v891 = vcombine.high %v881, %v881
  %v892 = vcombine.high %v888, %v888
  %v893 = vcombine.high %v24, %v24
  %v895 = vunpack.c.l.s4 1966171168
  %v896 = vunpack.c.0.s8 %v895
  %v897 = vlaneseq
  %v898 = vshrl.u32 %v897, 7
  %v899 = vsub.s32 %v896, %v898
  %v900 = vrot.slane %v24, %v899
  %v902 = vunpack.c.l.s4 1966171168
  %v903 = vunpack.c.0.s8 %v902
  %v904 = vlaneseq
  %v905 = vshrl.u32 %v904, 7
  %v906 = vsub.s32 %v903, %v905
  %v907 = vrot.slane %v893, %v906
  %v908 = vcombine.high %v900, %v900
  %v909 = vcombine.high %v907, %v907
  %v911 = vunpack.c.l.s4 1966171168
  %v912 = vunpack.c.0.s8 %v911
  %v913 = vlaneseq
  %v914 = vshrl.u32 %v913, 7
  %v915 = vsub.s32 %v912, %v914
  %v916 = vrot.slane %v900, %v915
  %v918 = vunpack.c.l.s4 1966171168
  %v919 = vunpack.c.0.s8 %v918
  %v920 = vlaneseq
  %v921 = vshrl.u32 %v920, 7
  %v922 = vsub.s32 %v919, %v921
  %v923 = vrot.slane %v907, %v922
  %v925 = vunpack.c.l.s4 1966171168
  %v926 = vunpack.c.0.s8 %v925
  %v927 = vlaneseq
  %v928 = vshrl.u32 %v927, 7
  %v929 = vsub.s32 %v926, %v928
  %v930 = vrot.slane %v908, %v929
  %v932 = vunpack.c.l.s4 1966171168
  %v933 = vunpack.c.0.s8 %v932
  %v934 = vlaneseq
  %v935 = vshrl.u32 %v934, 7
  %v936 = vsub.s32 %v933, %v935
  %v937 = vrot.slane %v909, %v936
  %v938 = vcombine.high %v916, %v916
  %v939 = vcombine.high %v923, %v923
  %v940 = vcombine.high %v930, %v930
  %v941 = vcombine.high %v937, %v937
  %v942 = vcombine.high %v25, %v25
  %v944 = vunpack.c.l.s4 1966171168
  %v945 = vunpack.c.0.s8 %v944
  %v946 = vlaneseq
  %v947 = vshrl.u32 %v946, 7
  %v948 = vsub.s32 %v945, %v947
  %v949 = vrot.slane %v25, %v948
  %v951 = vunpack.c.l.s4 1966171168
  %v952 = vunpack.c.0.s8 %v951
  %v953 = vlaneseq
  %v954 = vshrl.u32 %v953, 7
  %v955 = vsub.s32 %v952, %v954
  %v956 = vrot.slane %v942, %v955
  %v957 = vcombine.high %v949, %v949
  %v958 = vcombine.high %v956, %v956
  %v960 = vunpack.c.l.s4 1966171168
  %v961 = vunpack.c.0.s8 %v960
  %v962 = vlaneseq
  %v963 = vshrl.u32 %v962, 7
  %v964 = vsub.s32 %v961, %v963
  %v965 = vrot.slane %v949, %v964
  %v967 = vunpack.c.l.s4 1966171168
  %v968 = vunpack.c.0.s8 %v967
  %v969 = vlaneseq
  %v970 = vshrl.u32 %v969, 7
  %v971 = vsub.s32 %v968, %v970
  %v972 = vrot.slane %v956, %v971
  %v974 = vunpack.c.l.s4 1966171168
  %v975 = vunpack.c.0.s8 %v974
  %v976 = vlaneseq
  %v977 = vshrl.u32 %v976, 7
  %v978 = vsub.s32 %v975, %v977
  %v979 = vrot.slane %v957, %v978
  %v981 = vunpack.c.l.s4 1966171168
  %v982 = vunpack.c.0.s8 %v981
  %v983 = vlaneseq
  %v984 = vshrl.u32 %v983, 7
  %v985 = vsub.s32 %v982, %v984
  %v986 = vrot.slane %v958, %v985
  %v987 = vcombine.high %v965, %v965
  %v988 = vcombine.high %v972, %v972
  %v989 = vcombine.high %v979, %v979
  %v990 = vcombine.high %v986, %v986
  %v991 = vcombine.high %v26, %v26
  %v993 = vunpack.c.l.s4 1966171168
  %v994 = vunpack.c.0.s8 %v993
  %v995 = vlaneseq
  %v996 = vshrl.u32 %v995, 7
  %v997 = vsub.s32 %v994, %v996
  %v998 = vrot.slane %v26, %v997
  %v1000 = vunpack.c.l.s4 1966171168
  %v1001 = vunpack.c.0.s8 %v1000
  %v1002 = vlaneseq
  %v1003 = vshrl.u32 %v1002, 7
  %v1004 = vsub.s32 %v1001, %v1003
  %v1005 = vrot.slane %v991, %v1004
  %v1006 = vcombine.high %v998, %v998
  %v1007 = vcombine.high %v1005, %v1005
  %v1009 = vunpack.c.l.s4 1966171168
  %v1010 = vunpack.c.0.s8 %v1009
  %v1011 = vlaneseq
  %v1012 = vshrl.u32 %v1011, 7
  %v1013 = vsub.s32 %v1010, %v1012
  %v1014 = vrot.slane %v998, %v1013
  %v1016 = vunpack.c.l.s4 1966171168
  %v1017 = vunpack.c.0.s8 %v1016
  %v1018 = vlaneseq
  %v1019 = vshrl.u32 %v1018, 7
  %v1020 = vsub.s32 %v1017, %v1019
  %v1021 = vrot.slane %v1005, %v1020
  %v1023 = vunpack.c.l.s4 1966171168
  %v1024 = vunpack.c.0.s8 %v1023
  %v1025 = vlaneseq
  %v1026 = vshrl.u32 %v1025, 7
  %v1027 = vsub.s32 %v1024, %v1026
  %v1028 = vrot.slane %v1006, %v1027
  %v1030 = vunpack.c.l.s4 1966171168
  %v1031 = vunpack.c.0.s8 %v1030
  %v1032 = vlaneseq
  %v1033 = vshrl.u32 %v1032, 7
  %v1034 = vsub.s32 %v1031, %v1033
  %v1035 = vrot.slane %v1007, %v1034
  %v1036 = vcombine.high %v1014, %v1014
  %v1037 = vcombine.high %v1021, %v1021
  %v1038 = vcombine.high %v1028, %v1028
  %v1039 = vcombine.high %v1035, %v1035
  %v1040 = vcombine.high %v27, %v27
  %v1042 = vunpack.c.l.s4 1966171168
  %v1043 = vunpack.c.0.s8 %v1042
  %v1044 = vlaneseq
  %v1045 = vshrl.u32 %v1044, 7
  %v1046 = vsub.s32 %v1043, %v1045
  %v1047 = vrot.slane %v27, %v1046
  %v1049 = vunpack.c.l.s4 1966171168
  %v1050 = vunpack.c.0.s8 %v1049
  %v1051 = vlaneseq
  %v1052 = vshrl.u32 %v1051, 7
  %v1053 = vsub.s32 %v1050, %v1052
  %v1054 = vrot.slane %v1040, %v1053
  %v1055 = vcombine.high %v1047, %v1047
  %v1056 = vcombine.high %v1054, %v1054
  %v1058 = vunpack.c.l.s4 1966171168
  %v1059 = vunpack.c.0.s8 %v1058
  %v1060 = vlaneseq
  %v1061 = vshrl.u32 %v1060, 7
  %v1062 = vsub.s32 %v1059, %v1061
  %v1063 = vrot.slane %v1047, %v1062
  %v1065 = vunpack.c.l.s4 1966171168
  %v1066 = vunpack.c.0.s8 %v1065
  %v1067 = vlaneseq
  %v1068 = vshrl.u32 %v1067, 7
  %v1069 = vsub.s32 %v1066, %v1068
  %v1070 = vrot.slane %v1054, %v1069
  %v1072 = vunpack.c.l.s4 1966171168
  %v1073 = vunpack.c.0.s8 %v1072
  %v1074 = vlaneseq
  %v1075 = vshrl.u32 %v1074, 7
  %v1076 = vsub.s32 %v1073, %v1075
  %v1077 = vrot.slane %v1055, %v1076
  %v1079 = vunpack.c.l.s4 1966171168
  %v1080 = vunpack.c.0.s8 %v1079
  %v1081 = vlaneseq
  %v1082 = vshrl.u32 %v1081, 7
  %v1083 = vsub.s32 %v1080, %v1082
  %v1084 = vrot.slane %v1056, %v1083
  %v1085 = vcombine.high %v1063, %v1063
  %v1086 = vcombine.high %v1070, %v1070
  %v1087 = vcombine.high %v1077, %v1077
  %v1088 = vcombine.high %v1084, %v1084
  %v1089 = vcombine.high %v28, %v28
  %v1091 = vunpack.c.l.s4 1966171168
  %v1092 = vunpack.c.0.s8 %v1091
  %v1093 = vlaneseq
  %v1094 = vshrl.u32 %v1093, 7
  %v1095 = vsub.s32 %v1092, %v1094
  %v1096 = vrot.slane %v28, %v1095
  %v1098 = vunpack.c.l.s4 1966171168
  %v1099 = vunpack.c.0.s8 %v1098
  %v1100 = vlaneseq
  %v1101 = vshrl.u32 %v1100, 7
  %v1102 = vsub.s32 %v1099, %v1101
  %v1103 = vrot.slane %v1089, %v1102
  %v1104 = vcombine.high %v1096, %v1096
  %v1105 = vcombine.high %v1103, %v1103
  %v1107 = vunpack.c.l.s4 1966171168
  %v1108 = vunpack.c.0.s8 %v1107
  %v1109 = vlaneseq
  %v1110 = vshrl.u32 %v1109, 7
  %v1111 = vsub.s32 %v1108, %v1110
  %v1112 = vrot.slane %v1096, %v1111
  %v1114 = vunpack.c.l.s4 1966171168
  %v1115 = vunpack.c.0.s8 %v1114
  %v1116 = vlaneseq
  %v1117 = vshrl.u32 %v1116, 7
  %v1118 = vsub.s32 %v1115, %v1117
  %v1119 = vrot.slane %v1103, %v1118
  %v1121 = vunpack.c.l.s4 1966171168
  %v1122 = vunpack.c.0.s8 %v1121
  %v1123 = vlaneseq
  %v1124 = vshrl.u32 %v1123, 7
  %v1125 = vsub.s32 %v1122, %v1124
  %v1126 = vrot.slane %v1104, %v1125
  %v1128 = vunpack.c.l.s4 1966171168
  %v1129 = vunpack.c.0.s8 %v1128
  %v1130 = vlaneseq
  %v1131 = vshrl.u32 %v1130, 7
  %v1132 = vsub.s32 %v1129, %v1131
  %v1133 = vrot.slane %v1105, %v1132
  %v1134 = vcombine.high %v1112, %v1112
  %v1135 = vcombine.high %v1119, %v1119
  %v1136 = vcombine.high %v1126, %v1126
  %v1137 = vcombine.high %v1133, %v1133
  %v1139 = vunpack.c.l.s4 1966171168
  %v1140 = vunpack.c.0.s8 %v1139
  %v1141 = vlaneseq
  %v1142 = vshrl.u32 %v1141, 7
  %v1143 = vsub.s32 %v1140, %v1142
  %v1144 = vrot.slane %v29, %v1143
  %v1145 = vcombine.high %v1144, %v1144
  %v1147 = vunpack.c.l.s4 1966171168
  %v1148 = vunpack.c.0.s8 %v1147
  %v1149 = vlaneseq
  %v1150 = vshrl.u32 %v1149, 7
  %v1151 = vsub.s32 %v1148, %v1150
  %v1152 = vrot.slane %v1144, %v1151
  %v1154 = vunpack.c.l.s4 1966171168
  %v1155 = vunpack.c.0.s8 %v1154
  %v1156 = vlaneseq
  %v1157 = vshrl.u32 %v1156, 7
  %v1158 = vsub.s32 %v1155, %v1157
  %v1159 = vrot.slane %v1145, %v1158
  %v2010 = vunpack.c.l.b16 %v30
  %v2011 = vunpack.c.l.b16 %v31
  %v2012 = vunpack.c.l.b16 %v32
  %v2013 = vunpack.c.l.b16 %v33
  %v2014 = vunpack.c.l.b16 %v34
  %v2015 = vunpack.c.l.b16 %v35
  %v2016 = vunpack.c.l.b16 %v36
  %v2017 = vunpack.c.l.b16 %v37
  %v2018 = vunpack.c.l.b16 %v38
  %v2019 = vunpack.c.l.b16 %v39
  %v2020 = vunpack.c.l.b16 %v40
  %v2021 = vunpack.c.l.b16 %v41
  %v2022 = vunpack.c.l.b16 %v42
  %v2023 = vunpack.c.l.b16 %v43
  %v2024 = vunpack.c.l.b16 %v44
  %v2025 = vunpack.c.l.b16 %v45
  %v2026 = vunpack.c.l.b16 %v46
  %v2027 = vunpack.c.l.b16 %v47
  %v2028 = vunpack.c.l.b16 %v48
  %v2029 = vunpack.c.l.b16 %v49
  %v2030 = vunpack.c.l.b16 %v50
  %v2031 = vunpack.c.l.b16 %v51
  %v2032 = vunpack.c.l.b16 %v52
  %v2033 = vunpack.c.l.b16 %v53
  %v2034 = vunpack.c.l.b16 %v54
  %v2035 = vunpack.c.l.b16 %v55
  %v2036 = vunpack.c.l.b16 %v56
  %v2037 = vunpack.c.l.b16 %v57
  %v2038 = vunpack.c.l.b16 %v58
  %v2039 = vunpack.c.l.b16 %v59
  %v2040 = vunpack.c.l.b16 %v60
  %v2041 = vunpack.c.l.b16 %v61
  %v2042 = vunpack.c.l.b16 %v62
  %v2043 = vunpack.c.l.b16 %v63
  %v2044 = vunpack.c.l.b16 %v64
  %v2045 = vunpack.c.l.b16 %v65
  %v2046 = vunpack.c.l.b16 %v66
  %v2047 = vunpack.c.l.b16 %v67
  %v2048 = vunpack.c.l.b16 %v68
  %v2049 = vunpack.c.l.b16 %v69
  %v2050 = vunpack.c.l.b16 %v70
  %v2051 = vunpack.c.l.b16 %v71
  %v2052 = vunpack.c.l.b16 %v72
  %v2053 = vunpack.c.l.b16 %v73
  %v2054 = vunpack.c.l.b16 %v74
  %v2055 = vunpack.c.l.b16 %v75
  %v2056 = vunpack.c.l.b16 %v76
  %v2057 = vunpack.c.l.b16 %v77
  %v2058 = vunpack.c.l.b16 %v78
  %v2059 = vunpack.c.l.b16 %v79
  %v2060 = vunpack.c.l.b16 %v80
  %v2061 = vunpack.c.l.b16 %v81
  %v2062 = vunpack.c.l.b16 %v82
  %v2063 = vunpack.c.l.b16 %v83
  %v2064 = vunpack.c.l.b16 %v84
  %v2065 = vunpack.c.l.b16 %v85
  %v2066 = vunpack.c.l.b16 %v86
  %v2067 = vunpack.c.l.b16 %v87
  %v2068 = vunpack.c.l.b16 %v88
  %v2069 = vunpack.c.l.b16 %v89
  %v2070 = vunpack.c.l.b16 %v90
  %v2071 = vunpack.c.l.b16 %v91
  %v2072 = vunpack.c.l.b16 %v92
  %v2073 = vunpack.c.l.b16 %v93
  %v2074 = vunpack.c.l.b16 %v94
  %v2075 = vunpack.c.l.b16 %v95
  %v2076 = vunpack.c.l.b16 %v96
  %v2077 = vunpack.c.l.b16 %v97
  %v2078 = vunpack.c.l.b16 %v98
  %v2079 = vunpack.c.l.b16 %v99
  %v2080 = vunpack.c.l.b16 %v100
  %v2081 = vunpack.c.l.b16 %v101
  %v2082 = vunpack.c.l.b16 %v102
  %v2083 = vunpack.c.l.b16 %v103
  %v2084 = vunpack.c.l.b16 %v104
  %v2085 = vunpack.c.l.b16 %v105
  %v2086 = vunpack.c.l.b16 %v106
  %v2087 = vunpack.c.l.b16 %v107
  %v2088 = vunpack.c.l.b16 %v108
  %v2089 = vunpack.c.l.b16 %v109
  %v2090 = vunpack.c.l.b16 %v110
  %v2091 = vunpack.c.l.b16 %v111
  %v2092 = vunpack.c.l.b16 %v112
  %v2093 = vunpack.c.l.b16 %v113
  %v2094 = vunpack.c.l.b16 %v114
  %v2095 = vunpack.c.l.b16 %v115
  %v2096 = vunpack.c.l.b16 %v116
  %v2097 = vunpack.c.l.b16 %v117
  %v2098 = vunpack.c.l.b16 %v118
  %v2099 = vunpack.c.l.b16 %v119
  %v2100 = vunpack.c.l.b16 %v120
  %v2101 = vunpack.c.l.b16 %v121
  %v2102 = vunpack.c.l.b16 %v122
  %v2103 = vunpack.c.l.b16 %v123
  %v2104 = vunpack.c.l.b16 %v124
  %v2105 = vunpack.c.l.b16 %v125
  %v2106 = vunpack.c.l.b16 %v126
  %v2107 = vunpack.c.l.b16 %v127
  %v2108 = vunpack.c.l.b16 %v128
  %v2109 = vunpack.c.l.b16 %v129
  %v2110 = vunpack.c.l.b16 %v130
  %v2111 = vunpack.c.l.b16 %v131
  %v2112 = vunpack.c.l.b16 %v132
  %v2113 = vunpack.c.l.b16 %v133
  %v2114 = vunpack.c.l.b16 %v134
  %v2115 = vunpack.c.l.b16 %v135
  %v2116 = vunpack.c.l.b16 %v136
  %v2117 = vunpack.c.l.b16 %v137
  %v2118 = vunpack.c.l.b16 %v138
  %v2119 = vunpack.c.l.b16 %v139
  %v2120 = vunpack.c.l.b16 %v140
  %v2121 = vunpack.c.l.b16 %v141
  %v2122 = vunpack.c.l.b16 %v142
  %v2123 = vunpack.c.l.b16 %v143
  %v2124 = vunpack.c.l.b16 %v144
  %v2125 = vunpack.c.l.b16 %v145
  %v2126 = vunpack.c.l.b16 %v146
  %v2127 = vunpack.c.l.b16 %v147
  %v2128 = vunpack.c.l.b16 %v148
  %v2129 = vunpack.c.l.b16 %v149
  %v2130 = vunpack.c.l.b16 %v150
  %v2131 = vunpack.c.l.b16 %v151
  %v2132 = vunpack.c.l.b16 %v152
  %v2133 = vunpack.c.l.b16 %v153
  %v2134 = vunpack.c.l.b16 %v154
  %v2135 = vunpack.c.l.b16 %v155
  %v2136 = vunpack.c.l.b16 %v156
  %v2137 = vunpack.c.l.b16 %v157
  %v2138 = vunpack.c.l.b16 %v158
  %v2139 = vunpack.c.l.b16 %v159
  %v2140 = vunpack.c.l.b16 %v160
  %v2141 = vunpack.c.l.b16 %v161
  %v2142 = vunpack.c.l.b16 %v162
  %v2143 = vunpack.c.l.b16 %v163
  %v2144 = vunpack.c.l.b16 %v164
  %v2145 = vunpack.c.l.b16 %v165
  %v2146 = vunpack.c.l.b16 %v166
  %v2147 = vunpack.c.l.b16 %v167
  %v2148 = vunpack.c.l.b16 %v168
  %v2149 = vunpack.c.l.b16 %v169
  %v2150 = vunpack.c.l.b16 %v170
  %v2151 = vunpack.c.l.b16 %v171
  %v2152 = vunpack.c.l.b16 %v172
  %v2153 = vunpack.c.l.b16 %v173
  %v2154 = vunpack.c.l.b16 %v174
  %v2155 = vunpack.c.l.b16 %v175
  %v2156 = vunpack.c.l.b16 %v176
  %v2157 = vunpack.c.l.b16 %v177
  %v2158 = vunpack.c.l.b16 %v178
  %v2159 = vunpack.c.l.b16 %v179
  %v2160 = vunpack.c.l.b16 %v180
  %v2161 = vunpack.c.l.b16 %v181
  %v2162 = vunpack.c.l.b16 %v182
  %v2163 = vunpack.c.l.b16 %v183
  %v2164 = vunpack.c.l.b16 %v184
  %v2165 = vunpack.c.l.b16 %v185
  %v2166 = vunpack.c.l.b16 %v186
  %v2167 = vunpack.c.l.b16 %v187
  %v2168 = vunpack.c.l.b16 %v188
  %v2169 = vunpack.c.l.b16 %v189
  %v2170 = vunpack.c.l.b16 %v190
  %v2171 = vunpack.c.l.b16 %v191
  %v2172 = vunpack.c.l.b16 %v192
  %v2173 = vunpack.c.l.b16 %v193
  %v2174 = vunpack.c.l.b16 %v194
  %v2175 = vunpack.c.l.b16 %v195
  %v2176 = vunpack.c.l.b16 %v196
  %v2177 = vunpack.c.l.b16 %v197
  %v2178 = vunpack.c.l.b16 %v198
  %v2179 = vunpack.c.l.b16 %v199
  %v2180 = vunpack.c.l.b16 %v200
  %v2181 = vunpack.c.l.b16 %v201
  %v2182 = vunpack.c.l.b16 %v202
  %v2183 = vunpack.c.l.b16 %v203
  %v2184 = vunpack.c.l.b16 %v204
  %v2185 = vunpack.c.l.b16 %v205
  %v2186 = vunpack.c.l.b16 %v206
  %v2187 = vunpack.c.l.b16 %v207
  %v2188 = vunpack.c.l.b16 %v208
  %v2189 = vunpack.c.l.b16 %v209
  %v2190 = vunpack.c.l.b16 %v210
  %v2191 = vunpack.c.l.b16 %v211
  %v2192 = vunpack.c.l.b16 %v212
  %v2193 = vunpack.c.l.b16 %v213
  %v2194 = vunpack.c.l.b16 %v214
  %v2195 = vunpack.c.l.b16 %v215
  %v2196 = vunpack.c.l.b16 %v216
  %v2197 = vunpack.c.l.b16 %v217
  %v2198 = vunpack.c.l.b16 %v218
  %v2199 = vunpack.c.l.b16 %v219
  %v2200 = vunpack.c.l.b16 %v220
  %v2201 = vunpack.c.l.b16 %v221
  %v2202 = vunpack.c.l.b16 %v222
  %v2203 = vunpack.c.l.b16 %v223
  %v2204 = vunpack.c.l.b16 %v224
  %v2205 = vunpack.c.l.b16 %v225
  %v2206 = vunpack.c.l.b16 %v226
  %v2207 = vunpack.c.l.b16 %v227
  %v2208 = vunpack.c.l.b16 %v228
  %v2209 = vunpack.c.l.b16 %v229
  %v2210 = vunpack.c.l.b16 %v230
  %v2211 = vunpack.c.l.b16 %v231
  %v2212 = vunpack.c.l.b16 %v232
  %v2213 = vunpack.c.l.b16 %v233
  %v2214 = vunpack.c.l.b16 %v234
  %v2215 = vunpack.c.l.b16 %v235
  %v2216 = vunpack.c.l.b16 %v236
  %v2217 = vunpack.c.l.b16 %v237
  %v2218 = vunpack.c.l.b16 %v238
  %v2219 = vunpack.c.l.b16 %v239
  %v2220 = vunpack.c.l.b16 %v240
  %v2221 = vunpack.c.l.b16 %v241
  %v2222 = vunpack.c.l.b16 %v242
  %v2223 = vunpack.c.l.b16 %v243
  %v2224 = vunpack.c.l.b16 %v244
  %v2225 = vunpack.c.l.b16 %v245
  %v2226 = vunpack.c.l.b16 %v246
  %v2227 = vunpack.c.l.b16 %v247
  %v2228 = vunpack.c.l.b16 %v248
  %v2229 = vunpack.c.l.b16 %v249
  %v2230 = vunpack.c.l.b16 %v250
  %v2231 = vunpack.c.l.b16 %v251
  %v2232 = vunpack.c.l.b16 %v252
  %v2233 = vunpack.c.l.b16 %v253
  %v2234 = vunpack.c.l.b16 %v254
  %v2235 = vunpack.c.l.b16 %v255
  %v2236 = vunpack.c.l.b16 %v256
  %v2237 = vunpack.c.l.b16 %v257
  %v2238 = vunpack.c.l.b16 %v258
  %v2239 = vunpack.c.l.b16 %v259
  %v2240 = vunpack.c.l.b16 %v260
  %v2241 = vunpack.c.l.b16 %v261
  %v2242 = vunpack.c.l.b16 %v262
  %v2243 = vunpack.c.l.b16 %v263
  %v2244 = vunpack.c.l.b16 %v264
  %v2245 = vunpack.c.l.b16 %v265
  %v2246 = vunpack.c.l.b16 %v266
  %v2247 = vunpack.c.l.b16 %v267
  %v2248 = vunpack.c.l.b16 %v268
  %v2249 = vunpack.c.l.b16 %v269
  %v2250 = vunpack.c.l.b16 %v270
  %v2251 = vunpack.c.l.b16 %v271
  %v2252 = vunpack.c.l.b16 %v272
  %v2253 = vunpack.c.l.b16 %v273
  %v2254 = vunpack.c.l.b16 %v274
  %v2255 = vunpack.c.l.b16 %v275
  %v2256 = vunpack.c.l.b16 %v276
  %v2257 = vunpack.c.l.b16 %v277
  %v2258 = vunpack.c.l.b16 %v278
  %v2259 = vunpack.c.l.b16 %v279
  %v2260 = vunpack.c.l.b16 %v280
  %v2261 = vunpack.c.l.b16 %v281
  %v2262 = vunpack.c.l.b16 %v282
  %v2263 = vunpack.c.l.b16 %v283
  %v2264 = vunpack.c.l.b16 %v284
  %v2265 = vunpack.c.l.b16 %v285
  %v2266 = vunpack.c.l.b16 %v286
  %v2267 = vunpack.c.l.b16 %v287
  %v2268 = vunpack.c.l.b16 %v288
  %v2269 = vunpack.c.l.b16 %v289
  %v2270 = vunpack.c.l.b16 %v290
  %v2271 = vunpack.c.l.b16 %v291
  %v2272 = vunpack.c.l.b16 %v292
  %v2273 = vunpack.c.l.b16 %v293
  %v2274 = vunpack.c.l.b16 %v294
  %v2275 = vunpack.c.l.b16 %v295
  %v2276 = vunpack.c.l.b16 %v296
  %v2277 = vunpack.c.l.b16 %v297
  %v2278 = vunpack.c.l.b16 %v298
  %v2279 = vunpack.c.l.b16 %v299
  %v2280 = vunpack.c.l.b16 %v300
  %v2281 = vunpack.c.l.b16 %v301
  %v2282 = vunpack.c.l.b16 %v302
  %v2283 = vunpack.c.l.b16 %v303
  %v2284 = vunpack.c.l.b16 %v304
  %v2285 = vunpack.c.l.b16 %v305
  %v2286 = vunpack.c.l.b16 %v306
  %v2287 = vunpack.c.l.b16 %v307
  %v2288 = vunpack.c.l.b16 %v308
  %v2289 = vunpack.c.l.b16 %v309
  %v2290 = vunpack.c.l.b16 %v310
  %v2291 = vunpack.c.l.b16 %v311
  %v2292 = vunpack.c.l.b16 %v312
  %v2293 = vunpack.c.l.b16 %v313
  %v2294 = vunpack.c.l.b16 %v314
  %v2295 = vunpack.c.l.b16 %v315
  %v2296 = vunpack.c.l.b16 %v316
  %v2297 = vunpack.c.l.b16 %v317
  %v2298 = vunpack.c.l.b16 %v318
  %v2299 = vunpack.c.l.b16 %v319
  %v2300 = vunpack.c.l.b16 %v320
  %v2301 = vunpack.c.l.b16 %v321
  %v2302 = vunpack.c.l.b16 %v322
  %v2303 = vunpack.c.l.b16 %v323
  %v2304 = vunpack.c.l.b16 %v324
  %v2305 = vunpack.c.l.b16 %v325
  %v2306 = vunpack.c.l.b16 %v326
  %v2307 = vunpack.c.l.b16 %v327
  %v2308 = vunpack.c.l.b16 %v328
  %v2309 = vunpack.c.l.b16 %v329
  %v2310 = vunpack.c.l.b16 %v330
  %v2311 = vunpack.c.l.b16 %v331
  %v2312 = vunpack.c.l.b16 %v332
  %v2313 = vunpack.c.l.b16 %v333
  %v2314 = vunpack.c.l.b16 %v334
  %v2315 = vunpack.c.l.b16 %v335
  %v2316 = vunpack.c.l.b16 %v336
  %v2317 = vunpack.c.l.b16 %v337
  %v2318 = vunpack.c.l.b16 %v338
  %v2319 = vunpack.c.l.b16 %v339
  %v2320 = vunpack.c.l.b16 %v340
  %v2321 = vunpack.c.l.b16 %v341
  %v2322 = vunpack.c.l.b16 %v342
  %v2323 = vunpack.c.l.b16 %v343
  %v2324 = vunpack.c.l.b16 %v344
  %v2325 = vunpack.c.l.b16 %v345
  %v2326 = vunpack.c.l.b16 %v346
  %v2327 = vunpack.c.l.b16 %v347
  %v2328 = vunpack.c.l.b16 %v348
  %v2329 = vunpack.c.l.b16 %v349
  %v2330 = vunpack.c.l.b16 %v350
  %v2331 = vunpack.c.l.b16 %v351
  %v2332 = vunpack.c.l.b16 %v352
  %v2333 = vunpack.c.l.b16 %v353
  %v2334 = vunpack.c.l.b16 %v354
  %v2335 = vunpack.c.l.b16 %v355
  %v2336 = vunpack.c.l.b16 %v356
  %v2337 = vunpack.c.l.b16 %v357
  %v2338 = vunpack.c.l.b16 %v358
  %v2339 = vunpack.c.l.b16 %v359
  %v2340 = vunpack.c.l.b16 %v360
  %v2341 = vunpack.c.l.b16 %v361
  %v2342 = vunpack.c.l.b16 %v362
  %v2343 = vunpack.c.l.b16 %v363
  %v2344 = vunpack.c.l.b16 %v364
  %v2345 = vunpack.c.l.b16 %v365
  %v2346 = vunpack.c.l.b16 %v366
  %v2347 = vunpack.c.l.b16 %v367
  %v2348 = vunpack.c.l.b16 %v368
  %v2349 = vunpack.c.l.b16 %v369
  %v2350 = vunpack.c.l.b16 %v370
  %v2351 = vunpack.c.l.b16 %v371
  %v2352 = vunpack.c.l.b16 %v372
  %v2353 = vunpack.c.l.b16 %v373
  %v2354 = vunpack.c.l.b16 %v374
  %v2355 = vunpack.c.l.b16 %v375
  %v2356 = vunpack.c.l.b16 %v376
  %v2357 = vunpack.c.l.b16 %v377
  %v2358 = vunpack.c.l.b16 %v378
  %v2359 = vunpack.c.l.b16 %v379
  %v2360 = vunpack.c.l.b16 %v380
  %v2361 = vunpack.c.l.b16 %v381
  %v2362 = vunpack.c.l.b16 %v382
  %v2363 = vunpack.c.l.b16 %v383
  %v2364 = vunpack.c.l.b16 %v384
  %v2365 = vunpack.c.l.b16 %v385
  %v2366 = vunpack.c.l.b16 %v386
  %v2367 = vunpack.c.l.b16 %v387
  %v2368 = vunpack.c.l.b16 %v388
  %v2369 = vunpack.c.l.b16 %v389
  %v2370 = vunpack.c.l.b16 %v390
  %v2371 = vunpack.c.l.b16 %v391
  %v2372 = vunpack.c.l.b16 %v392
  %v2373 = vunpack.c.l.b16 %v393
  %v2374 = vunpack.c.l.b16 %v394
  %v2375 = vunpack.c.l.b16 %v395
  %v2376 = vunpack.c.l.b16 %v396
  %v2377 = vunpack.c.l.b16 %v397
  %v2378 = vunpack.c.l.b16 %v398
  %v2379 = vunpack.c.l.b16 %v399
  %v2380 = vunpack.c.l.b16 %v400
  %v2381 = vunpack.c.l.b16 %v401
  %v2382 = vunpack.c.l.b16 %v402
  %v2383 = vunpack.c.l.b16 %v403
  %v2384 = vunpack.c.l.b16 %v404
  %v2385 = vunpack.c.l.b16 %v405
  %v2386 = vunpack.c.l.b16 %v406
  %v2387 = vunpack.c.l.b16 %v407
  %v2388 = vunpack.c.l.b16 %v408
  %v2389 = vunpack.c.l.b16 %v409
  %v2390 = vunpack.c.l.b16 %v410
  %v2391 = vunpack.c.l.b16 %v411
  %v2392 = vunpack.c.l.b16 %v412
  %v2393 = vunpack.c.l.b16 %v413
  %v2394 = vunpack.c.l.b16 %v414
  %v2395 = vunpack.c.l.b16 %v415
  %v2396 = vunpack.c.l.b16 %v416
  %v2397 = vunpack.c.l.b16 %v417
  %v2398 = vunpack.c.l.b16 %v418
  %v2399 = vunpack.c.l.b16 %v419
  %v2400 = vunpack.c.l.b16 %v420
  %v2401 = vunpack.c.l.b16 %v421
  %v2402 = vunpack.c.l.b16 %v422
  %v2403 = vunpack.c.l.b16 %v423
  %v2404 = vunpack.c.l.b16 %v424
  %v2405 = vunpack.c.l.b16 %v425
  %v2406 = vunpack.c.l.b16 %v426
  %v2407 = vunpack.c.l.b16 %v427
  %v2408 = vunpack.c.l.b16 %v428
  %v2409 = vunpack.c.l.b16 %v429
  %v2410 = vunpack.c.l.b16 %v430
  %v2411 = vunpack.c.l.b16 %v431
  %v2412 = vunpack.c.l.b16 %v432
  %v2413 = vunpack.c.l.b16 %v433
  %v2414 = vunpack.c.l.b16 %v434
  %v2415 = vunpack.c.l.b16 %v435
  %v2416 = vunpack.c.l.b16 %v436
  %v2417 = vunpack.c.l.b16 %v437
  %v2418 = vunpack.c.l.b16 %v438
  %v2419 = vunpack.c.l.b16 %v439
  %v2420 = vunpack.c.l.b16 %v440
  %v2421 = vunpack.c.l.b16 %v441
  %v2422 = vunpack.c.l.b16 %v442
  %v2423 = vunpack.c.l.b16 %v443
  %v2424 = vunpack.c.l.b16 %v444
  %v2425 = vunpack.c.l.b16 %v445
  %v2426 = vunpack.c.l.b16 %v446
  %v2427 = vunpack.c.l.b16 %v447
  %v2428 = vunpack.c.l.b16 %v448
  %v2429 = vunpack.c.l.b16 %v449
  %v2430 = vunpack.c.l.b16 %v450
  %v2431 = vunpack.c.l.b16 %v451
  %v2432 = vunpack.c.l.b16 %v452
  %v2433 = vunpack.c.l.b16 %v453
  %v2434 = vunpack.c.l.b16 %v454
  %v2435 = vunpack.c.l.b16 %v455
  %v2436 = vunpack.c.l.b16 %v456
  %v2437 = vunpack.c.l.b16 %v457
  %v2438 = vunpack.c.l.b16 %v458
  %v2439 = vunpack.c.l.b16 %v459
  %v2440 = vunpack.c.l.b16 %v460
  %v2441 = vunpack.c.l.b16 %v461
  %v2442 = vunpack.c.l.b16 %v462
  %v2443 = vunpack.c.l.b16 %v463
  %v2444 = vunpack.c.l.b16 %v464
  %v2445 = vunpack.c.l.b16 %v465
  %v2446 = vunpack.c.l.b16 %v466
  %v2447 = vunpack.c.l.b16 %v467
  %v2448 = vunpack.c.l.b16 %v468
  %v2449 = vunpack.c.l.b16 %v469
  %v2450 = vunpack.c.l.b16 %v470
  %v2451 = vunpack.c.l.b16 %v471
  %v2452 = vunpack.c.l.b16 %v472
  %v2453 = vunpack.c.l.b16 %v473
  %v2454 = vunpack.c.l.b16 %v474
  %v2455 = vunpack.c.l.b16 %v475
  %v2456 = vunpack.c.l.b16 %v476
  %v2457 = vunpack.c.l.b16 %v477
  %v2458 = vunpack.c.l.b16 %v478
  %v2459 = vunpack.c.l.b16 %v479
  %v2460 = vunpack.c.l.b16 %v480
  %v2461 = vunpack.c.l.b16 %v481
  %v2462 = vunpack.c.l.b16 %v482
  %v2463 = vunpack.c.l.b16 %v483
  %v2464 = vunpack.c.l.b16 %v484
  %v2465 = vunpack.c.l.b16 %v485
  %v2466 = vunpack.c.l.b16 %v486
  %v2467 = vunpack.c.l.b16 %v487
  %v2468 = vunpack.c.l.b16 %v488
  %v2469 = vunpack.c.l.b16 %v489
  %v2470 = vunpack.c.l.b16 %v490
  %v2471 = vunpack.c.l.b16 %v491
  %v2472 = vunpack.c.l.b16 %v492
  %v2473 = vunpack.c.l.b16 %v493
  %v2474 = vunpack.c.l.b16 %v494
  %v2475 = vunpack.c.l.b16 %v495
  %v2476 = vunpack.c.l.b16 %v496
  %v2477 = vunpack.c.l.b16 %v497
  %v2478 = vunpack.c.l.b16 %v498
  %v2479 = vunpack.c.l.b16 %v499
  %v2480 = vunpack.c.l.b16 %v500
  %v2481 = vunpack.c.l.b16 %v501
  %v2482 = vunpack.c.l.b16 %v502
  %v2483 = vunpack.c.l.b16 %v503
  %v2484 = vunpack.c.l.b16 %v504
  %v2485 = vunpack.c.l.b16 %v505
  %v2486 = vunpack.c.l.b16 %v506
  %v2487 = vunpack.c.l.b16 %v507
  %v2488 = vunpack.c.l.b16 %v508
  %v2489 = vunpack.c.l.b16 %v509
  %v2490 = vunpack.c.l.b16 %v510
  %v2491 = vunpack.c.l.b16 %v511
  %v2492 = vunpack.c.l.b16 %v512
  %v2493 = vunpack.c.l.b16 %v513
  %v2494 = vunpack.c.l.b16 %v514
  %v2495 = vunpack.c.l.b16 %v515
  %v2496 = vunpack.c.l.b16 %v516
  %v2497 = vunpack.c.l.b16 %v517
  %v2498 = vunpack.c.l.b16 %v518
  %v2499 = vunpack.c.l.b16 %v519
  %v2500 = vunpack.c.l.b16 %v520
  %v2501 = vunpack.c.l.b16 %v521
  %v2502 = vunpack.c.l.b16 %v522
  %v2503 = vunpack.c.l.b16 %v523
  %v2504 = vunpack.c.l.b16 %v524
  %v2505 = vunpack.c.l.b16 %v525
  %v2506 = vunpack.c.l.b16 %v526
  %v2507 = vunpack.c.l.b16 %v527
  %v2508 = vunpack.c.l.b16 %v528
  %v2509 = vunpack.c.l.b16 %v529
  %v2510 = vunpack.c.l.b16 %v530
  %v2511 = vunpack.c.l.b16 %v531
  %v2512 = vunpack.c.l.b16 %v532
  %v2513 = vunpack.c.l.b16 %v533
  %v2514 = vunpack.c.l.b16 %v534
  %v2515 = vunpack.c.l.b16 %v535
  %v2516 = vunpack.c.l.b16 %v536
  %v2517 = vunpack.c.l.b16 %v537
  %v2518 = vunpack.c.l.b16 %v538
  %v2519 = vunpack.c.l.b16 %v539
  %v2520 = vunpack.c.l.b16 %v540
  %v2521 = vunpack.c.l.b16 %v541
  %v2522 = vunpack.c.l.b16 %v542
  %v2523 = vunpack.c.l.b16 %v543
  %v2524 = vunpack.c.l.b16 %v544
  %v2525 = vunpack.c.l.b16 %v545
  %v2526 = vunpack.c.l.b16 %v546
  %v2527 = vunpack.c.l.b16 %v547
  %v2528 = vunpack.c.l.b16 %v548
  %v2529 = vunpack.c.l.b16 %v549
  %v2530 = vunpack.c.l.b16 %v550
  %v2531 = vunpack.c.l.b16 %v551
  %v2532 = vunpack.c.l.b16 %v552
  %v2533 = vunpack.c.l.b16 %v553
  %v2534 = vunpack.c.l.b16 %v554
  %v2535 = vunpack.c.l.b16 %v555
  %v2536 = vunpack.c.l.b16 %v556
  %v2537 = vunpack.c.l.b16 %v557
  %v2538 = vunpack.c.l.b16 %v558
  %v2539 = vunpack.c.l.b16 %v559
  %v2540 = vunpack.c.l.b16 %v560
  %v2541 = vunpack.c.l.b16 %v561
  %v2542 = vunpack.c.l.b16 %v562
  %v2543 = vunpack.c.l.b16 %v563
  %v2544 = vunpack.c.l.b16 %v564
  %v2545 = vunpack.c.l.b16 %v565
  %v2546 = vunpack.c.l.b16 %v566
  %v2547 = vunpack.c.l.b16 %v567
  %v2548 = vunpack.c.l.b16 %v568
  %v2549 = vunpack.c.l.b16 %v569
  %v2550 = vunpack.c.l.b16 %v570
  %v2551 = vunpack.c.l.b16 %v571
  %v2552 = vunpack.c.l.b16 %v572
  %v2553 = vunpack.c.l.b16 %v573
  %v2554 = vunpack.c.l.b16 %v574
  %v2555 = vunpack.c.l.b16 %v575
  %v2556 = vunpack.c.l.b16 %v576
  %v2557 = vunpack.c.l.b16 %v577
  %v2558 = vunpack.c.l.b16 %v578
  %v2559 = vunpack.c.l.b16 %v579
  %v2560 = vunpack.c.l.b16 %v580
  %v2561 = vunpack.c.l.b16 %v581
  %v2562 = vunpack.c.l.b16 %v582
  %v2563 = vunpack.c.l.b16 %v583
  %v2564 = vunpack.c.l.b16 %v584
  %v2565 = vunpack.c.l.b16 %v585
  %v2566 = vunpack.c.l.b16 %v586
  %v2567 = vunpack.c.l.b16 %v587
  %v2568 = vunpack.c.l.b16 %v588
  %v2569 = vunpack.c.l.b16 %v589
  %v2570 = vunpack.c.l.b16 %v590
  %v2571 = vunpack.c.l.b16 %v591
  %v2572 = vunpack.c.l.b16 %v592
  %v2573 = vunpack.c.l.b16 %v593
  %v2574 = vunpack.c.l.b16 %v594
  %v2575 = vunpack.c.l.b16 %v595
  %v2576 = vunpack.c.l.b16 %v596
  %v2577 = vunpack.c.l.b16 %v597
  %v2578 = vunpack.c.l.b16 %v598
  %v2579 = vunpack.c.l.b16 %v599
  %v2580 = vunpack.c.l.b16 %v600
  %v2581 = vunpack.c.l.b16 %v601
  %v2582 = vunpack.c.l.b16 %v602
  %v2583 = vunpack.c.l.b16 %v603
  %v2584 = vunpack.c.l.b16 %v604
  %v2585 = vunpack.c.l.b16 %v605
  %v2586 = vunpack.c.l.b16 %v606
  %v2587 = vunpack.c.l.b16 %v607
  %v2588 = vunpack.c.l.b16 %v608
  %v2589 = vunpack.c.l.b16 %v609
  %v2590 = vunpack.c.l.b16 %v610
  %v2591 = vunpack.c.l.b16 %v611
  %v2592 = vunpack.c.l.b16 %v612
  %v2593 = vunpack.c.l.b16 %v613
  %v2594 = vunpack.c.l.b16 %v614
  %v2595 = vunpack.c.l.b16 %v615
  %v2596 = vunpack.c.l.b16 %v616
  %v2597 = vunpack.c.l.b16 %v617
  %v2598 = vunpack.c.l.b16 %v618
  %v2599 = vunpack.c.l.b16 %v619
  %v2600 = vunpack.c.l.b16 %v620
  %v2601 = vunpack.c.l.b16 %v621
  %v2602 = vunpack.c.l.b16 %v622
  %v2603 = vunpack.c.l.b16 %v623
  %v2604 = vunpack.c.l.b16 %v624
  %v2605 = vunpack.c.l.b16 %v625
  %v2606 = vunpack.c.l.b16 %v626
  %v2607 = vunpack.c.l.b16 %v627
  %v2608 = vunpack.c.l.b16 %v628
  %v2609 = vunpack.c.l.b16 %v629
  %v2610 = vunpack.c.l.b16 %v630
  %v2611 = vunpack.c.l.b16 %v631
  %v2612 = vunpack.c.l.b16 %v632
  %v2613 = vunpack.c.l.b16 %v633
  %v2614 = vunpack.c.l.b16 %v634
  %v2615 = vunpack.c.l.b16 %v635
  %v2616 = vunpack.c.l.b16 %v636
  %v2617 = vunpack.c.l.b16 %v637
  %v2618 = vunpack.c.l.b16 %v638
  %v2619 = vunpack.c.l.b16 %v639
  %v2620 = vunpack.c.l.b16 %v640
  %v2621 = vunpack.c.l.b16 %v641
  %v2622 = vunpack.c.l.b16 %v642
  %v2623 = vunpack.c.l.b16 %v643
  %v2624 = vunpack.c.l.b16 %v644
  %v2625 = vunpack.c.l.b16 %v645
  %v2626 = vunpack.c.l.b16 %v646
  %v2627 = vunpack.c.l.b16 %v647
  %v2628 = vunpack.c.l.b16 %v648
  %v2629 = vunpack.c.l.b16 %v649
  %v2630 = vunpack.c.l.b16 %v650
  %v2631 = vunpack.c.l.b16 %v651
  %v2632 = vunpack.c.l.b16 %v652
  %v2633 = vunpack.c.l.b16 %v653
  %v2634 = vunpack.c.l.b16 %v654
  %v2635 = vunpack.c.l.b16 %v655
  %v2636 = vunpack.c.l.b16 %v656
  %v2637 = vunpack.c.l.b16 %v657
  %v2638 = vunpack.c.l.b16 %v658
  %v2639 = vunpack.c.l.b16 %v659
  %v2640 = vunpack.c.l.b16 %v660
  %v2641 = vunpack.c.l.b16 %v661
  %v2642 = vunpack.c.l.b16 %v662
  %v2643 = vunpack.c.l.b16 %v663
  %v2644 = vunpack.c.l.b16 %v664
  %v2645 = vunpack.c.l.b16 %v665
  %v2646 = vunpack.c.l.b16 %v666
  %v2647 = vunpack.c.l.b16 %v667
  %v2648 = vunpack.c.l.b16 %v668
  %v2649 = vunpack.c.l.b16 %v669
  %v2650 = vunpack.c.l.b16 %v670
  %v2651 = vunpack.c.l.b16 %v671
  %v2652 = vunpack.c.l.b16 %v672
  %v2653 = vunpack.c.l.b16 %v673
  %v2654 = vunpack.c.l.b16 %v674
  %v2655 = vunpack.c.l.b16 %v675
  %v2656 = vunpack.c.l.b16 %v676
  %v2657 = vunpack.c.l.b16 %v677
  %v2658 = vunpack.c.l.b16 %v678
  %v2659 = vunpack.c.l.b16 %v679
  %v2660 = vunpack.c.l.b16 %v680
  %v2661 = vunpack.c.l.b16 %v681
  %v2662 = vunpack.c.l.b16 %v682
  %v2663 = vunpack.c.l.b16 %v683
  %v2664 = vunpack.c.l.b16 %v684
  %v2665 = vunpack.c.l.b16 %v685
  %v2666 = vunpack.c.l.b16 %v686
  %v2667 = vunpack.c.l.b16 %v687
  %v2668 = vunpack.c.l.b16 %v688
  %v2669 = vunpack.c.l.b16 %v689
  %v2670 = vunpack.c.l.b16 %v690
  %v2671 = vunpack.c.l.b16 %v691
  %v2672 = vunpack.c.l.b16 %v692
  %v2673 = vunpack.c.l.b16 %v693
  %v2674 = vunpack.c.l.b16 %v694
  %v2675 = vunpack.c.l.b16 %v695
  %v2676 = vunpack.c.l.b16 %v696
  %v2677 = vunpack.c.l.b16 %v697
  %v2678 = vunpack.c.l.b16 %v698
  %v2679 = vunpack.c.l.b16 %v699
  %v2680 = vunpack.c.l.b16 %v700
  %v2681 = vunpack.c.l.b16 %v701
  %v2682 = vunpack.c.l.b16 %v702
  %v2683 = vunpack.c.l.b16 %v703
  %v2684 = vunpack.c.l.b16 %v704
  %v2685 = vunpack.c.l.b16 %v705
  %v2686 = vunpack.c.l.b16 %v706
  %v2687 = vunpack.c.l.b16 %v707
  %v2688 = vunpack.c.l.b16 %v708
  %v2689 = vunpack.c.l.b16 %v709
  %v2690 = vunpack.c.l.b16 %v710
  %v2691 = vunpack.c.l.b16 %v711
  %v2692 = vunpack.c.l.b16 %v712
  %v2693 = vunpack.c.l.b16 %v713
  %v2694 = vunpack.c.l.b16 %v714
  %v2695 = vunpack.c.l.b16 %v715
  %v2696 = vunpack.c.l.b16 %v716
  %v2697 = vunpack.c.l.b16 %v717
  %v2698 = vunpack.c.l.b16 %v718
  %v2699 = vunpack.c.l.b16 %v719
  %v2700 = vunpack.c.l.b16 %v720
  %v2701 = vunpack.c.l.b16 %v721
  %v2702 = vunpack.c.l.b16 %v722
  %v2703 = vunpack.c.l.b16 %v723
  %v2704 = vunpack.c.l.b16 %v724
  %v2705 = vunpack.c.l.b16 %v725
  %v2706 = vunpack.c.l.b16 %v726
  %v2707 = vunpack.c.l.b16 %v727
  %v2708 = vunpack.c.l.b16 %v728
  %v2709 = vunpack.c.l.b16 %v729
  %v2710 = vunpack.c.l.b16 %v730
  %v2711 = vunpack.c.l.b16 %v731
  %v2712 = vunpack.c.l.b16 %v732
  %v2713 = vunpack.c.l.b16 %v733
  %v2714 = vunpack.c.l.b16 %v734
  %v2715 = vunpack.c.l.b16 %v735
  %v2716 = vunpack.c.l.b16 %v736
  %v2717 = vunpack.c.l.b16 %v737
  %v2718 = vunpack.c.l.b16 %v738
  %v2719 = vunpack.c.l.b16 %v739
  %v2720 = vunpack.c.l.b16 %v740
  %v2721 = vunpack.c.l.b16 %v741
  %v2722 = vunpack.c.l.b16 %v742
  %v2723 = vunpack.c.l.b16 %v743
  %v2724 = vunpack.c.l.b16 %v744
  %v2725 = vunpack.c.l.b16 %v745
  %v2726 = vunpack.c.l.b16 %v746
  %v2727 = vunpack.c.l.b16 %v747
  %v2728 = vunpack.c.l.b16 %v748
  %v2729 = vunpack.c.l.b16 %v749
  %v2730 = vunpack.c.l.b16 %v750
  %v2731 = vunpack.c.l.b16 %v751
  %v2732 = vunpack.c.l.b16 %v752
  %v2733 = vunpack.c.l.b16 %v753
  %v2734 = vunpack.c.l.b16 %v754
  %v2735 = vunpack.c.l.b16 %v755
  %v2736 = vunpack.c.l.b16 %v756
  %v2737 = vunpack.c.l.b16 %v757
  %v2738 = vunpack.c.l.b16 %v758
  %v2739 = vunpack.c.l.b16 %v759
  %v2740 = vunpack.c.l.b16 %v760
  %v2741 = vunpack.c.l.b16 %v761
  %v2742 = vunpack.c.l.b16 %v762
  %v2743 = vunpack.c.l.b16 %v763
  %v2744 = vunpack.c.l.b16 %v764
  %v2745 = vunpack.c.l.b16 %v765
  %v2746 = vunpack.c.l.b16 %v766
  %v2747 = vunpack.c.l.b16 %v767
  %v2748 = vunpack.c.l.b16 %v768
  %v2749 = vunpack.c.l.b16 %v769
  %v2750 = vunpack.c.l.b16 %v770
  %v2751 = vunpack.c.l.b16 %v771
  %v2752 = vunpack.c.l.b16 %v772
  %v2753 = vunpack.c.l.b16 %v773
  %v2754 = vunpack.c.l.b16 %v774
  %v2755 = vunpack.c.l.b16 %v775
  %v2756 = vunpack.c.l.b16 %v776
  %v2757 = vunpack.c.l.b16 %v777
  %v2758 = vunpack.c.l.b16 %v778
  %v2759 = vunpack.c.l.b16 %v779
  %v2760 = vunpack.c.l.b16 %v780
  %v2761 = vunpack.c.l.b16 %v781
  %v2762 = vunpack.c.l.b16 %v782
  %v2763 = vunpack.c.l.b16 %v783
  %v2764 = vunpack.c.l.b16 %v784
  %v2765 = vunpack.c.l.b16 %v785
  %v2766 = vunpack.c.l.b16 %v786
  %v2767 = vunpack.c.l.b16 %v787
  %v2768 = vunpack.c.l.b16 %v788
  %v2769 = vunpack.c.l.b16 %v789
  %v2770 = vunpack.c.l.b16 %v790
  %v2771 = vunpack.c.l.b16 %v791
  %v2772 = vunpack.c.l.b16 %v792
  %v2773 = vunpack.c.l.b16 %v793
  %v2774 = vunpack.c.l.b16 %v794
  %v2775 = vunpack.c.l.b16 %v795
  %v2776 = vunpack.c.l.b16 %v796
  %v2777 = vunpack.c.l.b16 %v797
  %v2778 = vunpack.c.l.b16 %v798
  %v2779 = vunpack.c.l.b16 %v799
  %v2780 = vunpack.c.l.b16 %v800
  %v2781 = vunpack.c.l.b16 %v801
  %v2782 = vunpack.c.l.b16 %v802
  %v2783 = vunpack.c.l.b16 %v803
  %v2784 = vunpack.c.l.b16 %v804
  %v2785 = vunpack.c.l.b16 %v805
  %v2786 = vunpack.c.l.b16 %v806
  %v2787 = vunpack.c.l.b16 %v807
  %v2788 = vunpack.c.l.b16 %v808
  %v2789 = vunpack.c.l.b16 %v809
  %v2790 = vunpack.c.l.b16 %v810
  %v2791 = vunpack.c.l.b16 %v811
  %v2792 = vunpack.c.l.b16 %v812
  %v2793 = vunpack.c.l.b16 %v813
  %v2794 = vunpack.c.l.b16 %v814
  %v2795 = vunpack.c.l.b16 %v815
  %v2796 = vunpack.c.l.b16 %v816
  %v2797 = vunpack.c.l.b16 %v817
  %v2798 = vunpack.c.l.b16 %v818
  %v2799 = vunpack.c.l.b16 %v819
  %v2800 = vunpack.c.l.b16 %v820
  %v2801 = vunpack.c.l.b16 %v821
  %v2802 = vunpack.c.l.b16 %v822
  %v2803 = vunpack.c.l.b16 %v823
  %v2804 = vunpack.c.l.b16 %v824
  %v2805 = vunpack.c.l.b16 %v825
  %v2806 = vunpack.c.l.b16 %v826
  %v2807 = vunpack.c.l.b16 %v827
  %v2808 = vunpack.c.l.b16 %v828
  %v2809 = vunpack.c.l.b16 %v829
  %v2810 = vpack.c.b16 %v2011, %v2010
  %v2811 = vpack.c.b16 %v2013, %v2012
  %v2812 = vpack.c.b16 %v2015, %v2014
  %v2813 = vpack.c.b16 %v2017, %v2016
  %v2814 = vpack.c.b16 %v2019, %v2018
  %v2815 = vpack.c.b16 %v2021, %v2020
  %v2816 = vpack.c.b16 %v2023, %v2022
  %v2817 = vpack.c.b16 %v2025, %v2024
  %v2818 = vpack.c.b16 %v2027, %v2026
  %v2819 = vpack.c.b16 %v2029, %v2028
  %v2820 = vpack.c.b16 %v2031, %v2030
  %v2821 = vpack.c.b16 %v2033, %v2032
  %v2822 = vpack.c.b16 %v2035, %v2034
  %v2823 = vpack.c.b16 %v2037, %v2036
  %v2824 = vpack.c.b16 %v2039, %v2038
  %v2825 = vpack.c.b16 %v2041, %v2040
  %v2826 = vpack.c.b16 %v2043, %v2042
  %v2827 = vpack.c.b16 %v2045, %v2044
  %v2828 = vpack.c.b16 %v2047, %v2046
  %v2829 = vpack.c.b16 %v2049, %v2048
  %v2830 = vpack.c.b16 %v2051, %v2050
  %v2831 = vpack.c.b16 %v2053, %v2052
  %v2832 = vpack.c.b16 %v2055, %v2054
  %v2833 = vpack.c.b16 %v2057, %v2056
  %v2834 = vpack.c.b16 %v2059, %v2058
  %v2835 = vpack.c.b16 %v2061, %v2060
  %v2836 = vpack.c.b16 %v2063, %v2062
  %v2837 = vpack.c.b16 %v2065, %v2064
  %v2838 = vpack.c.b16 %v2067, %v2066
  %v2839 = vpack.c.b16 %v2069, %v2068
  %v2840 = vpack.c.b16 %v2071, %v2070
  %v2841 = vpack.c.b16 %v2073, %v2072
  %v2842 = vpack.c.b16 %v2075, %v2074
  %v2843 = vpack.c.b16 %v2077, %v2076
  %v2844 = vpack.c.b16 %v2079, %v2078
  %v2845 = vpack.c.b16 %v2081, %v2080
  %v2846 = vpack.c.b16 %v2083, %v2082
  %v2847 = vpack.c.b16 %v2085, %v2084
  %v2848 = vpack.c.b16 %v2087, %v2086
  %v2849 = vpack.c.b16 %v2089, %v2088
  %v2850 = vpack.c.b16 %v2091, %v2090
  %v2851 = vpack.c.b16 %v2093, %v2092
  %v2852 = vpack.c.b16 %v2095, %v2094
  %v2853 = vpack.c.b16 %v2097, %v2096
  %v2854 = vpack.c.b16 %v2099, %v2098
  %v2855 = vpack.c.b16 %v2101, %v2100
  %v2856 = vpack.c.b16 %v2103, %v2102
  %v2857 = vpack.c.b16 %v2105, %v2104
  %v2858 = vpack.c.b16 %v2107, %v2106
  %v2859 = vpack.c.b16 %v2109, %v2108
  %v2860 = vpack.c.b16 %v2111, %v2110
  %v2861 = vpack.c.b16 %v2113, %v2112
  %v2862 = vpack.c.b16 %v2115, %v2114
  %v2863 = vpack.c.b16 %v2117, %v2116
  %v2864 = vpack.c.b16 %v2119, %v2118
  %v2865 = vpack.c.b16 %v2121, %v2120
  %v2866 = vpack.c.b16 %v2123, %v2122
  %v2867 = vpack.c.b16 %v2125, %v2124
  %v2868 = vpack.c.b16 %v2127, %v2126
  %v2869 = vpack.c.b16 %v2129, %v2128
  %v2870 = vpack.c.b16 %v2131, %v2130
  %v2871 = vpack.c.b16 %v2133, %v2132
  %v2872 = vpack.c.b16 %v2135, %v2134
  %v2873 = vpack.c.b16 %v2137, %v2136
  %v2874 = vpack.c.b16 %v2139, %v2138
  %v2875 = vpack.c.b16 %v2141, %v2140
  %v2876 = vpack.c.b16 %v2143, %v2142
  %v2877 = vpack.c.b16 %v2145, %v2144
  %v2878 = vpack.c.b16 %v2147, %v2146
  %v2879 = vpack.c.b16 %v2149, %v2148
  %v2880 = vpack.c.b16 %v2151, %v2150
  %v2881 = vpack.c.b16 %v2153, %v2152
  %v2882 = vpack.c.b16 %v2155, %v2154
  %v2883 = vpack.c.b16 %v2157, %v2156
  %v2884 = vpack.c.b16 %v2159, %v2158
  %v2885 = vpack.c.b16 %v2161, %v2160
  %v2886 = vpack.c.b16 %v2163, %v2162
  %v2887 = vpack.c.b16 %v2165, %v2164
  %v2888 = vpack.c.b16 %v2167, %v2166
  %v2889 = vpack.c.b16 %v2169, %v2168
  %v2890 = vpack.c.b16 %v2171, %v2170
  %v2891 = vpack.c.b16 %v2173, %v2172
  %v2892 = vpack.c.b16 %v2175, %v2174
  %v2893 = vpack.c.b16 %v2177, %v2176
  %v2894 = vpack.c.b16 %v2179, %v2178
  %v2895 = vpack.c.b16 %v2181, %v2180
  %v2896 = vpack.c.b16 %v2183, %v2182
  %v2897 = vpack.c.b16 %v2185, %v2184
  %v2898 = vpack.c.b16 %v2187, %v2186
  %v2899 = vpack.c.b16 %v2189, %v2188
  %v2900 = vpack.c.b16 %v2191, %v2190
  %v2901 = vpack.c.b16 %v2193, %v2192
  %v2902 = vpack.c.b16 %v2195, %v2194
  %v2903 = vpack.c.b16 %v2197, %v2196
  %v2904 = vpack.c.b16 %v2199, %v2198
  %v2905 = vpack.c.b16 %v2201, %v2200
  %v2906 = vpack.c.b16 %v2203, %v2202
  %v2907 = vpack.c.b16 %v2205, %v2204
  %v2908 = vpack.c.b16 %v2207, %v2206
  %v2909 = vpack.c.b16 %v2209, %v2208
  %v2910 = vpack.c.b16 %v2211, %v2210
  %v2911 = vpack.c.b16 %v2213, %v2212
  %v2912 = vpack.c.b16 %v2215, %v2214
  %v2913 = vpack.c.b16 %v2217, %v2216
  %v2914 = vpack.c.b16 %v2219, %v2218
  %v2915 = vpack.c.b16 %v2221, %v2220
  %v2916 = vpack.c.b16 %v2223, %v2222
  %v2917 = vpack.c.b16 %v2225, %v2224
  %v2918 = vpack.c.b16 %v2227, %v2226
  %v2919 = vpack.c.b16 %v2229, %v2228
  %v2920 = vpack.c.b16 %v2231, %v2230
  %v2921 = vpack.c.b16 %v2233, %v2232
  %v2922 = vpack.c.b16 %v2235, %v2234
  %v2923 = vpack.c.b16 %v2237, %v2236
  %v2924 = vpack.c.b16 %v2239, %v2238
  %v2925 = vpack.c.b16 %v2241, %v2240
  %v2926 = vpack.c.b16 %v2243, %v2242
  %v2927 = vpack.c.b16 %v2245, %v2244
  %v2928 = vpack.c.b16 %v2247, %v2246
  %v2929 = vpack.c.b16 %v2249, %v2248
  %v2930 = vpack.c.b16 %v2251, %v2250
  %v2931 = vpack.c.b16 %v2253, %v2252
  %v2932 = vpack.c.b16 %v2255, %v2254
  %v2933 = vpack.c.b16 %v2257, %v2256
  %v2934 = vpack.c.b16 %v2259, %v2258
  %v2935 = vpack.c.b16 %v2261, %v2260
  %v2936 = vpack.c.b16 %v2263, %v2262
  %v2937 = vpack.c.b16 %v2265, %v2264
  %v2938 = vpack.c.b16 %v2267, %v2266
  %v2939 = vpack.c.b16 %v2269, %v2268
  %v2940 = vpack.c.b16 %v2271, %v2270
  %v2941 = vpack.c.b16 %v2273, %v2272
  %v2942 = vpack.c.b16 %v2275, %v2274
  %v2943 = vpack.c.b16 %v2277, %v2276
  %v2944 = vpack.c.b16 %v2279, %v2278
  %v2945 = vpack.c.b16 %v2281, %v2280
  %v2946 = vpack.c.b16 %v2283, %v2282
  %v2947 = vpack.c.b16 %v2285, %v2284
  %v2948 = vpack.c.b16 %v2287, %v2286
  %v2949 = vpack.c.b16 %v2289, %v2288
  %v2950 = vpack.c.b16 %v2291, %v2290
  %v2951 = vpack.c.b16 %v2293, %v2292
  %v2952 = vpack.c.b16 %v2295, %v2294
  %v2953 = vpack.c.b16 %v2297, %v2296
  %v2954 = vpack.c.b16 %v2299, %v2298
  %v2955 = vpack.c.b16 %v2301, %v2300
  %v2956 = vpack.c.b16 %v2303, %v2302
  %v2957 = vpack.c.b16 %v2305, %v2304
  %v2958 = vpack.c.b16 %v2307, %v2306
  %v2959 = vpack.c.b16 %v2309, %v2308
  %v2960 = vpack.c.b16 %v2311, %v2310
  %v2961 = vpack.c.b16 %v2313, %v2312
  %v2962 = vpack.c.b16 %v2315, %v2314
  %v2963 = vpack.c.b16 %v2317, %v2316
  %v2964 = vpack.c.b16 %v2319, %v2318
  %v2965 = vpack.c.b16 %v2321, %v2320
  %v2966 = vpack.c.b16 %v2323, %v2322
  %v2967 = vpack.c.b16 %v2325, %v2324
  %v2968 = vpack.c.b16 %v2327, %v2326
  %v2969 = vpack.c.b16 %v2329, %v2328
  %v2970 = vpack.c.b16 %v2331, %v2330
  %v2971 = vpack.c.b16 %v2333, %v2332
  %v2972 = vpack.c.b16 %v2335, %v2334
  %v2973 = vpack.c.b16 %v2337, %v2336
  %v2974 = vpack.c.b16 %v2339, %v2338
  %v2975 = vpack.c.b16 %v2341, %v2340
  %v2976 = vpack.c.b16 %v2343, %v2342
  %v2977 = vpack.c.b16 %v2345, %v2344
  %v2978 = vpack.c.b16 %v2347, %v2346
  %v2979 = vpack.c.b16 %v2349, %v2348
  %v2980 = vpack.c.b16 %v2351, %v2350
  %v2981 = vpack.c.b16 %v2353, %v2352
  %v2982 = vpack.c.b16 %v2355, %v2354
  %v2983 = vpack.c.b16 %v2357, %v2356
  %v2984 = vpack.c.b16 %v2359, %v2358
  %v2985 = vpack.c.b16 %v2361, %v2360
  %v2986 = vpack.c.b16 %v2363, %v2362
  %v2987 = vpack.c.b16 %v2365, %v2364
  %v2988 = vpack.c.b16 %v2367, %v2366
  %v2989 = vpack.c.b16 %v2369, %v2368
  %v2990 = vpack.c.b16 %v2371, %v2370
  %v2991 = vpack.c.b16 %v2373, %v2372
  %v2992 = vpack.c.b16 %v2375, %v2374
  %v2993 = vpack.c.b16 %v2377, %v2376
  %v2994 = vpack.c.b16 %v2379, %v2378
  %v2995 = vpack.c.b16 %v2381, %v2380
  %v2996 = vpack.c.b16 %v2383, %v2382
  %v2997 = vpack.c.b16 %v2385, %v2384
  %v2998 = vpack.c.b16 %v2387, %v2386
  %v2999 = vpack.c.b16 %v2389, %v2388
  %v3000 = vpack.c.b16 %v2391, %v2390
  %v3001 = vpack.c.b16 %v2393, %v2392
  %v3002 = vpack.c.b16 %v2395, %v2394
  %v3003 = vpack.c.b16 %v2397, %v2396
  %v3004 = vpack.c.b16 %v2399, %v2398
  %v3005 = vpack.c.b16 %v2401, %v2400
  %v3006 = vpack.c.b16 %v2403, %v2402
  %v3007 = vpack.c.b16 %v2405, %v2404
  %v3008 = vpack.c.b16 %v2407, %v2406
  %v3009 = vpack.c.b16 %v2409, %v2408
  %v3010 = vpack.c.b16 %v2411, %v2410
  %v3011 = vpack.c.b16 %v2413, %v2412
  %v3012 = vpack.c.b16 %v2415, %v2414
  %v3013 = vpack.c.b16 %v2417, %v2416
  %v3014 = vpack.c.b16 %v2419, %v2418
  %v3015 = vpack.c.b16 %v2421, %v2420
  %v3016 = vpack.c.b16 %v2423, %v2422
  %v3017 = vpack.c.b16 %v2425, %v2424
  %v3018 = vpack.c.b16 %v2427, %v2426
  %v3019 = vpack.c.b16 %v2429, %v2428
  %v3020 = vpack.c.b16 %v2431, %v2430
  %v3021 = vpack.c.b16 %v2433, %v2432
  %v3022 = vpack.c.b16 %v2435, %v2434
  %v3023 = vpack.c.b16 %v2437, %v2436
  %v3024 = vpack.c.b16 %v2439, %v2438
  %v3025 = vpack.c.b16 %v2441, %v2440
  %v3026 = vpack.c.b16 %v2443, %v2442
  %v3027 = vpack.c.b16 %v2445, %v2444
  %v3028 = vpack.c.b16 %v2447, %v2446
  %v3029 = vpack.c.b16 %v2449, %v2448
  %v3030 = vpack.c.b16 %v2451, %v2450
  %v3031 = vpack.c.b16 %v2453, %v2452
  %v3032 = vpack.c.b16 %v2455, %v2454
  %v3033 = vpack.c.b16 %v2457, %v2456
  %v3034 = vpack.c.b16 %v2459, %v2458
  %v3035 = vpack.c.b16 %v2461, %v2460
  %v3036 = vpack.c.b16 %v2463, %v2462
  %v3037 = vpack.c.b16 %v2465, %v2464
  %v3038 = vpack.c.b16 %v2467, %v2466
  %v3039 = vpack.c.b16 %v2469, %v2468
  %v3040 = vpack.c.b16 %v2471, %v2470
  %v3041 = vpack.c.b16 %v2473, %v2472
  %v3042 = vpack.c.b16 %v2475, %v2474
  %v3043 = vpack.c.b16 %v2477, %v2476
  %v3044 = vpack.c.b16 %v2479, %v2478
  %v3045 = vpack.c.b16 %v2481, %v2480
  %v3046 = vpack.c.b16 %v2483, %v2482
  %v3047 = vpack.c.b16 %v2485, %v2484
  %v3048 = vpack.c.b16 %v2487, %v2486
  %v3049 = vpack.c.b16 %v2489, %v2488
  %v3050 = vpack.c.b16 %v2491, %v2490
  %v3051 = vpack.c.b16 %v2493, %v2492
  %v3052 = vpack.c.b16 %v2495, %v2494
  %v3053 = vpack.c.b16 %v2497, %v2496
  %v3054 = vpack.c.b16 %v2499, %v2498
  %v3055 = vpack.c.b16 %v2501, %v2500
  %v3056 = vpack.c.b16 %v2503, %v2502
  %v3057 = vpack.c.b16 %v2505, %v2504
  %v3058 = vpack.c.b16 %v2507, %v2506
  %v3059 = vpack.c.b16 %v2509, %v2508
  %v3060 = vpack.c.b16 %v2511, %v2510
  %v3061 = vpack.c.b16 %v2513, %v2512
  %v3062 = vpack.c.b16 %v2515, %v2514
  %v3063 = vpack.c.b16 %v2517, %v2516
  %v3064 = vpack.c.b16 %v2519, %v2518
  %v3065 = vpack.c.b16 %v2521, %v2520
  %v3066 = vpack.c.b16 %v2523, %v2522
  %v3067 = vpack.c.b16 %v2525, %v2524
  %v3068 = vpack.c.b16 %v2527, %v2526
  %v3069 = vpack.c.b16 %v2529, %v2528
  %v3070 = vpack.c.b16 %v2531, %v2530
  %v3071 = vpack.c.b16 %v2533, %v2532
  %v3072 = vpack.c.b16 %v2535, %v2534
  %v3073 = vpack.c.b16 %v2537, %v2536
  %v3074 = vpack.c.b16 %v2539, %v2538
  %v3075 = vpack.c.b16 %v2541, %v2540
  %v3076 = vpack.c.b16 %v2543, %v2542
  %v3077 = vpack.c.b16 %v2545, %v2544
  %v3078 = vpack.c.b16 %v2547, %v2546
  %v3079 = vpack.c.b16 %v2549, %v2548
  %v3080 = vpack.c.b16 %v2551, %v2550
  %v3081 = vpack.c.b16 %v2553, %v2552
  %v3082 = vpack.c.b16 %v2555, %v2554
  %v3083 = vpack.c.b16 %v2557, %v2556
  %v3084 = vpack.c.b16 %v2559, %v2558
  %v3085 = vpack.c.b16 %v2561, %v2560
  %v3086 = vpack.c.b16 %v2563, %v2562
  %v3087 = vpack.c.b16 %v2565, %v2564
  %v3088 = vpack.c.b16 %v2567, %v2566
  %v3089 = vpack.c.b16 %v2569, %v2568
  %v3090 = vpack.c.b16 %v2571, %v2570
  %v3091 = vpack.c.b16 %v2573, %v2572
  %v3092 = vpack.c.b16 %v2575, %v2574
  %v3093 = vpack.c.b16 %v2577, %v2576
  %v3094 = vpack.c.b16 %v2579, %v2578
  %v3095 = vpack.c.b16 %v2581, %v2580
  %v3096 = vpack.c.b16 %v2583, %v2582
  %v3097 = vpack.c.b16 %v2585, %v2584
  %v3098 = vpack.c.b16 %v2587, %v2586
  %v3099 = vpack.c.b16 %v2589, %v2588
  %v3100 = vpack.c.b16 %v2591, %v2590
  %v3101 = vpack.c.b16 %v2593, %v2592
  %v3102 = vpack.c.b16 %v2595, %v2594
  %v3103 = vpack.c.b16 %v2597, %v2596
  %v3104 = vpack.c.b16 %v2599, %v2598
  %v3105 = vpack.c.b16 %v2601, %v2600
  %v3106 = vpack.c.b16 %v2603, %v2602
  %v3107 = vpack.c.b16 %v2605, %v2604
  %v3108 = vpack.c.b16 %v2607, %v2606
  %v3109 = vpack.c.b16 %v2609, %v2608
  %v3110 = vpack.c.b16 %v2611, %v2610
  %v3111 = vpack.c.b16 %v2613, %v2612
  %v3112 = vpack.c.b16 %v2615, %v2614
  %v3113 = vpack.c.b16 %v2617, %v2616
  %v3114 = vpack.c.b16 %v2619, %v2618
  %v3115 = vpack.c.b16 %v2621, %v2620
  %v3116 = vpack.c.b16 %v2623, %v2622
  %v3117 = vpack.c.b16 %v2625, %v2624
  %v3118 = vpack.c.b16 %v2627, %v2626
  %v3119 = vpack.c.b16 %v2629, %v2628
  %v3120 = vpack.c.b16 %v2631, %v2630
  %v3121 = vpack.c.b16 %v2633, %v2632
  %v3122 = vpack.c.b16 %v2635, %v2634
  %v3123 = vpack.c.b16 %v2637, %v2636
  %v3124 = vpack.c.b16 %v2639, %v2638
  %v3125 = vpack.c.b16 %v2641, %v2640
  %v3126 = vpack.c.b16 %v2643, %v2642
  %v3127 = vpack.c.b16 %v2645, %v2644
  %v3128 = vpack.c.b16 %v2647, %v2646
  %v3129 = vpack.c.b16 %v2649, %v2648
  %v3130 = vpack.c.b16 %v2651, %v2650
  %v3131 = vpack.c.b16 %v2653, %v2652
  %v3132 = vpack.c.b16 %v2655, %v2654
  %v3133 = vpack.c.b16 %v2657, %v2656
  %v3134 = vpack.c.b16 %v2659, %v2658
  %v3135 = vpack.c.b16 %v2661, %v2660
  %v3136 = vpack.c.b16 %v2663, %v2662
  %v3137 = vpack.c.b16 %v2665, %v2664
  %v3138 = vpack.c.b16 %v2667, %v2666
  %v3139 = vpack.c.b16 %v2669, %v2668
  %v3140 = vpack.c.b16 %v2671, %v2670
  %v3141 = vpack.c.b16 %v2673, %v2672
  %v3142 = vpack.c.b16 %v2675, %v2674
  %v3143 = vpack.c.b16 %v2677, %v2676
  %v3144 = vpack.c.b16 %v2679, %v2678
  %v3145 = vpack.c.b16 %v2681, %v2680
  %v3146 = vpack.c.b16 %v2683, %v2682
  %v3147 = vpack.c.b16 %v2685, %v2684
  %v3148 = vpack.c.b16 %v2687, %v2686
  %v3149 = vpack.c.b16 %v2689, %v2688
  %v3150 = vpack.c.b16 %v2691, %v2690
  %v3151 = vpack.c.b16 %v2693, %v2692
  %v3152 = vpack.c.b16 %v2695, %v2694
  %v3153 = vpack.c.b16 %v2697, %v2696
  %v3154 = vpack.c.b16 %v2699, %v2698
  %v3155 = vpack.c.b16 %v2701, %v2700
  %v3156 = vpack.c.b16 %v2703, %v2702
  %v3157 = vpack.c.b16 %v2705, %v2704
  %v3158 = vpack.c.b16 %v2707, %v2706
  %v3159 = vpack.c.b16 %v2709, %v2708
  %v3160 = vpack.c.b16 %v2711, %v2710
  %v3161 = vpack.c.b16 %v2713, %v2712
  %v3162 = vpack.c.b16 %v2715, %v2714
  %v3163 = vpack.c.b16 %v2717, %v2716
  %v3164 = vpack.c.b16 %v2719, %v2718
  %v3165 = vpack.c.b16 %v2721, %v2720
  %v3166 = vpack.c.b16 %v2723, %v2722
  %v3167 = vpack.c.b16 %v2725, %v2724
  %v3168 = vpack.c.b16 %v2727, %v2726
  %v3169 = vpack.c.b16 %v2729, %v2728
  %v3170 = vpack.c.b16 %v2731, %v2730
  %v3171 = vpack.c.b16 %v2733, %v2732
  %v3172 = vpack.c.b16 %v2735, %v2734
  %v3173 = vpack.c.b16 %v2737, %v2736
  %v3174 = vpack.c.b16 %v2739, %v2738
  %v3175 = vpack.c.b16 %v2741, %v2740
  %v3176 = vpack.c.b16 %v2743, %v2742
  %v3177 = vpack.c.b16 %v2745, %v2744
  %v3178 = vpack.c.b16 %v2747, %v2746
  %v3179 = vpack.c.b16 %v2749, %v2748
  %v3180 = vpack.c.b16 %v2751, %v2750
  %v3181 = vpack.c.b16 %v2753, %v2752
  %v3182 = vpack.c.b16 %v2755, %v2754
  %v3183 = vpack.c.b16 %v2757, %v2756
  %v3184 = vpack.c.b16 %v2759, %v2758
  %v3185 = vpack.c.b16 %v2761, %v2760
  %v3186 = vpack.c.b16 %v2763, %v2762
  %v3187 = vpack.c.b16 %v2765, %v2764
  %v3188 = vpack.c.b16 %v2767, %v2766
  %v3189 = vpack.c.b16 %v2769, %v2768
  %v3190 = vpack.c.b16 %v2771, %v2770
  %v3191 = vpack.c.b16 %v2773, %v2772
  %v3192 = vpack.c.b16 %v2775, %v2774
  %v3193 = vpack.c.b16 %v2777, %v2776
  %v3194 = vpack.c.b16 %v2779, %v2778
  %v3195 = vpack.c.b16 %v2781, %v2780
  %v3196 = vpack.c.b16 %v2783, %v2782
  %v3197 = vpack.c.b16 %v2785, %v2784
  %v3198 = vpack.c.b16 %v2787, %v2786
  %v3199 = vpack.c.b16 %v2789, %v2788
  %v3200 = vpack.c.b16 %v2791, %v2790
  %v3201 = vpack.c.b16 %v2793, %v2792
  %v3202 = vpack.c.b16 %v2795, %v2794
  %v3203 = vpack.c.b16 %v2797, %v2796
  %v3204 = vpack.c.b16 %v2799, %v2798
  %v3205 = vpack.c.b16 %v2801, %v2800
  %v3206 = vpack.c.b16 %v2803, %v2802
  %v3207 = vpack.c.b16 %v2805, %v2804
  %v3208 = vpack.c.b16 %v2807, %v2806
  %v3209 = vpack.c.b16 %v2809, %v2808
  %3610 = vmatprep.subr.bf16.mxu0 0
  %3611 = vmatpush1.bf16.msra.mxu0 %v2810
  %3612 = vmatprep.subr.bf16.mxu0 0
  %3613 = vmatpush1.bf16.msra.mxu0 %v2811
  %3614 = vmatprep.subr.bf16.mxu0 0
  %3615 = vmatpush1.bf16.msra.mxu0 %v2812
  %3616 = vmatprep.subr.bf16.mxu0 0
  %3617 = vmatpush1.bf16.msra.mxu0 %v2813
  %3618 = vmatprep.subr.bf16.mxu0 0
  %3619 = vmatpush1.bf16.msra.mxu0 %v2814
  %3620 = vmatprep.subr.bf16.mxu0 0
  %3621 = vmatpush1.bf16.msra.mxu0 %v2815
  %3622 = vmatprep.subr.bf16.mxu0 0
  %3623 = vmatpush1.bf16.msra.mxu0 %v2816
  %3624 = vmatprep.subr.bf16.mxu0 0
  %3625 = vmatpush1.bf16.msra.mxu0 %v2817
  %3626 = vmatprep.subr.bf16.mxu0 0
  %3627 = vmatpush1.bf16.msra.mxu0 %v2818
  %3628 = vmatprep.subr.bf16.mxu0 0
  %3629 = vmatpush1.bf16.msra.mxu0 %v2819
  %3630 = vmatprep.subr.bf16.mxu0 0
  %3631 = vmatpush1.bf16.msra.mxu0 %v2820
  %3632 = vmatprep.subr.bf16.mxu0 0
  %3633 = vmatpush1.bf16.msra.mxu0 %v2821
  %3634 = vmatprep.subr.bf16.mxu0 0
  %3635 = vmatpush1.bf16.msra.mxu0 %v2822
  %3636 = vmatprep.subr.bf16.mxu0 0
  %3637 = vmatpush1.bf16.msra.mxu0 %v2823
  %3638 = vmatprep.subr.bf16.mxu0 0
  %3639 = vmatpush1.bf16.msra.mxu0 %v2824
  %3640 = vmatprep.subr.bf16.mxu0 0
  %3641 = vmatpush1.bf16.msra.mxu0 %v2825
  %3642 = vmatprep.mubr.bf16.mxu0 %v881
  %3643 = vmatmul.mubr.bf16.gmra.mrb[0].mxu0 %v867
  %v3644 = vpop.f32.mrb[0].mxu0
  %v3645 = vadd.f32 %v835, %v3644
  %v3646 = vpop.f32.mrb[0].mxu0
  %v3647 = vpop.f32.mrb[0].mxu0
  %v3648 = vpop.f32.mrb[0].mxu0
  %3649 = vdwg.mxu0
  %3650 = vmatprep.subr.bf16.mxu0 0
  %3651 = vmatpush1.bf16.msra.mxu0 %v2826
  %3652 = vmatprep.subr.bf16.mxu0 0
  %3653 = vmatpush1.bf16.msra.mxu0 %v2827
  %3654 = vmatprep.subr.bf16.mxu0 0
  %3655 = vmatpush1.bf16.msra.mxu0 %v2828
  %3656 = vmatprep.subr.bf16.mxu0 0
  %3657 = vmatpush1.bf16.msra.mxu0 %v2829
  %3658 = vmatprep.subr.bf16.mxu0 0
  %3659 = vmatpush1.bf16.msra.mxu0 %v2830
  %3660 = vmatprep.subr.bf16.mxu0 0
  %3661 = vmatpush1.bf16.msra.mxu0 %v2831
  %3662 = vmatprep.subr.bf16.mxu0 0
  %3663 = vmatpush1.bf16.msra.mxu0 %v2832
  %3664 = vmatprep.subr.bf16.mxu0 0
  %3665 = vmatpush1.bf16.msra.mxu0 %v2833
  %3666 = vmatprep.subr.bf16.mxu0 0
  %3667 = vmatpush1.bf16.msra.mxu0 %v2834
  %3668 = vmatprep.subr.bf16.mxu0 0
  %3669 = vmatpush1.bf16.msra.mxu0 %v2835
  %3670 = vmatprep.subr.bf16.mxu0 0
  %3671 = vmatpush1.bf16.msra.mxu0 %v2836
  %3672 = vmatprep.subr.bf16.mxu0 0
  %3673 = vmatpush1.bf16.msra.mxu0 %v2837
  %3674 = vmatprep.subr.bf16.mxu0 0
  %3675 = vmatpush1.bf16.msra.mxu0 %v2838
  %3676 = vmatprep.subr.bf16.mxu0 0
  %3677 = vmatpush1.bf16.msra.mxu0 %v2839
  %3678 = vmatprep.subr.bf16.mxu0 0
  %3679 = vmatpush1.bf16.msra.mxu0 %v2840
  %3680 = vmatprep.subr.bf16.mxu0 0
  %3681 = vmatpush1.bf16.msra.mxu0 %v2841
  %3682 = vmatprep.mubr.bf16.mxu0 %v891
  %3683 = vmatmul.mubr.bf16.gmra.mrb[0].mxu0 %v889
  %v3684 = vpop.f32.mrb[0].mxu0
  %v3685 = vadd.f32 %v3645, %v3684
  %v3686 = vpop.f32.mrb[0].mxu0
  %v3687 = vpop.f32.mrb[0].mxu0
  %v3688 = vpop.f32.mrb[0].mxu0
  %3689 = vdwg.mxu0
  %3690 = vmatprep.subr.bf16.mxu0 0
  %3691 = vmatpush1.bf16.msra.mxu0 %v2842
  %3692 = vmatprep.subr.bf16.mxu0 0
  %3693 = vmatpush1.bf16.msra.mxu0 %v2843
  %3694 = vmatprep.subr.bf16.mxu0 0
  %3695 = vmatpush1.bf16.msra.mxu0 %v2844
  %3696 = vmatprep.subr.bf16.mxu0 0
  %3697 = vmatpush1.bf16.msra.mxu0 %v2845
  %3698 = vmatprep.subr.bf16.mxu0 0
  %3699 = vmatpush1.bf16.msra.mxu0 %v2846
  %3700 = vmatprep.subr.bf16.mxu0 0
  %3701 = vmatpush1.bf16.msra.mxu0 %v2847
  %3702 = vmatprep.subr.bf16.mxu0 0
  %3703 = vmatpush1.bf16.msra.mxu0 %v2848
  %3704 = vmatprep.subr.bf16.mxu0 0
  %3705 = vmatpush1.bf16.msra.mxu0 %v2849
  %3706 = vmatprep.subr.bf16.mxu0 0
  %3707 = vmatpush1.bf16.msra.mxu0 %v2850
  %3708 = vmatprep.subr.bf16.mxu0 0
  %3709 = vmatpush1.bf16.msra.mxu0 %v2851
  %3710 = vmatprep.subr.bf16.mxu0 0
  %3711 = vmatpush1.bf16.msra.mxu0 %v2852
  %3712 = vmatprep.subr.bf16.mxu0 0
  %3713 = vmatpush1.bf16.msra.mxu0 %v2853
  %3714 = vmatprep.subr.bf16.mxu0 0
  %3715 = vmatpush1.bf16.msra.mxu0 %v2854
  %3716 = vmatprep.subr.bf16.mxu0 0
  %3717 = vmatpush1.bf16.msra.mxu0 %v2855
  %3718 = vmatprep.subr.bf16.mxu0 0
  %3719 = vmatpush1.bf16.msra.mxu0 %v2856
  %3720 = vmatprep.subr.bf16.mxu0 0
  %3721 = vmatpush1.bf16.msra.mxu0 %v2857
  %3722 = vmatprep.mubr.bf16.mxu0 %v888
  %3723 = vmatmul.mubr.bf16.gmra.mrb[0].mxu0 %v874
  %v3724 = vpop.f32.mrb[0].mxu0
  %v3725 = vadd.f32 %v3685, %v3724
  %v3726 = vpop.f32.mrb[0].mxu0
  %v3727 = vpop.f32.mrb[0].mxu0
  %v3728 = vpop.f32.mrb[0].mxu0
  %3729 = vdwg.mxu0
  %3730 = vmatprep.subr.bf16.mxu0 0
  %3731 = vmatpush1.bf16.msra.mxu0 %v2858
  %3732 = vmatprep.subr.bf16.mxu0 0
  %3733 = vmatpush1.bf16.msra.mxu0 %v2859
  %3734 = vmatprep.subr.bf16.mxu0 0
  %3735 = vmatpush1.bf16.msra.mxu0 %v2860
  %3736 = vmatprep.subr.bf16.mxu0 0
  %3737 = vmatpush1.bf16.msra.mxu0 %v2861
  %3738 = vmatprep.subr.bf16.mxu0 0
  %3739 = vmatpush1.bf16.msra.mxu0 %v2862
  %3740 = vmatprep.subr.bf16.mxu0 0
  %3741 = vmatpush1.bf16.msra.mxu0 %v2863
  %3742 = vmatprep.subr.bf16.mxu0 0
  %3743 = vmatpush1.bf16.msra.mxu0 %v2864
  %3744 = vmatprep.subr.bf16.mxu0 0
  %3745 = vmatpush1.bf16.msra.mxu0 %v2865
  %3746 = vmatprep.subr.bf16.mxu0 0
  %3747 = vmatpush1.bf16.msra.mxu0 %v2866
  %3748 = vmatprep.subr.bf16.mxu0 0
  %3749 = vmatpush1.bf16.msra.mxu0 %v2867
  %3750 = vmatprep.subr.bf16.mxu0 0
  %3751 = vmatpush1.bf16.msra.mxu0 %v2868
  %3752 = vmatprep.subr.bf16.mxu0 0
  %3753 = vmatpush1.bf16.msra.mxu0 %v2869
  %3754 = vmatprep.subr.bf16.mxu0 0
  %3755 = vmatpush1.bf16.msra.mxu0 %v2870
  %3756 = vmatprep.subr.bf16.mxu0 0
  %3757 = vmatpush1.bf16.msra.mxu0 %v2871
  %3758 = vmatprep.subr.bf16.mxu0 0
  %3759 = vmatpush1.bf16.msra.mxu0 %v2872
  %3760 = vmatprep.subr.bf16.mxu0 0
  %3761 = vmatpush1.bf16.msra.mxu0 %v2873
  %3762 = vmatprep.mubr.bf16.mxu0 %v892
  %3763 = vmatmul.mubr.bf16.gmra.mrb[0].mxu0 %v890
  %v3764 = vpop.f32.mrb[0].mxu0
  %v3765 = vadd.f32 %v3725, %v3764
  %v3766 = vpop.f32.mrb[0].mxu0
  %v3767 = vpop.f32.mrb[0].mxu0
  %v3768 = vpop.f32.mrb[0].mxu0
  %3769 = vdwg.mxu0
  %3770 = vmatprep.subr.bf16.mxu0 0
  %3771 = vmatpush1.bf16.msra.mxu0 %v2874
  %3772 = vmatprep.subr.bf16.mxu0 0
  %3773 = vmatpush1.bf16.msra.mxu0 %v2875
  %3774 = vmatprep.subr.bf16.mxu0 0
  %3775 = vmatpush1.bf16.msra.mxu0 %v2876
  %3776 = vmatprep.subr.bf16.mxu0 0
  %3777 = vmatpush1.bf16.msra.mxu0 %v2877
  %3778 = vmatprep.subr.bf16.mxu0 0
  %3779 = vmatpush1.bf16.msra.mxu0 %v2878
  %3780 = vmatprep.subr.bf16.mxu0 0
  %3781 = vmatpush1.bf16.msra.mxu0 %v2879
  %3782 = vmatprep.subr.bf16.mxu0 0
  %3783 = vmatpush1.bf16.msra.mxu0 %v2880
  %3784 = vmatprep.subr.bf16.mxu0 0
  %3785 = vmatpush1.bf16.msra.mxu0 %v2881
  %3786 = vmatprep.subr.bf16.mxu0 0
  %3787 = vmatpush1.bf16.msra.mxu0 %v2882
  %3788 = vmatprep.subr.bf16.mxu0 0
  %3789 = vmatpush1.bf16.msra.mxu0 %v2883
  %3790 = vmatprep.subr.bf16.mxu0 0
  %3791 = vmatpush1.bf16.msra.mxu0 %v2884
  %3792 = vmatprep.subr.bf16.mxu0 0
  %3793 = vmatpush1.bf16.msra.mxu0 %v2885
  %3794 = vmatprep.subr.bf16.mxu0 0
  %3795 = vmatpush1.bf16.msra.mxu0 %v2886
  %3796 = vmatprep.subr.bf16.mxu0 0
  %3797 = vmatpush1.bf16.msra.mxu0 %v2887
  %3798 = vmatprep.subr.bf16.mxu0 0
  %3799 = vmatpush1.bf16.msra.mxu0 %v2888
  %3800 = vmatprep.subr.bf16.mxu0 0
  %3801 = vmatpush1.bf16.msra.mxu0 %v2889
  %3802 = vmatprep.mubr.bf16.mxu0 %v930
  %3803 = vmatmul.mubr.bf16.gmra.mrb[0].mxu0 %v916
  %v3804 = vpop.f32.mrb[0].mxu0
  %v3805 = vadd.f32 %v3765, %v3804
  %v3806 = vpop.f32.mrb[0].mxu0
  %v3807 = vpop.f32.mrb[0].mxu0
  %v3808 = vpop.f32.mrb[0].mxu0
  %3809 = vdwg.mxu0
  %3810 = vmatprep.subr.bf16.mxu0 0
  %3811 = vmatpush1.bf16.msra.mxu0 %v2890
  %3812 = vmatprep.subr.bf16.mxu0 0
  %3813 = vmatpush1.bf16.msra.mxu0 %v2891
  %3814 = vmatprep.subr.bf16.mxu0 0
  %3815 = vmatpush1.bf16.msra.mxu0 %v2892
  %3816 = vmatprep.subr.bf16.mxu0 0
  %3817 = vmatpush1.bf16.msra.mxu0 %v2893
  %3818 = vmatprep.subr.bf16.mxu0 0
  %3819 = vmatpush1.bf16.msra.mxu0 %v2894
  %3820 = vmatprep.subr.bf16.mxu0 0
  %3821 = vmatpush1.bf16.msra.mxu0 %v2895
  %3822 = vmatprep.subr.bf16.mxu0 0
  %3823 = vmatpush1.bf16.msra.mxu0 %v2896
  %3824 = vmatprep.subr.bf16.mxu0 0
  %3825 = vmatpush1.bf16.msra.mxu0 %v2897
  %3826 = vmatprep.subr.bf16.mxu0 0
  %3827 = vmatpush1.bf16.msra.mxu0 %v2898
  %3828 = vmatprep.subr.bf16.mxu0 0
  %3829 = vmatpush1.bf16.msra.mxu0 %v2899
  %3830 = vmatprep.subr.bf16.mxu0 0
  %3831 = vmatpush1.bf16.msra.mxu0 %v2900
  %3832 = vmatprep.subr.bf16.mxu0 0
  %3833 = vmatpush1.bf16.msra.mxu0 %v2901
  %3834 = vmatprep.subr.bf16.mxu0 0
  %3835 = vmatpush1.bf16.msra.mxu0 %v2902
  %3836 = vmatprep.subr.bf16.mxu0 0
  %3837 = vmatpush1.bf16.msra.mxu0 %v2903
  %3838 = vmatprep.subr.bf16.mxu0 0
  %3839 = vmatpush1.bf16.msra.mxu0 %v2904
  %3840 = vmatprep.subr.bf16.mxu0 0
  %3841 = vmatpush1.bf16.msra.mxu0 %v2905
  %3842 = vmatprep.mubr.bf16.mxu0 %v940
  %3843 = vmatmul.mubr.bf16.gmra.mrb[0].mxu0 %v938
  %v3844 = vpop.f32.mrb[0].mxu0
  %v3845 = vadd.f32 %v3805, %v3844
  %v3846 = vpop.f32.mrb[0].mxu0
  %v3847 = vpop.f32.mrb[0].mxu0
  %v3848 = vpop.f32.mrb[0].mxu0
  %3849 = vdwg.mxu0
  %3850 = vmatprep.subr.bf16.mxu0 0
  %3851 = vmatpush1.bf16.msra.mxu0 %v2906
  %3852 = vmatprep.subr.bf16.mxu0 0
  %3853 = vmatpush1.bf16.msra.mxu0 %v2907
  %3854 = vmatprep.subr.bf16.mxu0 0
  %3855 = vmatpush1.bf16.msra.mxu0 %v2908
  %3856 = vmatprep.subr.bf16.mxu0 0
  %3857 = vmatpush1.bf16.msra.mxu0 %v2909
  %3858 = vmatprep.subr.bf16.mxu0 0
  %3859 = vmatpush1.bf16.msra.mxu0 %v2910
  %3860 = vmatprep.subr.bf16.mxu0 0
  %3861 = vmatpush1.bf16.msra.mxu0 %v2911
  %3862 = vmatprep.subr.bf16.mxu0 0
  %3863 = vmatpush1.bf16.msra.mxu0 %v2912
  %3864 = vmatprep.subr.bf16.mxu0 0
  %3865 = vmatpush1.bf16.msra.mxu0 %v2913
  %3866 = vmatprep.subr.bf16.mxu0 0
  %3867 = vmatpush1.bf16.msra.mxu0 %v2914
  %3868 = vmatprep.subr.bf16.mxu0 0
  %3869 = vmatpush1.bf16.msra.mxu0 %v2915
  %3870 = vmatprep.subr.bf16.mxu0 0
  %3871 = vmatpush1.bf16.msra.mxu0 %v2916
  %3872 = vmatprep.subr.bf16.mxu0 0
  %3873 = vmatpush1.bf16.msra.mxu0 %v2917
  %3874 = vmatprep.subr.bf16.mxu0 0
  %3875 = vmatpush1.bf16.msra.mxu0 %v2918
  %3876 = vmatprep.subr.bf16.mxu0 0
  %3877 = vmatpush1.bf16.msra.mxu0 %v2919
  %3878 = vmatprep.subr.bf16.mxu0 0
  %3879 = vmatpush1.bf16.msra.mxu0 %v2920
  %3880 = vmatprep.subr.bf16.mxu0 0
  %3881 = vmatpush1.bf16.msra.mxu0 %v2921
  %3882 = vmatprep.mubr.bf16.mxu0 %v937
  %3883 = vmatmul.mubr.bf16.gmra.mrb[0].mxu0 %v923
  %v3884 = vpop.f32.mrb[0].mxu0
  %v3885 = vadd.f32 %v3845, %v3884
  %v3886 = vpop.f32.mrb[0].mxu0
  %v3887 = vpop.f32.mrb[0].mxu0
  %v3888 = vpop.f32.mrb[0].mxu0
  %3889 = vdwg.mxu0
  %3890 = vmatprep.subr.bf16.mxu0 0
  %3891 = vmatpush1.bf16.msra.mxu0 %v2922
  %3892 = vmatprep.subr.bf16.mxu0 0
  %3893 = vmatpush1.bf16.msra.mxu0 %v2923
  %3894 = vmatprep.subr.bf16.mxu0 0
  %3895 = vmatpush1.bf16.msra.mxu0 %v2924
  %3896 = vmatprep.subr.bf16.mxu0 0
  %3897 = vmatpush1.bf16.msra.mxu0 %v2925
  %3898 = vmatprep.subr.bf16.mxu0 0
  %3899 = vmatpush1.bf16.msra.mxu0 %v2926
  %3900 = vmatprep.subr.bf16.mxu0 0
  %3901 = vmatpush1.bf16.msra.mxu0 %v2927
  %3902 = vmatprep.subr.bf16.mxu0 0
  %3903 = vmatpush1.bf16.msra.mxu0 %v2928
  %3904 = vmatprep.subr.bf16.mxu0 0
  %3905 = vmatpush1.bf16.msra.mxu0 %v2929
  %3906 = vmatprep.subr.bf16.mxu0 0
  %3907 = vmatpush1.bf16.msra.mxu0 %v2930
  %3908 = vmatprep.subr.bf16.mxu0 0
  %3909 = vmatpush1.bf16.msra.mxu0 %v2931
  %3910 = vmatprep.subr.bf16.mxu0 0
  %3911 = vmatpush1.bf16.msra.mxu0 %v2932
  %3912 = vmatprep.subr.bf16.mxu0 0
  %3913 = vmatpush1.bf16.msra.mxu0 %v2933
  %3914 = vmatprep.subr.bf16.mxu0 0
  %3915 = vmatpush1.bf16.msra.mxu0 %v2934
  %3916 = vmatprep.subr.bf16.mxu0 0
  %3917 = vmatpush1.bf16.msra.mxu0 %v2935
  %3918 = vmatprep.subr.bf16.mxu0 0
  %3919 = vmatpush1.bf16.msra.mxu0 %v2936
  %3920 = vmatprep.subr.bf16.mxu0 0
  %3921 = vmatpush1.bf16.msra.mxu0 %v2937
  %3922 = vmatprep.mubr.bf16.mxu0 %v941
  %3923 = vmatmul.mubr.bf16.gmra.mrb[0].mxu0 %v939
  %v3924 = vpop.f32.mrb[0].mxu0
  %v3925 = vadd.f32 %v3885, %v3924
  %v3926 = vpop.f32.mrb[0].mxu0
  %v3927 = vpop.f32.mrb[0].mxu0
  %v3928 = vpop.f32.mrb[0].mxu0
  %3929 = vdwg.mxu0
  %3930 = vmatprep.subr.bf16.mxu0 0
  %3931 = vmatpush1.bf16.msra.mxu0 %v2938
  %3932 = vmatprep.subr.bf16.mxu0 0
  %3933 = vmatpush1.bf16.msra.mxu0 %v2939
  %3934 = vmatprep.subr.bf16.mxu0 0
  %3935 = vmatpush1.bf16.msra.mxu0 %v2940
  %3936 = vmatprep.subr.bf16.mxu0 0
  %3937 = vmatpush1.bf16.msra.mxu0 %v2941
  %3938 = vmatprep.subr.bf16.mxu0 0
  %3939 = vmatpush1.bf16.msra.mxu0 %v2942
  %3940 = vmatprep.subr.bf16.mxu0 0
  %3941 = vmatpush1.bf16.msra.mxu0 %v2943
  %3942 = vmatprep.subr.bf16.mxu0 0
  %3943 = vmatpush1.bf16.msra.mxu0 %v2944
  %3944 = vmatprep.subr.bf16.mxu0 0
  %3945 = vmatpush1.bf16.msra.mxu0 %v2945
  %3946 = vmatprep.subr.bf16.mxu0 0
  %3947 = vmatpush1.bf16.msra.mxu0 %v2946
  %3948 = vmatprep.subr.bf16.mxu0 0
  %3949 = vmatpush1.bf16.msra.mxu0 %v2947
  %3950 = vmatprep.subr.bf16.mxu0 0
  %3951 = vmatpush1.bf16.msra.mxu0 %v2948
  %3952 = vmatprep.subr.bf16.mxu0 0
  %3953 = vmatpush1.bf16.msra.mxu0 %v2949
  %3954 = vmatprep.subr.bf16.mxu0 0
  %3955 = vmatpush1.bf16.msra.mxu0 %v2950
  %3956 = vmatprep.subr.bf16.mxu0 0
  %3957 = vmatpush1.bf16.msra.mxu0 %v2951
  %3958 = vmatprep.subr.bf16.mxu0 0
  %3959 = vmatpush1.bf16.msra.mxu0 %v2952
  %3960 = vmatprep.subr.bf16.mxu0 0
  %3961 = vmatpush1.bf16.msra.mxu0 %v2953
  %3962 = vmatprep.mubr.bf16.mxu0 %v979
  %3963 = vmatmul.mubr.bf16.gmra.mrb[0].mxu0 %v965
  %v3964 = vpop.f32.mrb[0].mxu0
  %v3965 = vadd.f32 %v3925, %v3964
  %v3966 = vpop.f32.mrb[0].mxu0
  %v3967 = vpop.f32.mrb[0].mxu0
  %v3968 = vpop.f32.mrb[0].mxu0
  %3969 = vdwg.mxu0
  %3970 = vmatprep.subr.bf16.mxu0 0
  %3971 = vmatpush1.bf16.msra.mxu0 %v2954
  %3972 = vmatprep.subr.bf16.mxu0 0
  %3973 = vmatpush1.bf16.msra.mxu0 %v2955
  %3974 = vmatprep.subr.bf16.mxu0 0
  %3975 = vmatpush1.bf16.msra.mxu0 %v2956
  %3976 = vmatprep.subr.bf16.mxu0 0
  %3977 = vmatpush1.bf16.msra.mxu0 %v2957
  %3978 = vmatprep.subr.bf16.mxu0 0
  %3979 = vmatpush1.bf16.msra.mxu0 %v2958
  %3980 = vmatprep.subr.bf16.mxu0 0
  %3981 = vmatpush1.bf16.msra.mxu0 %v2959
  %3982 = vmatprep.subr.bf16.mxu0 0
  %3983 = vmatpush1.bf16.msra.mxu0 %v2960
  %3984 = vmatprep.subr.bf16.mxu0 0
  %3985 = vmatpush1.bf16.msra.mxu0 %v2961
  %3986 = vmatprep.subr.bf16.mxu0 0
  %3987 = vmatpush1.bf16.msra.mxu0 %v2962
  %3988 = vmatprep.subr.bf16.mxu0 0
  %3989 = vmatpush1.bf16.msra.mxu0 %v2963
  %3990 = vmatprep.subr.bf16.mxu0 0
  %3991 = vmatpush1.bf16.msra.mxu0 %v2964
  %3992 = vmatprep.subr.bf16.mxu0 0
  %3993 = vmatpush1.bf16.msra.mxu0 %v2965
  %3994 = vmatprep.subr.bf16.mxu0 0
  %3995 = vmatpush1.bf16.msra.mxu0 %v2966
  %3996 = vmatprep.subr.bf16.mxu0 0
  %3997 = vmatpush1.bf16.msra.mxu0 %v2967
  %3998 = vmatprep.subr.bf16.mxu0 0
  %3999 = vmatpush1.bf16.msra.mxu0 %v2968
  %4000 = vmatprep.subr.bf16.mxu0 0
  %4001 = vmatpush1.bf16.msra.mxu0 %v2969
  %4002 = vmatprep.mubr.bf16.mxu0 %v989
  %4003 = vmatmul.mubr.bf16.gmra.mrb[0].mxu0 %v987
  %v4004 = vpop.f32.mrb[0].mxu0
  %v4005 = vadd.f32 %v3965, %v4004
  %v4006 = vpop.f32.mrb[0].mxu0
  %v4007 = vpop.f32.mrb[0].mxu0
  %v4008 = vpop.f32.mrb[0].mxu0
  %4009 = vdwg.mxu0
  %4010 = vmatprep.subr.bf16.mxu0 0
  %4011 = vmatpush1.bf16.msra.mxu0 %v2970
  %4012 = vmatprep.subr.bf16.mxu0 0
  %4013 = vmatpush1.bf16.msra.mxu0 %v2971
  %4014 = vmatprep.subr.bf16.mxu0 0
  %4015 = vmatpush1.bf16.msra.mxu0 %v2972
  %4016 = vmatprep.subr.bf16.mxu0 0
  %4017 = vmatpush1.bf16.msra.mxu0 %v2973
  %4018 = vmatprep.subr.bf16.mxu0 0
  %4019 = vmatpush1.bf16.msra.mxu0 %v2974
  %4020 = vmatprep.subr.bf16.mxu0 0
  %4021 = vmatpush1.bf16.msra.mxu0 %v2975
  %4022 = vmatprep.subr.bf16.mxu0 0
  %4023 = vmatpush1.bf16.msra.mxu0 %v2976
  %4024 = vmatprep.subr.bf16.mxu0 0
  %4025 = vmatpush1.bf16.msra.mxu0 %v2977
  %4026 = vmatprep.subr.bf16.mxu0 0
  %4027 = vmatpush1.bf16.msra.mxu0 %v2978
  %4028 = vmatprep.subr.bf16.mxu0 0
  %4029 = vmatpush1.bf16.msra.mxu0 %v2979
  %4030 = vmatprep.subr.bf16.mxu0 0
  %4031 = vmatpush1.bf16.msra.mxu0 %v2980
  %4032 = vmatprep.subr.bf16.mxu0 0
  %4033 = vmatpush1.bf16.msra.mxu0 %v2981
  %4034 = vmatprep.subr.bf16.mxu0 0
  %4035 = vmatpush1.bf16.msra.mxu0 %v2982
  %4036 = vmatprep.subr.bf16.mxu0 0
  %4037 = vmatpush1.bf16.msra.mxu0 %v2983
  %4038 = vmatprep.subr.bf16.mxu0 0
  %4039 = vmatpush1.bf16.msra.mxu0 %v2984
  %4040 = vmatprep.subr.bf16.mxu0 0
  %4041 = vmatpush1.bf16.msra.mxu0 %v2985
  %4042 = vmatprep.mubr.bf16.mxu0 %v986
  %4043 = vmatmul.mubr.bf16.gmra.mrb[0].mxu0 %v972
  %v4044 = vpop.f32.mrb[0].mxu0
  %v4045 = vadd.f32 %v4005, %v4044
  %v4046 = vpop.f32.mrb[0].mxu0
  %v4047 = vpop.f32.mrb[0].mxu0
  %v4048 = vpop.f32.mrb[0].mxu0
  %4049 = vdwg.mxu0
  %4050 = vmatprep.subr.bf16.mxu0 0
  %4051 = vmatpush1.bf16.msra.mxu0 %v2986
  %4052 = vmatprep.subr.bf16.mxu0 0
  %4053 = vmatpush1.bf16.msra.mxu0 %v2987
  %4054 = vmatprep.subr.bf16.mxu0 0
  %4055 = vmatpush1.bf16.msra.mxu0 %v2988
  %4056 = vmatprep.subr.bf16.mxu0 0
  %4057 = vmatpush1.bf16.msra.mxu0 %v2989
  %4058 = vmatprep.subr.bf16.mxu0 0
  %4059 = vmatpush1.bf16.msra.mxu0 %v2990
  %4060 = vmatprep.subr.bf16.mxu0 0
  %4061 = vmatpush1.bf16.msra.mxu0 %v2991
  %4062 = vmatprep.subr.bf16.mxu0 0
  %4063 = vmatpush1.bf16.msra.mxu0 %v2992
  %4064 = vmatprep.subr.bf16.mxu0 0
  %4065 = vmatpush1.bf16.msra.mxu0 %v2993
  %4066 = vmatprep.subr.bf16.mxu0 0
  %4067 = vmatpush1.bf16.msra.mxu0 %v2994
  %4068 = vmatprep.subr.bf16.mxu0 0
  %4069 = vmatpush1.bf16.msra.mxu0 %v2995
  %4070 = vmatprep.subr.bf16.mxu0 0
  %4071 = vmatpush1.bf16.msra.mxu0 %v2996
  %4072 = vmatprep.subr.bf16.mxu0 0
  %4073 = vmatpush1.bf16.msra.mxu0 %v2997
  %4074 = vmatprep.subr.bf16.mxu0 0
  %4075 = vmatpush1.bf16.msra.mxu0 %v2998
  %4076 = vmatprep.subr.bf16.mxu0 0
  %4077 = vmatpush1.bf16.msra.mxu0 %v2999
  %4078 = vmatprep.subr.bf16.mxu0 0
  %4079 = vmatpush1.bf16.msra.mxu0 %v3000
  %4080 = vmatprep.subr.bf16.mxu0 0
  %4081 = vmatpush1.bf16.msra.mxu0 %v3001
  %4082 = vmatprep.mubr.bf16.mxu0 %v990
  %4083 = vmatmul.mubr.bf16.gmra.mrb[0].mxu0 %v988
  %v4084 = vpop.f32.mrb[0].mxu0
  %v4085 = vadd.f32 %v4045, %v4084
  %v4086 = vpop.f32.mrb[0].mxu0
  %v4087 = vpop.f32.mrb[0].mxu0
  %v4088 = vpop.f32.mrb[0].mxu0
  %4089 = vdwg.mxu0
  %4090 = vmatprep.subr.bf16.mxu0 0
  %4091 = vmatpush1.bf16.msra.mxu0 %v3002
  %4092 = vmatprep.subr.bf16.mxu0 0
  %4093 = vmatpush1.bf16.msra.mxu0 %v3003
  %4094 = vmatprep.subr.bf16.mxu0 0
  %4095 = vmatpush1.bf16.msra.mxu0 %v3004
  %4096 = vmatprep.subr.bf16.mxu0 0
  %4097 = vmatpush1.bf16.msra.mxu0 %v3005
  %4098 = vmatprep.subr.bf16.mxu0 0
  %4099 = vmatpush1.bf16.msra.mxu0 %v3006
  %4100 = vmatprep.subr.bf16.mxu0 0
  %4101 = vmatpush1.bf16.msra.mxu0 %v3007
  %4102 = vmatprep.subr.bf16.mxu0 0
  %4103 = vmatpush1.bf16.msra.mxu0 %v3008
  %4104 = vmatprep.subr.bf16.mxu0 0
  %4105 = vmatpush1.bf16.msra.mxu0 %v3009
  %4106 = vmatprep.subr.bf16.mxu0 0
  %4107 = vmatpush1.bf16.msra.mxu0 %v3010
  %4108 = vmatprep.subr.bf16.mxu0 0
  %4109 = vmatpush1.bf16.msra.mxu0 %v3011
  %4110 = vmatprep.subr.bf16.mxu0 0
  %4111 = vmatpush1.bf16.msra.mxu0 %v3012
  %4112 = vmatprep.subr.bf16.mxu0 0
  %4113 = vmatpush1.bf16.msra.mxu0 %v3013
  %4114 = vmatprep.subr.bf16.mxu0 0
  %4115 = vmatpush1.bf16.msra.mxu0 %v3014
  %4116 = vmatprep.subr.bf16.mxu0 0
  %4117 = vmatpush1.bf16.msra.mxu0 %v3015
  %4118 = vmatprep.subr.bf16.mxu0 0
  %4119 = vmatpush1.bf16.msra.mxu0 %v3016
  %4120 = vmatprep.subr.bf16.mxu0 0
  %4121 = vmatpush1.bf16.msra.mxu0 %v3017
  %4122 = vmatprep.mubr.bf16.mxu0 %v1028
  %4123 = vmatmul.mubr.bf16.gmra.mrb[0].mxu0 %v1014
  %v4124 = vpop.f32.mrb[0].mxu0
  %v4125 = vadd.f32 %v4085, %v4124
  %v4126 = vpop.f32.mrb[0].mxu0
  %v4127 = vpop.f32.mrb[0].mxu0
  %v4128 = vpop.f32.mrb[0].mxu0
  %4129 = vdwg.mxu0
  %4130 = vmatprep.subr.bf16.mxu0 0
  %4131 = vmatpush1.bf16.msra.mxu0 %v3018
  %4132 = vmatprep.subr.bf16.mxu0 0
  %4133 = vmatpush1.bf16.msra.mxu0 %v3019
  %4134 = vmatprep.subr.bf16.mxu0 0
  %4135 = vmatpush1.bf16.msra.mxu0 %v3020
  %4136 = vmatprep.subr.bf16.mxu0 0
  %4137 = vmatpush1.bf16.msra.mxu0 %v3021
  %4138 = vmatprep.subr.bf16.mxu0 0
  %4139 = vmatpush1.bf16.msra.mxu0 %v3022
  %4140 = vmatprep.subr.bf16.mxu0 0
  %4141 = vmatpush1.bf16.msra.mxu0 %v3023
  %4142 = vmatprep.subr.bf16.mxu0 0
  %4143 = vmatpush1.bf16.msra.mxu0 %v3024
  %4144 = vmatprep.subr.bf16.mxu0 0
  %4145 = vmatpush1.bf16.msra.mxu0 %v3025
  %4146 = vmatprep.subr.bf16.mxu0 0
  %4147 = vmatpush1.bf16.msra.mxu0 %v3026
  %4148 = vmatprep.subr.bf16.mxu0 0
  %4149 = vmatpush1.bf16.msra.mxu0 %v3027
  %4150 = vmatprep.subr.bf16.mxu0 0
  %4151 = vmatpush1.bf16.msra.mxu0 %v3028
  %4152 = vmatprep.subr.bf16.mxu0 0
  %4153 = vmatpush1.bf16.msra.mxu0 %v3029
  %4154 = vmatprep.subr.bf16.mxu0 0
  %4155 = vmatpush1.bf16.msra.mxu0 %v3030
  %4156 = vmatprep.subr.bf16.mxu0 0
  %4157 = vmatpush1.bf16.msra.mxu0 %v3031
  %4158 = vmatprep.subr.bf16.mxu0 0
  %4159 = vmatpush1.bf16.msra.mxu0 %v3032
  %4160 = vmatprep.subr.bf16.mxu0 0
  %4161 = vmatpush1.bf16.msra.mxu0 %v3033
  %4162 = vmatprep.mubr.bf16.mxu0 %v1038
  %4163 = vmatmul.mubr.bf16.gmra.mrb[0].mxu0 %v1036
  %v4164 = vpop.f32.mrb[0].mxu0
  %v4165 = vadd.f32 %v4125, %v4164
  %v4166 = vpop.f32.mrb[0].mxu0
  %v4167 = vpop.f32.mrb[0].mxu0
  %v4168 = vpop.f32.mrb[0].mxu0
  %4169 = vdwg.mxu0
  %4170 = vmatprep.subr.bf16.mxu0 0
  %4171 = vmatpush1.bf16.msra.mxu0 %v3034
  %4172 = vmatprep.subr.bf16.mxu0 0
  %4173 = vmatpush1.bf16.msra.mxu0 %v3035
  %4174 = vmatprep.subr.bf16.mxu0 0
  %4175 = vmatpush1.bf16.msra.mxu0 %v3036
  %4176 = vmatprep.subr.bf16.mxu0 0
  %4177 = vmatpush1.bf16.msra.mxu0 %v3037
  %4178 = vmatprep.subr.bf16.mxu0 0
  %4179 = vmatpush1.bf16.msra.mxu0 %v3038
  %4180 = vmatprep.subr.bf16.mxu0 0
  %4181 = vmatpush1.bf16.msra.mxu0 %v3039
  %4182 = vmatprep.subr.bf16.mxu0 0
  %4183 = vmatpush1.bf16.msra.mxu0 %v3040
  %4184 = vmatprep.subr.bf16.mxu0 0
  %4185 = vmatpush1.bf16.msra.mxu0 %v3041
  %4186 = vmatprep.subr.bf16.mxu0 0
  %4187 = vmatpush1.bf16.msra.mxu0 %v3042
  %4188 = vmatprep.subr.bf16.mxu0 0
  %4189 = vmatpush1.bf16.msra.mxu0 %v3043
  %4190 = vmatprep.subr.bf16.mxu0 0
  %4191 = vmatpush1.bf16.msra.mxu0 %v3044
  %4192 = vmatprep.subr.bf16.mxu0 0
  %4193 = vmatpush1.bf16.msra.mxu0 %v3045
  %4194 = vmatprep.subr.bf16.mxu0 0
  %4195 = vmatpush1.bf16.msra.mxu0 %v3046
  %4196 = vmatprep.subr.bf16.mxu0 0
  %4197 = vmatpush1.bf16.msra.mxu0 %v3047
  %4198 = vmatprep.subr.bf16.mxu0 0
  %4199 = vmatpush1.bf16.msra.mxu0 %v3048
  %4200 = vmatprep.subr.bf16.mxu0 0
  %4201 = vmatpush1.bf16.msra.mxu0 %v3049
  %4202 = vmatprep.mubr.bf16.mxu0 %v1035
  %4203 = vmatmul.mubr.bf16.gmra.mrb[0].mxu0 %v1021
  %v4204 = vpop.f32.mrb[0].mxu0
  %v4205 = vadd.f32 %v4165, %v4204
  %v4206 = vpop.f32.mrb[0].mxu0
  %v4207 = vpop.f32.mrb[0].mxu0
  %v4208 = vpop.f32.mrb[0].mxu0
  %4209 = vdwg.mxu0
  %4210 = vmatprep.subr.bf16.mxu0 0
  %4211 = vmatpush1.bf16.msra.mxu0 %v3050
  %4212 = vmatprep.subr.bf16.mxu0 0
  %4213 = vmatpush1.bf16.msra.mxu0 %v3051
  %4214 = vmatprep.subr.bf16.mxu0 0
  %4215 = vmatpush1.bf16.msra.mxu0 %v3052
  %4216 = vmatprep.subr.bf16.mxu0 0
  %4217 = vmatpush1.bf16.msra.mxu0 %v3053
  %4218 = vmatprep.subr.bf16.mxu0 0
  %4219 = vmatpush1.bf16.msra.mxu0 %v3054
  %4220 = vmatprep.subr.bf16.mxu0 0
  %4221 = vmatpush1.bf16.msra.mxu0 %v3055
  %4222 = vmatprep.subr.bf16.mxu0 0
  %4223 = vmatpush1.bf16.msra.mxu0 %v3056
  %4224 = vmatprep.subr.bf16.mxu0 0
  %4225 = vmatpush1.bf16.msra.mxu0 %v3057
  %4226 = vmatprep.subr.bf16.mxu0 0
  %4227 = vmatpush1.bf16.msra.mxu0 %v3058
  %4228 = vmatprep.subr.bf16.mxu0 0
  %4229 = vmatpush1.bf16.msra.mxu0 %v3059
  %4230 = vmatprep.subr.bf16.mxu0 0
  %4231 = vmatpush1.bf16.msra.mxu0 %v3060
  %4232 = vmatprep.subr.bf16.mxu0 0
  %4233 = vmatpush1.bf16.msra.mxu0 %v3061
  %4234 = vmatprep.subr.bf16.mxu0 0
  %4235 = vmatpush1.bf16.msra.mxu0 %v3062
  %4236 = vmatprep.subr.bf16.mxu0 0
  %4237 = vmatpush1.bf16.msra.mxu0 %v3063
  %4238 = vmatprep.subr.bf16.mxu0 0
  %4239 = vmatpush1.bf16.msra.mxu0 %v3064
  %4240 = vmatprep.subr.bf16.mxu0 0
  %4241 = vmatpush1.bf16.msra.mxu0 %v3065
  %4242 = vmatprep.mubr.bf16.mxu0 %v1039
  %4243 = vmatmul.mubr.bf16.gmra.mrb[0].mxu0 %v1037
  %v4244 = vpop.f32.mrb[0].mxu0
  %v4245 = vadd.f32 %v4205, %v4244
  %v4246 = vpop.f32.mrb[0].mxu0
  %v4247 = vpop.f32.mrb[0].mxu0
  %v4248 = vpop.f32.mrb[0].mxu0
  %4249 = vdwg.mxu0
  %4250 = vmatprep.subr.bf16.mxu0 0
  %4251 = vmatpush1.bf16.msra.mxu0 %v3066
  %4252 = vmatprep.subr.bf16.mxu0 0
  %4253 = vmatpush1.bf16.msra.mxu0 %v3067
  %4254 = vmatprep.subr.bf16.mxu0 0
  %4255 = vmatpush1.bf16.msra.mxu0 %v3068
  %4256 = vmatprep.subr.bf16.mxu0 0
  %4257 = vmatpush1.bf16.msra.mxu0 %v3069
  %4258 = vmatprep.subr.bf16.mxu0 0
  %4259 = vmatpush1.bf16.msra.mxu0 %v3070
  %4260 = vmatprep.subr.bf16.mxu0 0
  %4261 = vmatpush1.bf16.msra.mxu0 %v3071
  %4262 = vmatprep.subr.bf16.mxu0 0
  %4263 = vmatpush1.bf16.msra.mxu0 %v3072
  %4264 = vmatprep.subr.bf16.mxu0 0
  %4265 = vmatpush1.bf16.msra.mxu0 %v3073
  %4266 = vmatprep.subr.bf16.mxu0 0
  %4267 = vmatpush1.bf16.msra.mxu0 %v3074
  %4268 = vmatprep.subr.bf16.mxu0 0
  %4269 = vmatpush1.bf16.msra.mxu0 %v3075
  %4270 = vmatprep.subr.bf16.mxu0 0
  %4271 = vmatpush1.bf16.msra.mxu0 %v3076
  %4272 = vmatprep.subr.bf16.mxu0 0
  %4273 = vmatpush1.bf16.msra.mxu0 %v3077
  %4274 = vmatprep.subr.bf16.mxu0 0
  %4275 = vmatpush1.bf16.msra.mxu0 %v3078
  %4276 = vmatprep.subr.bf16.mxu0 0
  %4277 = vmatpush1.bf16.msra.mxu0 %v3079
  %4278 = vmatprep.subr.bf16.mxu0 0
  %4279 = vmatpush1.bf16.msra.mxu0 %v3080
  %4280 = vmatprep.subr.bf16.mxu0 0
  %4281 = vmatpush1.bf16.msra.mxu0 %v3081
  %4282 = vmatprep.mubr.bf16.mxu0 %v1077
  %4283 = vmatmul.mubr.bf16.gmra.mrb[0].mxu0 %v1063
  %v4284 = vpop.f32.mrb[0].mxu0
  %v4285 = vadd.f32 %v4245, %v4284
  %v4286 = vpop.f32.mrb[0].mxu0
  %v4287 = vpop.f32.mrb[0].mxu0
  %v4288 = vpop.f32.mrb[0].mxu0
  %4289 = vdwg.mxu0
  %4290 = vmatprep.subr.bf16.mxu0 0
  %4291 = vmatpush1.bf16.msra.mxu0 %v3082
  %4292 = vmatprep.subr.bf16.mxu0 0
  %4293 = vmatpush1.bf16.msra.mxu0 %v3083
  %4294 = vmatprep.subr.bf16.mxu0 0
  %4295 = vmatpush1.bf16.msra.mxu0 %v3084
  %4296 = vmatprep.subr.bf16.mxu0 0
  %4297 = vmatpush1.bf16.msra.mxu0 %v3085
  %4298 = vmatprep.subr.bf16.mxu0 0
  %4299 = vmatpush1.bf16.msra.mxu0 %v3086
  %4300 = vmatprep.subr.bf16.mxu0 0
  %4301 = vmatpush1.bf16.msra.mxu0 %v3087
  %4302 = vmatprep.subr.bf16.mxu0 0
  %4303 = vmatpush1.bf16.msra.mxu0 %v3088
  %4304 = vmatprep.subr.bf16.mxu0 0
  %4305 = vmatpush1.bf16.msra.mxu0 %v3089
  %4306 = vmatprep.subr.bf16.mxu0 0
  %4307 = vmatpush1.bf16.msra.mxu0 %v3090
  %4308 = vmatprep.subr.bf16.mxu0 0
  %4309 = vmatpush1.bf16.msra.mxu0 %v3091
  %4310 = vmatprep.subr.bf16.mxu0 0
  %4311 = vmatpush1.bf16.msra.mxu0 %v3092
  %4312 = vmatprep.subr.bf16.mxu0 0
  %4313 = vmatpush1.bf16.msra.mxu0 %v3093
  %4314 = vmatprep.subr.bf16.mxu0 0
  %4315 = vmatpush1.bf16.msra.mxu0 %v3094
  %4316 = vmatprep.subr.bf16.mxu0 0
  %4317 = vmatpush1.bf16.msra.mxu0 %v3095
  %4318 = vmatprep.subr.bf16.mxu0 0
  %4319 = vmatpush1.bf16.msra.mxu0 %v3096
  %4320 = vmatprep.subr.bf16.mxu0 0
  %4321 = vmatpush1.bf16.msra.mxu0 %v3097
  %4322 = vmatprep.mubr.bf16.mxu0 %v1087
  %4323 = vmatmul.mubr.bf16.gmra.mrb[0].mxu0 %v1085
  %v4324 = vpop.f32.mrb[0].mxu0
  %v4325 = vadd.f32 %v4285, %v4324
  %v4326 = vpop.f32.mrb[0].mxu0
  %v4327 = vpop.f32.mrb[0].mxu0
  %v4328 = vpop.f32.mrb[0].mxu0
  %4329 = vdwg.mxu0
  %4330 = vmatprep.subr.bf16.mxu0 0
  %4331 = vmatpush1.bf16.msra.mxu0 %v3098
  %4332 = vmatprep.subr.bf16.mxu0 0
  %4333 = vmatpush1.bf16.msra.mxu0 %v3099
  %4334 = vmatprep.subr.bf16.mxu0 0
  %4335 = vmatpush1.bf16.msra.mxu0 %v3100
  %4336 = vmatprep.subr.bf16.mxu0 0
  %4337 = vmatpush1.bf16.msra.mxu0 %v3101
  %4338 = vmatprep.subr.bf16.mxu0 0
  %4339 = vmatpush1.bf16.msra.mxu0 %v3102
  %4340 = vmatprep.subr.bf16.mxu0 0
  %4341 = vmatpush1.bf16.msra.mxu0 %v3103
  %4342 = vmatprep.subr.bf16.mxu0 0
  %4343 = vmatpush1.bf16.msra.mxu0 %v3104
  %4344 = vmatprep.subr.bf16.mxu0 0
  %4345 = vmatpush1.bf16.msra.mxu0 %v3105
  %4346 = vmatprep.subr.bf16.mxu0 0
  %4347 = vmatpush1.bf16.msra.mxu0 %v3106
  %4348 = vmatprep.subr.bf16.mxu0 0
  %4349 = vmatpush1.bf16.msra.mxu0 %v3107
  %4350 = vmatprep.subr.bf16.mxu0 0
  %4351 = vmatpush1.bf16.msra.mxu0 %v3108
  %4352 = vmatprep.subr.bf16.mxu0 0
  %4353 = vmatpush1.bf16.msra.mxu0 %v3109
  %4354 = vmatprep.subr.bf16.mxu0 0
  %4355 = vmatpush1.bf16.msra.mxu0 %v3110
  %4356 = vmatprep.subr.bf16.mxu0 0
  %4357 = vmatpush1.bf16.msra.mxu0 %v3111
  %4358 = vmatprep.subr.bf16.mxu0 0
  %4359 = vmatpush1.bf16.msra.mxu0 %v3112
  %4360 = vmatprep.subr.bf16.mxu0 0
  %4361 = vmatpush1.bf16.msra.mxu0 %v3113
  %4362 = vmatprep.mubr.bf16.mxu0 %v1084
  %4363 = vmatmul.mubr.bf16.gmra.mrb[0].mxu0 %v1070
  %v4364 = vpop.f32.mrb[0].mxu0
  %v4365 = vadd.f32 %v4325, %v4364
  %v4366 = vpop.f32.mrb[0].mxu0
  %v4367 = vpop.f32.mrb[0].mxu0
  %v4368 = vpop.f32.mrb[0].mxu0
  %4369 = vdwg.mxu0
  %4370 = vmatprep.subr.bf16.mxu0 0
  %4371 = vmatpush1.bf16.msra.mxu0 %v3114
  %4372 = vmatprep.subr.bf16.mxu0 0
  %4373 = vmatpush1.bf16.msra.mxu0 %v3115
  %4374 = vmatprep.subr.bf16.mxu0 0
  %4375 = vmatpush1.bf16.msra.mxu0 %v3116
  %4376 = vmatprep.subr.bf16.mxu0 0
  %4377 = vmatpush1.bf16.msra.mxu0 %v3117
  %4378 = vmatprep.subr.bf16.mxu0 0
  %4379 = vmatpush1.bf16.msra.mxu0 %v3118
  %4380 = vmatprep.subr.bf16.mxu0 0
  %4381 = vmatpush1.bf16.msra.mxu0 %v3119
  %4382 = vmatprep.subr.bf16.mxu0 0
  %4383 = vmatpush1.bf16.msra.mxu0 %v3120
  %4384 = vmatprep.subr.bf16.mxu0 0
  %4385 = vmatpush1.bf16.msra.mxu0 %v3121
  %4386 = vmatprep.subr.bf16.mxu0 0
  %4387 = vmatpush1.bf16.msra.mxu0 %v3122
  %4388 = vmatprep.subr.bf16.mxu0 0
  %4389 = vmatpush1.bf16.msra.mxu0 %v3123
  %4390 = vmatprep.subr.bf16.mxu0 0
  %4391 = vmatpush1.bf16.msra.mxu0 %v3124
  %4392 = vmatprep.subr.bf16.mxu0 0
  %4393 = vmatpush1.bf16.msra.mxu0 %v3125
  %4394 = vmatprep.subr.bf16.mxu0 0
  %4395 = vmatpush1.bf16.msra.mxu0 %v3126
  %4396 = vmatprep.subr.bf16.mxu0 0
  %4397 = vmatpush1.bf16.msra.mxu0 %v3127
  %4398 = vmatprep.subr.bf16.mxu0 0
  %4399 = vmatpush1.bf16.msra.mxu0 %v3128
  %4400 = vmatprep.subr.bf16.mxu0 0
  %4401 = vmatpush1.bf16.msra.mxu0 %v3129
  %4402 = vmatprep.mubr.bf16.mxu0 %v1088
  %4403 = vmatmul.mubr.bf16.gmra.mrb[0].mxu0 %v1086
  %v4404 = vpop.f32.mrb[0].mxu0
  %v4405 = vadd.f32 %v4365, %v4404
  %v4406 = vpop.f32.mrb[0].mxu0
  %v4407 = vpop.f32.mrb[0].mxu0
  %v4408 = vpop.f32.mrb[0].mxu0
  %4409 = vdwg.mxu0
  %4410 = vmatprep.subr.bf16.mxu0 0
  %4411 = vmatpush1.bf16.msra.mxu0 %v3130
  %4412 = vmatprep.subr.bf16.mxu0 0
  %4413 = vmatpush1.bf16.msra.mxu0 %v3131
  %4414 = vmatprep.subr.bf16.mxu0 0
  %4415 = vmatpush1.bf16.msra.mxu0 %v3132
  %4416 = vmatprep.subr.bf16.mxu0 0
  %4417 = vmatpush1.bf16.msra.mxu0 %v3133
  %4418 = vmatprep.subr.bf16.mxu0 0
  %4419 = vmatpush1.bf16.msra.mxu0 %v3134
  %4420 = vmatprep.subr.bf16.mxu0 0
  %4421 = vmatpush1.bf16.msra.mxu0 %v3135
  %4422 = vmatprep.subr.bf16.mxu0 0
  %4423 = vmatpush1.bf16.msra.mxu0 %v3136
  %4424 = vmatprep.subr.bf16.mxu0 0
  %4425 = vmatpush1.bf16.msra.mxu0 %v3137
  %4426 = vmatprep.subr.bf16.mxu0 0
  %4427 = vmatpush1.bf16.msra.mxu0 %v3138
  %4428 = vmatprep.subr.bf16.mxu0 0
  %4429 = vmatpush1.bf16.msra.mxu0 %v3139
  %4430 = vmatprep.subr.bf16.mxu0 0
  %4431 = vmatpush1.bf16.msra.mxu0 %v3140
  %4432 = vmatprep.subr.bf16.mxu0 0
  %4433 = vmatpush1.bf16.msra.mxu0 %v3141
  %4434 = vmatprep.subr.bf16.mxu0 0
  %4435 = vmatpush1.bf16.msra.mxu0 %v3142
  %4436 = vmatprep.subr.bf16.mxu0 0
  %4437 = vmatpush1.bf16.msra.mxu0 %v3143
  %4438 = vmatprep.subr.bf16.mxu0 0
  %4439 = vmatpush1.bf16.msra.mxu0 %v3144
  %4440 = vmatprep.subr.bf16.mxu0 0
  %4441 = vmatpush1.bf16.msra.mxu0 %v3145
  %4442 = vmatprep.mubr.bf16.mxu0 %v1126
  %4443 = vmatmul.mubr.bf16.gmra.mrb[0].mxu0 %v1112
  %v4444 = vpop.f32.mrb[0].mxu0
  %v4445 = vadd.f32 %v4405, %v4444
  %v4446 = vpop.f32.mrb[0].mxu0
  %v4447 = vpop.f32.mrb[0].mxu0
  %v4448 = vpop.f32.mrb[0].mxu0
  %4449 = vdwg.mxu0
  %4450 = vmatprep.subr.bf16.mxu0 0
  %4451 = vmatpush1.bf16.msra.mxu0 %v3146
  %4452 = vmatprep.subr.bf16.mxu0 0
  %4453 = vmatpush1.bf16.msra.mxu0 %v3147
  %4454 = vmatprep.subr.bf16.mxu0 0
  %4455 = vmatpush1.bf16.msra.mxu0 %v3148
  %4456 = vmatprep.subr.bf16.mxu0 0
  %4457 = vmatpush1.bf16.msra.mxu0 %v3149
  %4458 = vmatprep.subr.bf16.mxu0 0
  %4459 = vmatpush1.bf16.msra.mxu0 %v3150
  %4460 = vmatprep.subr.bf16.mxu0 0
  %4461 = vmatpush1.bf16.msra.mxu0 %v3151
  %4462 = vmatprep.subr.bf16.mxu0 0
  %4463 = vmatpush1.bf16.msra.mxu0 %v3152
  %4464 = vmatprep.subr.bf16.mxu0 0
  %4465 = vmatpush1.bf16.msra.mxu0 %v3153
  %4466 = vmatprep.subr.bf16.mxu0 0
  %4467 = vmatpush1.bf16.msra.mxu0 %v3154
  %4468 = vmatprep.subr.bf16.mxu0 0
  %4469 = vmatpush1.bf16.msra.mxu0 %v3155
  %4470 = vmatprep.subr.bf16.mxu0 0
  %4471 = vmatpush1.bf16.msra.mxu0 %v3156
  %4472 = vmatprep.subr.bf16.mxu0 0
  %4473 = vmatpush1.bf16.msra.mxu0 %v3157
  %4474 = vmatprep.subr.bf16.mxu0 0
  %4475 = vmatpush1.bf16.msra.mxu0 %v3158
  %4476 = vmatprep.subr.bf16.mxu0 0
  %4477 = vmatpush1.bf16.msra.mxu0 %v3159
  %4478 = vmatprep.subr.bf16.mxu0 0
  %4479 = vmatpush1.bf16.msra.mxu0 %v3160
  %4480 = vmatprep.subr.bf16.mxu0 0
  %4481 = vmatpush1.bf16.msra.mxu0 %v3161
  %4482 = vmatprep.mubr.bf16.mxu0 %v1136
  %4483 = vmatmul.mubr.bf16.gmra.mrb[0].mxu0 %v1134
  %v4484 = vpop.f32.mrb[0].mxu0
  %v4485 = vadd.f32 %v4445, %v4484
  %v4486 = vpop.f32.mrb[0].mxu0
  %v4487 = vpop.f32.mrb[0].mxu0
  %v4488 = vpop.f32.mrb[0].mxu0
  %4489 = vdwg.mxu0
  %4490 = vmatprep.subr.bf16.mxu0 0
  %4491 = vmatpush1.bf16.msra.mxu0 %v3162
  %4492 = vmatprep.subr.bf16.mxu0 0
  %4493 = vmatpush1.bf16.msra.mxu0 %v3163
  %4494 = vmatprep.subr.bf16.mxu0 0
  %4495 = vmatpush1.bf16.msra.mxu0 %v3164
  %4496 = vmatprep.subr.bf16.mxu0 0
  %4497 = vmatpush1.bf16.msra.mxu0 %v3165
  %4498 = vmatprep.subr.bf16.mxu0 0
  %4499 = vmatpush1.bf16.msra.mxu0 %v3166
  %4500 = vmatprep.subr.bf16.mxu0 0
  %4501 = vmatpush1.bf16.msra.mxu0 %v3167
  %4502 = vmatprep.subr.bf16.mxu0 0
  %4503 = vmatpush1.bf16.msra.mxu0 %v3168
  %4504 = vmatprep.subr.bf16.mxu0 0
  %4505 = vmatpush1.bf16.msra.mxu0 %v3169
  %4506 = vmatprep.subr.bf16.mxu0 0
  %4507 = vmatpush1.bf16.msra.mxu0 %v3170
  %4508 = vmatprep.subr.bf16.mxu0 0
  %4509 = vmatpush1.bf16.msra.mxu0 %v3171
  %4510 = vmatprep.subr.bf16.mxu0 0
  %4511 = vmatpush1.bf16.msra.mxu0 %v3172
  %4512 = vmatprep.subr.bf16.mxu0 0
  %4513 = vmatpush1.bf16.msra.mxu0 %v3173
  %4514 = vmatprep.subr.bf16.mxu0 0
  %4515 = vmatpush1.bf16.msra.mxu0 %v3174
  %4516 = vmatprep.subr.bf16.mxu0 0
  %4517 = vmatpush1.bf16.msra.mxu0 %v3175
  %4518 = vmatprep.subr.bf16.mxu0 0
  %4519 = vmatpush1.bf16.msra.mxu0 %v3176
  %4520 = vmatprep.subr.bf16.mxu0 0
  %4521 = vmatpush1.bf16.msra.mxu0 %v3177
  %4522 = vmatprep.mubr.bf16.mxu0 %v1133
  %4523 = vmatmul.mubr.bf16.gmra.mrb[0].mxu0 %v1119
  %v4524 = vpop.f32.mrb[0].mxu0
  %v4525 = vadd.f32 %v4485, %v4524
  %v4526 = vpop.f32.mrb[0].mxu0
  %v4527 = vpop.f32.mrb[0].mxu0
  %v4528 = vpop.f32.mrb[0].mxu0
  %4529 = vdwg.mxu0
  %4530 = vmatprep.subr.bf16.mxu0 0
  %4531 = vmatpush1.bf16.msra.mxu0 %v3178
  %4532 = vmatprep.subr.bf16.mxu0 0
  %4533 = vmatpush1.bf16.msra.mxu0 %v3179
  %4534 = vmatprep.subr.bf16.mxu0 0
  %4535 = vmatpush1.bf16.msra.mxu0 %v3180
  %4536 = vmatprep.subr.bf16.mxu0 0
  %4537 = vmatpush1.bf16.msra.mxu0 %v3181
  %4538 = vmatprep.subr.bf16.mxu0 0
  %4539 = vmatpush1.bf16.msra.mxu0 %v3182
  %4540 = vmatprep.subr.bf16.mxu0 0
  %4541 = vmatpush1.bf16.msra.mxu0 %v3183
  %4542 = vmatprep.subr.bf16.mxu0 0
  %4543 = vmatpush1.bf16.msra.mxu0 %v3184
  %4544 = vmatprep.subr.bf16.mxu0 0
  %4545 = vmatpush1.bf16.msra.mxu0 %v3185
  %4546 = vmatprep.subr.bf16.mxu0 0
  %4547 = vmatpush1.bf16.msra.mxu0 %v3186
  %4548 = vmatprep.subr.bf16.mxu0 0
  %4549 = vmatpush1.bf16.msra.mxu0 %v3187
  %4550 = vmatprep.subr.bf16.mxu0 0
  %4551 = vmatpush1.bf16.msra.mxu0 %v3188
  %4552 = vmatprep.subr.bf16.mxu0 0
  %4553 = vmatpush1.bf16.msra.mxu0 %v3189
  %4554 = vmatprep.subr.bf16.mxu0 0
  %4555 = vmatpush1.bf16.msra.mxu0 %v3190
  %4556 = vmatprep.subr.bf16.mxu0 0
  %4557 = vmatpush1.bf16.msra.mxu0 %v3191
  %4558 = vmatprep.subr.bf16.mxu0 0
  %4559 = vmatpush1.bf16.msra.mxu0 %v3192
  %4560 = vmatprep.subr.bf16.mxu0 0
  %4561 = vmatpush1.bf16.msra.mxu0 %v3193
  %4562 = vmatprep.mubr.bf16.mxu0 %v1137
  %4563 = vmatmul.mubr.bf16.gmra.mrb[0].mxu0 %v1135
  %v4564 = vpop.f32.mrb[0].mxu0
  %v4565 = vadd.f32 %v4525, %v4564
  %v4566 = vpop.f32.mrb[0].mxu0
  %v4567 = vpop.f32.mrb[0].mxu0
  %v4568 = vpop.f32.mrb[0].mxu0
  %4569 = vdwg.mxu0
  %4570 = vmatprep.subr.bf16.mxu0 0
  %4571 = vmatpush1.bf16.msra.mxu0 %v3194
  %4572 = vmatprep.subr.bf16.mxu0 0
  %4573 = vmatpush1.bf16.msra.mxu0 %v3195
  %4574 = vmatprep.subr.bf16.mxu0 0
  %4575 = vmatpush1.bf16.msra.mxu0 %v3196
  %4576 = vmatprep.subr.bf16.mxu0 0
  %4577 = vmatpush1.bf16.msra.mxu0 %v3197
  %4578 = vmatprep.subr.bf16.mxu0 0
  %4579 = vmatpush1.bf16.msra.mxu0 %v3198
  %4580 = vmatprep.subr.bf16.mxu0 0
  %4581 = vmatpush1.bf16.msra.mxu0 %v3199
  %4582 = vmatprep.subr.bf16.mxu0 0
  %4583 = vmatpush1.bf16.msra.mxu0 %v3200
  %4584 = vmatprep.subr.bf16.mxu0 0
  %4585 = vmatpush1.bf16.msra.mxu0 %v3201
  %4586 = vmatprep.subr.bf16.mxu0 0
  %4587 = vmatpush1.bf16.msra.mxu0 %v3202
  %4588 = vmatprep.subr.bf16.mxu0 0
  %4589 = vmatpush1.bf16.msra.mxu0 %v3203
  %4590 = vmatprep.subr.bf16.mxu0 0
  %4591 = vmatpush1.bf16.msra.mxu0 %v3204
  %4592 = vmatprep.subr.bf16.mxu0 0
  %4593 = vmatpush1.bf16.msra.mxu0 %v3205
  %4594 = vmatprep.subr.bf16.mxu0 0
  %4595 = vmatpush1.bf16.msra.mxu0 %v3206
  %4596 = vmatprep.subr.bf16.mxu0 0
  %4597 = vmatpush1.bf16.msra.mxu0 %v3207
  %4598 = vmatprep.subr.bf16.mxu0 0
  %4599 = vmatpush1.bf16.msra.mxu0 %v3208
  %4600 = vmatprep.subr.bf16.mxu0 0
  %4601 = vmatpush1.bf16.msra.mxu0 %v3209
  %4602 = vmatprep.mubr.bf16.mxu0 %v1159
  %4603 = vmatmul.mubr.bf16.gmra.mrb[0].mxu0 %v1152
  %v4604 = vpop.f32.mrb[0].mxu0
  %v4605 = vadd.f32 %v4565, %v4604
  %v4606 = vpop.f32.mrb[0].mxu0
  %v4607 = vpop.f32.mrb[0].mxu0
  %v4608 = vpop.f32.mrb[0].mxu0
  %4609 = vdwg.mxu0
  %v4610 = vld [vmem:[%s3] sm:$0xff]
  %v4611 = vld [vmem:[%s3 + $0x8] sm:$0xff]
  %v4612 = vld [vmem:[%s3 + $0x10] sm:$0xff]
  %v4613 = vld [vmem:[%s3 + $0x18] sm:$0xff]
  %v4614 = vld [vmem:[%s3 + $0x20] sm:$0xff]
  %v4615 = vld [vmem:[%s3 + $0x28] sm:$0xff]
  %v4616 = vld [vmem:[%s3 + $0x30] sm:$0xff]
  %v4617 = vld [vmem:[%s3 + $0x38] sm:$0xff]
  %v4618 = vld [vmem:[%s3 + $0x40] sm:$0xff]
  %v4619 = vld [vmem:[%s3 + $0x48] sm:$0xff]
  %v4620 = vld [vmem:[%s3 + $0x50] sm:$0xff]
  %v4621 = vld [vmem:[%s3 + $0x58] sm:$0xff]
  %v4622 = vld [vmem:[%s3 + $0x60] sm:$0xff]
  %v4623 = vld [vmem:[%s3 + $0x68] sm:$0xff]
  %v4624 = vld [vmem:[%s3 + $0x70] sm:$0xff]
  %v4625 = vld [vmem:[%s3 + $0x78] sm:$0xff]
  %v4626 = vld [vmem:[#allocation2] sm:$0x1]
  %v4628 = vlaneseq
  %v4629 = vshrl.u32 %v4628, 7
  %v4630 = vsub.s32 0, %v4629
  %v4631 = vrot.slane %v4626, %v4630
  %4633 = vmatprep.subr.mxu0 0.0
  %4634 = vmatpush1.msra.mxu0 %v4610
  %4635 = vmatprep.subr.mxu0 0.0
  %4636 = vmatpush1.msra.mxu0 %v4611
  %4637 = vmatprep.subr.mxu0 0.0
  %4638 = vmatpush1.msra.mxu0 %v4612
  %4639 = vmatprep.subr.mxu0 0.0
  %4640 = vmatpush1.msra.mxu0 %v4613
  %4641 = vmatprep.subr.mxu0 0.0
  %4642 = vmatpush1.msra.mxu0 %v4614
  %4643 = vmatprep.subr.mxu0 0.0
  %4644 = vmatpush1.msra.mxu0 %v4615
  %4645 = vmatprep.subr.mxu0 0.0
  %4646 = vmatpush1.msra.mxu0 %v4616
  %4647 = vmatprep.subr.mxu0 0.0
  %4648 = vmatpush1.msra.mxu0 %v4617
  %4649 = vmatprep.subr.mxu0 0.0
  %4650 = vmatpush1.msra.mxu0 %v4618
  %4651 = vmatprep.subr.mxu0 0.0
  %4652 = vmatpush1.msra.mxu0 %v4619
  %4653 = vmatprep.subr.mxu0 0.0
  %4654 = vmatpush1.msra.mxu0 %v4620
  %4655 = vmatprep.subr.mxu0 0.0
  %4656 = vmatpush1.msra.mxu0 %v4621
  %4657 = vmatprep.subr.mxu0 0.0
  %4658 = vmatpush1.msra.mxu0 %v4622
  %4659 = vmatprep.subr.mxu0 0.0
  %4660 = vmatpush1.msra.mxu0 %v4623
  %4661 = vmatprep.subr.mxu0 0.0
  %4662 = vmatpush1.msra.mxu0 %v4624
  %4663 = vmatprep.subr.mxu0 0.0
  %4664 = vmatpush1.msra.mxu0 %v4625
  %4665 = vmatprep.subr.mxu0 0.0
  %4666 = vmatpush1.msra.mxu0 0.0
  %4667 = vmatprep.subr.mxu0 0.0
  %4668 = vmatpush1.msra.mxu0 0.0
  %4669 = vmatprep.subr.mxu0 0.0
  %4670 = vmatpush1.msra.mxu0 0.0
  %4671 = vmatprep.subr.mxu0 0.0
  %4672 = vmatpush1.msra.mxu0 0.0
  %4673 = vmatprep.subr.mxu0 0.0
  %4674 = vmatpush1.msra.mxu0 0.0
  %4675 = vmatprep.subr.mxu0 0.0
  %4676 = vmatpush1.msra.mxu0 0.0
  %4677 = vmatprep.subr.mxu0 0.0
  %4678 = vmatpush1.msra.mxu0 0.0
  %4679 = vmatprep.subr.mxu0 0.0
  %4680 = vmatpush1.msra.mxu0 0.0
  %4681 = vmatprep.subr.mxu0 0.0
  %4682 = vmatpush1.msra.mxu0 0.0
  %4683 = vmatprep.subr.mxu0 0.0
  %4684 = vmatpush1.msra.mxu0 0.0
  %4685 = vmatprep.subr.mxu0 0.0
  %4686 = vmatpush1.msra.mxu0 0.0
  %4687 = vmatprep.subr.mxu0 0.0
  %4688 = vmatpush1.msra.mxu0 0.0
  %4689 = vmatprep.subr.mxu0 0.0
  %4690 = vmatpush1.msra.mxu0 0.0
  %4691 = vmatprep.subr.mxu0 0.0
  %4692 = vmatpush1.msra.mxu0 0.0
  %4693 = vmatprep.subr.mxu0 0.0
  %4694 = vmatpush1.msra.mxu0 0.0
  %4695 = vmatprep.subr.mxu0 0.0
  %4696 = vmatpush1.msra.mxu0 0.0
  %4697 = vmatprep.mubr.f32.mxu0 0.0
  %4698 = vmatmul.mubr.f32.gmra.mrb[0].mxu0 %v4605
  %v4699 = vpop.f32.mrb[0].mxu0
  %v4700 = vadd.f32 %v4631, %v4699
  %v4701 = vpop.f32.mrb[0].mxu0
  %4702 = vdwg.mxu0
  %vm4703 = vcmask 1024
  %4704 = vst.msk [vmem:[%s5] sm:$0x3] %vm4703, %v4700
  // Predicated region
  $region22: #{cnn_forward.5} parent=0 // pred_check
    _
  $region23: #{cnn_forward.5} parent=0 // pred_check_branch
    %4706 = sbr.rel (0) target = $region25
  $region24: #{cnn_forward.5} parent=0 // pred_region
    _
  $region25: #{cnn_forward.5} parent=0 // pred_fallthru
    _
  // Predicated region
  $region26: #{cnn_forward.5} parent=0 // pred_check
    _
  $region27: #{cnn_forward.5} parent=0 // pred_check_branch
    %4708 = sbr.rel (0) target = $region29
  $region28: #{cnn_forward.5} parent=0 // pred_region
    _
  $region29: #{cnn_forward.5} parent=0 // pred_fallthru
    _

</llo_original>
